<compile_context>
chip_gen: v5e
topology: v5e:2x2
jax: 0.10.0
libtpu: 0.0.40
codegen_flags: <defaults>
</compile_context>

<pallas_src>
import functools

import jax
import jax.numpy as jnp
from jax.experimental import pallas as pl
from jax.experimental.pallas import tpu as pltpu

INPUT_SIZE = 6                      # forced by BiLSTM input 198 = 6 + 3*64
CH_PAD = 8                          # raw channels padded to 8 lanes
HIDDEN = 256                        # module hard-codes hidden_size = 256
CONV_CH = 64
CONV_OUT = 3 * CONV_CH              # 192
FC1 = 512

# Bias-slab lane offsets (all starts 128-aligned).
_OFF_CONV_B = 0                     # 192   conv1|conv3|conv5 bias
_OFF_B_F = 256                      # 1024  forward gate bias (b_ih + b_hh)
_OFF_B_B = 1280                     # 1024  backward gate bias
_OFF_FC1_B = 2304                   # 512
_OFF_FC2_W = 2816                   # 512
_OFF_FC2_B = 3328                   # 1
_BIAS_W = 3456

VMEM_SPEC = pl.BlockSpec(memory_space=pltpu.MemorySpace.VMEM)


def _sigmoid(x):
    # Exact: sigmoid(x) == 0.5*tanh(0.5*x) + 0.5 ; single EUP op per element.
    return 0.5 * jnp.tanh(0.5 * x) + 0.5


# ----------------------------------------------------------------------------
# The single fused Pallas kernel
# ----------------------------------------------------------------------------

def _mclita_kernel(xraw_ref, conv_w_ref, wih_x_ref, wih_c_ref, whh_ref,
                   bias_ref, fc1_w_hbm, out_ref,
                   xg_ref, fc1_w_vmem, fc1_sem, *, seq_len, mpad, batch):
    # xraw : ((S+4)*mpad, 8)  time-major, time-padded (+-2), batch/ch padded
    H = HIDDEN
    bf16 = jnp.bfloat16
    S = seq_len
    rows = S * mpad

    # -- (0) start the head-weight DMA; it overlaps the conv, the input
    #    projection and the whole recurrence; waited on just before fc1. ------
    fc1_cp = pltpu.make_async_copy(fc1_w_hbm, fc1_w_vmem, fc1_sem)
    fc1_cp.start()

    # -- (1) fused conv1/conv3/conv5 as 5 shifted matmuls: in time-major
    #    layout a time shift of +-1/+-2 is a row shift of +-mpad/+-2*mpad,
    #    i.e. a whole 8-sublane block -> aligned static views. ----------------
    conv = jnp.zeros((rows, CONV_OUT), jnp.float32)
    for j in range(5):                                   # tap j reads x[t+j-2]
        lhs = xraw_ref[j * mpad:j * mpad + rows, :].astype(bf16)
        conv += jnp.dot(lhs, conv_w_ref[j * CH_PAD:(j + 1) * CH_PAD, :],
                        preferred_element_type=jnp.float32)
    conv = jnp.maximum(conv + bias_ref[:, _OFF_CONV_B:_OFF_CONV_B + CONV_OUT],
                       0.0)                              # (S*mpad, 192) f32
    conv_bf = conv.astype(bf16)
    xraw_cur = xraw_ref[2 * mpad:2 * mpad + rows, :].astype(bf16)

    # -- (2) forward-direction input projection for ALL timesteps ------------
    xg_ref[...] = (
        jnp.dot(xraw_cur, wih_x_ref[:, 0:4 * H],
                preferred_element_type=jnp.float32)
        + jnp.dot(conv_bf, wih_c_ref[:, 0:4 * H],
                  preferred_element_type=jnp.float32)
        + bias_ref[:, _OFF_B_F:_OFF_B_F + 4 * H])        # (S*mpad, 4H) f32

    # -- (3) backward direction: lstm_out[:, -1, :] only consumes its FIRST
    #    processed step (t = S-1, zero state), so W_hh_reverse drops out.
    #    Computed here so `conv` is NOT live across the unrolled recurrence. --
    last = (S - 1) * mpad
    gb = (jnp.dot(xraw_cur[last:last + mpad, :], wih_x_ref[:, 4 * H:8 * H],
                  preferred_element_type=jnp.float32)
          + jnp.dot(conv_bf[last:last + mpad, :], wih_c_ref[:, 4 * H:8 * H],
                    preferred_element_type=jnp.float32)
          + bias_ref[:, _OFF_B_B:_OFF_B_B + 4 * H])      # (mpad, 4H)
    h_bwd = (_sigmoid(gb[:, 3 * H:4 * H])                # o * tanh(i*g); f*c0=0
             * jnp.tanh(_sigmoid(gb[:, 0:H]) * jnp.tanh(gb[:, 2 * H:3 * H])))

    # -- (4) forward LSTM recurrence, fully unrolled, h/c vreg-resident -------
    # TODO(synk): make W_hh MXU-weight-stationary (pltpu.matmul_push_rhs once +
    # matmul_acc_lhs per step) once multi-tile RHS / accumulator-reset
    # semantics are verified on all targets; with jnp.dot the (256,1024) bf16
    # weights may be re-pushed every step.
    h = jnp.zeros((mpad, H), jnp.float32)
    c = jnp.zeros((mpad, H), jnp.float32)
    for t in range(S):                                   # static, tiny S
        gates = xg_ref[t * mpad:(t + 1) * mpad, :] + jnp.dot(
            h.astype(bf16), whh_ref[...], preferred_element_type=jnp.float32)
        i = _sigmoid(gates[:, 0:H])
        f = _sigmoid(gates[:, H:2 * H])
        g = jnp.tanh(gates[:, 2 * H:3 * H])
        o = _sigmoid(gates[:, 3 * H:4 * H])
        c = f * c + i * g
        h = o * jnp.tanh(c)

    # -- (5) head: d = |h1 - h2| -> fc1 -> relu -> fc2 -> sigmoid -------------
    fc1_cp.wait()
    hcat = jnp.concatenate([h, h_bwd], axis=-1)          # (mpad, 2H), in vregs
    d = jnp.abs(hcat[0:batch, :] - hcat[batch:2 * batch, :])   # (B, 2H)
    z = jnp.maximum(
        jnp.dot(d.astype(bf16), fc1_w_vmem[...],
                preferred_element_type=jnp.float32)
        + bias_ref[:, _OFF_FC1_B:_OFF_FC1_B + FC1], 0.0)        # (B, 512)
    o2 = (jnp.sum(z * bias_ref[:, _OFF_FC2_W:_OFF_FC2_W + FC1],
                  axis=-1, keepdims=True)
          + bias_ref[:, _OFF_FC2_B:_OFF_FC2_B + 1])
    out_ref[...] = _sigmoid(o2)                          # (B, 1)


# ----------------------------------------------------------------------------
# JAX-side layout glue (concat + pad + time-major reshape; im2col is in-kernel)
# ----------------------------------------------------------------------------

def _prep_inputs(x1, x2):
    B, S, C = x1.shape
    x = jnp.concatenate([x1, x2], axis=0)                # (2B,S,C); rows 0..B-1 = x1
    m = 2 * B
    mpad = ((m + 7) // 8) * 8
    # zero-pad: batch -> mpad sublanes, time +-2 (conv 'same'), channels -> 8
    x = jnp.pad(x, ((0, mpad - m), (2, 2), (0, CH_PAD - C)))
    x = jnp.transpose(x, (1, 0, 2)).reshape((S + 4) * mpad, CH_PAD)
    return x.astype(jnp.float32), mpad


# ----------------------------------------------------------------------------
# Geo preprocessing (faithful to the reference, incl. its lat/lon name swap)
# ----------------------------------------------------------------------------

_R = 6378137.0


def _mercator(lat_deg, lon_deg):
    # mercator_project returns (x, y) = (R*lon_rad, R*log(tan(pi/4 + lat_rad/2)))
    return (_R * jnp.deg2rad(lon_deg),
            _R * jnp.log(jnp.tan(jnp.pi / 4 + jnp.deg2rad(lat_deg) / 2)))


def normalize_coordinates(x1, x2):
    # Reference binds mercator's (x, y) to (lat_*, lon_*), so channel 0 gets the
    # lon-projection and channel 1 the lat-projection -- reproduced exactly.
    a1, b1 = _mercator(x1[:, :, 0], x1[:, :, 1])
    a2, b2 = _mercator(x2[:, :, 0], x2[:, :, 1])
    max_lat = jnp.maximum(a1.max(axis=1, keepdims=True), a2.max(axis=1, keepdims=True))
    min_lat = jnp.minimum(a1.min(axis=1, keepdims=True), a2.min(axis=1, keepdims=True))
    max_lon = jnp.maximum(b1.max(axis=1, keepdims=True), b2.max(axis=1, keepdims=True))
    min_lon = jnp.minimum(b1.min(axis=1, keepdims=True), b2.min(axis=1, keepdims=True))
    eps = 1e-8
    dlat = max_lat - min_lat + eps
    dlon = max_lon - min_lon + eps
    x1 = x1.at[:, :, 0].set((a1 - min_lat) / dlat)
    x2 = x2.at[:, :, 0].set((a2 - min_lat) / dlat)
    x1 = x1.at[:, :, 1].set((b1 - min_lon) / dlon)
    x2 = x2.at[:, :, 1].set((b2 - min_lon) / dlon)
    return x1, x2


# ----------------------------------------------------------------------------
# Full forward pass
# ----------------------------------------------------------------------------

def mclita_forward(params, x1, x2, dtime):
    del dtime  # accepted for API parity with the PyTorch module; unused there too
    x1, x2 = normalize_coordinates(x1, x2)
    B, S, C = x1.shape
    assert x2.shape == (B, S, C) and C == INPUT_SIZE

    xraw, mpad = _prep_inputs(x1, x2)
    kernel = functools.partial(_mclita_kernel, seq_len=S, mpad=mpad, batch=B)

    # TODO(synk): for large B add a leading grid axis over folded-batch tiles
    # with dimension_semantics=("parallel",) so both v7x TensorCores are used.
    return pl.pallas_call(
        kernel,
        out_shape=jax.ShapeDtypeStruct((B, 1), jnp.float32),
        in_specs=[VMEM_SPEC] * 6 + [pl.BlockSpec(memory_space=pl.ANY)],
        out_specs=VMEM_SPEC,
        scratch_shapes=[
            pltpu.VMEM((S * mpad, 4 * HIDDEN), jnp.float32),   # xg (fwd gates)
            pltpu.VMEM((2 * HIDDEN, FC1), jnp.bfloat16),       # fc1_w landing buffer
            pltpu.SemaphoreType.DMA(()),                       # fc1_w copy sem
        ],
    )(xraw, params["conv_w"], params["wih_x"], params["wih_c"],
      params["whh"], params["bias"], params["fc1_w"])


# ----------------------------------------------------------------------------
# Deterministic parameter init (synthetic weights, PyTorch-like shapes, packed)
# ----------------------------------------------------------------------------

def init_params(key):
    ks = jax.random.split(key, 13)

    def u(k, shape, bound):
        return jax.random.uniform(k, shape, jnp.float32, -bound, bound)

    # Conv1d weights in PyTorch layout (out, in, k), packed into ONE
    # (5 taps x 8 padded input channels, 192) slab acting on x[t + j - 2];
    # output channel order [conv1 | conv3 | conv5].
    w1 = u(ks[0], (CONV_CH, INPUT_SIZE, 1), (INPUT_SIZE * 1) ** -0.5)
    b1 = u(ks[1], (CONV_CH,), (INPUT_SIZE * 1) ** -0.5)
    w3 = u(ks[2], (CONV_CH, INPUT_SIZE, 3), (INPUT_SIZE * 3) ** -0.5)
    b3 = u(ks[3], (CONV_CH,), (INPUT_SIZE * 3) ** -0.5)
    w5 = u(ks[4], (CONV_CH, INPUT_SIZE, 5), (INPUT_SIZE * 5) ** -0.5)
    b5 = u(ks[5], (CONV_CH,), (INPUT_SIZE * 5) ** -0.5)
    Wb = jnp.zeros((5, CH_PAD, CONV_OUT), jnp.float32)
    Wb = Wb.at[2, :INPUT_SIZE, 0:64].set(w1[:, :, 0].T)              # k=1: center tap
    for j in range(3):
        Wb = Wb.at[j + 1, :INPUT_SIZE, 64:128].set(w3[:, :, j].T)    # k=3, padding 1
    for j in range(5):
        Wb = Wb.at[j, :INPUT_SIZE, 128:192].set(w5[:, :, j].T)       # k=5, padding 2
    conv_w = Wb.reshape(5 * CH_PAD, CONV_OUT).astype(jnp.bfloat16)
    conv_b = jnp.concatenate([b1, b3, b5])                           # (192,)

    # BiLSTM (gate order i,f,g,o).  W_ih^T for BOTH directions packed
    # column-wise (cols [0:1024] forward, [1024:2048] backward); rows split
    # into raw-x rows (padded 6->8) and conv rows (192).  W_hh_reverse is
    # omitted: only the backward pass' first step (zero state) is consumed.
    bound = HIDDEN ** -0.5
    wih_f = u(ks[6], (INPUT_SIZE + CONV_OUT, 4 * HIDDEN), bound)
    whh = u(ks[7], (HIDDEN, 4 * HIDDEN), bound).astype(jnp.bfloat16)
    b_f = u(ks[8], (4 * HIDDEN,), bound) * 2.0      # models b_ih + b_hh (synthetic)
    wih_b = u(ks[9], (INPUT_SIZE + CONV_OUT, 4 * HIDDEN), bound)
    b_b = u(ks[10], (4 * HIDDEN,), bound) * 2.0
    wih = jnp.concatenate([wih_f, wih_b], axis=1)                    # (198, 2048)
    wih_x = jnp.zeros((CH_PAD, 8 * HIDDEN), jnp.float32).at[
        :INPUT_SIZE].set(wih[:INPUT_SIZE]).astype(jnp.bfloat16)      # (8, 2048)
    wih_c = wih[INPUT_SIZE:].astype(jnp.bfloat16)                    # (192, 2048)

    # Head.
    fc1_w = u(ks[11], (2 * HIDDEN, FC1), (2 * HIDDEN) ** -0.5).astype(jnp.bfloat16)
    kf = jax.random.split(ks[12], 3)
    fc1_b = u(kf[0], (FC1,), (2 * HIDDEN) ** -0.5)
    fc2_w = u(kf[1], (FC1,), FC1 ** -0.5)
    fc2_b = u(kf[2], (1,), FC1 ** -0.5)

    # All 1-D parameters packed into ONE lane-dense slab (fewer DMA descriptors).
    bias = jnp.zeros((1, _BIAS_W), jnp.float32)
    bias = bias.at[0, _OFF_CONV_B:_OFF_CONV_B + CONV_OUT].set(conv_b)
    bias = bias.at[0, _OFF_B_F:_OFF_B_F + 4 * HIDDEN].set(b_f)
    bias = bias.at[0, _OFF_B_B:_OFF_B_B + 4 * HIDDEN].set(b_b)
    bias = bias.at[0, _OFF_FC1_B:_OFF_FC1_B + FC1].set(fc1_b)
    bias = bias.at[0, _OFF_FC2_W:_OFF_FC2_W + FC1].set(fc2_w)
    bias = bias.at[0, _OFF_FC2_B].set(fc2_b[0])

    return dict(conv_w=conv_w, wih_x=wih_x, wih_c=wih_c, whh=whh,
                bias=bias, fc1_w=fc1_w)


# ----------------------------------------------------------------------------

if __name__ == "__main__":
    key = jax.random.PRNGKey(0)
    kp, kx = jax.random.split(key)
    params = init_params(kp)

    B, S = 2, 8
    ks = jax.random.split(kx, 7)
    lat1 = 30.0 + jax.random.uniform(ks[0], (B, S)) * 0.5
    lon1 = 120.0 + jax.random.uniform(ks[1], (B, S)) * 0.5
    oth1 = jax.random.normal(ks[2], (B, S, 4))
    x1 = jnp.concatenate([lat1[..., None], lon1[..., None], oth1], axis=-1)
    lat2 = 30.2 + jax.random.uniform(ks[3], (B, S)) * 0.5
    lon2 = 120.2 + jax.random.uniform(ks[4], (B, S)) * 0.5
    oth2 = jax.random.normal(ks[5], (B, S, 4))
    x2 = jnp.concatenate([lat2[..., None], lon2[..., None], oth2], axis=-1)
    dtime = 60.0 + jax.random.uniform(ks[6], (B, 1)) * 600.0

    out = jax.jit(mclita_forward)(params, x1, x2, dtime)
    out = jax.block_until_ready(out)
    assert out.shape == (B, 1) and bool(jnp.all(jnp.isfinite(out)))
    print("KERNEL_OK")
</pallas_src>

<mosaic_0001>
module attributes {stable_mosaic.version = 11 : i64} {
  func.func @_mclita_kernel(%arg0: memref<96x8xf32, #tpu.memory_space<vmem>>, %arg1: memref<40x192xbf16, #tpu.memory_space<vmem>>, %arg2: memref<8x2048xbf16, #tpu.memory_space<vmem>>, %arg3: memref<192x2048xbf16, #tpu.memory_space<vmem>>, %arg4: memref<256x1024xbf16, #tpu.memory_space<vmem>>, %arg5: memref<1x3456xf32, #tpu.memory_space<vmem>>, %arg6: memref<512x512xbf16, #tpu.memory_space<any>>, %arg7: memref<2x1xf32, #tpu.memory_space<vmem>>, %arg8: memref<64x1024xf32, #tpu.memory_space<vmem>>, %arg9: memref<512x512xbf16, #tpu.memory_space<vmem>>, %arg10: memref<!tpu.dma_semaphore, #tpu.memory_space<semaphore_mem>>) attributes {dimension_semantics = [], scalar_prefetch = 0 : i64, scratch_operands = 3 : i64, tpu.core_type = #tpu.core_type<tc>} {
    tpu.enqueue_dma source(%arg6 : memref<512x512xbf16, #tpu.memory_space<any>>) target(%arg9 : memref<512x512xbf16, #tpu.memory_space<vmem>>) target_semaphore(%arg10 : memref<!tpu.dma_semaphore, #tpu.memory_space<semaphore_mem>>)
    %cst = arith.constant 0.000000e+00 : f32
    %0 = vector.broadcast %cst : f32 to vector<64x192xf32>
    %c0 = arith.constant 0 : index
    %c0_0 = arith.constant 0 : index
    %1 = vector.load %arg0[%c0, %c0_0] : memref<96x8xf32, #tpu.memory_space<vmem>>, vector<64x8xf32>
    %2 = arith.truncf %1 : vector<64x8xf32> to vector<64x8xbf16>
    %c0_1 = arith.constant 0 : index
    %c0_2 = arith.constant 0 : index
    %3 = vector.load %arg1[%c0_1, %c0_2] : memref<40x192xbf16, #tpu.memory_space<vmem>>, vector<8x192xbf16>
    %cst_3 = arith.constant dense<0.000000e+00> : vector<64x192xf32>
    %4 = tpu.matmul %2, %3, %cst_3 {dimension_numbers = #tpu.dot_dimension_numbers<[1], [0], [0], [1], [0, 0, 1, 1], [], []>} : vector<64x8xbf16>, vector<8x192xbf16>, vector<64x192xf32> -> vector<64x192xf32>
    %5 = arith.addf %0, %4 : vector<64x192xf32>
    %c8 = arith.constant 8 : index
    %c0_4 = arith.constant 0 : index
    %6 = vector.load %arg0[%c8, %c0_4] : memref<96x8xf32, #tpu.memory_space<vmem>>, vector<64x8xf32>
    %7 = arith.truncf %6 : vector<64x8xf32> to vector<64x8xbf16>
    %c8_5 = arith.constant 8 : index
    %c0_6 = arith.constant 0 : index
    %8 = vector.load %arg1[%c8_5, %c0_6] : memref<40x192xbf16, #tpu.memory_space<vmem>>, vector<8x192xbf16>
    %cst_7 = arith.constant dense<0.000000e+00> : vector<64x192xf32>
    %9 = tpu.matmul %7, %8, %cst_7 {dimension_numbers = #tpu.dot_dimension_numbers<[1], [0], [0], [1], [0, 0, 1, 1], [], []>} : vector<64x8xbf16>, vector<8x192xbf16>, vector<64x192xf32> -> vector<64x192xf32>
    %10 = arith.addf %5, %9 : vector<64x192xf32>
    %c16 = arith.constant 16 : index
    %c0_8 = arith.constant 0 : index
    %11 = vector.load %arg0[%c16, %c0_8] : memref<96x8xf32, #tpu.memory_space<vmem>>, vector<64x8xf32>
    %12 = arith.truncf %11 : vector<64x8xf32> to vector<64x8xbf16>
    %c16_9 = arith.constant 16 : index
    %c0_10 = arith.constant 0 : index
    %13 = vector.load %arg1[%c16_9, %c0_10] : memref<40x192xbf16, #tpu.memory_space<vmem>>, vector<8x192xbf16>
    %cst_11 = arith.constant dense<0.000000e+00> : vector<64x192xf32>
    %14 = tpu.matmul %12, %13, %cst_11 {dimension_numbers = #tpu.dot_dimension_numbers<[1], [0], [0], [1], [0, 0, 1, 1], [], []>} : vector<64x8xbf16>, vector<8x192xbf16>, vector<64x192xf32> -> vector<64x192xf32>
    %15 = arith.addf %10, %14 : vector<64x192xf32>
    %c24 = arith.constant 24 : index
    %c0_12 = arith.constant 0 : index
    %16 = vector.load %arg0[%c24, %c0_12] : memref<96x8xf32, #tpu.memory_space<vmem>>, vector<64x8xf32>
    %17 = arith.truncf %16 : vector<64x8xf32> to vector<64x8xbf16>
    %c24_13 = arith.constant 24 : index
    %c0_14 = arith.constant 0 : index
    %18 = vector.load %arg1[%c24_13, %c0_14] : memref<40x192xbf16, #tpu.memory_space<vmem>>, vector<8x192xbf16>
    %cst_15 = arith.constant dense<0.000000e+00> : vector<64x192xf32>
    %19 = tpu.matmul %17, %18, %cst_15 {dimension_numbers = #tpu.dot_dimension_numbers<[1], [0], [0], [1], [0, 0, 1, 1], [], []>} : vector<64x8xbf16>, vector<8x192xbf16>, vector<64x192xf32> -> vector<64x192xf32>
    %20 = arith.addf %15, %19 : vector<64x192xf32>
    %c32 = arith.constant 32 : index
    %c0_16 = arith.constant 0 : index
    %21 = vector.load %arg0[%c32, %c0_16] : memref<96x8xf32, #tpu.memory_space<vmem>>, vector<64x8xf32>
    %22 = arith.truncf %21 : vector<64x8xf32> to vector<64x8xbf16>
    %c32_17 = arith.constant 32 : index
    %c0_18 = arith.constant 0 : index
    %23 = vector.load %arg1[%c32_17, %c0_18] : memref<40x192xbf16, #tpu.memory_space<vmem>>, vector<8x192xbf16>
    %cst_19 = arith.constant dense<0.000000e+00> : vector<64x192xf32>
    %24 = tpu.matmul %22, %23, %cst_19 {dimension_numbers = #tpu.dot_dimension_numbers<[1], [0], [0], [1], [0, 0, 1, 1], [], []>} : vector<64x8xbf16>, vector<8x192xbf16>, vector<64x192xf32> -> vector<64x192xf32>
    %25 = arith.addf %20, %24 : vector<64x192xf32>
    %c0_20 = arith.constant 0 : index
    %c0_21 = arith.constant 0 : index
    %26 = vector.load %arg5[%c0_20, %c0_21] : memref<1x3456xf32, #tpu.memory_space<vmem>>, vector<1x192xf32>
    %27 = vector.broadcast %26 : vector<1x192xf32> to vector<64x192xf32>
    %28 = arith.addf %25, %27 : vector<64x192xf32>
    %cst_22 = arith.constant 0.000000e+00 : f32
    %29 = vector.broadcast %cst_22 : f32 to vector<64x192xf32>
    %30 = arith.maximumf %28, %29 : vector<64x192xf32>
    %31 = arith.truncf %30 : vector<64x192xf32> to vector<64x192xbf16>
    %c16_23 = arith.constant 16 : index
    %c0_24 = arith.constant 0 : index
    %32 = vector.load %arg0[%c16_23, %c0_24] : memref<96x8xf32, #tpu.memory_space<vmem>>, vector<64x8xf32>
    %33 = arith.truncf %32 : vector<64x8xf32> to vector<64x8xbf16>
    %c0_25 = arith.constant 0 : index
    %c0_26 = arith.constant 0 : index
    %34 = vector.load %arg2[%c0_25, %c0_26] : memref<8x2048xbf16, #tpu.memory_space<vmem>>, vector<8x1024xbf16>
    %cst_27 = arith.constant dense<0.000000e+00> : vector<64x1024xf32>
    %35 = tpu.matmul %33, %34, %cst_27 {dimension_numbers = #tpu.dot_dimension_numbers<[1], [0], [0], [1], [0, 0, 1, 1], [], []>} : vector<64x8xbf16>, vector<8x1024xbf16>, vector<64x1024xf32> -> vector<64x1024xf32>
    %c0_28 = arith.constant 0 : index
    %c0_29 = arith.constant 0 : index
    %36 = vector.load %arg3[%c0_28, %c0_29] : memref<192x2048xbf16, #tpu.memory_space<vmem>>, vector<192x1024xbf16>
    %cst_30 = arith.constant dense<0.000000e+00> : vector<64x1024xf32>
    %37 = tpu.matmul %31, %36, %cst_30 {dimension_numbers = #tpu.dot_dimension_numbers<[1], [0], [0], [1], [0, 0, 1, 1], [], []>} : vector<64x192xbf16>, vector<192x1024xbf16>, vector<64x1024xf32> -> vector<64x1024xf32>
    %38 = arith.addf %35, %37 : vector<64x1024xf32>
    %c0_31 = arith.constant 0 : index
    %c256 = arith.constant 256 : index
    %39 = vector.load %arg5[%c0_31, %c256] : memref<1x3456xf32, #tpu.memory_space<vmem>>, vector<1x1024xf32>
    %40 = vector.broadcast %39 : vector<1x1024xf32> to vector<64x1024xf32>
    %41 = arith.addf %38, %40 : vector<64x1024xf32>
    %c0_32 = arith.constant 0 : index
    %c0_33 = arith.constant 0 : index
    %42 = vector.load %arg8[%c0_32, %c0_33] : memref<64x1024xf32, #tpu.memory_space<vmem>>, vector<64x1024xf32>
    tpu.vector_store %arg8[%c0_32, %c0_33], %41 {strides = array<i32>} : memref<64x1024xf32, #tpu.memory_space<vmem>>, vector<64x1024xf32>,
    %43 = vector.extract_strided_slice %33 {offsets = [56, 0], sizes = [8, 8], strides = [1, 1]} : vector<64x8xbf16> to vector<8x8xbf16>
    %c0_34 = arith.constant 0 : index
    %c1024 = arith.constant 1024 : index
    %44 = vector.load %arg2[%c0_34, %c1024] : memref<8x2048xbf16, #tpu.memory_space<vmem>>, vector<8x1024xbf16>
    %cst_35 = arith.constant dense<0.000000e+00> : vector<8x1024xf32>
    %45 = tpu.matmul %43, %44, %cst_35 {dimension_numbers = #tpu.dot_dimension_numbers<[1], [0], [0], [1], [0, 0, 1, 1], [], []>} : vector<8x8xbf16>, vector<8x1024xbf16>, vector<8x1024xf32> -> vector<8x1024xf32>
    %46 = vector.extract_strided_slice %31 {offsets = [56, 0], sizes = [8, 192], strides = [1, 1]} : vector<64x192xbf16> to vector<8x192xbf16>
    %c0_36 = arith.constant 0 : index
    %c1024_37 = arith.constant 1024 : index
    %47 = vector.load %arg3[%c0_36, %c1024_37] : memref<192x2048xbf16, #tpu.memory_space<vmem>>, vector<192x1024xbf16>
    %cst_38 = arith.constant dense<0.000000e+00> : vector<8x1024xf32>
    %48 = tpu.matmul %46, %47, %cst_38 {dimension_numbers = #tpu.dot_dimension_numbers<[1], [0], [0], [1], [0, 0, 1, 1], [], []>} : vector<8x192xbf16>, vector<192x1024xbf16>, vector<8x1024xf32> -> vector<8x1024xf32>
    %49 = arith.addf %45, %48 : vector<8x1024xf32>
    %c0_39 = arith.constant 0 : index
    %c1280 = arith.constant 1280 : index
    %50 = vector.load %arg5[%c0_39, %c1280] : memref<1x3456xf32, #tpu.memory_space<vmem>>, vector<1x1024xf32>
    %51 = vector.broadcast %50 : vector<1x1024xf32> to vector<8x1024xf32>
    %52 = arith.addf %49, %51 : vector<8x1024xf32>
    %53 = vector.extract_strided_slice %52 {offsets = [0, 768], sizes = [8, 256], strides = [1, 1]} : vector<8x1024xf32> to vector<8x256xf32>
    %cst_40 = arith.constant 5.000000e-01 : f32
    %54 = vector.broadcast %cst_40 : f32 to vector<8x256xf32>
    %55 = arith.mulf %54, %53 : vector<8x256xf32>
    %56 = math.tanh %55 : vector<8x256xf32>
    %cst_41 = arith.constant 5.000000e-01 : f32
    %57 = vector.broadcast %cst_41 : f32 to vector<8x256xf32>
    %58 = arith.mulf %57, %56 : vector<8x256xf32>
    %cst_42 = arith.constant 5.000000e-01 : f32
    %59 = vector.broadcast %cst_42 : f32 to vector<8x256xf32>
    %60 = arith.addf %58, %59 : vector<8x256xf32>
    %61 = vector.extract_strided_slice %52 {offsets = [0, 0], sizes = [8, 256], strides = [1, 1]} : vector<8x1024xf32> to vector<8x256xf32>
    %cst_43 = arith.constant 5.000000e-01 : f32
    %62 = vector.broadcast %cst_43 : f32 to vector<8x256xf32>
    %63 = arith.mulf %62, %61 : vector<8x256xf32>
    %64 = math.tanh %63 : vector<8x256xf32>
    %cst_44 = arith.constant 5.000000e-01 : f32
    %65 = vector.broadcast %cst_44 : f32 to vector<8x256xf32>
    %66 = arith.mulf %65, %64 : vector<8x256xf32>
    %cst_45 = arith.constant 5.000000e-01 : f32
    %67 = vector.broadcast %cst_45 : f32 to vector<8x256xf32>
    %68 = arith.addf %66, %67 : vector<8x256xf32>
    %69 = vector.extract_strided_slice %52 {offsets = [0, 512], sizes = [8, 256], strides = [1, 1]} : vector<8x1024xf32> to vector<8x256xf32>
    %70 = math.tanh %69 : vector<8x256xf32>
    %71 = arith.mulf %68, %70 : vector<8x256xf32>
    %72 = math.tanh %71 : vector<8x256xf32>
    %73 = arith.mulf %60, %72 : vector<8x256xf32>
    %cst_46 = arith.constant 0.000000e+00 : f32
    %74 = vector.broadcast %cst_46 : f32 to vector<8x256xf32>
    %cst_47 = arith.constant 0.000000e+00 : f32
    %75 = vector.broadcast %cst_47 : f32 to vector<8x256xf32>
    %c0_48 = arith.constant 0 : index
    %c0_49 = arith.constant 0 : index
    %76 = vector.load %arg8[%c0_48, %c0_49] : memref<64x1024xf32, #tpu.memory_space<vmem>>, vector<8x1024xf32>
    %77 = arith.truncf %74 : vector<8x256xf32> to vector<8x256xbf16>
    %c0_50 = arith.constant 0 : index
    %c0_51 = arith.constant 0 : index
    %78 = vector.load %arg4[%c0_50, %c0_51] : memref<256x1024xbf16, #tpu.memory_space<vmem>>, vector<256x1024xbf16>
    %cst_52 = arith.constant dense<0.000000e+00> : vector<8x1024xf32>
    %79 = tpu.matmul %77, %78, %cst_52 {dimension_numbers = #tpu.dot_dimension_numbers<[1], [0], [0], [1], [0, 0, 1, 1], [], []>} : vector<8x256xbf16>, vector<256x1024xbf16>, vector<8x1024xf32> -> vector<8x1024xf32>
    %80 = arith.addf %76, %79 : vector<8x1024xf32>
    %81 = vector.extract_strided_slice %80 {offsets = [0, 0], sizes = [8, 256], strides = [1, 1]} : vector<8x1024xf32> to vector<8x256xf32>
    %cst_53 = arith.constant 5.000000e-01 : f32
    %82 = vector.broadcast %cst_53 : f32 to vector<8x256xf32>
    %83 = arith.mulf %82, %81 : vector<8x256xf32>
    %84 = math.tanh %83 : vector<8x256xf32>
    %cst_54 = arith.constant 5.000000e-01 : f32
    %85 = vector.broadcast %cst_54 : f32 to vector<8x256xf32>
    %86 = arith.mulf %85, %84 : vector<8x256xf32>
    %cst_55 = arith.constant 5.000000e-01 : f32
    %87 = vector.broadcast %cst_55 : f32 to vector<8x256xf32>
    %88 = arith.addf %86, %87 : vector<8x256xf32>
    %89 = vector.extract_strided_slice %80 {offsets = [0, 256], sizes = [8, 256], strides = [1, 1]} : vector<8x1024xf32> to vector<8x256xf32>
    %cst_56 = arith.constant 5.000000e-01 : f32
    %90 = vector.broadcast %cst_56 : f32 to vector<8x256xf32>
    %91 = arith.mulf %90, %89 : vector<8x256xf32>
    %92 = math.tanh %91 : vector<8x256xf32>
    %cst_57 = arith.constant 5.000000e-01 : f32
    %93 = vector.broadcast %cst_57 : f32 to vector<8x256xf32>
    %94 = arith.mulf %93, %92 : vector<8x256xf32>
    %cst_58 = arith.constant 5.000000e-01 : f32
    %95 = vector.broadcast %cst_58 : f32 to vector<8x256xf32>
    %96 = arith.addf %94, %95 : vector<8x256xf32>
    %97 = vector.extract_strided_slice %80 {offsets = [0, 512], sizes = [8, 256], strides = [1, 1]} : vector<8x1024xf32> to vector<8x256xf32>
    %98 = math.tanh %97 : vector<8x256xf32>
    %99 = vector.extract_strided_slice %80 {offsets = [0, 768], sizes = [8, 256], strides = [1, 1]} : vector<8x1024xf32> to vector<8x256xf32>
    %cst_59 = arith.constant 5.000000e-01 : f32
    %100 = vector.broadcast %cst_59 : f32 to vector<8x256xf32>
    %101 = arith.mulf %100, %99 : vector<8x256xf32>
    %102 = math.tanh %101 : vector<8x256xf32>
    %cst_60 = arith.constant 5.000000e-01 : f32
    %103 = vector.broadcast %cst_60 : f32 to vector<8x256xf32>
    %104 = arith.mulf %103, %102 : vector<8x256xf32>
    %cst_61 = arith.constant 5.000000e-01 : f32
    %105 = vector.broadcast %cst_61 : f32 to vector<8x256xf32>
    %106 = arith.addf %104, %105 : vector<8x256xf32>
    %107 = arith.mulf %96, %75 : vector<8x256xf32>
    %108 = arith.mulf %88, %98 : vector<8x256xf32>
    %109 = arith.addf %107, %108 : vector<8x256xf32>
    %110 = math.tanh %109 : vector<8x256xf32>
    %111 = arith.mulf %106, %110 : vector<8x256xf32>
    %c8_62 = arith.constant 8 : index
    %c0_63 = arith.constant 0 : index
    %112 = vector.load %arg8[%c8_62, %c0_63] : memref<64x1024xf32, #tpu.memory_space<vmem>>, vector<8x1024xf32>
    %113 = arith.truncf %111 : vector<8x256xf32> to vector<8x256xbf16>
    %c0_64 = arith.constant 0 : index
    %c0_65 = arith.constant 0 : index
    %114 = vector.load %arg4[%c0_64, %c0_65] : memref<256x1024xbf16, #tpu.memory_space<vmem>>, vector<256x1024xbf16>
    %cst_66 = arith.constant dense<0.000000e+00> : vector<8x1024xf32>
    %115 = tpu.matmul %113, %114, %cst_66 {dimension_numbers = #tpu.dot_dimension_numbers<[1], [0], [0], [1], [0, 0, 1, 1], [], []>} : vector<8x256xbf16>, vector<256x1024xbf16>, vector<8x1024xf32> -> vector<8x1024xf32>
    %116 = arith.addf %112, %115 : vector<8x1024xf32>
    %117 = vector.extract_strided_slice %116 {offsets = [0, 0], sizes = [8, 256], strides = [1, 1]} : vector<8x1024xf32> to vector<8x256xf32>
    %cst_67 = arith.constant 5.000000e-01 : f32
    %118 = vector.broadcast %cst_67 : f32 to vector<8x256xf32>
    %119 = arith.mulf %118, %117 : vector<8x256xf32>
    %120 = math.tanh %119 : vector<8x256xf32>
    %cst_68 = arith.constant 5.000000e-01 : f32
    %121 = vector.broadcast %cst_68 : f32 to vector<8x256xf32>
    %122 = arith.mulf %121, %120 : vector<8x256xf32>
    %cst_69 = arith.constant 5.000000e-01 : f32
    %123 = vector.broadcast %cst_69 : f32 to vector<8x256xf32>
    %124 = arith.addf %122, %123 : vector<8x256xf32>
    %125 = vector.extract_strided_slice %116 {offsets = [0, 256], sizes = [8, 256], strides = [1, 1]} : vector<8x1024xf32> to vector<8x256xf32>
    %cst_70 = arith.constant 5.000000e-01 : f32
    %126 = vector.broadcast %cst_70 : f32 to vector<8x256xf32>
    %127 = arith.mulf %126, %125 : vector<8x256xf32>
    %128 = math.tanh %127 : vector<8x256xf32>
    %cst_71 = arith.constant 5.000000e-01 : f32
    %129 = vector.broadcast %cst_71 : f32 to vector<8x256xf32>
    %130 = arith.mulf %129, %128 : vector<8x256xf32>
    %cst_72 = arith.constant 5.000000e-01 : f32
    %131 = vector.broadcast %cst_72 : f32 to vector<8x256xf32>
    %132 = arith.addf %130, %131 : vector<8x256xf32>
    %133 = vector.extract_strided_slice %116 {offsets = [0, 512], sizes = [8, 256], strides = [1, 1]} : vector<8x1024xf32> to vector<8x256xf32>
    %134 = math.tanh %133 : vector<8x256xf32>
    %135 = vector.extract_strided_slice %116 {offsets = [0, 768], sizes = [8, 256], strides = [1, 1]} : vector<8x1024xf32> to vector<8x256xf32>
    %cst_73 = arith.constant 5.000000e-01 : f32
    %136 = vector.broadcast %cst_73 : f32 to vector<8x256xf32>
    %137 = arith.mulf %136, %135 : vector<8x256xf32>
    %138 = math.tanh %137 : vector<8x256xf32>
    %cst_74 = arith.constant 5.000000e-01 : f32
    %139 = vector.broadcast %cst_74 : f32 to vector<8x256xf32>
    %140 = arith.mulf %139, %138 : vector<8x256xf32>
    %cst_75 = arith.constant 5.000000e-01 : f32
    %141 = vector.broadcast %cst_75 : f32 to vector<8x256xf32>
    %142 = arith.addf %140, %141 : vector<8x256xf32>
    %143 = arith.mulf %132, %109 : vector<8x256xf32>
    %144 = arith.mulf %124, %134 : vector<8x256xf32>
    %145 = arith.addf %143, %144 : vector<8x256xf32>
    %146 = math.tanh %145 : vector<8x256xf32>
    %147 = arith.mulf %142, %146 : vector<8x256xf32>
    %c16_76 = arith.constant 16 : index
    %c0_77 = arith.constant 0 : index
    %148 = vector.load %arg8[%c16_76, %c0_77] : memref<64x1024xf32, #tpu.memory_space<vmem>>, vector<8x1024xf32>
    %149 = arith.truncf %147 : vector<8x256xf32> to vector<8x256xbf16>
    %c0_78 = arith.constant 0 : index
    %c0_79 = arith.constant 0 : index
    %150 = vector.load %arg4[%c0_78, %c0_79] : memref<256x1024xbf16, #tpu.memory_space<vmem>>, vector<256x1024xbf16>
    %cst_80 = arith.constant dense<0.000000e+00> : vector<8x1024xf32>
    %151 = tpu.matmul %149, %150, %cst_80 {dimension_numbers = #tpu.dot_dimension_numbers<[1], [0], [0], [1], [0, 0, 1, 1], [], []>} : vector<8x256xbf16>, vector<256x1024xbf16>, vector<8x1024xf32> -> vector<8x1024xf32>
    %152 = arith.addf %148, %151 : vector<8x1024xf32>
    %153 = vector.extract_strided_slice %152 {offsets = [0, 0], sizes = [8, 256], strides = [1, 1]} : vector<8x1024xf32> to vector<8x256xf32>
    %cst_81 = arith.constant 5.000000e-01 : f32
    %154 = vector.broadcast %cst_81 : f32 to vector<8x256xf32>
    %155 = arith.mulf %154, %153 : vector<8x256xf32>
    %156 = math.tanh %155 : vector<8x256xf32>
    %cst_82 = arith.constant 5.000000e-01 : f32
    %157 = vector.broadcast %cst_82 : f32 to vector<8x256xf32>
    %158 = arith.mulf %157, %156 : vector<8x256xf32>
    %cst_83 = arith.constant 5.000000e-01 : f32
    %159 = vector.broadcast %cst_83 : f32 to vector<8x256xf32>
    %160 = arith.addf %158, %159 : vector<8x256xf32>
    %161 = vector.extract_strided_slice %152 {offsets = [0, 256], sizes = [8, 256], strides = [1, 1]} : vector<8x1024xf32> to vector<8x256xf32>
    %cst_84 = arith.constant 5.000000e-01 : f32
    %162 = vector.broadcast %cst_84 : f32 to vector<8x256xf32>
    %163 = arith.mulf %162, %161 : vector<8x256xf32>
    %164 = math.tanh %163 : vector<8x256xf32>
    %cst_85 = arith.constant 5.000000e-01 : f32
    %165 = vector.broadcast %cst_85 : f32 to vector<8x256xf32>
    %166 = arith.mulf %165, %164 : vector<8x256xf32>
    %cst_86 = arith.constant 5.000000e-01 : f32
    %167 = vector.broadcast %cst_86 : f32 to vector<8x256xf32>
    %168 = arith.addf %166, %167 : vector<8x256xf32>
    %169 = vector.extract_strided_slice %152 {offsets = [0, 512], sizes = [8, 256], strides = [1, 1]} : vector<8x1024xf32> to vector<8x256xf32>
    %170 = math.tanh %169 : vector<8x256xf32>
    %171 = vector.extract_strided_slice %152 {offsets = [0, 768], sizes = [8, 256], strides = [1, 1]} : vector<8x1024xf32> to vector<8x256xf32>
    %cst_87 = arith.constant 5.000000e-01 : f32
    %172 = vector.broadcast %cst_87 : f32 to vector<8x256xf32>
    %173 = arith.mulf %172, %171 : vector<8x256xf32>
    %174 = math.tanh %173 : vector<8x256xf32>
    %cst_88 = arith.constant 5.000000e-01 : f32
    %175 = vector.broadcast %cst_88 : f32 to vector<8x256xf32>
    %176 = arith.mulf %175, %174 : vector<8x256xf32>
    %cst_89 = arith.constant 5.000000e-01 : f32
    %177 = vector.broadcast %cst_89 : f32 to vector<8x256xf32>
    %178 = arith.addf %176, %177 : vector<8x256xf32>
    %179 = arith.mulf %168, %145 : vector<8x256xf32>
    %180 = arith.mulf %160, %170 : vector<8x256xf32>
    %181 = arith.addf %179, %180 : vector<8x256xf32>
    %182 = math.tanh %181 : vector<8x256xf32>
    %183 = arith.mulf %178, %182 : vector<8x256xf32>
    %c24_90 = arith.constant 24 : index
    %c0_91 = arith.constant 0 : index
    %184 = vector.load %arg8[%c24_90, %c0_91] : memref<64x1024xf32, #tpu.memory_space<vmem>>, vector<8x1024xf32>
    %185 = arith.truncf %183 : vector<8x256xf32> to vector<8x256xbf16>
    %c0_92 = arith.constant 0 : index
    %c0_93 = arith.constant 0 : index
    %186 = vector.load %arg4[%c0_92, %c0_93] : memref<256x1024xbf16, #tpu.memory_space<vmem>>, vector<256x1024xbf16>
    %cst_94 = arith.constant dense<0.000000e+00> : vector<8x1024xf32>
    %187 = tpu.matmul %185, %186, %cst_94 {dimension_numbers = #tpu.dot_dimension_numbers<[1], [0], [0], [1], [0, 0, 1, 1], [], []>} : vector<8x256xbf16>, vector<256x1024xbf16>, vector<8x1024xf32> -> vector<8x1024xf32>
    %188 = arith.addf %184, %187 : vector<8x1024xf32>
    %189 = vector.extract_strided_slice %188 {offsets = [0, 0], sizes = [8, 256], strides = [1, 1]} : vector<8x1024xf32> to vector<8x256xf32>
    %cst_95 = arith.constant 5.000000e-01 : f32
    %190 = vector.broadcast %cst_95 : f32 to vector<8x256xf32>
    %191 = arith.mulf %190, %189 : vector<8x256xf32>
    %192 = math.tanh %191 : vector<8x256xf32>
    %cst_96 = arith.constant 5.000000e-01 : f32
    %193 = vector.broadcast %cst_96 : f32 to vector<8x256xf32>
    %194 = arith.mulf %193, %192 : vector<8x256xf32>
    %cst_97 = arith.constant 5.000000e-01 : f32
    %195 = vector.broadcast %cst_97 : f32 to vector<8x256xf32>
    %196 = arith.addf %194, %195 : vector<8x256xf32>
    %197 = vector.extract_strided_slice %188 {offsets = [0, 256], sizes = [8, 256], strides = [1, 1]} : vector<8x1024xf32> to vector<8x256xf32>
    %cst_98 = arith.constant 5.000000e-01 : f32
    %198 = vector.broadcast %cst_98 : f32 to vector<8x256xf32>
    %199 = arith.mulf %198, %197 : vector<8x256xf32>
    %200 = math.tanh %199 : vector<8x256xf32>
    %cst_99 = arith.constant 5.000000e-01 : f32
    %201 = vector.broadcast %cst_99 : f32 to vector<8x256xf32>
    %202 = arith.mulf %201, %200 : vector<8x256xf32>
    %cst_100 = arith.constant 5.000000e-01 : f32
    %203 = vector.broadcast %cst_100 : f32 to vector<8x256xf32>
    %204 = arith.addf %202, %203 : vector<8x256xf32>
    %205 = vector.extract_strided_slice %188 {offsets = [0, 512], sizes = [8, 256], strides = [1, 1]} : vector<8x1024xf32> to vector<8x256xf32>
    %206 = math.tanh %205 : vector<8x256xf32>
    %207 = vector.extract_strided_slice %188 {offsets = [0, 768], sizes = [8, 256], strides = [1, 1]} : vector<8x1024xf32> to vector<8x256xf32>
    %cst_101 = arith.constant 5.000000e-01 : f32
    %208 = vector.broadcast %cst_101 : f32 to vector<8x256xf32>
    %209 = arith.mulf %208, %207 : vector<8x256xf32>
    %210 = math.tanh %209 : vector<8x256xf32>
    %cst_102 = arith.constant 5.000000e-01 : f32
    %211 = vector.broadcast %cst_102 : f32 to vector<8x256xf32>
    %212 = arith.mulf %211, %210 : vector<8x256xf32>
    %cst_103 = arith.constant 5.000000e-01 : f32
    %213 = vector.broadcast %cst_103 : f32 to vector<8x256xf32>
    %214 = arith.addf %212, %213 : vector<8x256xf32>
    %215 = arith.mulf %204, %181 : vector<8x256xf32>
    %216 = arith.mulf %196, %206 : vector<8x256xf32>
    %217 = arith.addf %215, %216 : vector<8x256xf32>
    %218 = math.tanh %217 : vector<8x256xf32>
    %219 = arith.mulf %214, %218 : vector<8x256xf32>
    %c32_104 = arith.constant 32 : index
    %c0_105 = arith.constant 0 : index
    %220 = vector.load %arg8[%c32_104, %c0_105] : memref<64x1024xf32, #tpu.memory_space<vmem>>, vector<8x1024xf32>
    %221 = arith.truncf %219 : vector<8x256xf32> to vector<8x256xbf16>
    %c0_106 = arith.constant 0 : index
    %c0_107 = arith.constant 0 : index
    %222 = vector.load %arg4[%c0_106, %c0_107] : memref<256x1024xbf16, #tpu.memory_space<vmem>>, vector<256x1024xbf16>
    %cst_108 = arith.constant dense<0.000000e+00> : vector<8x1024xf32>
    %223 = tpu.matmul %221, %222, %cst_108 {dimension_numbers = #tpu.dot_dimension_numbers<[1], [0], [0], [1], [0, 0, 1, 1], [], []>} : vector<8x256xbf16>, vector<256x1024xbf16>, vector<8x1024xf32> -> vector<8x1024xf32>
    %224 = arith.addf %220, %223 : vector<8x1024xf32>
    %225 = vector.extract_strided_slice %224 {offsets = [0, 0], sizes = [8, 256], strides = [1, 1]} : vector<8x1024xf32> to vector<8x256xf32>
    %cst_109 = arith.constant 5.000000e-01 : f32
    %226 = vector.broadcast %cst_109 : f32 to vector<8x256xf32>
    %227 = arith.mulf %226, %225 : vector<8x256xf32>
    %228 = math.tanh %227 : vector<8x256xf32>
    %cst_110 = arith.constant 5.000000e-01 : f32
    %229 = vector.broadcast %cst_110 : f32 to vector<8x256xf32>
    %230 = arith.mulf %229, %228 : vector<8x256xf32>
    %cst_111 = arith.constant 5.000000e-01 : f32
    %231 = vector.broadcast %cst_111 : f32 to vector<8x256xf32>
    %232 = arith.addf %230, %231 : vector<8x256xf32>
    %233 = vector.extract_strided_slice %224 {offsets = [0, 256], sizes = [8, 256], strides = [1, 1]} : vector<8x1024xf32> to vector<8x256xf32>
    %cst_112 = arith.constant 5.000000e-01 : f32
    %234 = vector.broadcast %cst_112 : f32 to vector<8x256xf32>
    %235 = arith.mulf %234, %233 : vector<8x256xf32>
    %236 = math.tanh %235 : vector<8x256xf32>
    %cst_113 = arith.constant 5.000000e-01 : f32
    %237 = vector.broadcast %cst_113 : f32 to vector<8x256xf32>
    %238 = arith.mulf %237, %236 : vector<8x256xf32>
    %cst_114 = arith.constant 5.000000e-01 : f32
    %239 = vector.broadcast %cst_114 : f32 to vector<8x256xf32>
    %240 = arith.addf %238, %239 : vector<8x256xf32>
    %241 = vector.extract_strided_slice %224 {offsets = [0, 512], sizes = [8, 256], strides = [1, 1]} : vector<8x1024xf32> to vector<8x256xf32>
    %242 = math.tanh %241 : vector<8x256xf32>
    %243 = vector.extract_strided_slice %224 {offsets = [0, 768], sizes = [8, 256], strides = [1, 1]} : vector<8x1024xf32> to vector<8x256xf32>
    %cst_115 = arith.constant 5.000000e-01 : f32
    %244 = vector.broadcast %cst_115 : f32 to vector<8x256xf32>
    %245 = arith.mulf %244, %243 : vector<8x256xf32>
    %246 = math.tanh %245 : vector<8x256xf32>
    %cst_116 = arith.constant 5.000000e-01 : f32
    %247 = vector.broadcast %cst_116 : f32 to vector<8x256xf32>
    %248 = arith.mulf %247, %246 : vector<8x256xf32>
    %cst_117 = arith.constant 5.000000e-01 : f32
    %249 = vector.broadcast %cst_117 : f32 to vector<8x256xf32>
    %250 = arith.addf %248, %249 : vector<8x256xf32>
    %251 = arith.mulf %240, %217 : vector<8x256xf32>
    %252 = arith.mulf %232, %242 : vector<8x256xf32>
    %253 = arith.addf %251, %252 : vector<8x256xf32>
    %254 = math.tanh %253 : vector<8x256xf32>
    %255 = arith.mulf %250, %254 : vector<8x256xf32>
    %c40 = arith.constant 40 : index
    %c0_118 = arith.constant 0 : index
    %256 = vector.load %arg8[%c40, %c0_118] : memref<64x1024xf32, #tpu.memory_space<vmem>>, vector<8x1024xf32>
    %257 = arith.truncf %255 : vector<8x256xf32> to vector<8x256xbf16>
    %c0_119 = arith.constant 0 : index
    %c0_120 = arith.constant 0 : index
    %258 = vector.load %arg4[%c0_119, %c0_120] : memref<256x1024xbf16, #tpu.memory_space<vmem>>, vector<256x1024xbf16>
    %cst_121 = arith.constant dense<0.000000e+00> : vector<8x1024xf32>
    %259 = tpu.matmul %257, %258, %cst_121 {dimension_numbers = #tpu.dot_dimension_numbers<[1], [0], [0], [1], [0, 0, 1, 1], [], []>} : vector<8x256xbf16>, vector<256x1024xbf16>, vector<8x1024xf32> -> vector<8x1024xf32>
    %260 = arith.addf %256, %259 : vector<8x1024xf32>
    %261 = vector.extract_strided_slice %260 {offsets = [0, 0], sizes = [8, 256], strides = [1, 1]} : vector<8x1024xf32> to vector<8x256xf32>
    %cst_122 = arith.constant 5.000000e-01 : f32
    %262 = vector.broadcast %cst_122 : f32 to vector<8x256xf32>
    %263 = arith.mulf %262, %261 : vector<8x256xf32>
    %264 = math.tanh %263 : vector<8x256xf32>
    %cst_123 = arith.constant 5.000000e-01 : f32
    %265 = vector.broadcast %cst_123 : f32 to vector<8x256xf32>
    %266 = arith.mulf %265, %264 : vector<8x256xf32>
    %cst_124 = arith.constant 5.000000e-01 : f32
    %267 = vector.broadcast %cst_124 : f32 to vector<8x256xf32>
    %268 = arith.addf %266, %267 : vector<8x256xf32>
    %269 = vector.extract_strided_slice %260 {offsets = [0, 256], sizes = [8, 256], strides = [1, 1]} : vector<8x1024xf32> to vector<8x256xf32>
    %cst_125 = arith.constant 5.000000e-01 : f32
    %270 = vector.broadcast %cst_125 : f32 to vector<8x256xf32>
    %271 = arith.mulf %270, %269 : vector<8x256xf32>
    %272 = math.tanh %271 : vector<8x256xf32>
    %cst_126 = arith.constant 5.000000e-01 : f32
    %273 = vector.broadcast %cst_126 : f32 to vector<8x256xf32>
    %274 = arith.mulf %273, %272 : vector<8x256xf32>
    %cst_127 = arith.constant 5.000000e-01 : f32
    %275 = vector.broadcast %cst_127 : f32 to vector<8x256xf32>
    %276 = arith.addf %274, %275 : vector<8x256xf32>
    %277 = vector.extract_strided_slice %260 {offsets = [0, 512], sizes = [8, 256], strides = [1, 1]} : vector<8x1024xf32> to vector<8x256xf32>
    %278 = math.tanh %277 : vector<8x256xf32>
    %279 = vector.extract_strided_slice %260 {offsets = [0, 768], sizes = [8, 256], strides = [1, 1]} : vector<8x1024xf32> to vector<8x256xf32>
    %cst_128 = arith.constant 5.000000e-01 : f32
    %280 = vector.broadcast %cst_128 : f32 to vector<8x256xf32>
    %281 = arith.mulf %280, %279 : vector<8x256xf32>
    %282 = math.tanh %281 : vector<8x256xf32>
    %cst_129 = arith.constant 5.000000e-01 : f32
    %283 = vector.broadcast %cst_129 : f32 to vector<8x256xf32>
    %284 = arith.mulf %283, %282 : vector<8x256xf32>
    %cst_130 = arith.constant 5.000000e-01 : f32
    %285 = vector.broadcast %cst_130 : f32 to vector<8x256xf32>
    %286 = arith.addf %284, %285 : vector<8x256xf32>
    %287 = arith.mulf %276, %253 : vector<8x256xf32>
    %288 = arith.mulf %268, %278 : vector<8x256xf32>
    %289 = arith.addf %287, %288 : vector<8x256xf32>
    %290 = math.tanh %289 : vector<8x256xf32>
    %291 = arith.mulf %286, %290 : vector<8x256xf32>
    %c48 = arith.constant 48 : index
    %c0_131 = arith.constant 0 : index
    %292 = vector.load %arg8[%c48, %c0_131] : memref<64x1024xf32, #tpu.memory_space<vmem>>, vector<8x1024xf32>
    %293 = arith.truncf %291 : vector<8x256xf32> to vector<8x256xbf16>
    %c0_132 = arith.constant 0 : index
    %c0_133 = arith.constant 0 : index
    %294 = vector.load %arg4[%c0_132, %c0_133] : memref<256x1024xbf16, #tpu.memory_space<vmem>>, vector<256x1024xbf16>
    %cst_134 = arith.constant dense<0.000000e+00> : vector<8x1024xf32>
    %295 = tpu.matmul %293, %294, %cst_134 {dimension_numbers = #tpu.dot_dimension_numbers<[1], [0], [0], [1], [0, 0, 1, 1], [], []>} : vector<8x256xbf16>, vector<256x1024xbf16>, vector<8x1024xf32> -> vector<8x1024xf32>
    %296 = arith.addf %292, %295 : vector<8x1024xf32>
    %297 = vector.extract_strided_slice %296 {offsets = [0, 0], sizes = [8, 256], strides = [1, 1]} : vector<8x1024xf32> to vector<8x256xf32>
    %cst_135 = arith.constant 5.000000e-01 : f32
    %298 = vector.broadcast %cst_135 : f32 to vector<8x256xf32>
    %299 = arith.mulf %298, %297 : vector<8x256xf32>
    %300 = math.tanh %299 : vector<8x256xf32>
    %cst_136 = arith.constant 5.000000e-01 : f32
    %301 = vector.broadcast %cst_136 : f32 to vector<8x256xf32>
    %302 = arith.mulf %301, %300 : vector<8x256xf32>
    %cst_137 = arith.constant 5.000000e-01 : f32
    %303 = vector.broadcast %cst_137 : f32 to vector<8x256xf32>
    %304 = arith.addf %302, %303 : vector<8x256xf32>
    %305 = vector.extract_strided_slice %296 {offsets = [0, 256], sizes = [8, 256], strides = [1, 1]} : vector<8x1024xf32> to vector<8x256xf32>
    %cst_138 = arith.constant 5.000000e-01 : f32
    %306 = vector.broadcast %cst_138 : f32 to vector<8x256xf32>
    %307 = arith.mulf %306, %305 : vector<8x256xf32>
    %308 = math.tanh %307 : vector<8x256xf32>
    %cst_139 = arith.constant 5.000000e-01 : f32
    %309 = vector.broadcast %cst_139 : f32 to vector<8x256xf32>
    %310 = arith.mulf %309, %308 : vector<8x256xf32>
    %cst_140 = arith.constant 5.000000e-01 : f32
    %311 = vector.broadcast %cst_140 : f32 to vector<8x256xf32>
    %312 = arith.addf %310, %311 : vector<8x256xf32>
    %313 = vector.extract_strided_slice %296 {offsets = [0, 512], sizes = [8, 256], strides = [1, 1]} : vector<8x1024xf32> to vector<8x256xf32>
    %314 = math.tanh %313 : vector<8x256xf32>
    %315 = vector.extract_strided_slice %296 {offsets = [0, 768], sizes = [8, 256], strides = [1, 1]} : vector<8x1024xf32> to vector<8x256xf32>
    %cst_141 = arith.constant 5.000000e-01 : f32
    %316 = vector.broadcast %cst_141 : f32 to vector<8x256xf32>
    %317 = arith.mulf %316, %315 : vector<8x256xf32>
    %318 = math.tanh %317 : vector<8x256xf32>
    %cst_142 = arith.constant 5.000000e-01 : f32
    %319 = vector.broadcast %cst_142 : f32 to vector<8x256xf32>
    %320 = arith.mulf %319, %318 : vector<8x256xf32>
    %cst_143 = arith.constant 5.000000e-01 : f32
    %321 = vector.broadcast %cst_143 : f32 to vector<8x256xf32>
    %322 = arith.addf %320, %321 : vector<8x256xf32>
    %323 = arith.mulf %312, %289 : vector<8x256xf32>
    %324 = arith.mulf %304, %314 : vector<8x256xf32>
    %325 = arith.addf %323, %324 : vector<8x256xf32>
    %326 = math.tanh %325 : vector<8x256xf32>
    %327 = arith.mulf %322, %326 : vector<8x256xf32>
    %c56 = arith.constant 56 : index
    %c0_144 = arith.constant 0 : index
    %328 = vector.load %arg8[%c56, %c0_144] : memref<64x1024xf32, #tpu.memory_space<vmem>>, vector<8x1024xf32>
    %329 = arith.truncf %327 : vector<8x256xf32> to vector<8x256xbf16>
    %c0_145 = arith.constant 0 : index
    %c0_146 = arith.constant 0 : index
    %330 = vector.load %arg4[%c0_145, %c0_146] : memref<256x1024xbf16, #tpu.memory_space<vmem>>, vector<256x1024xbf16>
    %cst_147 = arith.constant dense<0.000000e+00> : vector<8x1024xf32>
    %331 = tpu.matmul %329, %330, %cst_147 {dimension_numbers = #tpu.dot_dimension_numbers<[1], [0], [0], [1], [0, 0, 1, 1], [], []>} : vector<8x256xbf16>, vector<256x1024xbf16>, vector<8x1024xf32> -> vector<8x1024xf32>
    %332 = arith.addf %328, %331 : vector<8x1024xf32>
    %333 = vector.extract_strided_slice %332 {offsets = [0, 0], sizes = [8, 256], strides = [1, 1]} : vector<8x1024xf32> to vector<8x256xf32>
    %cst_148 = arith.constant 5.000000e-01 : f32
    %334 = vector.broadcast %cst_148 : f32 to vector<8x256xf32>
    %335 = arith.mulf %334, %333 : vector<8x256xf32>
    %336 = math.tanh %335 : vector<8x256xf32>
    %cst_149 = arith.constant 5.000000e-01 : f32
    %337 = vector.broadcast %cst_149 : f32 to vector<8x256xf32>
    %338 = arith.mulf %337, %336 : vector<8x256xf32>
    %cst_150 = arith.constant 5.000000e-01 : f32
    %339 = vector.broadcast %cst_150 : f32 to vector<8x256xf32>
    %340 = arith.addf %338, %339 : vector<8x256xf32>
    %341 = vector.extract_strided_slice %332 {offsets = [0, 256], sizes = [8, 256], strides = [1, 1]} : vector<8x1024xf32> to vector<8x256xf32>
    %cst_151 = arith.constant 5.000000e-01 : f32
    %342 = vector.broadcast %cst_151 : f32 to vector<8x256xf32>
    %343 = arith.mulf %342, %341 : vector<8x256xf32>
    %344 = math.tanh %343 : vector<8x256xf32>
    %cst_152 = arith.constant 5.000000e-01 : f32
    %345 = vector.broadcast %cst_152 : f32 to vector<8x256xf32>
    %346 = arith.mulf %345, %344 : vector<8x256xf32>
    %cst_153 = arith.constant 5.000000e-01 : f32
    %347 = vector.broadcast %cst_153 : f32 to vector<8x256xf32>
    %348 = arith.addf %346, %347 : vector<8x256xf32>
    %349 = vector.extract_strided_slice %332 {offsets = [0, 512], sizes = [8, 256], strides = [1, 1]} : vector<8x1024xf32> to vector<8x256xf32>
    %350 = math.tanh %349 : vector<8x256xf32>
    %351 = vector.extract_strided_slice %332 {offsets = [0, 768], sizes = [8, 256], strides = [1, 1]} : vector<8x1024xf32> to vector<8x256xf32>
    %cst_154 = arith.constant 5.000000e-01 : f32
    %352 = vector.broadcast %cst_154 : f32 to vector<8x256xf32>
    %353 = arith.mulf %352, %351 : vector<8x256xf32>
    %354 = math.tanh %353 : vector<8x256xf32>
    %cst_155 = arith.constant 5.000000e-01 : f32
    %355 = vector.broadcast %cst_155 : f32 to vector<8x256xf32>
    %356 = arith.mulf %355, %354 : vector<8x256xf32>
    %cst_156 = arith.constant 5.000000e-01 : f32
    %357 = vector.broadcast %cst_156 : f32 to vector<8x256xf32>
    %358 = arith.addf %356, %357 : vector<8x256xf32>
    %359 = arith.mulf %348, %325 : vector<8x256xf32>
    %360 = arith.mulf %340, %350 : vector<8x256xf32>
    %361 = arith.addf %359, %360 : vector<8x256xf32>
    %362 = math.tanh %361 : vector<8x256xf32>
    %363 = arith.mulf %358, %362 : vector<8x256xf32>
    tpu.wait_dma2 semaphore(%arg10 : memref<!tpu.dma_semaphore, #tpu.memory_space<semaphore_mem>>) src(%arg6 : memref<512x512xbf16, #tpu.memory_space<any>>) dst(%arg9 : memref<512x512xbf16, #tpu.memory_space<vmem>>)
    %364 = tpu.concatenate %363, %73 in 1 : vector<8x256xf32>, vector<8x256xf32> -> vector<8x512xf32>
    %365 = vector.extract_strided_slice %364 {offsets = [0, 0], sizes = [2, 512], strides = [1, 1]} : vector<8x512xf32> to vector<2x512xf32>
    %366 = vector.extract_strided_slice %364 {offsets = [2, 0], sizes = [2, 512], strides = [1, 1]} : vector<8x512xf32> to vector<2x512xf32>
    %367 = arith.subf %365, %366 : vector<2x512xf32>
    %368 = math.absf %367 : vector<2x512xf32>
    %369 = arith.truncf %368 : vector<2x512xf32> to vector<2x512xbf16>
    %c0_157 = arith.constant 0 : index
    %c0_158 = arith.constant 0 : index
    %370 = vector.load %arg9[%c0_157, %c0_158] : memref<512x512xbf16, #tpu.memory_space<vmem>>, vector<512x512xbf16>
    %cst_159 = arith.constant dense<0.000000e+00> : vector<2x512xf32>
    %371 = tpu.matmul %369, %370, %cst_159 {dimension_numbers = #tpu.dot_dimension_numbers<[1], [0], [0], [1], [0, 0, 1, 1], [], []>} : vector<2x512xbf16>, vector<512x512xbf16>, vector<2x512xf32> -> vector<2x512xf32>
    %c0_160 = arith.constant 0 : index
    %c2304 = arith.constant 2304 : index
    %372 = vector.load %arg5[%c0_160, %c2304] : memref<1x3456xf32, #tpu.memory_space<vmem>>, vector<1x512xf32>
    %373 = vector.broadcast %372 : vector<1x512xf32> to vector<2x512xf32>
    %374 = arith.addf %371, %373 : vector<2x512xf32>
    %cst_161 = arith.constant 0.000000e+00 : f32
    %375 = vector.broadcast %cst_161 : f32 to vector<2x512xf32>
    %376 = arith.maximumf %374, %375 : vector<2x512xf32>
    %c0_162 = arith.constant 0 : index
    %c2816 = arith.constant 2816 : index
    %377 = vector.load %arg5[%c0_162, %c2816] : memref<1x3456xf32, #tpu.memory_space<vmem>>, vector<1x512xf32>
    %378 = vector.broadcast %377 : vector<1x512xf32> to vector<2x512xf32>
    %379 = arith.mulf %376, %378 : vector<2x512xf32>
    %cst_163 = arith.constant dense<0.000000e+00> : vector<2xf32>
    %380 = vector.multi_reduction <add>, %379, %cst_163 [1] : vector<2x512xf32> to vector<2xf32>
    %381 = vector.shape_cast %380 : vector<2xf32> to vector<2x1xf32>
    %c0_164 = arith.constant 0 : index
    %c3328 = arith.constant 3328 : index
    %382 = vector.load %arg5[%c0_164, %c3328] : memref<1x3456xf32, #tpu.memory_space<vmem>>, vector<1x1xf32>
    %383 = vector.broadcast %382 : vector<1x1xf32> to vector<2x1xf32>
    %384 = arith.addf %381, %383 : vector<2x1xf32>
    %cst_165 = arith.constant 5.000000e-01 : f32
    %385 = vector.broadcast %cst_165 : f32 to vector<2x1xf32>
    %386 = arith.mulf %385, %384 : vector<2x1xf32>
    %387 = math.tanh %386 : vector<2x1xf32>
    %cst_166 = arith.constant 5.000000e-01 : f32
    %388 = vector.broadcast %cst_166 : f32 to vector<2x1xf32>
    %389 = arith.mulf %388, %387 : vector<2x1xf32>
    %cst_167 = arith.constant 5.000000e-01 : f32
    %390 = vector.broadcast %cst_167 : f32 to vector<2x1xf32>
    %391 = arith.addf %389, %390 : vector<2x1xf32>
    %c0_168 = arith.constant 0 : index
    %c0_169 = arith.constant 0 : index
    %392 = vector.load %arg7[%c0_168, %c0_169] : memref<2x1xf32, #tpu.memory_space<vmem>>, vector<2x1xf32>
    tpu.vector_store %arg7[%c0_168, %c0_169], %391 {strides = array<i32>} : memref<2x1xf32, #tpu.memory_space<vmem>>, vector<2x1xf32>,
    return
  }
}

</mosaic_0001>

<llo_original>
// kernel: mclita_forward.1
$region0: #{mclita_forward.1}
  #allocation0 [shape = 'u32[]', space=smem, size = 0x4, offset = 0x4, fixed_abs, tag = 'smem constant byte address 0x4 - core index']
  #allocation1 [shape = 'u32[72,128]{1,0:T(1,128)}', space=vmem, size = 0x9000, scoped, tag = 'internal scratch']
  #allocation2 [shape = 'f32[64,1024]{1,0:T(8,128)}', space=vmem, size = 0x40000, scoped, tag = 'scratch operand']
  #allocation3 [shape = 'bf16[512,512]{1,0:T(8,128)(2,1)}', space=vmem, size = 0x80000, scoped, tag = 'scratch operand']
  #allocation4 [shape = 's32[1]{0}', space=sflag, size = 0x4, scoped, tag = 'scratch operand']
  #allocation9 [shape = 's32[]', space=sflag, size = 0x4, offset = 0, fixed_abs, tag = 'sflag constant byte address 0x0 - dummy sync flag']
  #allocation10 [shape = 's32[]', space=sflag, size = 0x4, offset = 0, fixed_abs, tag = 'sflag constant byte address 0x0 - dummy sync flag']
  #allocation11 [shape = 'u32[]', space=smem, size = 0x4, offset = 0x44, fixed_abs, tag = 'smem constant byte address 0x44 - assertion arg 0']
  #allocation12 [shape = 'u32[]', space=smem, size = 0x4, offset = 0x48, fixed_abs, tag = 'smem constant byte address 0x48 - assertion arg 1']
  %s0 = inlined_call_operand.vmem [shape: f32[96,8], index: 0, kind: input, shape index: {}]
  %s1 = inlined_call_operand.vmem [shape: bf16[40,192], index: 1, kind: input, shape index: {}]
  %s2 = inlined_call_operand.vmem [shape: bf16[8,2048], index: 2, kind: input, shape index: {}]
  %s3 = inlined_call_operand.hbm [shape: bf16[192,2048], index: 3, kind: input, shape index: {}]
  %s4 = inlined_call_operand.hbm [shape: bf16[256,1024], index: 4, kind: input, shape index: {}]
  %s5 = inlined_call_operand.vmem [shape: f32[1,3456], index: 5, kind: input, shape index: {}]
  %s6 = inlined_call_operand.hbm [shape: bf16[512,512], index: 6, kind: input, shape index: {}]
  %s7 = inlined_call_operand.vmem [shape: f32[2,1], index: 7, kind: output, shape index: {}]
  %s8 = sld [smem:[#allocation0]]
  $region46: #{mclita_forward.1} parent=0
    _
  %s10 = ssub.s32 1, %s8
  %s11 = scalar_select 0, %s10, %s8
  $region1: #{mclita_forward.1} parent=0
    #allocation5 [shape = 'u8[786432]{0}', space=vmem, size = 0xc0000, scoped, tag = 'input window, operand 3, single buffered']
    #allocation6 [shape = 's32[1]{0}', space=sflag, size = 0x4, scoped, tag = 'scoped memory for mclita_forward.1']
    #allocation7 [shape = 'u8[524288]{0}', space=vmem, size = 0x80000, scoped, tag = 'input window, operand 4, single buffered']
    #allocation8 [shape = 's32[1]{0}', space=sflag, size = 0x4, scoped, tag = 'scoped memory for mclita_forward.1']
    %12 = vsyncpa [#allocation6], 0
    %13 = vsyncpa [#allocation8], 0
    // Predicated region
    $region2: #{mclita_forward.1} parent=1 // pred_check
      _
    $region3: #{mclita_forward.1} parent=1 // pred_check_branch
      %15 = sbr.rel (0) target = $region5
    $region4: #{mclita_forward.1} parent=1 // pred_region
      _
    $region5: #{mclita_forward.1} parent=1 // pred_fallthru
      _
    // Predicated region
    $region6: #{mclita_forward.1} parent=1 // pred_check
      _
    $region7: #{mclita_forward.1} parent=1 // pred_check_branch
      %17 = sbr.rel (0) target = $region9
    $region8: #{mclita_forward.1} parent=1 // pred_region
      _
    $region9: #{mclita_forward.1} parent=1 // pred_fallthru
      _
    // Predicated region
    $region10: #{mclita_forward.1} parent=1 // pred_check
      _
    $region11: #{mclita_forward.1} parent=1 // pred_check_branch
      %19 = sbr.rel (0) target = $region13
    $region12: #{mclita_forward.1} parent=1 // pred_region
      _
    $region13: #{mclita_forward.1} parent=1 // pred_fallthru
      _
    // Predicated region
    $region14: #{mclita_forward.1} parent=1 // pred_check
      _
    $region15: #{mclita_forward.1} parent=1 // pred_check_branch
      %21 = sbr.rel (0) target = $region17
    $region16: #{mclita_forward.1} parent=1 // pred_region
      %23 = vsyncadd [#allocation6], 0
      %s24 = sshll.u32 %s3, 4
      %s25 = int_to_ptr.hbm [resolvable:$true] %s24
      %s26 = sshll.u32 [#allocation5], 4
      %s27 = int_to_ptr.vmem [resolvable:$true] %s26
      %32 = dma.hbm_to_vmem [thread:$0]  %s25, 24576, %s27, [#allocation6], 1024, 1024, 64
    $region17: #{mclita_forward.1} parent=1 // pred_fallthru
      _
    // Predicated region
    $region18: #{mclita_forward.1} parent=1 // pred_check
      _
    $region19: #{mclita_forward.1} parent=1 // pred_check_branch
      %34 = sbr.rel (0) target = $region21
    $region20: #{mclita_forward.1} parent=1 // pred_region
      %36 = vsyncadd [#allocation8], 0
      %s37 = sshll.u32 %s4, 4
      %s38 = int_to_ptr.hbm [resolvable:$true] %s37
      %s39 = sshll.u32 [#allocation7], 4
      %s40 = int_to_ptr.vmem [resolvable:$true] %s39
      %45 = dma.hbm_to_vmem [thread:$0]  %s38, 16384, %s40, [#allocation8], 512, 512, 32
    $region21: #{mclita_forward.1} parent=1 // pred_fallthru
      _
    // Predicated region
    $region22: #{mclita_forward.1} parent=1 // pred_check
      _
    $region23: #{mclita_forward.1} parent=1 // pred_check_branch
      %47 = sbr.rel (0) target = $region25
    $region24: #{mclita_forward.1} parent=1 // pred_region
      _
    $region25: #{mclita_forward.1} parent=1 // pred_fallthru
      _
    // Predicated region
    $region26: #{mclita_forward.1} parent=1 // pred_check
      _
    $region27: #{mclita_forward.1} parent=1 // pred_check_branch
      %49 = sbr.rel (0) target = $region29
    $region28: #{mclita_forward.1} parent=1 // pred_region
      %51 = dma.done [#allocation6], 24576
    $region29: #{mclita_forward.1} parent=1 // pred_fallthru
      _
    // Predicated region
    $region30: #{mclita_forward.1} parent=1 // pred_check
      _
    $region31: #{mclita_forward.1} parent=1 // pred_check_branch
      %53 = sbr.rel (0) target = $region33
    $region32: #{mclita_forward.1} parent=1 // pred_region
      %55 = dma.done [#allocation8], 16384
    $region33: #{mclita_forward.1} parent=1 // pred_fallthru
      _
    // Predicated region
    $region34: #{mclita_forward.1} parent=1 // pred_check
      _
    $region35: #{mclita_forward.1} parent=1 // pred_check_branch
      %58 = sbr.rel target = $region37
    $region36: #{mclita_forward.1} parent=1 // pred_region
      %59 = sst [smem:[#allocation11]] [#allocation10]
      %60 = sst [smem:[#allocation12]] [#allocation9]
    $region37: #{mclita_forward.1} parent=1 // pred_fallthru
      _
    %62 = shalt.err (0)
    %s64 = sshll.u32 %s6, 4
    %s65 = int_to_ptr.hbm [resolvable:$true] %s64
    %s66 = sshll.u32 [#allocation3], 4
    %s67 = int_to_ptr.vmem [resolvable:$true] %s66
    %69 = dma.hbm_to_vmem [thread:$0]  %s65, 16384, %s67, [#allocation4]
    %v70 = vld [vmem:[%s0] sm:$0xff]
    %v71 = vld [vmem:[%s0 + $0x8] sm:$0xff]
    %v72 = vld [vmem:[%s0 + $0x10] sm:$0xff]
    %v73 = vld [vmem:[%s0 + $0x18] sm:$0xff]
    %v74 = vld [vmem:[%s0 + $0x20] sm:$0xff]
    %v75 = vld [vmem:[%s0 + $0x28] sm:$0xff]
    %v76 = vld [vmem:[%s0 + $0x30] sm:$0xff]
    %v77 = vld [vmem:[%s0 + $0x38] sm:$0xff]
    %v78 = vpack.c.bf16 %v71, %v70
    %v79 = vpack.c.bf16 %v73, %v72
    %v80 = vpack.c.bf16 %v75, %v74
    %v81 = vpack.c.bf16 %v77, %v76
    %v82 = vld [vmem:[%s1] sm:$0xff]
    %v83 = vld [vmem:[%s0 + $0x40] sm:$0xff]
    %v84 = vpack.c.bf16 %v72, %v71
    %v85 = vpack.c.bf16 %v74, %v73
    %v86 = vpack.c.bf16 %v76, %v75
    %v87 = vpack.c.bf16 %v83, %v77
    %v88 = vld [vmem:[%s1 + $0x8] sm:$0xff]
    %v90 = vunpack.c.l.b16 %v88
    %v91 = vunpack.c.h.b16 %v88
    %v92 = vpack.c.b16 %v90, %v90
    %v93 = vpack.c.b16 %v91, %v91
    %vm94 = vcmask 64512
    %v96 = vsel %vm94, %v84, 0
    %v99 = vsel %vm94, %v85, 0
    %v102 = vsel %vm94, %v86, 0
    %v105 = vsel %vm94, %v87, 0
    %vm107 = vcmask 1043456
    %v109 = vsel %vm107, %v92, 0
    %v112 = vsel %vm107, %v93, 0
    %114 = vmatpush.bf16.msra.mxu0 0
    %115 = vmatpush.bf16.msra.mxu0 0
    %116 = vmatpush.bf16.msra.mxu0 0
    %117 = vmatpush.bf16.msra.mxu0 0
    %118 = vmatpush.bf16.msra.mxu0 0
    %119 = vmatpush.bf16.msra.mxu0 0
    %120 = vmatpush.bf16.msra.mxu0 0
    %121 = vmatpush.bf16.msra.mxu0 %v109
    %122 = vmatmul.bf16.gmra.mxu0 %v96
    %v123 = vpop.f32.mrf.mxu0
    %v124 = vadd.f32 0.0, %v123
    %v125 = vpop.f32.mrf.mxu0
    %v126 = vadd.f32 0.0, %v125
    %127 = vmatmul.bf16.gmra.mxu0 %v99
    %v128 = vpop.f32.mrf.mxu0
    %v129 = vadd.f32 0.0, %v128
    %v130 = vpop.f32.mrf.mxu0
    %v131 = vadd.f32 0.0, %v130
    %132 = vmatmul.bf16.gmra.mxu0 %v102
    %v133 = vpop.f32.mrf.mxu0
    %v134 = vadd.f32 0.0, %v133
    %v135 = vpop.f32.mrf.mxu0
    %v136 = vadd.f32 0.0, %v135
    %137 = vmatmul.bf16.gmra.mxu0 %v105
    %v138 = vpop.f32.mrf.mxu0
    %v139 = vadd.f32 0.0, %v138
    %v140 = vpop.f32.mrf.mxu0
    %v141 = vadd.f32 0.0, %v140
    %142 = vdwg.mxu0
    %143 = vmatpush.bf16.msra.mxu0 0
    %144 = vmatpush.bf16.msra.mxu0 0
    %145 = vmatpush.bf16.msra.mxu0 0
    %146 = vmatpush.bf16.msra.mxu0 0
    %147 = vmatpush.bf16.msra.mxu0 0
    %148 = vmatpush.bf16.msra.mxu0 0
    %149 = vmatpush.bf16.msra.mxu0 0
    %150 = vmatpush.bf16.msra.mxu0 %v112
    %151 = vmatmul.bf16.gmra.mxu0 %v96
    %v152 = vpop.f32.mrf.mxu0
    %v153 = vadd.f32 0.0, %v152
    %v154 = vpop.f32.mrf.mxu0
    %v155 = vadd.f32 0.0, %v154
    %156 = vmatmul.bf16.gmra.mxu0 %v99
    %v157 = vpop.f32.mrf.mxu0
    %v158 = vadd.f32 0.0, %v157
    %v159 = vpop.f32.mrf.mxu0
    %v160 = vadd.f32 0.0, %v159
    %161 = vmatmul.bf16.gmra.mxu0 %v102
    %v162 = vpop.f32.mrf.mxu0
    %v163 = vadd.f32 0.0, %v162
    %v164 = vpop.f32.mrf.mxu0
    %v165 = vadd.f32 0.0, %v164
    %166 = vmatmul.bf16.gmra.mxu0 %v105
    %v167 = vpop.f32.mrf.mxu0
    %v168 = vadd.f32 0.0, %v167
    %v169 = vpop.f32.mrf.mxu0
    %v170 = vadd.f32 0.0, %v169
    %171 = vdwg.mxu0
    %v173 = vunpack.c.l.b16 %v82
    %v174 = vunpack.c.h.b16 %v82
    %v175 = vpack.c.b16 %v173, %v173
    %v176 = vpack.c.b16 %v174, %v174
    %v178 = vsel %vm94, %v78, 0
    %v181 = vsel %vm94, %v79, 0
    %v184 = vsel %vm94, %v80, 0
    %v187 = vsel %vm94, %v81, 0
    %v190 = vsel %vm107, %v175, 0
    %v193 = vsel %vm107, %v176, 0
    %195 = vmatpush.bf16.msra.mxu0 0
    %196 = vmatpush.bf16.msra.mxu0 0
    %197 = vmatpush.bf16.msra.mxu0 0
    %198 = vmatpush.bf16.msra.mxu0 0
    %199 = vmatpush.bf16.msra.mxu0 0
    %200 = vmatpush.bf16.msra.mxu0 0
    %201 = vmatpush.bf16.msra.mxu0 0
    %202 = vmatpush.bf16.msra.mxu0 %v190
    %203 = vmatmul.bf16.gmra.mxu0 %v178
    %v204 = vpop.f32.mrf.mxu0
    %v205 = vadd.f32 %v124, %v204
    %v206 = vpop.f32.mrf.mxu0
    %v207 = vadd.f32 %v126, %v206
    %208 = vmatmul.bf16.gmra.mxu0 %v181
    %v209 = vpop.f32.mrf.mxu0
    %v210 = vadd.f32 %v129, %v209
    %v211 = vpop.f32.mrf.mxu0
    %v212 = vadd.f32 %v131, %v211
    %213 = vmatmul.bf16.gmra.mxu0 %v184
    %v214 = vpop.f32.mrf.mxu0
    %v215 = vadd.f32 %v134, %v214
    %v216 = vpop.f32.mrf.mxu0
    %v217 = vadd.f32 %v136, %v216
    %218 = vmatmul.bf16.gmra.mxu0 %v187
    %v219 = vpop.f32.mrf.mxu0
    %v220 = vadd.f32 %v139, %v219
    %v221 = vpop.f32.mrf.mxu0
    %v222 = vadd.f32 %v141, %v221
    %223 = vdwg.mxu0
    %224 = vmatpush.bf16.msra.mxu0 0
    %225 = vmatpush.bf16.msra.mxu0 0
    %226 = vmatpush.bf16.msra.mxu0 0
    %227 = vmatpush.bf16.msra.mxu0 0
    %228 = vmatpush.bf16.msra.mxu0 0
    %229 = vmatpush.bf16.msra.mxu0 0
    %230 = vmatpush.bf16.msra.mxu0 0
    %231 = vmatpush.bf16.msra.mxu0 %v193
    %232 = vmatmul.bf16.gmra.mxu0 %v178
    %v233 = vpop.f32.mrf.mxu0
    %v234 = vadd.f32 %v153, %v233
    %v235 = vpop.f32.mrf.mxu0
    %v236 = vadd.f32 %v155, %v235
    %237 = vmatmul.bf16.gmra.mxu0 %v181
    %v238 = vpop.f32.mrf.mxu0
    %v239 = vadd.f32 %v158, %v238
    %v240 = vpop.f32.mrf.mxu0
    %v241 = vadd.f32 %v160, %v240
    %242 = vmatmul.bf16.gmra.mxu0 %v184
    %v243 = vpop.f32.mrf.mxu0
    %v244 = vadd.f32 %v163, %v243
    %v245 = vpop.f32.mrf.mxu0
    %v246 = vadd.f32 %v165, %v245
    %247 = vmatmul.bf16.gmra.mxu0 %v187
    %v248 = vpop.f32.mrf.mxu0
    %v249 = vadd.f32 %v168, %v248
    %v250 = vpop.f32.mrf.mxu0
    %v251 = vadd.f32 %v170, %v250
    %252 = vdwg.mxu0
    %v253 = vld [vmem:[%s0 + $0x10] sm:$0xff]
    %v254 = vld [vmem:[%s0 + $0x18] sm:$0xff]
    %v255 = vld [vmem:[%s0 + $0x20] sm:$0xff]
    %v256 = vld [vmem:[%s0 + $0x28] sm:$0xff]
    %v257 = vld [vmem:[%s0 + $0x30] sm:$0xff]
    %v258 = vld [vmem:[%s0 + $0x38] sm:$0xff]
    %v259 = vld [vmem:[%s0 + $0x40] sm:$0xff]
    %v260 = vld [vmem:[%s0 + $0x48] sm:$0xff]
    %v261 = vpack.c.bf16 %v253, %v253
    %v262 = vpack.c.bf16 %v254, %v254
    %v263 = vpack.c.bf16 %v255, %v255
    %v264 = vpack.c.bf16 %v256, %v256
    %v265 = vpack.c.bf16 %v257, %v257
    %v266 = vpack.c.bf16 %v258, %v258
    %v267 = vpack.c.bf16 %v259, %v259
    %v268 = vpack.c.bf16 %v260, %v260
    %v269 = vld [vmem:[%s1 + $0x10] sm:$0xff]
    %v278 = vunpack.c.l.b16 %v261
    %v279 = vunpack.c.l.b16 %v262
    %v280 = vunpack.c.l.b16 %v263
    %v281 = vunpack.c.l.b16 %v264
    %v282 = vunpack.c.l.b16 %v265
    %v283 = vunpack.c.l.b16 %v266
    %v284 = vunpack.c.l.b16 %v267
    %v285 = vunpack.c.l.b16 %v268
    %v286 = vpack.c.b16 %v279, %v278
    %v287 = vpack.c.b16 %v281, %v280
    %v288 = vpack.c.b16 %v283, %v282
    %v289 = vpack.c.b16 %v285, %v284
    %v291 = vunpack.c.l.b16 %v269
    %v292 = vunpack.c.h.b16 %v269
    %v293 = vpack.c.b16 %v291, %v291
    %v294 = vpack.c.b16 %v292, %v292
    %v296 = vsel %vm94, %v286, 0
    %v299 = vsel %vm94, %v287, 0
    %v302 = vsel %vm94, %v288, 0
    %v305 = vsel %vm94, %v289, 0
    %v308 = vsel %vm107, %v293, 0
    %v311 = vsel %vm107, %v294, 0
    %313 = vmatpush.bf16.msra.mxu0 0
    %314 = vmatpush.bf16.msra.mxu0 0
    %315 = vmatpush.bf16.msra.mxu0 0
    %316 = vmatpush.bf16.msra.mxu0 0
    %317 = vmatpush.bf16.msra.mxu0 0
    %318 = vmatpush.bf16.msra.mxu0 0
    %319 = vmatpush.bf16.msra.mxu0 0
    %320 = vmatpush.bf16.msra.mxu0 %v308
    %321 = vmatmul.bf16.gmra.mxu0 %v296
    %v322 = vpop.f32.mrf.mxu0
    %v323 = vadd.f32 0.0, %v322
    %v324 = vpop.f32.mrf.mxu0
    %v325 = vadd.f32 0.0, %v324
    %326 = vmatmul.bf16.gmra.mxu0 %v299
    %v327 = vpop.f32.mrf.mxu0
    %v328 = vadd.f32 0.0, %v327
    %v329 = vpop.f32.mrf.mxu0
    %v330 = vadd.f32 0.0, %v329
    %331 = vmatmul.bf16.gmra.mxu0 %v302
    %v332 = vpop.f32.mrf.mxu0
    %v333 = vadd.f32 0.0, %v332
    %v334 = vpop.f32.mrf.mxu0
    %v335 = vadd.f32 0.0, %v334
    %336 = vmatmul.bf16.gmra.mxu0 %v305
    %v337 = vpop.f32.mrf.mxu0
    %v338 = vadd.f32 0.0, %v337
    %v339 = vpop.f32.mrf.mxu0
    %v340 = vadd.f32 0.0, %v339
    %341 = vdwg.mxu0
    %342 = vmatpush.bf16.msra.mxu0 0
    %343 = vmatpush.bf16.msra.mxu0 0
    %344 = vmatpush.bf16.msra.mxu0 0
    %345 = vmatpush.bf16.msra.mxu0 0
    %346 = vmatpush.bf16.msra.mxu0 0
    %347 = vmatpush.bf16.msra.mxu0 0
    %348 = vmatpush.bf16.msra.mxu0 0
    %349 = vmatpush.bf16.msra.mxu0 %v311
    %350 = vmatmul.bf16.gmra.mxu0 %v296
    %v351 = vpop.f32.mrf.mxu0
    %v352 = vadd.f32 0.0, %v351
    %v353 = vpop.f32.mrf.mxu0
    %v354 = vadd.f32 0.0, %v353
    %355 = vmatmul.bf16.gmra.mxu0 %v299
    %v356 = vpop.f32.mrf.mxu0
    %v357 = vadd.f32 0.0, %v356
    %v358 = vpop.f32.mrf.mxu0
    %v359 = vadd.f32 0.0, %v358
    %360 = vmatmul.bf16.gmra.mxu0 %v302
    %v361 = vpop.f32.mrf.mxu0
    %v362 = vadd.f32 0.0, %v361
    %v363 = vpop.f32.mrf.mxu0
    %v364 = vadd.f32 0.0, %v363
    %365 = vmatmul.bf16.gmra.mxu0 %v305
    %v366 = vpop.f32.mrf.mxu0
    %v367 = vadd.f32 0.0, %v366
    %v368 = vpop.f32.mrf.mxu0
    %v369 = vadd.f32 0.0, %v368
    %370 = vdwg.mxu0
    %v371 = vadd.f32 %v205, %v323
    %v372 = vadd.f32 %v234, %v352
    %v373 = vadd.f32 %v207, %v325
    %v374 = vadd.f32 %v236, %v354
    %v375 = vadd.f32 %v210, %v328
    %v376 = vadd.f32 %v239, %v357
    %v377 = vadd.f32 %v212, %v330
    %v378 = vadd.f32 %v241, %v359
    %v379 = vadd.f32 %v215, %v333
    %v380 = vadd.f32 %v244, %v362
    %v381 = vadd.f32 %v217, %v335
    %v382 = vadd.f32 %v246, %v364
    %v383 = vadd.f32 %v220, %v338
    %v384 = vadd.f32 %v249, %v367
    %v385 = vadd.f32 %v222, %v340
    %v386 = vadd.f32 %v251, %v369
    %v387 = vld [vmem:[%s0 + $0x18] sm:$0xff]
    %v388 = vld [vmem:[%s0 + $0x20] sm:$0xff]
    %v389 = vld [vmem:[%s0 + $0x28] sm:$0xff]
    %v390 = vld [vmem:[%s0 + $0x30] sm:$0xff]
    %v391 = vld [vmem:[%s0 + $0x38] sm:$0xff]
    %v392 = vld [vmem:[%s0 + $0x40] sm:$0xff]
    %v393 = vld [vmem:[%s0 + $0x48] sm:$0xff]
    %v394 = vld [vmem:[%s0 + $0x50] sm:$0xff]
    %v395 = vpack.c.bf16 %v388, %v387
    %v396 = vpack.c.bf16 %v390, %v389
    %v397 = vpack.c.bf16 %v392, %v391
    %v398 = vpack.c.bf16 %v394, %v393
    %v399 = vld [vmem:[%s1 + $0x18] sm:$0xff]
    %v401 = vunpack.c.l.b16 %v399
    %v402 = vunpack.c.h.b16 %v399
    %v403 = vpack.c.b16 %v401, %v401
    %v404 = vpack.c.b16 %v402, %v402
    %v406 = vsel %vm94, %v395, 0
    %v409 = vsel %vm94, %v396, 0
    %v412 = vsel %vm94, %v397, 0
    %v415 = vsel %vm94, %v398, 0
    %v418 = vsel %vm107, %v403, 0
    %v421 = vsel %vm107, %v404, 0
    %423 = vmatpush.bf16.msra.mxu0 0
    %424 = vmatpush.bf16.msra.mxu0 0
    %425 = vmatpush.bf16.msra.mxu0 0
    %426 = vmatpush.bf16.msra.mxu0 0
    %427 = vmatpush.bf16.msra.mxu0 0
    %428 = vmatpush.bf16.msra.mxu0 0
    %429 = vmatpush.bf16.msra.mxu0 0
    %430 = vmatpush.bf16.msra.mxu0 %v418
    %431 = vmatmul.bf16.gmra.mxu0 %v406
    %v432 = vpop.f32.mrf.mxu0
    %v433 = vadd.f32 0.0, %v432
    %v434 = vpop.f32.mrf.mxu0
    %v435 = vadd.f32 0.0, %v434
    %436 = vmatmul.bf16.gmra.mxu0 %v409
    %v437 = vpop.f32.mrf.mxu0
    %v438 = vadd.f32 0.0, %v437
    %v439 = vpop.f32.mrf.mxu0
    %v440 = vadd.f32 0.0, %v439
    %441 = vmatmul.bf16.gmra.mxu0 %v412
    %v442 = vpop.f32.mrf.mxu0
    %v443 = vadd.f32 0.0, %v442
    %v444 = vpop.f32.mrf.mxu0
    %v445 = vadd.f32 0.0, %v444
    %446 = vmatmul.bf16.gmra.mxu0 %v415
    %v447 = vpop.f32.mrf.mxu0
    %v448 = vadd.f32 0.0, %v447
    %v449 = vpop.f32.mrf.mxu0
    %v450 = vadd.f32 0.0, %v449
    %451 = vdwg.mxu0
    %452 = vmatpush.bf16.msra.mxu0 0
    %453 = vmatpush.bf16.msra.mxu0 0
    %454 = vmatpush.bf16.msra.mxu0 0
    %455 = vmatpush.bf16.msra.mxu0 0
    %456 = vmatpush.bf16.msra.mxu0 0
    %457 = vmatpush.bf16.msra.mxu0 0
    %458 = vmatpush.bf16.msra.mxu0 0
    %459 = vmatpush.bf16.msra.mxu0 %v421
    %460 = vmatmul.bf16.gmra.mxu0 %v406
    %v461 = vpop.f32.mrf.mxu0
    %v462 = vadd.f32 0.0, %v461
    %v463 = vpop.f32.mrf.mxu0
    %v464 = vadd.f32 0.0, %v463
    %465 = vmatmul.bf16.gmra.mxu0 %v409
    %v466 = vpop.f32.mrf.mxu0
    %v467 = vadd.f32 0.0, %v466
    %v468 = vpop.f32.mrf.mxu0
    %v469 = vadd.f32 0.0, %v468
    %470 = vmatmul.bf16.gmra.mxu0 %v412
    %v471 = vpop.f32.mrf.mxu0
    %v472 = vadd.f32 0.0, %v471
    %v473 = vpop.f32.mrf.mxu0
    %v474 = vadd.f32 0.0, %v473
    %475 = vmatmul.bf16.gmra.mxu0 %v415
    %v476 = vpop.f32.mrf.mxu0
    %v477 = vadd.f32 0.0, %v476
    %v478 = vpop.f32.mrf.mxu0
    %v479 = vadd.f32 0.0, %v478
    %480 = vdwg.mxu0
    %v481 = vadd.f32 %v371, %v433
    %v482 = vadd.f32 %v372, %v462
    %v483 = vadd.f32 %v373, %v435
    %v484 = vadd.f32 %v374, %v464
    %v485 = vadd.f32 %v375, %v438
    %v486 = vadd.f32 %v376, %v467
    %v487 = vadd.f32 %v377, %v440
    %v488 = vadd.f32 %v378, %v469
    %v489 = vadd.f32 %v379, %v443
    %v490 = vadd.f32 %v380, %v472
    %v491 = vadd.f32 %v381, %v445
    %v492 = vadd.f32 %v382, %v474
    %v493 = vadd.f32 %v383, %v448
    %v494 = vadd.f32 %v384, %v477
    %v495 = vadd.f32 %v385, %v450
    %v496 = vadd.f32 %v386, %v479
    %v497 = vld [vmem:[%s0 + $0x20] sm:$0xff]
    %v498 = vld [vmem:[%s0 + $0x28] sm:$0xff]
    %v499 = vld [vmem:[%s0 + $0x30] sm:$0xff]
    %v500 = vld [vmem:[%s0 + $0x38] sm:$0xff]
    %v501 = vld [vmem:[%s0 + $0x40] sm:$0xff]
    %v502 = vld [vmem:[%s0 + $0x48] sm:$0xff]
    %v503 = vld [vmem:[%s0 + $0x50] sm:$0xff]
    %v504 = vld [vmem:[%s0 + $0x58] sm:$0xff]
    %v505 = vpack.c.bf16 %v498, %v497
    %v506 = vpack.c.bf16 %v500, %v499
    %v507 = vpack.c.bf16 %v502, %v501
    %v508 = vpack.c.bf16 %v504, %v503
    %v509 = vld [vmem:[%s1 + $0x20] sm:$0xff]
    %v511 = vunpack.c.l.b16 %v509
    %v512 = vunpack.c.h.b16 %v509
    %v513 = vpack.c.b16 %v511, %v511
    %v514 = vpack.c.b16 %v512, %v512
    %v516 = vsel %vm94, %v505, 0
    %v519 = vsel %vm94, %v506, 0
    %v522 = vsel %vm94, %v507, 0
    %v525 = vsel %vm94, %v508, 0
    %v528 = vsel %vm107, %v513, 0
    %v531 = vsel %vm107, %v514, 0
    %533 = vmatpush.bf16.msra.mxu0 0
    %534 = vmatpush.bf16.msra.mxu0 0
    %535 = vmatpush.bf16.msra.mxu0 0
    %536 = vmatpush.bf16.msra.mxu0 0
    %537 = vmatpush.bf16.msra.mxu0 0
    %538 = vmatpush.bf16.msra.mxu0 0
    %539 = vmatpush.bf16.msra.mxu0 0
    %540 = vmatpush.bf16.msra.mxu0 %v528
    %541 = vmatmul.bf16.gmra.mxu0 %v516
    %v542 = vpop.f32.mrf.mxu0
    %v543 = vadd.f32 0.0, %v542
    %v544 = vpop.f32.mrf.mxu0
    %v545 = vadd.f32 0.0, %v544
    %546 = vmatmul.bf16.gmra.mxu0 %v519
    %v547 = vpop.f32.mrf.mxu0
    %v548 = vadd.f32 0.0, %v547
    %v549 = vpop.f32.mrf.mxu0
    %v550 = vadd.f32 0.0, %v549
    %551 = vmatmul.bf16.gmra.mxu0 %v522
    %v552 = vpop.f32.mrf.mxu0
    %v553 = vadd.f32 0.0, %v552
    %v554 = vpop.f32.mrf.mxu0
    %v555 = vadd.f32 0.0, %v554
    %556 = vmatmul.bf16.gmra.mxu0 %v525
    %v557 = vpop.f32.mrf.mxu0
    %v558 = vadd.f32 0.0, %v557
    %v559 = vpop.f32.mrf.mxu0
    %v560 = vadd.f32 0.0, %v559
    %561 = vdwg.mxu0
    %562 = vmatpush.bf16.msra.mxu0 0
    %563 = vmatpush.bf16.msra.mxu0 0
    %564 = vmatpush.bf16.msra.mxu0 0
    %565 = vmatpush.bf16.msra.mxu0 0
    %566 = vmatpush.bf16.msra.mxu0 0
    %567 = vmatpush.bf16.msra.mxu0 0
    %568 = vmatpush.bf16.msra.mxu0 0
    %569 = vmatpush.bf16.msra.mxu0 %v531
    %570 = vmatmul.bf16.gmra.mxu0 %v516
    %v571 = vpop.f32.mrf.mxu0
    %v572 = vadd.f32 0.0, %v571
    %v573 = vpop.f32.mrf.mxu0
    %v574 = vadd.f32 0.0, %v573
    %575 = vmatmul.bf16.gmra.mxu0 %v519
    %v576 = vpop.f32.mrf.mxu0
    %v577 = vadd.f32 0.0, %v576
    %v578 = vpop.f32.mrf.mxu0
    %v579 = vadd.f32 0.0, %v578
    %580 = vmatmul.bf16.gmra.mxu0 %v522
    %v581 = vpop.f32.mrf.mxu0
    %v582 = vadd.f32 0.0, %v581
    %v583 = vpop.f32.mrf.mxu0
    %v584 = vadd.f32 0.0, %v583
    %585 = vmatmul.bf16.gmra.mxu0 %v525
    %v586 = vpop.f32.mrf.mxu0
    %v587 = vadd.f32 0.0, %v586
    %v588 = vpop.f32.mrf.mxu0
    %v589 = vadd.f32 0.0, %v588
    %590 = vdwg.mxu0
    %v591 = vadd.f32 %v481, %v543
    %v592 = vadd.f32 %v482, %v572
    %v593 = vadd.f32 %v483, %v545
    %v594 = vadd.f32 %v484, %v574
    %v595 = vadd.f32 %v485, %v548
    %v596 = vadd.f32 %v486, %v577
    %v597 = vadd.f32 %v487, %v550
    %v598 = vadd.f32 %v488, %v579
    %v599 = vadd.f32 %v489, %v553
    %v600 = vadd.f32 %v490, %v582
    %v601 = vadd.f32 %v491, %v555
    %v602 = vadd.f32 %v492, %v584
    %v603 = vadd.f32 %v493, %v558
    %v604 = vadd.f32 %v494, %v587
    %v605 = vadd.f32 %v495, %v560
    %v606 = vadd.f32 %v496, %v589
    %v607 = vld [vmem:[%s5] sm:$0x3]
    %v609 = vperm.slane %v607, 0
    %v610 = vperm.slane %v607, 1
    %v613 = vadd.f32 %v591, %v609
    %v614 = vadd.f32 %v592, %v610
    %v615 = vadd.f32 %v593, %v609
    %v616 = vadd.f32 %v594, %v610
    %v617 = vadd.f32 %v595, %v609
    %v618 = vadd.f32 %v596, %v610
    %v619 = vadd.f32 %v597, %v609
    %v620 = vadd.f32 %v598, %v610
    %v621 = vadd.f32 %v599, %v609
    %v622 = vadd.f32 %v600, %v610
    %v623 = vadd.f32 %v601, %v609
    %v624 = vadd.f32 %v602, %v610
    %v625 = vadd.f32 %v603, %v609
    %v626 = vadd.f32 %v604, %v610
    %v627 = vadd.f32 %v605, %v609
    %v628 = vadd.f32 %v606, %v610
    %v629 = vmax.f32 %v613, 0.0
    %v630 = vmax.f32 %v614, 0.0
    %v631 = vmax.f32 %v615, 0.0
    %v632 = vmax.f32 %v616, 0.0
    %v633 = vmax.f32 %v617, 0.0
    %v634 = vmax.f32 %v618, 0.0
    %v635 = vmax.f32 %v619, 0.0
    %v636 = vmax.f32 %v620, 0.0
    %v637 = vmax.f32 %v621, 0.0
    %v638 = vmax.f32 %v622, 0.0
    %v639 = vmax.f32 %v623, 0.0
    %v640 = vmax.f32 %v624, 0.0
    %v641 = vmax.f32 %v625, 0.0
    %v642 = vmax.f32 %v626, 0.0
    %v643 = vmax.f32 %v627, 0.0
    %v644 = vmax.f32 %v628, 0.0
    %v645 = vpack.c.bf16 %v630, %v629
    %v646 = vpack.c.bf16 %v632, %v631
    %v647 = vpack.c.bf16 %v634, %v633
    %v648 = vpack.c.bf16 %v636, %v635
    %v649 = vpack.c.bf16 %v638, %v637
    %v650 = vpack.c.bf16 %v640, %v639
    %v651 = vpack.c.bf16 %v642, %v641
    %v652 = vpack.c.bf16 %v644, %v643
    %v653 = vld [vmem:[%s2] sm:$0xff]
    %v654 = vld [vmem:[%s2 + $0x8] sm:$0xff]
    %v655 = vld [vmem:[%s2 + $0x10] sm:$0xff]
    %v656 = vld [vmem:[%s2 + $0x18] sm:$0xff]
    %v657 = vld [vmem:[#allocation5] sm:$0xff]
    %v658 = vld [vmem:[#allocation5 + $0x8] sm:$0xff]
    %v659 = vld [vmem:[#allocation5 + $0x10] sm:$0xff]
    %v660 = vld [vmem:[#allocation5 + $0x18] sm:$0xff]
    %v661 = vld [vmem:[#allocation5 + $0x40] sm:$0xff]
    %v662 = vld [vmem:[#allocation5 + $0x48] sm:$0xff]
    %v663 = vld [vmem:[#allocation5 + $0x50] sm:$0xff]
    %v664 = vld [vmem:[#allocation5 + $0x58] sm:$0xff]
    %v665 = vld [vmem:[#allocation5 + $0x80] sm:$0xff]
    %v666 = vld [vmem:[#allocation5 + $0x88] sm:$0xff]
    %v667 = vld [vmem:[#allocation5 + $0x90] sm:$0xff]
    %v668 = vld [vmem:[#allocation5 + $0x98] sm:$0xff]
    %v669 = vld [vmem:[#allocation5 + $0xc0] sm:$0xff]
    %v670 = vld [vmem:[#allocation5 + $0xc8] sm:$0xff]
    %v671 = vld [vmem:[#allocation5 + $0xd0] sm:$0xff]
    %v672 = vld [vmem:[#allocation5 + $0xd8] sm:$0xff]
    %v673 = vld [vmem:[#allocation5 + $0x100] sm:$0xff]
    %v674 = vld [vmem:[#allocation5 + $0x108] sm:$0xff]
    %v675 = vld [vmem:[#allocation5 + $0x110] sm:$0xff]
    %v676 = vld [vmem:[#allocation5 + $0x118] sm:$0xff]
    %v677 = vld [vmem:[#allocation5 + $0x140] sm:$0xff]
    %v678 = vld [vmem:[#allocation5 + $0x148] sm:$0xff]
    %v679 = vld [vmem:[#allocation5 + $0x150] sm:$0xff]
    %v680 = vld [vmem:[#allocation5 + $0x158] sm:$0xff]
    %v681 = vld [vmem:[#allocation5 + $0x180] sm:$0xff]
    %v682 = vld [vmem:[#allocation5 + $0x188] sm:$0xff]
    %v683 = vld [vmem:[#allocation5 + $0x190] sm:$0xff]
    %v684 = vld [vmem:[#allocation5 + $0x198] sm:$0xff]
    %v685 = vld [vmem:[#allocation5 + $0x1c0] sm:$0xff]
    %v686 = vld [vmem:[#allocation5 + $0x1c8] sm:$0xff]
    %v687 = vld [vmem:[#allocation5 + $0x1d0] sm:$0xff]
    %v688 = vld [vmem:[#allocation5 + $0x1d8] sm:$0xff]
    %v689 = vld [vmem:[#allocation5 + $0x200] sm:$0xff]
    %v690 = vld [vmem:[#allocation5 + $0x208] sm:$0xff]
    %v691 = vld [vmem:[#allocation5 + $0x210] sm:$0xff]
    %v692 = vld [vmem:[#allocation5 + $0x218] sm:$0xff]
    %v693 = vld [vmem:[#allocation5 + $0x240] sm:$0xff]
    %v694 = vld [vmem:[#allocation5 + $0x248] sm:$0xff]
    %v695 = vld [vmem:[#allocation5 + $0x250] sm:$0xff]
    %v696 = vld [vmem:[#allocation5 + $0x258] sm:$0xff]
    %v697 = vld [vmem:[#allocation5 + $0x280] sm:$0xff]
    %v698 = vld [vmem:[#allocation5 + $0x288] sm:$0xff]
    %v699 = vld [vmem:[#allocation5 + $0x290] sm:$0xff]
    %v700 = vld [vmem:[#allocation5 + $0x298] sm:$0xff]
    %v701 = vld [vmem:[#allocation5 + $0x2c0] sm:$0xff]
    %v702 = vld [vmem:[#allocation5 + $0x2c8] sm:$0xff]
    %v703 = vld [vmem:[#allocation5 + $0x2d0] sm:$0xff]
    %v704 = vld [vmem:[#allocation5 + $0x2d8] sm:$0xff]
    %v705 = vld [vmem:[#allocation5 + $0x300] sm:$0xff]
    %v706 = vld [vmem:[#allocation5 + $0x308] sm:$0xff]
    %v707 = vld [vmem:[#allocation5 + $0x310] sm:$0xff]
    %v708 = vld [vmem:[#allocation5 + $0x318] sm:$0xff]
    %v709 = vld [vmem:[#allocation5 + $0x340] sm:$0xff]
    %v710 = vld [vmem:[#allocation5 + $0x348] sm:$0xff]
    %v711 = vld [vmem:[#allocation5 + $0x350] sm:$0xff]
    %v712 = vld [vmem:[#allocation5 + $0x358] sm:$0xff]
    %v713 = vld [vmem:[#allocation5 + $0x380] sm:$0xff]
    %v714 = vld [vmem:[#allocation5 + $0x388] sm:$0xff]
    %v715 = vld [vmem:[#allocation5 + $0x390] sm:$0xff]
    %v716 = vld [vmem:[#allocation5 + $0x398] sm:$0xff]
    %v717 = vld [vmem:[#allocation5 + $0x3c0] sm:$0xff]
    %v718 = vld [vmem:[#allocation5 + $0x3c8] sm:$0xff]
    %v719 = vld [vmem:[#allocation5 + $0x3d0] sm:$0xff]
    %v720 = vld [vmem:[#allocation5 + $0x3d8] sm:$0xff]
    %v721 = vld [vmem:[#allocation5 + $0x400] sm:$0xff]
    %v722 = vld [vmem:[#allocation5 + $0x408] sm:$0xff]
    %v723 = vld [vmem:[#allocation5 + $0x410] sm:$0xff]
    %v724 = vld [vmem:[#allocation5 + $0x418] sm:$0xff]
    %v725 = vld [vmem:[#allocation5 + $0x440] sm:$0xff]
    %v726 = vld [vmem:[#allocation5 + $0x448] sm:$0xff]
    %v727 = vld [vmem:[#allocation5 + $0x450] sm:$0xff]
    %v728 = vld [vmem:[#allocation5 + $0x458] sm:$0xff]
    %v729 = vld [vmem:[#allocation5 + $0x480] sm:$0xff]
    %v730 = vld [vmem:[#allocation5 + $0x488] sm:$0xff]
    %v731 = vld [vmem:[#allocation5 + $0x490] sm:$0xff]
    %v732 = vld [vmem:[#allocation5 + $0x498] sm:$0xff]
    %v733 = vld [vmem:[#allocation5 + $0x4c0] sm:$0xff]
    %v734 = vld [vmem:[#allocation5 + $0x4c8] sm:$0xff]
    %v735 = vld [vmem:[#allocation5 + $0x4d0] sm:$0xff]
    %v736 = vld [vmem:[#allocation5 + $0x4d8] sm:$0xff]
    %v737 = vld [vmem:[#allocation5 + $0x500] sm:$0xff]
    %v738 = vld [vmem:[#allocation5 + $0x508] sm:$0xff]
    %v739 = vld [vmem:[#allocation5 + $0x510] sm:$0xff]
    %v740 = vld [vmem:[#allocation5 + $0x518] sm:$0xff]
    %v741 = vld [vmem:[#allocation5 + $0x540] sm:$0xff]
    %v742 = vld [vmem:[#allocation5 + $0x548] sm:$0xff]
    %v743 = vld [vmem:[#allocation5 + $0x550] sm:$0xff]
    %v744 = vld [vmem:[#allocation5 + $0x558] sm:$0xff]
    %v745 = vld [vmem:[#allocation5 + $0x580] sm:$0xff]
    %v746 = vld [vmem:[#allocation5 + $0x588] sm:$0xff]
    %v747 = vld [vmem:[#allocation5 + $0x590] sm:$0xff]
    %v748 = vld [vmem:[#allocation5 + $0x598] sm:$0xff]
    %v749 = vld [vmem:[#allocation5 + $0x5c0] sm:$0xff]
    %v750 = vld [vmem:[#allocation5 + $0x5c8] sm:$0xff]
    %v751 = vld [vmem:[#allocation5 + $0x5d0] sm:$0xff]
    %v752 = vld [vmem:[#allocation5 + $0x5d8] sm:$0xff]
    %v761 = vunpack.c.l.b16 %v645
    %v762 = vunpack.c.h.b16 %v645
    %v763 = vunpack.c.l.b16 %v646
    %v764 = vunpack.c.h.b16 %v646
    %v765 = vunpack.c.l.b16 %v647
    %v766 = vunpack.c.h.b16 %v647
    %v767 = vunpack.c.l.b16 %v648
    %v768 = vunpack.c.h.b16 %v648
    %v769 = vunpack.c.l.b16 %v649
    %v770 = vunpack.c.h.b16 %v649
    %v771 = vunpack.c.l.b16 %v650
    %v772 = vunpack.c.h.b16 %v650
    %v773 = vunpack.c.l.b16 %v651
    %v774 = vunpack.c.h.b16 %v651
    %v775 = vunpack.c.l.b16 %v652
    %v776 = vunpack.c.h.b16 %v652
    %v777 = vpack.c.b16 %v763, %v761
    %v778 = vpack.c.b16 %v764, %v762
    %v779 = vpack.c.b16 %v767, %v765
    %v780 = vpack.c.b16 %v768, %v766
    %v781 = vpack.c.b16 %v771, %v769
    %v782 = vpack.c.b16 %v772, %v770
    %v783 = vpack.c.b16 %v775, %v773
    %v784 = vpack.c.b16 %v776, %v774
    %v885 = vunpack.c.l.b16 %v657
    %v886 = vunpack.c.h.b16 %v657
    %v887 = vunpack.c.l.b16 %v658
    %v888 = vunpack.c.h.b16 %v658
    %v889 = vunpack.c.l.b16 %v659
    %v890 = vunpack.c.h.b16 %v659
    %v891 = vunpack.c.l.b16 %v660
    %v892 = vunpack.c.h.b16 %v660
    %v893 = vunpack.c.l.b16 %v661
    %v894 = vunpack.c.h.b16 %v661
    %v895 = vunpack.c.l.b16 %v662
    %v896 = vunpack.c.h.b16 %v662
    %v897 = vunpack.c.l.b16 %v663
    %v898 = vunpack.c.h.b16 %v663
    %v899 = vunpack.c.l.b16 %v664
    %v900 = vunpack.c.h.b16 %v664
    %v901 = vunpack.c.l.b16 %v665
    %v902 = vunpack.c.h.b16 %v665
    %v903 = vunpack.c.l.b16 %v666
    %v904 = vunpack.c.h.b16 %v666
    %v905 = vunpack.c.l.b16 %v667
    %v906 = vunpack.c.h.b16 %v667
    %v907 = vunpack.c.l.b16 %v668
    %v908 = vunpack.c.h.b16 %v668
    %v909 = vunpack.c.l.b16 %v669
    %v910 = vunpack.c.h.b16 %v669
    %v911 = vunpack.c.l.b16 %v670
    %v912 = vunpack.c.h.b16 %v670
    %v913 = vunpack.c.l.b16 %v671
    %v914 = vunpack.c.h.b16 %v671
    %v915 = vunpack.c.l.b16 %v672
    %v916 = vunpack.c.h.b16 %v672
    %v917 = vunpack.c.l.b16 %v673
    %v918 = vunpack.c.h.b16 %v673
    %v919 = vunpack.c.l.b16 %v674
    %v920 = vunpack.c.h.b16 %v674
    %v921 = vunpack.c.l.b16 %v675
    %v922 = vunpack.c.h.b16 %v675
    %v923 = vunpack.c.l.b16 %v676
    %v924 = vunpack.c.h.b16 %v676
    %v925 = vunpack.c.l.b16 %v677
    %v926 = vunpack.c.h.b16 %v677
    %v927 = vunpack.c.l.b16 %v678
    %v928 = vunpack.c.h.b16 %v678
    %v929 = vunpack.c.l.b16 %v679
    %v930 = vunpack.c.h.b16 %v679
    %v931 = vunpack.c.l.b16 %v680
    %v932 = vunpack.c.h.b16 %v680
    %v933 = vunpack.c.l.b16 %v681
    %v934 = vunpack.c.h.b16 %v681
    %v935 = vunpack.c.l.b16 %v682
    %v936 = vunpack.c.h.b16 %v682
    %v937 = vunpack.c.l.b16 %v683
    %v938 = vunpack.c.h.b16 %v683
    %v939 = vunpack.c.l.b16 %v684
    %v940 = vunpack.c.h.b16 %v684
    %v941 = vunpack.c.l.b16 %v685
    %v942 = vunpack.c.h.b16 %v685
    %v943 = vunpack.c.l.b16 %v686
    %v944 = vunpack.c.h.b16 %v686
    %v945 = vunpack.c.l.b16 %v687
    %v946 = vunpack.c.h.b16 %v687
    %v947 = vunpack.c.l.b16 %v688
    %v948 = vunpack.c.h.b16 %v688
    %v949 = vunpack.c.l.b16 %v689
    %v950 = vunpack.c.h.b16 %v689
    %v951 = vunpack.c.l.b16 %v690
    %v952 = vunpack.c.h.b16 %v690
    %v953 = vunpack.c.l.b16 %v691
    %v954 = vunpack.c.h.b16 %v691
    %v955 = vunpack.c.l.b16 %v692
    %v956 = vunpack.c.h.b16 %v692
    %v957 = vunpack.c.l.b16 %v693
    %v958 = vunpack.c.h.b16 %v693
    %v959 = vunpack.c.l.b16 %v694
    %v960 = vunpack.c.h.b16 %v694
    %v961 = vunpack.c.l.b16 %v695
    %v962 = vunpack.c.h.b16 %v695
    %v963 = vunpack.c.l.b16 %v696
    %v964 = vunpack.c.h.b16 %v696
    %v965 = vunpack.c.l.b16 %v697
    %v966 = vunpack.c.h.b16 %v697
    %v967 = vunpack.c.l.b16 %v698
    %v968 = vunpack.c.h.b16 %v698
    %v969 = vunpack.c.l.b16 %v699
    %v970 = vunpack.c.h.b16 %v699
    %v971 = vunpack.c.l.b16 %v700
    %v972 = vunpack.c.h.b16 %v700
    %v973 = vunpack.c.l.b16 %v701
    %v974 = vunpack.c.h.b16 %v701
    %v975 = vunpack.c.l.b16 %v702
    %v976 = vunpack.c.h.b16 %v702
    %v977 = vunpack.c.l.b16 %v703
    %v978 = vunpack.c.h.b16 %v703
    %v979 = vunpack.c.l.b16 %v704
    %v980 = vunpack.c.h.b16 %v704
    %v981 = vunpack.c.l.b16 %v705
    %v982 = vunpack.c.h.b16 %v705
    %v983 = vunpack.c.l.b16 %v706
    %v984 = vunpack.c.h.b16 %v706
    %v985 = vunpack.c.l.b16 %v707
    %v986 = vunpack.c.h.b16 %v707
    %v987 = vunpack.c.l.b16 %v708
    %v988 = vunpack.c.h.b16 %v708
    %v989 = vunpack.c.l.b16 %v709
    %v990 = vunpack.c.h.b16 %v709
    %v991 = vunpack.c.l.b16 %v710
    %v992 = vunpack.c.h.b16 %v710
    %v993 = vunpack.c.l.b16 %v711
    %v994 = vunpack.c.h.b16 %v711
    %v995 = vunpack.c.l.b16 %v712
    %v996 = vunpack.c.h.b16 %v712
    %v997 = vunpack.c.l.b16 %v713
    %v998 = vunpack.c.h.b16 %v713
    %v999 = vunpack.c.l.b16 %v714
    %v1000 = vunpack.c.h.b16 %v714
    %v1001 = vunpack.c.l.b16 %v715
    %v1002 = vunpack.c.h.b16 %v715
    %v1003 = vunpack.c.l.b16 %v716
    %v1004 = vunpack.c.h.b16 %v716
    %v1005 = vunpack.c.l.b16 %v717
    %v1006 = vunpack.c.h.b16 %v717
    %v1007 = vunpack.c.l.b16 %v718
    %v1008 = vunpack.c.h.b16 %v718
    %v1009 = vunpack.c.l.b16 %v719
    %v1010 = vunpack.c.h.b16 %v719
    %v1011 = vunpack.c.l.b16 %v720
    %v1012 = vunpack.c.h.b16 %v720
    %v1013 = vunpack.c.l.b16 %v721
    %v1014 = vunpack.c.h.b16 %v721
    %v1015 = vunpack.c.l.b16 %v722
    %v1016 = vunpack.c.h.b16 %v722
    %v1017 = vunpack.c.l.b16 %v723
    %v1018 = vunpack.c.h.b16 %v723
    %v1019 = vunpack.c.l.b16 %v724
    %v1020 = vunpack.c.h.b16 %v724
    %v1021 = vunpack.c.l.b16 %v725
    %v1022 = vunpack.c.h.b16 %v725
    %v1023 = vunpack.c.l.b16 %v726
    %v1024 = vunpack.c.h.b16 %v726
    %v1025 = vunpack.c.l.b16 %v727
    %v1026 = vunpack.c.h.b16 %v727
    %v1027 = vunpack.c.l.b16 %v728
    %v1028 = vunpack.c.h.b16 %v728
    %v1029 = vunpack.c.l.b16 %v729
    %v1030 = vunpack.c.h.b16 %v729
    %v1031 = vunpack.c.l.b16 %v730
    %v1032 = vunpack.c.h.b16 %v730
    %v1033 = vunpack.c.l.b16 %v731
    %v1034 = vunpack.c.h.b16 %v731
    %v1035 = vunpack.c.l.b16 %v732
    %v1036 = vunpack.c.h.b16 %v732
    %v1037 = vunpack.c.l.b16 %v733
    %v1038 = vunpack.c.h.b16 %v733
    %v1039 = vunpack.c.l.b16 %v734
    %v1040 = vunpack.c.h.b16 %v734
    %v1041 = vunpack.c.l.b16 %v735
    %v1042 = vunpack.c.h.b16 %v735
    %v1043 = vunpack.c.l.b16 %v736
    %v1044 = vunpack.c.h.b16 %v736
    %v1045 = vunpack.c.l.b16 %v737
    %v1046 = vunpack.c.h.b16 %v737
    %v1047 = vunpack.c.l.b16 %v738
    %v1048 = vunpack.c.h.b16 %v738
    %v1049 = vunpack.c.l.b16 %v739
    %v1050 = vunpack.c.h.b16 %v739
    %v1051 = vunpack.c.l.b16 %v740
    %v1052 = vunpack.c.h.b16 %v740
    %v1053 = vunpack.c.l.b16 %v741
    %v1054 = vunpack.c.h.b16 %v741
    %v1055 = vunpack.c.l.b16 %v742
    %v1056 = vunpack.c.h.b16 %v742
    %v1057 = vunpack.c.l.b16 %v743
    %v1058 = vunpack.c.h.b16 %v743
    %v1059 = vunpack.c.l.b16 %v744
    %v1060 = vunpack.c.h.b16 %v744
    %v1061 = vunpack.c.l.b16 %v745
    %v1062 = vunpack.c.h.b16 %v745
    %v1063 = vunpack.c.l.b16 %v746
    %v1064 = vunpack.c.h.b16 %v746
    %v1065 = vunpack.c.l.b16 %v747
    %v1066 = vunpack.c.h.b16 %v747
    %v1067 = vunpack.c.l.b16 %v748
    %v1068 = vunpack.c.h.b16 %v748
    %v1069 = vunpack.c.l.b16 %v749
    %v1070 = vunpack.c.h.b16 %v749
    %v1071 = vunpack.c.l.b16 %v750
    %v1072 = vunpack.c.h.b16 %v750
    %v1073 = vunpack.c.l.b16 %v751
    %v1074 = vunpack.c.h.b16 %v751
    %v1075 = vunpack.c.l.b16 %v752
    %v1076 = vunpack.c.h.b16 %v752
    %v1077 = vpack.c.b16 %v893, %v885
    %v1078 = vpack.c.b16 %v894, %v886
    %v1079 = vpack.c.b16 %v895, %v887
    %v1080 = vpack.c.b16 %v896, %v888
    %v1081 = vpack.c.b16 %v897, %v889
    %v1082 = vpack.c.b16 %v898, %v890
    %v1083 = vpack.c.b16 %v899, %v891
    %v1084 = vpack.c.b16 %v900, %v892
    %v1085 = vpack.c.b16 %v909, %v901
    %v1086 = vpack.c.b16 %v910, %v902
    %v1087 = vpack.c.b16 %v911, %v903
    %v1088 = vpack.c.b16 %v912, %v904
    %v1089 = vpack.c.b16 %v913, %v905
    %v1090 = vpack.c.b16 %v914, %v906
    %v1091 = vpack.c.b16 %v915, %v907
    %v1092 = vpack.c.b16 %v916, %v908
    %v1093 = vpack.c.b16 %v925, %v917
    %v1094 = vpack.c.b16 %v926, %v918
    %v1095 = vpack.c.b16 %v927, %v919
    %v1096 = vpack.c.b16 %v928, %v920
    %v1097 = vpack.c.b16 %v929, %v921
    %v1098 = vpack.c.b16 %v930, %v922
    %v1099 = vpack.c.b16 %v931, %v923
    %v1100 = vpack.c.b16 %v932, %v924
    %v1101 = vpack.c.b16 %v941, %v933
    %v1102 = vpack.c.b16 %v942, %v934
    %v1103 = vpack.c.b16 %v943, %v935
    %v1104 = vpack.c.b16 %v944, %v936
    %v1105 = vpack.c.b16 %v945, %v937
    %v1106 = vpack.c.b16 %v946, %v938
    %v1107 = vpack.c.b16 %v947, %v939
    %v1108 = vpack.c.b16 %v948, %v940
    %v1109 = vpack.c.b16 %v957, %v949
    %v1110 = vpack.c.b16 %v958, %v950
    %v1111 = vpack.c.b16 %v959, %v951
    %v1112 = vpack.c.b16 %v960, %v952
    %v1113 = vpack.c.b16 %v961, %v953
    %v1114 = vpack.c.b16 %v962, %v954
    %v1115 = vpack.c.b16 %v963, %v955
    %v1116 = vpack.c.b16 %v964, %v956
    %v1117 = vpack.c.b16 %v973, %v965
    %v1118 = vpack.c.b16 %v974, %v966
    %v1119 = vpack.c.b16 %v975, %v967
    %v1120 = vpack.c.b16 %v976, %v968
    %v1121 = vpack.c.b16 %v977, %v969
    %v1122 = vpack.c.b16 %v978, %v970
    %v1123 = vpack.c.b16 %v979, %v971
    %v1124 = vpack.c.b16 %v980, %v972
    %v1125 = vpack.c.b16 %v989, %v981
    %v1126 = vpack.c.b16 %v990, %v982
    %v1127 = vpack.c.b16 %v991, %v983
    %v1128 = vpack.c.b16 %v992, %v984
    %v1129 = vpack.c.b16 %v993, %v985
    %v1130 = vpack.c.b16 %v994, %v986
    %v1131 = vpack.c.b16 %v995, %v987
    %v1132 = vpack.c.b16 %v996, %v988
    %v1133 = vpack.c.b16 %v1005, %v997
    %v1134 = vpack.c.b16 %v1006, %v998
    %v1135 = vpack.c.b16 %v1007, %v999
    %v1136 = vpack.c.b16 %v1008, %v1000
    %v1137 = vpack.c.b16 %v1009, %v1001
    %v1138 = vpack.c.b16 %v1010, %v1002
    %v1139 = vpack.c.b16 %v1011, %v1003
    %v1140 = vpack.c.b16 %v1012, %v1004
    %v1141 = vpack.c.b16 %v1021, %v1013
    %v1142 = vpack.c.b16 %v1022, %v1014
    %v1143 = vpack.c.b16 %v1023, %v1015
    %v1144 = vpack.c.b16 %v1024, %v1016
    %v1145 = vpack.c.b16 %v1025, %v1017
    %v1146 = vpack.c.b16 %v1026, %v1018
    %v1147 = vpack.c.b16 %v1027, %v1019
    %v1148 = vpack.c.b16 %v1028, %v1020
    %v1149 = vpack.c.b16 %v1037, %v1029
    %v1150 = vpack.c.b16 %v1038, %v1030
    %v1151 = vpack.c.b16 %v1039, %v1031
    %v1152 = vpack.c.b16 %v1040, %v1032
    %v1153 = vpack.c.b16 %v1041, %v1033
    %v1154 = vpack.c.b16 %v1042, %v1034
    %v1155 = vpack.c.b16 %v1043, %v1035
    %v1156 = vpack.c.b16 %v1044, %v1036
    %v1157 = vpack.c.b16 %v1053, %v1045
    %v1158 = vpack.c.b16 %v1054, %v1046
    %v1159 = vpack.c.b16 %v1055, %v1047
    %v1160 = vpack.c.b16 %v1056, %v1048
    %v1161 = vpack.c.b16 %v1057, %v1049
    %v1162 = vpack.c.b16 %v1058, %v1050
    %v1163 = vpack.c.b16 %v1059, %v1051
    %v1164 = vpack.c.b16 %v1060, %v1052
    %v1165 = vpack.c.b16 %v1069, %v1061
    %v1166 = vpack.c.b16 %v1070, %v1062
    %v1167 = vpack.c.b16 %v1071, %v1063
    %v1168 = vpack.c.b16 %v1072, %v1064
    %v1169 = vpack.c.b16 %v1073, %v1065
    %v1170 = vpack.c.b16 %v1074, %v1066
    %v1171 = vpack.c.b16 %v1075, %v1067
    %v1172 = vpack.c.b16 %v1076, %v1068
    %vm1269 = vcmask 523264
    %v1271 = vsel %vm1269, %v778, 0
    %v1274 = vsel %vm1269, %v780, 0
    %v1277 = vsel %vm1269, %v782, 0
    %v1280 = vsel %vm1269, %v784, 0
    %1282 = vmatpush.bf16.msra.mxu0 %v1133
    %1283 = vmatpush.bf16.msra.mxu0 %v1125
    %1284 = vmatpush.bf16.msra.mxu0 %v1117
    %1285 = vmatpush.bf16.msra.mxu0 %v1109
    %1286 = vmatpush.bf16.msra.mxu0 %v1101
    %1287 = vmatpush.bf16.msra.mxu0 %v1093
    %1288 = vmatpush.bf16.msra.mxu0 %v1085
    %1289 = vmatpush.bf16.msra.mxu0 %v1077
    %1290 = vmatmul.bf16.gmra.mxu0 %v777
    %v1291 = vpop.f32.mrf.mxu0
    %v1292 = vadd.f32 0.0, %v1291
    %v1293 = vpop.f32.mrf.mxu0
    %v1294 = vadd.f32 0.0, %v1293
    %1295 = vmatmul.bf16.gmra.mxu0 %v779
    %v1296 = vpop.f32.mrf.mxu0
    %v1297 = vadd.f32 0.0, %v1296
    %v1298 = vpop.f32.mrf.mxu0
    %v1299 = vadd.f32 0.0, %v1298
    %1300 = vmatmul.bf16.gmra.mxu0 %v781
    %v1301 = vpop.f32.mrf.mxu0
    %v1302 = vadd.f32 0.0, %v1301
    %v1303 = vpop.f32.mrf.mxu0
    %v1304 = vadd.f32 0.0, %v1303
    %1305 = vmatmul.bf16.gmra.mxu0 %v783
    %v1306 = vpop.f32.mrf.mxu0
    %v1307 = vadd.f32 0.0, %v1306
    %v1308 = vpop.f32.mrf.mxu0
    %v1309 = vadd.f32 0.0, %v1308
    %1310 = vdwg.mxu0
    %1311 = vmatpush.bf16.msra.mxu0 0
    %1312 = vmatpush.bf16.msra.mxu0 0
    %1313 = vmatpush.bf16.msra.mxu0 0
    %1314 = vmatpush.bf16.msra.mxu0 0
    %1315 = vmatpush.bf16.msra.mxu0 %v1165
    %1316 = vmatpush.bf16.msra.mxu0 %v1157
    %1317 = vmatpush.bf16.msra.mxu0 %v1149
    %1318 = vmatpush.bf16.msra.mxu0 %v1141
    %1319 = vmatmul.bf16.gmra.mxu0 %v1271
    %v1320 = vpop.f32.mrf.mxu0
    %v1321 = vadd.f32 %v1292, %v1320
    %v1322 = vpop.f32.mrf.mxu0
    %v1323 = vadd.f32 %v1294, %v1322
    %1324 = vmatmul.bf16.gmra.mxu0 %v1274
    %v1325 = vpop.f32.mrf.mxu0
    %v1326 = vadd.f32 %v1297, %v1325
    %v1327 = vpop.f32.mrf.mxu0
    %v1328 = vadd.f32 %v1299, %v1327
    %1329 = vmatmul.bf16.gmra.mxu0 %v1277
    %v1330 = vpop.f32.mrf.mxu0
    %v1331 = vadd.f32 %v1302, %v1330
    %v1332 = vpop.f32.mrf.mxu0
    %v1333 = vadd.f32 %v1304, %v1332
    %1334 = vmatmul.bf16.gmra.mxu0 %v1280
    %v1335 = vpop.f32.mrf.mxu0
    %v1336 = vadd.f32 %v1307, %v1335
    %v1337 = vpop.f32.mrf.mxu0
    %v1338 = vadd.f32 %v1309, %v1337
    %1339 = vdwg.mxu0
    %1340 = vmatpush.bf16.msra.mxu0 %v1134
    %1341 = vmatpush.bf16.msra.mxu0 %v1126
    %1342 = vmatpush.bf16.msra.mxu0 %v1118
    %1343 = vmatpush.bf16.msra.mxu0 %v1110
    %1344 = vmatpush.bf16.msra.mxu0 %v1102
    %1345 = vmatpush.bf16.msra.mxu0 %v1094
    %1346 = vmatpush.bf16.msra.mxu0 %v1086
    %1347 = vmatpush.bf16.msra.mxu0 %v1078
    %1348 = vmatmul.bf16.gmra.mxu0 %v777
    %v1349 = vpop.f32.mrf.mxu0
    %v1350 = vadd.f32 0.0, %v1349
    %v1351 = vpop.f32.mrf.mxu0
    %v1352 = vadd.f32 0.0, %v1351
    %1353 = vmatmul.bf16.gmra.mxu0 %v779
    %v1354 = vpop.f32.mrf.mxu0
    %v1355 = vadd.f32 0.0, %v1354
    %v1356 = vpop.f32.mrf.mxu0
    %v1357 = vadd.f32 0.0, %v1356
    %1358 = vmatmul.bf16.gmra.mxu0 %v781
    %v1359 = vpop.f32.mrf.mxu0
    %v1360 = vadd.f32 0.0, %v1359
    %v1361 = vpop.f32.mrf.mxu0
    %v1362 = vadd.f32 0.0, %v1361
    %1363 = vmatmul.bf16.gmra.mxu0 %v783
    %v1364 = vpop.f32.mrf.mxu0
    %v1365 = vadd.f32 0.0, %v1364
    %v1366 = vpop.f32.mrf.mxu0
    %v1367 = vadd.f32 0.0, %v1366
    %1368 = vdwg.mxu0
    %1369 = vmatpush.bf16.msra.mxu0 0
    %1370 = vmatpush.bf16.msra.mxu0 0
    %1371 = vmatpush.bf16.msra.mxu0 0
    %1372 = vmatpush.bf16.msra.mxu0 0
    %1373 = vmatpush.bf16.msra.mxu0 %v1166
    %1374 = vmatpush.bf16.msra.mxu0 %v1158
    %1375 = vmatpush.bf16.msra.mxu0 %v1150
    %1376 = vmatpush.bf16.msra.mxu0 %v1142
    %1377 = vmatmul.bf16.gmra.mxu0 %v1271
    %v1378 = vpop.f32.mrf.mxu0
    %v1379 = vadd.f32 %v1350, %v1378
    %v1380 = vpop.f32.mrf.mxu0
    %v1381 = vadd.f32 %v1352, %v1380
    %1382 = vmatmul.bf16.gmra.mxu0 %v1274
    %v1383 = vpop.f32.mrf.mxu0
    %v1384 = vadd.f32 %v1355, %v1383
    %v1385 = vpop.f32.mrf.mxu0
    %v1386 = vadd.f32 %v1357, %v1385
    %1387 = vmatmul.bf16.gmra.mxu0 %v1277
    %v1388 = vpop.f32.mrf.mxu0
    %v1389 = vadd.f32 %v1360, %v1388
    %v1390 = vpop.f32.mrf.mxu0
    %v1391 = vadd.f32 %v1362, %v1390
    %1392 = vmatmul.bf16.gmra.mxu0 %v1280
    %v1393 = vpop.f32.mrf.mxu0
    %v1394 = vadd.f32 %v1365, %v1393
    %v1395 = vpop.f32.mrf.mxu0
    %v1396 = vadd.f32 %v1367, %v1395
    %1397 = vdwg.mxu0
    %1398 = vmatpush.bf16.msra.mxu0 %v1135
    %1399 = vmatpush.bf16.msra.mxu0 %v1127
    %1400 = vmatpush.bf16.msra.mxu0 %v1119
    %1401 = vmatpush.bf16.msra.mxu0 %v1111
    %1402 = vmatpush.bf16.msra.mxu0 %v1103
    %1403 = vmatpush.bf16.msra.mxu0 %v1095
    %1404 = vmatpush.bf16.msra.mxu0 %v1087
    %1405 = vmatpush.bf16.msra.mxu0 %v1079
    %1406 = vmatmul.bf16.gmra.mxu0 %v777
    %v1407 = vpop.f32.mrf.mxu0
    %v1408 = vadd.f32 0.0, %v1407
    %v1409 = vpop.f32.mrf.mxu0
    %v1410 = vadd.f32 0.0, %v1409
    %1411 = vmatmul.bf16.gmra.mxu0 %v779
    %v1412 = vpop.f32.mrf.mxu0
    %v1413 = vadd.f32 0.0, %v1412
    %v1414 = vpop.f32.mrf.mxu0
    %v1415 = vadd.f32 0.0, %v1414
    %1416 = vmatmul.bf16.gmra.mxu0 %v781
    %v1417 = vpop.f32.mrf.mxu0
    %v1418 = vadd.f32 0.0, %v1417
    %v1419 = vpop.f32.mrf.mxu0
    %v1420 = vadd.f32 0.0, %v1419
    %1421 = vmatmul.bf16.gmra.mxu0 %v783
    %v1422 = vpop.f32.mrf.mxu0
    %v1423 = vadd.f32 0.0, %v1422
    %v1424 = vpop.f32.mrf.mxu0
    %v1425 = vadd.f32 0.0, %v1424
    %1426 = vdwg.mxu0
    %1427 = vmatpush.bf16.msra.mxu0 0
    %1428 = vmatpush.bf16.msra.mxu0 0
    %1429 = vmatpush.bf16.msra.mxu0 0
    %1430 = vmatpush.bf16.msra.mxu0 0
    %1431 = vmatpush.bf16.msra.mxu0 %v1167
    %1432 = vmatpush.bf16.msra.mxu0 %v1159
    %1433 = vmatpush.bf16.msra.mxu0 %v1151
    %1434 = vmatpush.bf16.msra.mxu0 %v1143
    %1435 = vmatmul.bf16.gmra.mxu0 %v1271
    %v1436 = vpop.f32.mrf.mxu0
    %v1437 = vadd.f32 %v1408, %v1436
    %v1438 = vpop.f32.mrf.mxu0
    %v1439 = vadd.f32 %v1410, %v1438
    %1440 = vmatmul.bf16.gmra.mxu0 %v1274
    %v1441 = vpop.f32.mrf.mxu0
    %v1442 = vadd.f32 %v1413, %v1441
    %v1443 = vpop.f32.mrf.mxu0
    %v1444 = vadd.f32 %v1415, %v1443
    %1445 = vmatmul.bf16.gmra.mxu0 %v1277
    %v1446 = vpop.f32.mrf.mxu0
    %v1447 = vadd.f32 %v1418, %v1446
    %v1448 = vpop.f32.mrf.mxu0
    %v1449 = vadd.f32 %v1420, %v1448
    %1450 = vmatmul.bf16.gmra.mxu0 %v1280
    %v1451 = vpop.f32.mrf.mxu0
    %v1452 = vadd.f32 %v1423, %v1451
    %v1453 = vpop.f32.mrf.mxu0
    %v1454 = vadd.f32 %v1425, %v1453
    %1455 = vdwg.mxu0
    %1456 = vmatpush.bf16.msra.mxu0 %v1136
    %1457 = vmatpush.bf16.msra.mxu0 %v1128
    %1458 = vmatpush.bf16.msra.mxu0 %v1120
    %1459 = vmatpush.bf16.msra.mxu0 %v1112
    %1460 = vmatpush.bf16.msra.mxu0 %v1104
    %1461 = vmatpush.bf16.msra.mxu0 %v1096
    %1462 = vmatpush.bf16.msra.mxu0 %v1088
    %1463 = vmatpush.bf16.msra.mxu0 %v1080
    %1464 = vmatmul.bf16.gmra.mxu0 %v777
    %v1465 = vpop.f32.mrf.mxu0
    %v1466 = vadd.f32 0.0, %v1465
    %v1467 = vpop.f32.mrf.mxu0
    %v1468 = vadd.f32 0.0, %v1467
    %1469 = vmatmul.bf16.gmra.mxu0 %v779
    %v1470 = vpop.f32.mrf.mxu0
    %v1471 = vadd.f32 0.0, %v1470
    %v1472 = vpop.f32.mrf.mxu0
    %v1473 = vadd.f32 0.0, %v1472
    %1474 = vmatmul.bf16.gmra.mxu0 %v781
    %v1475 = vpop.f32.mrf.mxu0
    %v1476 = vadd.f32 0.0, %v1475
    %v1477 = vpop.f32.mrf.mxu0
    %v1478 = vadd.f32 0.0, %v1477
    %1479 = vmatmul.bf16.gmra.mxu0 %v783
    %v1480 = vpop.f32.mrf.mxu0
    %v1481 = vadd.f32 0.0, %v1480
    %v1482 = vpop.f32.mrf.mxu0
    %v1483 = vadd.f32 0.0, %v1482
    %1484 = vdwg.mxu0
    %1485 = vmatpush.bf16.msra.mxu0 0
    %1486 = vmatpush.bf16.msra.mxu0 0
    %1487 = vmatpush.bf16.msra.mxu0 0
    %1488 = vmatpush.bf16.msra.mxu0 0
    %1489 = vmatpush.bf16.msra.mxu0 %v1168
    %1490 = vmatpush.bf16.msra.mxu0 %v1160
    %1491 = vmatpush.bf16.msra.mxu0 %v1152
    %1492 = vmatpush.bf16.msra.mxu0 %v1144
    %1493 = vmatmul.bf16.gmra.mxu0 %v1271
    %v1494 = vpop.f32.mrf.mxu0
    %v1495 = vadd.f32 %v1466, %v1494
    %v1496 = vpop.f32.mrf.mxu0
    %v1497 = vadd.f32 %v1468, %v1496
    %1498 = vmatmul.bf16.gmra.mxu0 %v1274
    %v1499 = vpop.f32.mrf.mxu0
    %v1500 = vadd.f32 %v1471, %v1499
    %v1501 = vpop.f32.mrf.mxu0
    %v1502 = vadd.f32 %v1473, %v1501
    %1503 = vmatmul.bf16.gmra.mxu0 %v1277
    %v1504 = vpop.f32.mrf.mxu0
    %v1505 = vadd.f32 %v1476, %v1504
    %v1506 = vpop.f32.mrf.mxu0
    %v1507 = vadd.f32 %v1478, %v1506
    %1508 = vmatmul.bf16.gmra.mxu0 %v1280
    %v1509 = vpop.f32.mrf.mxu0
    %v1510 = vadd.f32 %v1481, %v1509
    %v1511 = vpop.f32.mrf.mxu0
    %v1512 = vadd.f32 %v1483, %v1511
    %1513 = vdwg.mxu0
    %1514 = vmatpush.bf16.msra.mxu0 %v1137
    %1515 = vmatpush.bf16.msra.mxu0 %v1129
    %1516 = vmatpush.bf16.msra.mxu0 %v1121
    %1517 = vmatpush.bf16.msra.mxu0 %v1113
    %1518 = vmatpush.bf16.msra.mxu0 %v1105
    %1519 = vmatpush.bf16.msra.mxu0 %v1097
    %1520 = vmatpush.bf16.msra.mxu0 %v1089
    %1521 = vmatpush.bf16.msra.mxu0 %v1081
    %1522 = vmatmul.bf16.gmra.mxu0 %v777
    %v1523 = vpop.f32.mrf.mxu0
    %v1524 = vadd.f32 0.0, %v1523
    %v1525 = vpop.f32.mrf.mxu0
    %v1526 = vadd.f32 0.0, %v1525
    %1527 = vmatmul.bf16.gmra.mxu0 %v779
    %v1528 = vpop.f32.mrf.mxu0
    %v1529 = vadd.f32 0.0, %v1528
    %v1530 = vpop.f32.mrf.mxu0
    %v1531 = vadd.f32 0.0, %v1530
    %1532 = vmatmul.bf16.gmra.mxu0 %v781
    %v1533 = vpop.f32.mrf.mxu0
    %v1534 = vadd.f32 0.0, %v1533
    %v1535 = vpop.f32.mrf.mxu0
    %v1536 = vadd.f32 0.0, %v1535
    %1537 = vmatmul.bf16.gmra.mxu0 %v783
    %v1538 = vpop.f32.mrf.mxu0
    %v1539 = vadd.f32 0.0, %v1538
    %v1540 = vpop.f32.mrf.mxu0
    %v1541 = vadd.f32 0.0, %v1540
    %1542 = vdwg.mxu0
    %1543 = vmatpush.bf16.msra.mxu0 0
    %1544 = vmatpush.bf16.msra.mxu0 0
    %1545 = vmatpush.bf16.msra.mxu0 0
    %1546 = vmatpush.bf16.msra.mxu0 0
    %1547 = vmatpush.bf16.msra.mxu0 %v1169
    %1548 = vmatpush.bf16.msra.mxu0 %v1161
    %1549 = vmatpush.bf16.msra.mxu0 %v1153
    %1550 = vmatpush.bf16.msra.mxu0 %v1145
    %1551 = vmatmul.bf16.gmra.mxu0 %v1271
    %v1552 = vpop.f32.mrf.mxu0
    %v1553 = vadd.f32 %v1524, %v1552
    %v1554 = vpop.f32.mrf.mxu0
    %v1555 = vadd.f32 %v1526, %v1554
    %1556 = vmatmul.bf16.gmra.mxu0 %v1274
    %v1557 = vpop.f32.mrf.mxu0
    %v1558 = vadd.f32 %v1529, %v1557
    %v1559 = vpop.f32.mrf.mxu0
    %v1560 = vadd.f32 %v1531, %v1559
    %1561 = vmatmul.bf16.gmra.mxu0 %v1277
    %v1562 = vpop.f32.mrf.mxu0
    %v1563 = vadd.f32 %v1534, %v1562
    %v1564 = vpop.f32.mrf.mxu0
    %v1565 = vadd.f32 %v1536, %v1564
    %1566 = vmatmul.bf16.gmra.mxu0 %v1280
    %v1567 = vpop.f32.mrf.mxu0
    %v1568 = vadd.f32 %v1539, %v1567
    %v1569 = vpop.f32.mrf.mxu0
    %v1570 = vadd.f32 %v1541, %v1569
    %1571 = vdwg.mxu0
    %1572 = vmatpush.bf16.msra.mxu0 %v1138
    %1573 = vmatpush.bf16.msra.mxu0 %v1130
    %1574 = vmatpush.bf16.msra.mxu0 %v1122
    %1575 = vmatpush.bf16.msra.mxu0 %v1114
    %1576 = vmatpush.bf16.msra.mxu0 %v1106
    %1577 = vmatpush.bf16.msra.mxu0 %v1098
    %1578 = vmatpush.bf16.msra.mxu0 %v1090
    %1579 = vmatpush.bf16.msra.mxu0 %v1082
    %1580 = vmatmul.bf16.gmra.mxu0 %v777
    %v1581 = vpop.f32.mrf.mxu0
    %v1582 = vadd.f32 0.0, %v1581
    %v1583 = vpop.f32.mrf.mxu0
    %v1584 = vadd.f32 0.0, %v1583
    %1585 = vmatmul.bf16.gmra.mxu0 %v779
    %v1586 = vpop.f32.mrf.mxu0
    %v1587 = vadd.f32 0.0, %v1586
    %v1588 = vpop.f32.mrf.mxu0
    %v1589 = vadd.f32 0.0, %v1588
    %1590 = vmatmul.bf16.gmra.mxu0 %v781
    %v1591 = vpop.f32.mrf.mxu0
    %v1592 = vadd.f32 0.0, %v1591
    %v1593 = vpop.f32.mrf.mxu0
    %v1594 = vadd.f32 0.0, %v1593
    %1595 = vmatmul.bf16.gmra.mxu0 %v783
    %v1596 = vpop.f32.mrf.mxu0
    %v1597 = vadd.f32 0.0, %v1596
    %v1598 = vpop.f32.mrf.mxu0
    %v1599 = vadd.f32 0.0, %v1598
    %1600 = vdwg.mxu0
    %1601 = vmatpush.bf16.msra.mxu0 0
    %1602 = vmatpush.bf16.msra.mxu0 0
    %1603 = vmatpush.bf16.msra.mxu0 0
    %1604 = vmatpush.bf16.msra.mxu0 0
    %1605 = vmatpush.bf16.msra.mxu0 %v1170
    %1606 = vmatpush.bf16.msra.mxu0 %v1162
    %1607 = vmatpush.bf16.msra.mxu0 %v1154
    %1608 = vmatpush.bf16.msra.mxu0 %v1146
    %1609 = vmatmul.bf16.gmra.mxu0 %v1271
    %v1610 = vpop.f32.mrf.mxu0
    %v1611 = vadd.f32 %v1582, %v1610
    %v1612 = vpop.f32.mrf.mxu0
    %v1613 = vadd.f32 %v1584, %v1612
    %1614 = vmatmul.bf16.gmra.mxu0 %v1274
    %v1615 = vpop.f32.mrf.mxu0
    %v1616 = vadd.f32 %v1587, %v1615
    %v1617 = vpop.f32.mrf.mxu0
    %v1618 = vadd.f32 %v1589, %v1617
    %1619 = vmatmul.bf16.gmra.mxu0 %v1277
    %v1620 = vpop.f32.mrf.mxu0
    %v1621 = vadd.f32 %v1592, %v1620
    %v1622 = vpop.f32.mrf.mxu0
    %v1623 = vadd.f32 %v1594, %v1622
    %1624 = vmatmul.bf16.gmra.mxu0 %v1280
    %v1625 = vpop.f32.mrf.mxu0
    %v1626 = vadd.f32 %v1597, %v1625
    %v1627 = vpop.f32.mrf.mxu0
    %v1628 = vadd.f32 %v1599, %v1627
    %1629 = vdwg.mxu0
    %1630 = vmatpush.bf16.msra.mxu0 %v1139
    %1631 = vmatpush.bf16.msra.mxu0 %v1131
    %1632 = vmatpush.bf16.msra.mxu0 %v1123
    %1633 = vmatpush.bf16.msra.mxu0 %v1115
    %1634 = vmatpush.bf16.msra.mxu0 %v1107
    %1635 = vmatpush.bf16.msra.mxu0 %v1099
    %1636 = vmatpush.bf16.msra.mxu0 %v1091
    %1637 = vmatpush.bf16.msra.mxu0 %v1083
    %1638 = vmatmul.bf16.gmra.mxu0 %v777
    %v1639 = vpop.f32.mrf.mxu0
    %v1640 = vadd.f32 0.0, %v1639
    %v1641 = vpop.f32.mrf.mxu0
    %v1642 = vadd.f32 0.0, %v1641
    %1643 = vmatmul.bf16.gmra.mxu0 %v779
    %v1644 = vpop.f32.mrf.mxu0
    %v1645 = vadd.f32 0.0, %v1644
    %v1646 = vpop.f32.mrf.mxu0
    %v1647 = vadd.f32 0.0, %v1646
    %1648 = vmatmul.bf16.gmra.mxu0 %v781
    %v1649 = vpop.f32.mrf.mxu0
    %v1650 = vadd.f32 0.0, %v1649
    %v1651 = vpop.f32.mrf.mxu0
    %v1652 = vadd.f32 0.0, %v1651
    %1653 = vmatmul.bf16.gmra.mxu0 %v783
    %v1654 = vpop.f32.mrf.mxu0
    %v1655 = vadd.f32 0.0, %v1654
    %v1656 = vpop.f32.mrf.mxu0
    %v1657 = vadd.f32 0.0, %v1656
    %1658 = vdwg.mxu0
    %1659 = vmatpush.bf16.msra.mxu0 0
    %1660 = vmatpush.bf16.msra.mxu0 0
    %1661 = vmatpush.bf16.msra.mxu0 0
    %1662 = vmatpush.bf16.msra.mxu0 0
    %1663 = vmatpush.bf16.msra.mxu0 %v1171
    %1664 = vmatpush.bf16.msra.mxu0 %v1163
    %1665 = vmatpush.bf16.msra.mxu0 %v1155
    %1666 = vmatpush.bf16.msra.mxu0 %v1147
    %1667 = vmatmul.bf16.gmra.mxu0 %v1271
    %v1668 = vpop.f32.mrf.mxu0
    %v1669 = vadd.f32 %v1640, %v1668
    %v1670 = vpop.f32.mrf.mxu0
    %v1671 = vadd.f32 %v1642, %v1670
    %1672 = vmatmul.bf16.gmra.mxu0 %v1274
    %v1673 = vpop.f32.mrf.mxu0
    %v1674 = vadd.f32 %v1645, %v1673
    %v1675 = vpop.f32.mrf.mxu0
    %v1676 = vadd.f32 %v1647, %v1675
    %1677 = vmatmul.bf16.gmra.mxu0 %v1277
    %v1678 = vpop.f32.mrf.mxu0
    %v1679 = vadd.f32 %v1650, %v1678
    %v1680 = vpop.f32.mrf.mxu0
    %v1681 = vadd.f32 %v1652, %v1680
    %1682 = vmatmul.bf16.gmra.mxu0 %v1280
    %v1683 = vpop.f32.mrf.mxu0
    %v1684 = vadd.f32 %v1655, %v1683
    %v1685 = vpop.f32.mrf.mxu0
    %v1686 = vadd.f32 %v1657, %v1685
    %1687 = vdwg.mxu0
    %1688 = vmatpush.bf16.msra.mxu0 %v1140
    %1689 = vmatpush.bf16.msra.mxu0 %v1132
    %1690 = vmatpush.bf16.msra.mxu0 %v1124
    %1691 = vmatpush.bf16.msra.mxu0 %v1116
    %1692 = vmatpush.bf16.msra.mxu0 %v1108
    %1693 = vmatpush.bf16.msra.mxu0 %v1100
    %1694 = vmatpush.bf16.msra.mxu0 %v1092
    %1695 = vmatpush.bf16.msra.mxu0 %v1084
    %1696 = vmatmul.bf16.gmra.mxu0 %v777
    %v1697 = vpop.f32.mrf.mxu0
    %v1698 = vadd.f32 0.0, %v1697
    %v1699 = vpop.f32.mrf.mxu0
    %v1700 = vadd.f32 0.0, %v1699
    %1701 = vmatmul.bf16.gmra.mxu0 %v779
    %v1702 = vpop.f32.mrf.mxu0
    %v1703 = vadd.f32 0.0, %v1702
    %v1704 = vpop.f32.mrf.mxu0
    %v1705 = vadd.f32 0.0, %v1704
    %1706 = vmatmul.bf16.gmra.mxu0 %v781
    %v1707 = vpop.f32.mrf.mxu0
    %v1708 = vadd.f32 0.0, %v1707
    %v1709 = vpop.f32.mrf.mxu0
    %v1710 = vadd.f32 0.0, %v1709
    %1711 = vmatmul.bf16.gmra.mxu0 %v783
    %v1712 = vpop.f32.mrf.mxu0
    %v1713 = vadd.f32 0.0, %v1712
    %v1714 = vpop.f32.mrf.mxu0
    %v1715 = vadd.f32 0.0, %v1714
    %1716 = vdwg.mxu0
    %1717 = vmatpush.bf16.msra.mxu0 0
    %1718 = vmatpush.bf16.msra.mxu0 0
    %1719 = vmatpush.bf16.msra.mxu0 0
    %1720 = vmatpush.bf16.msra.mxu0 0
    %1721 = vmatpush.bf16.msra.mxu0 %v1172
    %1722 = vmatpush.bf16.msra.mxu0 %v1164
    %1723 = vmatpush.bf16.msra.mxu0 %v1156
    %1724 = vmatpush.bf16.msra.mxu0 %v1148
    %1725 = vmatmul.bf16.gmra.mxu0 %v1271
    %v1726 = vpop.f32.mrf.mxu0
    %v1727 = vadd.f32 %v1698, %v1726
    %v1728 = vpop.f32.mrf.mxu0
    %v1729 = vadd.f32 %v1700, %v1728
    %1730 = vmatmul.bf16.gmra.mxu0 %v1274
    %v1731 = vpop.f32.mrf.mxu0
    %v1732 = vadd.f32 %v1703, %v1731
    %v1733 = vpop.f32.mrf.mxu0
    %v1734 = vadd.f32 %v1705, %v1733
    %1735 = vmatmul.bf16.gmra.mxu0 %v1277
    %v1736 = vpop.f32.mrf.mxu0
    %v1737 = vadd.f32 %v1708, %v1736
    %v1738 = vpop.f32.mrf.mxu0
    %v1739 = vadd.f32 %v1710, %v1738
    %1740 = vmatmul.bf16.gmra.mxu0 %v1280
    %v1741 = vpop.f32.mrf.mxu0
    %v1742 = vadd.f32 %v1713, %v1741
    %v1743 = vpop.f32.mrf.mxu0
    %v1744 = vadd.f32 %v1715, %v1743
    %1745 = vdwg.mxu0
    %v1750 = vunpack.c.l.b16 %v653
    %v1751 = vunpack.c.h.b16 %v653
    %v1752 = vunpack.c.l.b16 %v654
    %v1753 = vunpack.c.h.b16 %v654
    %v1754 = vunpack.c.l.b16 %v655
    %v1755 = vunpack.c.h.b16 %v655
    %v1756 = vunpack.c.l.b16 %v656
    %v1757 = vunpack.c.h.b16 %v656
    %v1758 = vpack.c.b16 %v1750, %v1750
    %v1759 = vpack.c.b16 %v1751, %v1751
    %v1760 = vpack.c.b16 %v1752, %v1752
    %v1761 = vpack.c.b16 %v1753, %v1753
    %v1762 = vpack.c.b16 %v1754, %v1754
    %v1763 = vpack.c.b16 %v1755, %v1755
    %v1764 = vpack.c.b16 %v1756, %v1756
    %v1765 = vpack.c.b16 %v1757, %v1757
    %v1767 = vsel %vm107, %v1758, 0
    %v1770 = vsel %vm107, %v1759, 0
    %v1773 = vsel %vm107, %v1760, 0
    %v1776 = vsel %vm107, %v1761, 0
    %v1779 = vsel %vm107, %v1762, 0
    %v1782 = vsel %vm107, %v1763, 0
    %v1785 = vsel %vm107, %v1764, 0
    %v1788 = vsel %vm107, %v1765, 0
    %1790 = vmatpush.bf16.msra.mxu0 0
    %1791 = vmatpush.bf16.msra.mxu0 0
    %1792 = vmatpush.bf16.msra.mxu0 0
    %1793 = vmatpush.bf16.msra.mxu0 0
    %1794 = vmatpush.bf16.msra.mxu0 0
    %1795 = vmatpush.bf16.msra.mxu0 0
    %1796 = vmatpush.bf16.msra.mxu0 0
    %1797 = vmatpush.bf16.msra.mxu0 %v1767
    %1798 = vmatmul.bf16.gmra.mxu0 %v296
    %v1799 = vpop.f32.mrf.mxu0
    %v1800 = vadd.f32 %v1321, %v1799
    %v1801 = vpop.f32.mrf.mxu0
    %v1802 = vadd.f32 %v1323, %v1801
    %1803 = vmatmul.bf16.gmra.mxu0 %v299
    %v1804 = vpop.f32.mrf.mxu0
    %v1805 = vadd.f32 %v1326, %v1804
    %v1806 = vpop.f32.mrf.mxu0
    %v1807 = vadd.f32 %v1328, %v1806
    %1808 = vmatmul.bf16.gmra.mxu0 %v302
    %v1809 = vpop.f32.mrf.mxu0
    %v1810 = vadd.f32 %v1331, %v1809
    %v1811 = vpop.f32.mrf.mxu0
    %v1812 = vadd.f32 %v1333, %v1811
    %1813 = vmatmul.bf16.gmra.mxu0 %v305
    %v1814 = vpop.f32.mrf.mxu0
    %v1815 = vadd.f32 %v1336, %v1814
    %v1816 = vpop.f32.mrf.mxu0
    %v1817 = vadd.f32 %v1338, %v1816
    %1818 = vdwg.mxu0
    %1819 = vmatpush.bf16.msra.mxu0 0
    %1820 = vmatpush.bf16.msra.mxu0 0
    %1821 = vmatpush.bf16.msra.mxu0 0
    %1822 = vmatpush.bf16.msra.mxu0 0
    %1823 = vmatpush.bf16.msra.mxu0 0
    %1824 = vmatpush.bf16.msra.mxu0 0
    %1825 = vmatpush.bf16.msra.mxu0 0
    %1826 = vmatpush.bf16.msra.mxu0 %v1770
    %1827 = vmatmul.bf16.gmra.mxu0 %v296
    %v1828 = vpop.f32.mrf.mxu0
    %v1829 = vadd.f32 %v1379, %v1828
    %v1830 = vpop.f32.mrf.mxu0
    %v1831 = vadd.f32 %v1381, %v1830
    %1832 = vmatmul.bf16.gmra.mxu0 %v299
    %v1833 = vpop.f32.mrf.mxu0
    %v1834 = vadd.f32 %v1384, %v1833
    %v1835 = vpop.f32.mrf.mxu0
    %v1836 = vadd.f32 %v1386, %v1835
    %1837 = vmatmul.bf16.gmra.mxu0 %v302
    %v1838 = vpop.f32.mrf.mxu0
    %v1839 = vadd.f32 %v1389, %v1838
    %v1840 = vpop.f32.mrf.mxu0
    %v1841 = vadd.f32 %v1391, %v1840
    %1842 = vmatmul.bf16.gmra.mxu0 %v305
    %v1843 = vpop.f32.mrf.mxu0
    %v1844 = vadd.f32 %v1394, %v1843
    %v1845 = vpop.f32.mrf.mxu0
    %v1846 = vadd.f32 %v1396, %v1845
    %1847 = vdwg.mxu0
    %1848 = vmatpush.bf16.msra.mxu0 0
    %1849 = vmatpush.bf16.msra.mxu0 0
    %1850 = vmatpush.bf16.msra.mxu0 0
    %1851 = vmatpush.bf16.msra.mxu0 0
    %1852 = vmatpush.bf16.msra.mxu0 0
    %1853 = vmatpush.bf16.msra.mxu0 0
    %1854 = vmatpush.bf16.msra.mxu0 0
    %1855 = vmatpush.bf16.msra.mxu0 %v1773
    %1856 = vmatmul.bf16.gmra.mxu0 %v296
    %v1857 = vpop.f32.mrf.mxu0
    %v1858 = vadd.f32 %v1437, %v1857
    %v1859 = vpop.f32.mrf.mxu0
    %v1860 = vadd.f32 %v1439, %v1859
    %1861 = vmatmul.bf16.gmra.mxu0 %v299
    %v1862 = vpop.f32.mrf.mxu0
    %v1863 = vadd.f32 %v1442, %v1862
    %v1864 = vpop.f32.mrf.mxu0
    %v1865 = vadd.f32 %v1444, %v1864
    %1866 = vmatmul.bf16.gmra.mxu0 %v302
    %v1867 = vpop.f32.mrf.mxu0
    %v1868 = vadd.f32 %v1447, %v1867
    %v1869 = vpop.f32.mrf.mxu0
    %v1870 = vadd.f32 %v1449, %v1869
    %1871 = vmatmul.bf16.gmra.mxu0 %v305
    %v1872 = vpop.f32.mrf.mxu0
    %v1873 = vadd.f32 %v1452, %v1872
    %v1874 = vpop.f32.mrf.mxu0
    %v1875 = vadd.f32 %v1454, %v1874
    %1876 = vdwg.mxu0
    %1877 = vmatpush.bf16.msra.mxu0 0
    %1878 = vmatpush.bf16.msra.mxu0 0
    %1879 = vmatpush.bf16.msra.mxu0 0
    %1880 = vmatpush.bf16.msra.mxu0 0
    %1881 = vmatpush.bf16.msra.mxu0 0
    %1882 = vmatpush.bf16.msra.mxu0 0
    %1883 = vmatpush.bf16.msra.mxu0 0
    %1884 = vmatpush.bf16.msra.mxu0 %v1776
    %1885 = vmatmul.bf16.gmra.mxu0 %v296
    %v1886 = vpop.f32.mrf.mxu0
    %v1887 = vadd.f32 %v1495, %v1886
    %v1888 = vpop.f32.mrf.mxu0
    %v1889 = vadd.f32 %v1497, %v1888
    %1890 = vmatmul.bf16.gmra.mxu0 %v299
    %v1891 = vpop.f32.mrf.mxu0
    %v1892 = vadd.f32 %v1500, %v1891
    %v1893 = vpop.f32.mrf.mxu0
    %v1894 = vadd.f32 %v1502, %v1893
    %1895 = vmatmul.bf16.gmra.mxu0 %v302
    %v1896 = vpop.f32.mrf.mxu0
    %v1897 = vadd.f32 %v1505, %v1896
    %v1898 = vpop.f32.mrf.mxu0
    %v1899 = vadd.f32 %v1507, %v1898
    %1900 = vmatmul.bf16.gmra.mxu0 %v305
    %v1901 = vpop.f32.mrf.mxu0
    %v1902 = vadd.f32 %v1510, %v1901
    %v1903 = vpop.f32.mrf.mxu0
    %v1904 = vadd.f32 %v1512, %v1903
    %1905 = vdwg.mxu0
    %1906 = vmatpush.bf16.msra.mxu0 0
    %1907 = vmatpush.bf16.msra.mxu0 0
    %1908 = vmatpush.bf16.msra.mxu0 0
    %1909 = vmatpush.bf16.msra.mxu0 0
    %1910 = vmatpush.bf16.msra.mxu0 0
    %1911 = vmatpush.bf16.msra.mxu0 0
    %1912 = vmatpush.bf16.msra.mxu0 0
    %1913 = vmatpush.bf16.msra.mxu0 %v1779
    %1914 = vmatmul.bf16.gmra.mxu0 %v296
    %v1915 = vpop.f32.mrf.mxu0
    %v1916 = vadd.f32 %v1553, %v1915
    %v1917 = vpop.f32.mrf.mxu0
    %v1918 = vadd.f32 %v1555, %v1917
    %1919 = vmatmul.bf16.gmra.mxu0 %v299
    %v1920 = vpop.f32.mrf.mxu0
    %v1921 = vadd.f32 %v1558, %v1920
    %v1922 = vpop.f32.mrf.mxu0
    %v1923 = vadd.f32 %v1560, %v1922
    %1924 = vmatmul.bf16.gmra.mxu0 %v302
    %v1925 = vpop.f32.mrf.mxu0
    %v1926 = vadd.f32 %v1563, %v1925
    %v1927 = vpop.f32.mrf.mxu0
    %v1928 = vadd.f32 %v1565, %v1927
    %1929 = vmatmul.bf16.gmra.mxu0 %v305
    %v1930 = vpop.f32.mrf.mxu0
    %v1931 = vadd.f32 %v1568, %v1930
    %v1932 = vpop.f32.mrf.mxu0
    %v1933 = vadd.f32 %v1570, %v1932
    %1934 = vdwg.mxu0
    %1935 = vmatpush.bf16.msra.mxu0 0
    %1936 = vmatpush.bf16.msra.mxu0 0
    %1937 = vmatpush.bf16.msra.mxu0 0
    %1938 = vmatpush.bf16.msra.mxu0 0
    %1939 = vmatpush.bf16.msra.mxu0 0
    %1940 = vmatpush.bf16.msra.mxu0 0
    %1941 = vmatpush.bf16.msra.mxu0 0
    %1942 = vmatpush.bf16.msra.mxu0 %v1782
    %1943 = vmatmul.bf16.gmra.mxu0 %v296
    %v1944 = vpop.f32.mrf.mxu0
    %v1945 = vadd.f32 %v1611, %v1944
    %v1946 = vpop.f32.mrf.mxu0
    %v1947 = vadd.f32 %v1613, %v1946
    %1948 = vmatmul.bf16.gmra.mxu0 %v299
    %v1949 = vpop.f32.mrf.mxu0
    %v1950 = vadd.f32 %v1616, %v1949
    %v1951 = vpop.f32.mrf.mxu0
    %v1952 = vadd.f32 %v1618, %v1951
    %1953 = vmatmul.bf16.gmra.mxu0 %v302
    %v1954 = vpop.f32.mrf.mxu0
    %v1955 = vadd.f32 %v1621, %v1954
    %v1956 = vpop.f32.mrf.mxu0
    %v1957 = vadd.f32 %v1623, %v1956
    %1958 = vmatmul.bf16.gmra.mxu0 %v305
    %v1959 = vpop.f32.mrf.mxu0
    %v1960 = vadd.f32 %v1626, %v1959
    %v1961 = vpop.f32.mrf.mxu0
    %v1962 = vadd.f32 %v1628, %v1961
    %1963 = vdwg.mxu0
    %1964 = vmatpush.bf16.msra.mxu0 0
    %1965 = vmatpush.bf16.msra.mxu0 0
    %1966 = vmatpush.bf16.msra.mxu0 0
    %1967 = vmatpush.bf16.msra.mxu0 0
    %1968 = vmatpush.bf16.msra.mxu0 0
    %1969 = vmatpush.bf16.msra.mxu0 0
    %1970 = vmatpush.bf16.msra.mxu0 0
    %1971 = vmatpush.bf16.msra.mxu0 %v1785
    %1972 = vmatmul.bf16.gmra.mxu0 %v296
    %v1973 = vpop.f32.mrf.mxu0
    %v1974 = vadd.f32 %v1669, %v1973
    %v1975 = vpop.f32.mrf.mxu0
    %v1976 = vadd.f32 %v1671, %v1975
    %1977 = vmatmul.bf16.gmra.mxu0 %v299
    %v1978 = vpop.f32.mrf.mxu0
    %v1979 = vadd.f32 %v1674, %v1978
    %v1980 = vpop.f32.mrf.mxu0
    %v1981 = vadd.f32 %v1676, %v1980
    %1982 = vmatmul.bf16.gmra.mxu0 %v302
    %v1983 = vpop.f32.mrf.mxu0
    %v1984 = vadd.f32 %v1679, %v1983
    %v1985 = vpop.f32.mrf.mxu0
    %v1986 = vadd.f32 %v1681, %v1985
    %1987 = vmatmul.bf16.gmra.mxu0 %v305
    %v1988 = vpop.f32.mrf.mxu0
    %v1989 = vadd.f32 %v1684, %v1988
    %v1990 = vpop.f32.mrf.mxu0
    %v1991 = vadd.f32 %v1686, %v1990
    %1992 = vdwg.mxu0
    %1993 = vmatpush.bf16.msra.mxu0 0
    %1994 = vmatpush.bf16.msra.mxu0 0
    %1995 = vmatpush.bf16.msra.mxu0 0
    %1996 = vmatpush.bf16.msra.mxu0 0
    %1997 = vmatpush.bf16.msra.mxu0 0
    %1998 = vmatpush.bf16.msra.mxu0 0
    %1999 = vmatpush.bf16.msra.mxu0 0
    %2000 = vmatpush.bf16.msra.mxu0 %v1788
    %2001 = vmatmul.bf16.gmra.mxu0 %v296
    %v2002 = vpop.f32.mrf.mxu0
    %v2003 = vadd.f32 %v1727, %v2002
    %v2004 = vpop.f32.mrf.mxu0
    %v2005 = vadd.f32 %v1729, %v2004
    %2006 = vmatmul.bf16.gmra.mxu0 %v299
    %v2007 = vpop.f32.mrf.mxu0
    %v2008 = vadd.f32 %v1732, %v2007
    %v2009 = vpop.f32.mrf.mxu0
    %v2010 = vadd.f32 %v1734, %v2009
    %2011 = vmatmul.bf16.gmra.mxu0 %v302
    %v2012 = vpop.f32.mrf.mxu0
    %v2013 = vadd.f32 %v1737, %v2012
    %v2014 = vpop.f32.mrf.mxu0
    %v2015 = vadd.f32 %v1739, %v2014
    %2016 = vmatmul.bf16.gmra.mxu0 %v305
    %v2017 = vpop.f32.mrf.mxu0
    %v2018 = vadd.f32 %v1742, %v2017
    %v2019 = vpop.f32.mrf.mxu0
    %v2020 = vadd.f32 %v1744, %v2019
    %2021 = vdwg.mxu0
    %v2022 = vld [vmem:[%s5 + $0x2] sm:$0xff]
    %v2024 = vperm.slane %v2022, 0
    %v2025 = vperm.slane %v2022, 1
    %v2026 = vperm.slane %v2022, 2
    %v2027 = vperm.slane %v2022, 3
    %v2028 = vperm.slane %v2022, 4
    %v2029 = vperm.slane %v2022, 5
    %v2030 = vperm.slane %v2022, 6
    %v2031 = vperm.slane %v2022, 7
    %v2040 = vadd.f32 %v1800, %v2024
    %v2041 = vadd.f32 %v1829, %v2025
    %v2042 = vadd.f32 %v1858, %v2026
    %v2043 = vadd.f32 %v1887, %v2027
    %v2044 = vadd.f32 %v1916, %v2028
    %v2045 = vadd.f32 %v1945, %v2029
    %v2046 = vadd.f32 %v1974, %v2030
    %v2047 = vadd.f32 %v2003, %v2031
    %v2048 = vadd.f32 %v1802, %v2024
    %v2049 = vadd.f32 %v1831, %v2025
    %v2050 = vadd.f32 %v1860, %v2026
    %v2051 = vadd.f32 %v1889, %v2027
    %v2052 = vadd.f32 %v1918, %v2028
    %v2053 = vadd.f32 %v1947, %v2029
    %v2054 = vadd.f32 %v1976, %v2030
    %v2055 = vadd.f32 %v2005, %v2031
    %v2056 = vadd.f32 %v1805, %v2024
    %v2057 = vadd.f32 %v1834, %v2025
    %v2058 = vadd.f32 %v1863, %v2026
    %v2059 = vadd.f32 %v1892, %v2027
    %v2060 = vadd.f32 %v1921, %v2028
    %v2061 = vadd.f32 %v1950, %v2029
    %v2062 = vadd.f32 %v1979, %v2030
    %v2063 = vadd.f32 %v2008, %v2031
    %v2064 = vadd.f32 %v1807, %v2024
    %v2065 = vadd.f32 %v1836, %v2025
    %v2066 = vadd.f32 %v1865, %v2026
    %v2067 = vadd.f32 %v1894, %v2027
    %v2068 = vadd.f32 %v1923, %v2028
    %v2069 = vadd.f32 %v1952, %v2029
    %v2070 = vadd.f32 %v1981, %v2030
    %v2071 = vadd.f32 %v2010, %v2031
    %v2072 = vadd.f32 %v1810, %v2024
    %v2073 = vadd.f32 %v1839, %v2025
    %v2074 = vadd.f32 %v1868, %v2026
    %v2075 = vadd.f32 %v1897, %v2027
    %v2076 = vadd.f32 %v1926, %v2028
    %v2077 = vadd.f32 %v1955, %v2029
    %v2078 = vadd.f32 %v1984, %v2030
    %v2079 = vadd.f32 %v2013, %v2031
    %v2080 = vadd.f32 %v1812, %v2024
    %v2081 = vadd.f32 %v1841, %v2025
    %v2082 = vadd.f32 %v1870, %v2026
    %v2083 = vadd.f32 %v1899, %v2027
    %v2084 = vadd.f32 %v1928, %v2028
    %v2085 = vadd.f32 %v1957, %v2029
    %v2086 = vadd.f32 %v1986, %v2030
    %v2087 = vadd.f32 %v2015, %v2031
    %v2088 = vadd.f32 %v1815, %v2024
    %v2089 = vadd.f32 %v1844, %v2025
    %v2090 = vadd.f32 %v1873, %v2026
    %v2091 = vadd.f32 %v1902, %v2027
    %v2092 = vadd.f32 %v1931, %v2028
    %v2093 = vadd.f32 %v1960, %v2029
    %v2094 = vadd.f32 %v1989, %v2030
    %v2095 = vadd.f32 %v2018, %v2031
    %v2096 = vadd.f32 %v1817, %v2024
    %v2097 = vadd.f32 %v1846, %v2025
    %v2098 = vadd.f32 %v1875, %v2026
    %v2099 = vadd.f32 %v1904, %v2027
    %v2100 = vadd.f32 %v1933, %v2028
    %v2101 = vadd.f32 %v1962, %v2029
    %v2102 = vadd.f32 %v1991, %v2030
    %v2103 = vadd.f32 %v2020, %v2031
    %2104 = vst [vmem:[#allocation2] sm:$0xff] %v2040
    %2105 = vst [vmem:[#allocation2 + $0x8] sm:$0xff] %v2041
    %2106 = vst [vmem:[#allocation2 + $0x10] sm:$0xff] %v2042
    %2107 = vst [vmem:[#allocation2 + $0x18] sm:$0xff] %v2043
    %2108 = vst [vmem:[#allocation2 + $0x20] sm:$0xff] %v2044
    %2109 = vst [vmem:[#allocation2 + $0x28] sm:$0xff] %v2045
    %2110 = vst [vmem:[#allocation2 + $0x30] sm:$0xff] %v2046
    %2111 = vst [vmem:[#allocation2 + $0x38] sm:$0xff] %v2047
    %2112 = vst [vmem:[#allocation2 + $0x40] sm:$0xff] %v2048
    %2113 = vst [vmem:[#allocation2 + $0x48] sm:$0xff] %v2049
    %2114 = vst [vmem:[#allocation2 + $0x50] sm:$0xff] %v2050
    %2115 = vst [vmem:[#allocation2 + $0x58] sm:$0xff] %v2051
    %2116 = vst [vmem:[#allocation2 + $0x60] sm:$0xff] %v2052
    %2117 = vst [vmem:[#allocation2 + $0x68] sm:$0xff] %v2053
    %2118 = vst [vmem:[#allocation2 + $0x70] sm:$0xff] %v2054
    %2119 = vst [vmem:[#allocation2 + $0x78] sm:$0xff] %v2055
    %2120 = vst [vmem:[#allocation2 + $0x80] sm:$0xff] %v2056
    %2121 = vst [vmem:[#allocation2 + $0x88] sm:$0xff] %v2057
    %2122 = vst [vmem:[#allocation2 + $0x90] sm:$0xff] %v2058
    %2123 = vst [vmem:[#allocation2 + $0x98] sm:$0xff] %v2059
    %2124 = vst [vmem:[#allocation2 + $0xa0] sm:$0xff] %v2060
    %2125 = vst [vmem:[#allocation2 + $0xa8] sm:$0xff] %v2061
    %2126 = vst [vmem:[#allocation2 + $0xb0] sm:$0xff] %v2062
    %2127 = vst [vmem:[#allocation2 + $0xb8] sm:$0xff] %v2063
    %2128 = vst [vmem:[#allocation2 + $0xc0] sm:$0xff] %v2064
    %2129 = vst [vmem:[#allocation2 + $0xc8] sm:$0xff] %v2065
    %2130 = vst [vmem:[#allocation2 + $0xd0] sm:$0xff] %v2066
    %2131 = vst [vmem:[#allocation2 + $0xd8] sm:$0xff] %v2067
    %2132 = vst [vmem:[#allocation2 + $0xe0] sm:$0xff] %v2068
    %2133 = vst [vmem:[#allocation2 + $0xe8] sm:$0xff] %v2069
    %2134 = vst [vmem:[#allocation2 + $0xf0] sm:$0xff] %v2070
    %2135 = vst [vmem:[#allocation2 + $0xf8] sm:$0xff] %v2071
    %2136 = vst [vmem:[#allocation2 + $0x100] sm:$0xff] %v2072
    %2137 = vst [vmem:[#allocation2 + $0x108] sm:$0xff] %v2073
    %2138 = vst [vmem:[#allocation2 + $0x110] sm:$0xff] %v2074
    %2139 = vst [vmem:[#allocation2 + $0x118] sm:$0xff] %v2075
    %2140 = vst [vmem:[#allocation2 + $0x120] sm:$0xff] %v2076
    %2141 = vst [vmem:[#allocation2 + $0x128] sm:$0xff] %v2077
    %2142 = vst [vmem:[#allocation2 + $0x130] sm:$0xff] %v2078
    %2143 = vst [vmem:[#allocation2 + $0x138] sm:$0xff] %v2079
    %2144 = vst [vmem:[#allocation2 + $0x140] sm:$0xff] %v2080
    %2145 = vst [vmem:[#allocation2 + $0x148] sm:$0xff] %v2081
    %2146 = vst [vmem:[#allocation2 + $0x150] sm:$0xff] %v2082
    %2147 = vst [vmem:[#allocation2 + $0x158] sm:$0xff] %v2083
    %2148 = vst [vmem:[#allocation2 + $0x160] sm:$0xff] %v2084
    %2149 = vst [vmem:[#allocation2 + $0x168] sm:$0xff] %v2085
    %2150 = vst [vmem:[#allocation2 + $0x170] sm:$0xff] %v2086
    %2151 = vst [vmem:[#allocation2 + $0x178] sm:$0xff] %v2087
    %2152 = vst [vmem:[#allocation2 + $0x180] sm:$0xff] %v2088
    %2153 = vst [vmem:[#allocation2 + $0x188] sm:$0xff] %v2089
    %2154 = vst [vmem:[#allocation2 + $0x190] sm:$0xff] %v2090
    %2155 = vst [vmem:[#allocation2 + $0x198] sm:$0xff] %v2091
    %2156 = vst [vmem:[#allocation2 + $0x1a0] sm:$0xff] %v2092
    %2157 = vst [vmem:[#allocation2 + $0x1a8] sm:$0xff] %v2093
    %2158 = vst [vmem:[#allocation2 + $0x1b0] sm:$0xff] %v2094
    %2159 = vst [vmem:[#allocation2 + $0x1b8] sm:$0xff] %v2095
    %2160 = vst [vmem:[#allocation2 + $0x1c0] sm:$0xff] %v2096
    %2161 = vst [vmem:[#allocation2 + $0x1c8] sm:$0xff] %v2097
    %2162 = vst [vmem:[#allocation2 + $0x1d0] sm:$0xff] %v2098
    %2163 = vst [vmem:[#allocation2 + $0x1d8] sm:$0xff] %v2099
    %2164 = vst [vmem:[#allocation2 + $0x1e0] sm:$0xff] %v2100
    %2165 = vst [vmem:[#allocation2 + $0x1e8] sm:$0xff] %v2101
    %2166 = vst [vmem:[#allocation2 + $0x1f0] sm:$0xff] %v2102
    %2167 = vst [vmem:[#allocation2 + $0x1f8] sm:$0xff] %v2103
    %v2168 = vld [vmem:[%s2 + $0x20] sm:$0xff]
    %v2169 = vld [vmem:[%s2 + $0x30] sm:$0xff]
    %v2170 = vld [vmem:[%s2 + $0x38] sm:$0xff]
    %v2171 = vld [vmem:[#allocation5 + $0x20] sm:$0xff]
    %v2172 = vld [vmem:[#allocation5 + $0x30] sm:$0xff]
    %v2173 = vld [vmem:[#allocation5 + $0x38] sm:$0xff]
    %v2174 = vld [vmem:[#allocation5 + $0x60] sm:$0xff]
    %v2175 = vld [vmem:[#allocation5 + $0x70] sm:$0xff]
    %v2176 = vld [vmem:[#allocation5 + $0x78] sm:$0xff]
    %v2177 = vld [vmem:[#allocation5 + $0xa0] sm:$0xff]
    %v2178 = vld [vmem:[#allocation5 + $0xb0] sm:$0xff]
    %v2179 = vld [vmem:[#allocation5 + $0xb8] sm:$0xff]
    %v2180 = vld [vmem:[#allocation5 + $0xe0] sm:$0xff]
    %v2181 = vld [vmem:[#allocation5 + $0xf0] sm:$0xff]
    %v2182 = vld [vmem:[#allocation5 + $0xf8] sm:$0xff]
    %v2183 = vld [vmem:[#allocation5 + $0x120] sm:$0xff]
    %v2184 = vld [vmem:[#allocation5 + $0x130] sm:$0xff]
    %v2185 = vld [vmem:[#allocation5 + $0x138] sm:$0xff]
    %v2186 = vld [vmem:[#allocation5 + $0x160] sm:$0xff]
    %v2187 = vld [vmem:[#allocation5 + $0x170] sm:$0xff]
    %v2188 = vld [vmem:[#allocation5 + $0x178] sm:$0xff]
    %v2189 = vld [vmem:[#allocation5 + $0x1a0] sm:$0xff]
    %v2190 = vld [vmem:[#allocation5 + $0x1b0] sm:$0xff]
    %v2191 = vld [vmem:[#allocation5 + $0x1b8] sm:$0xff]
    %v2192 = vld [vmem:[#allocation5 + $0x1e0] sm:$0xff]
    %v2193 = vld [vmem:[#allocation5 + $0x1f0] sm:$0xff]
    %v2194 = vld [vmem:[#allocation5 + $0x1f8] sm:$0xff]
    %v2195 = vld [vmem:[#allocation5 + $0x220] sm:$0xff]
    %v2196 = vld [vmem:[#allocation5 + $0x230] sm:$0xff]
    %v2197 = vld [vmem:[#allocation5 + $0x238] sm:$0xff]
    %v2198 = vld [vmem:[#allocation5 + $0x260] sm:$0xff]
    %v2199 = vld [vmem:[#allocation5 + $0x270] sm:$0xff]
    %v2200 = vld [vmem:[#allocation5 + $0x278] sm:$0xff]
    %v2201 = vld [vmem:[#allocation5 + $0x2a0] sm:$0xff]
    %v2202 = vld [vmem:[#allocation5 + $0x2b0] sm:$0xff]
    %v2203 = vld [vmem:[#allocation5 + $0x2b8] sm:$0xff]
    %v2204 = vld [vmem:[#allocation5 + $0x2e0] sm:$0xff]
    %v2205 = vld [vmem:[#allocation5 + $0x2f0] sm:$0xff]
    %v2206 = vld [vmem:[#allocation5 + $0x2f8] sm:$0xff]
    %v2207 = vld [vmem:[#allocation5 + $0x320] sm:$0xff]
    %v2208 = vld [vmem:[#allocation5 + $0x330] sm:$0xff]
    %v2209 = vld [vmem:[#allocation5 + $0x338] sm:$0xff]
    %v2210 = vld [vmem:[#allocation5 + $0x360] sm:$0xff]
    %v2211 = vld [vmem:[#allocation5 + $0x370] sm:$0xff]
    %v2212 = vld [vmem:[#allocation5 + $0x378] sm:$0xff]
    %v2213 = vld [vmem:[#allocation5 + $0x3a0] sm:$0xff]
    %v2214 = vld [vmem:[#allocation5 + $0x3b0] sm:$0xff]
    %v2215 = vld [vmem:[#allocation5 + $0x3b8] sm:$0xff]
    %v2216 = vld [vmem:[#allocation5 + $0x3e0] sm:$0xff]
    %v2217 = vld [vmem:[#allocation5 + $0x3f0] sm:$0xff]
    %v2218 = vld [vmem:[#allocation5 + $0x3f8] sm:$0xff]
    %v2219 = vld [vmem:[#allocation5 + $0x420] sm:$0xff]
    %v2220 = vld [vmem:[#allocation5 + $0x430] sm:$0xff]
    %v2221 = vld [vmem:[#allocation5 + $0x438] sm:$0xff]
    %v2222 = vld [vmem:[#allocation5 + $0x460] sm:$0xff]
    %v2223 = vld [vmem:[#allocation5 + $0x470] sm:$0xff]
    %v2224 = vld [vmem:[#allocation5 + $0x478] sm:$0xff]
    %v2225 = vld [vmem:[#allocation5 + $0x4a0] sm:$0xff]
    %v2226 = vld [vmem:[#allocation5 + $0x4b0] sm:$0xff]
    %v2227 = vld [vmem:[#allocation5 + $0x4b8] sm:$0xff]
    %v2228 = vld [vmem:[#allocation5 + $0x4e0] sm:$0xff]
    %v2229 = vld [vmem:[#allocation5 + $0x4f0] sm:$0xff]
    %v2230 = vld [vmem:[#allocation5 + $0x4f8] sm:$0xff]
    %v2231 = vld [vmem:[#allocation5 + $0x520] sm:$0xff]
    %v2232 = vld [vmem:[#allocation5 + $0x530] sm:$0xff]
    %v2233 = vld [vmem:[#allocation5 + $0x538] sm:$0xff]
    %v2234 = vld [vmem:[#allocation5 + $0x560] sm:$0xff]
    %v2235 = vld [vmem:[#allocation5 + $0x570] sm:$0xff]
    %v2236 = vld [vmem:[#allocation5 + $0x578] sm:$0xff]
    %v2237 = vld [vmem:[#allocation5 + $0x5a0] sm:$0xff]
    %v2238 = vld [vmem:[#allocation5 + $0x5b0] sm:$0xff]
    %v2239 = vld [vmem:[#allocation5 + $0x5b8] sm:$0xff]
    %v2240 = vld [vmem:[#allocation5 + $0x5e0] sm:$0xff]
    %v2241 = vld [vmem:[#allocation5 + $0x5f0] sm:$0xff]
    %v2242 = vld [vmem:[#allocation5 + $0x5f8] sm:$0xff]
    %v2243 = vpack.c.b16 %v775, %v775
    %v2244 = vpack.c.b16 %v776, %v776
    %v2318 = vunpack.c.l.b16 %v2171
    %v2319 = vunpack.c.h.b16 %v2171
    %v2320 = vunpack.c.l.b16 %v2172
    %v2321 = vunpack.c.h.b16 %v2172
    %v2322 = vunpack.c.l.b16 %v2173
    %v2323 = vunpack.c.h.b16 %v2173
    %v2324 = vunpack.c.l.b16 %v2174
    %v2325 = vunpack.c.h.b16 %v2174
    %v2326 = vunpack.c.l.b16 %v2175
    %v2327 = vunpack.c.h.b16 %v2175
    %v2328 = vunpack.c.l.b16 %v2176
    %v2329 = vunpack.c.h.b16 %v2176
    %v2330 = vunpack.c.l.b16 %v2177
    %v2331 = vunpack.c.h.b16 %v2177
    %v2332 = vunpack.c.l.b16 %v2178
    %v2333 = vunpack.c.h.b16 %v2178
    %v2334 = vunpack.c.l.b16 %v2179
    %v2335 = vunpack.c.h.b16 %v2179
    %v2336 = vunpack.c.l.b16 %v2180
    %v2337 = vunpack.c.h.b16 %v2180
    %v2338 = vunpack.c.l.b16 %v2181
    %v2339 = vunpack.c.h.b16 %v2181
    %v2340 = vunpack.c.l.b16 %v2182
    %v2341 = vunpack.c.h.b16 %v2182
    %v2342 = vunpack.c.l.b16 %v2183
    %v2343 = vunpack.c.h.b16 %v2183
    %v2344 = vunpack.c.l.b16 %v2184
    %v2345 = vunpack.c.h.b16 %v2184
    %v2346 = vunpack.c.l.b16 %v2185
    %v2347 = vunpack.c.h.b16 %v2185
    %v2348 = vunpack.c.l.b16 %v2186
    %v2349 = vunpack.c.h.b16 %v2186
    %v2350 = vunpack.c.l.b16 %v2187
    %v2351 = vunpack.c.h.b16 %v2187
    %v2352 = vunpack.c.l.b16 %v2188
    %v2353 = vunpack.c.h.b16 %v2188
    %v2354 = vunpack.c.l.b16 %v2189
    %v2355 = vunpack.c.h.b16 %v2189
    %v2356 = vunpack.c.l.b16 %v2190
    %v2357 = vunpack.c.h.b16 %v2190
    %v2358 = vunpack.c.l.b16 %v2191
    %v2359 = vunpack.c.h.b16 %v2191
    %v2360 = vunpack.c.l.b16 %v2192
    %v2361 = vunpack.c.h.b16 %v2192
    %v2362 = vunpack.c.l.b16 %v2193
    %v2363 = vunpack.c.h.b16 %v2193
    %v2364 = vunpack.c.l.b16 %v2194
    %v2365 = vunpack.c.h.b16 %v2194
    %v2366 = vunpack.c.l.b16 %v2195
    %v2367 = vunpack.c.h.b16 %v2195
    %v2368 = vunpack.c.l.b16 %v2196
    %v2369 = vunpack.c.h.b16 %v2196
    %v2370 = vunpack.c.l.b16 %v2197
    %v2371 = vunpack.c.h.b16 %v2197
    %v2372 = vunpack.c.l.b16 %v2198
    %v2373 = vunpack.c.h.b16 %v2198
    %v2374 = vunpack.c.l.b16 %v2199
    %v2375 = vunpack.c.h.b16 %v2199
    %v2376 = vunpack.c.l.b16 %v2200
    %v2377 = vunpack.c.h.b16 %v2200
    %v2378 = vunpack.c.l.b16 %v2201
    %v2379 = vunpack.c.h.b16 %v2201
    %v2380 = vunpack.c.l.b16 %v2202
    %v2381 = vunpack.c.h.b16 %v2202
    %v2382 = vunpack.c.l.b16 %v2203
    %v2383 = vunpack.c.h.b16 %v2203
    %v2384 = vunpack.c.l.b16 %v2204
    %v2385 = vunpack.c.h.b16 %v2204
    %v2386 = vunpack.c.l.b16 %v2205
    %v2387 = vunpack.c.h.b16 %v2205
    %v2388 = vunpack.c.l.b16 %v2206
    %v2389 = vunpack.c.h.b16 %v2206
    %v2390 = vunpack.c.l.b16 %v2207
    %v2391 = vunpack.c.h.b16 %v2207
    %v2392 = vunpack.c.l.b16 %v2208
    %v2393 = vunpack.c.h.b16 %v2208
    %v2394 = vunpack.c.l.b16 %v2209
    %v2395 = vunpack.c.h.b16 %v2209
    %v2396 = vunpack.c.l.b16 %v2210
    %v2397 = vunpack.c.h.b16 %v2210
    %v2398 = vunpack.c.l.b16 %v2211
    %v2399 = vunpack.c.h.b16 %v2211
    %v2400 = vunpack.c.l.b16 %v2212
    %v2401 = vunpack.c.h.b16 %v2212
    %v2402 = vunpack.c.l.b16 %v2213
    %v2403 = vunpack.c.h.b16 %v2213
    %v2404 = vunpack.c.l.b16 %v2214
    %v2405 = vunpack.c.h.b16 %v2214
    %v2406 = vunpack.c.l.b16 %v2215
    %v2407 = vunpack.c.h.b16 %v2215
    %v2408 = vunpack.c.l.b16 %v2216
    %v2409 = vunpack.c.h.b16 %v2216
    %v2410 = vunpack.c.l.b16 %v2217
    %v2411 = vunpack.c.h.b16 %v2217
    %v2412 = vunpack.c.l.b16 %v2218
    %v2413 = vunpack.c.h.b16 %v2218
    %v2414 = vunpack.c.l.b16 %v2219
    %v2415 = vunpack.c.h.b16 %v2219
    %v2416 = vunpack.c.l.b16 %v2220
    %v2417 = vunpack.c.h.b16 %v2220
    %v2418 = vunpack.c.l.b16 %v2221
    %v2419 = vunpack.c.h.b16 %v2221
    %v2420 = vunpack.c.l.b16 %v2222
    %v2421 = vunpack.c.h.b16 %v2222
    %v2422 = vunpack.c.l.b16 %v2223
    %v2423 = vunpack.c.h.b16 %v2223
    %v2424 = vunpack.c.l.b16 %v2224
    %v2425 = vunpack.c.h.b16 %v2224
    %v2426 = vunpack.c.l.b16 %v2225
    %v2427 = vunpack.c.h.b16 %v2225
    %v2428 = vunpack.c.l.b16 %v2226
    %v2429 = vunpack.c.h.b16 %v2226
    %v2430 = vunpack.c.l.b16 %v2227
    %v2431 = vunpack.c.h.b16 %v2227
    %v2432 = vunpack.c.l.b16 %v2228
    %v2433 = vunpack.c.h.b16 %v2228
    %v2434 = vunpack.c.l.b16 %v2229
    %v2435 = vunpack.c.h.b16 %v2229
    %v2436 = vunpack.c.l.b16 %v2230
    %v2437 = vunpack.c.h.b16 %v2230
    %v2438 = vunpack.c.l.b16 %v2231
    %v2439 = vunpack.c.h.b16 %v2231
    %v2440 = vunpack.c.l.b16 %v2232
    %v2441 = vunpack.c.h.b16 %v2232
    %v2442 = vunpack.c.l.b16 %v2233
    %v2443 = vunpack.c.h.b16 %v2233
    %v2444 = vunpack.c.l.b16 %v2234
    %v2445 = vunpack.c.h.b16 %v2234
    %v2446 = vunpack.c.l.b16 %v2235
    %v2447 = vunpack.c.h.b16 %v2235
    %v2448 = vunpack.c.l.b16 %v2236
    %v2449 = vunpack.c.h.b16 %v2236
    %v2450 = vunpack.c.l.b16 %v2237
    %v2451 = vunpack.c.h.b16 %v2237
    %v2452 = vunpack.c.l.b16 %v2238
    %v2453 = vunpack.c.h.b16 %v2238
    %v2454 = vunpack.c.l.b16 %v2239
    %v2455 = vunpack.c.h.b16 %v2239
    %v2456 = vunpack.c.l.b16 %v2240
    %v2457 = vunpack.c.h.b16 %v2240
    %v2458 = vunpack.c.l.b16 %v2241
    %v2459 = vunpack.c.h.b16 %v2241
    %v2460 = vunpack.c.l.b16 %v2242
    %v2461 = vunpack.c.h.b16 %v2242
    %v2462 = vpack.c.b16 %v2324, %v2318
    %v2463 = vpack.c.b16 %v2325, %v2319
    %v2464 = vpack.c.b16 %v2326, %v2320
    %v2465 = vpack.c.b16 %v2327, %v2321
    %v2466 = vpack.c.b16 %v2328, %v2322
    %v2467 = vpack.c.b16 %v2329, %v2323
    %v2468 = vpack.c.b16 %v2336, %v2330
    %v2469 = vpack.c.b16 %v2337, %v2331
    %v2470 = vpack.c.b16 %v2338, %v2332
    %v2471 = vpack.c.b16 %v2339, %v2333
    %v2472 = vpack.c.b16 %v2340, %v2334
    %v2473 = vpack.c.b16 %v2341, %v2335
    %v2474 = vpack.c.b16 %v2348, %v2342
    %v2475 = vpack.c.b16 %v2349, %v2343
    %v2476 = vpack.c.b16 %v2350, %v2344
    %v2477 = vpack.c.b16 %v2351, %v2345
    %v2478 = vpack.c.b16 %v2352, %v2346
    %v2479 = vpack.c.b16 %v2353, %v2347
    %v2480 = vpack.c.b16 %v2360, %v2354
    %v2481 = vpack.c.b16 %v2361, %v2355
    %v2482 = vpack.c.b16 %v2362, %v2356
    %v2483 = vpack.c.b16 %v2363, %v2357
    %v2484 = vpack.c.b16 %v2364, %v2358
    %v2485 = vpack.c.b16 %v2365, %v2359
    %v2486 = vpack.c.b16 %v2372, %v2366
    %v2487 = vpack.c.b16 %v2373, %v2367
    %v2488 = vpack.c.b16 %v2374, %v2368
    %v2489 = vpack.c.b16 %v2375, %v2369
    %v2490 = vpack.c.b16 %v2376, %v2370
    %v2491 = vpack.c.b16 %v2377, %v2371
    %v2492 = vpack.c.b16 %v2384, %v2378
    %v2493 = vpack.c.b16 %v2385, %v2379
    %v2494 = vpack.c.b16 %v2386, %v2380
    %v2495 = vpack.c.b16 %v2387, %v2381
    %v2496 = vpack.c.b16 %v2388, %v2382
    %v2497 = vpack.c.b16 %v2389, %v2383
    %v2498 = vpack.c.b16 %v2396, %v2390
    %v2499 = vpack.c.b16 %v2397, %v2391
    %v2500 = vpack.c.b16 %v2398, %v2392
    %v2501 = vpack.c.b16 %v2399, %v2393
    %v2502 = vpack.c.b16 %v2400, %v2394
    %v2503 = vpack.c.b16 %v2401, %v2395
    %v2504 = vpack.c.b16 %v2408, %v2402
    %v2505 = vpack.c.b16 %v2409, %v2403
    %v2506 = vpack.c.b16 %v2410, %v2404
    %v2507 = vpack.c.b16 %v2411, %v2405
    %v2508 = vpack.c.b16 %v2412, %v2406
    %v2509 = vpack.c.b16 %v2413, %v2407
    %v2510 = vpack.c.b16 %v2420, %v2414
    %v2511 = vpack.c.b16 %v2421, %v2415
    %v2512 = vpack.c.b16 %v2422, %v2416
    %v2513 = vpack.c.b16 %v2423, %v2417
    %v2514 = vpack.c.b16 %v2424, %v2418
    %v2515 = vpack.c.b16 %v2425, %v2419
    %v2516 = vpack.c.b16 %v2432, %v2426
    %v2517 = vpack.c.b16 %v2433, %v2427
    %v2518 = vpack.c.b16 %v2434, %v2428
    %v2519 = vpack.c.b16 %v2435, %v2429
    %v2520 = vpack.c.b16 %v2436, %v2430
    %v2521 = vpack.c.b16 %v2437, %v2431
    %v2522 = vpack.c.b16 %v2444, %v2438
    %v2523 = vpack.c.b16 %v2445, %v2439
    %v2524 = vpack.c.b16 %v2446, %v2440
    %v2525 = vpack.c.b16 %v2447, %v2441
    %v2526 = vpack.c.b16 %v2448, %v2442
    %v2527 = vpack.c.b16 %v2449, %v2443
    %v2528 = vpack.c.b16 %v2456, %v2450
    %v2529 = vpack.c.b16 %v2457, %v2451
    %v2530 = vpack.c.b16 %v2458, %v2452
    %v2531 = vpack.c.b16 %v2459, %v2453
    %v2532 = vpack.c.b16 %v2460, %v2454
    %v2533 = vpack.c.b16 %v2461, %v2455
    %v2607 = vsel %vm1269, %v2244, 0
    %2609 = vmatpush.bf16.msra.mxu0 %v2504
    %2610 = vmatpush.bf16.msra.mxu0 %v2498
    %2611 = vmatpush.bf16.msra.mxu0 %v2492
    %2612 = vmatpush.bf16.msra.mxu0 %v2486
    %2613 = vmatpush.bf16.msra.mxu0 %v2480
    %2614 = vmatpush.bf16.msra.mxu0 %v2474
    %2615 = vmatpush.bf16.msra.mxu0 %v2468
    %2616 = vmatpush.bf16.msra.mxu0 %v2462
    %2617 = vmatmul.bf16.gmra.mxu0 %v2243
    %v2618 = vpop.f32.mrf.mxu0
    %v2619 = vadd.f32 0.0, %v2618
    %v2620 = vpop.f32.mrf.mxu0
    %2621 = vdwg.mxu0
    %2622 = vmatpush.bf16.msra.mxu0 0
    %2623 = vmatpush.bf16.msra.mxu0 0
    %2624 = vmatpush.bf16.msra.mxu0 0
    %2625 = vmatpush.bf16.msra.mxu0 0
    %2626 = vmatpush.bf16.msra.mxu0 %v2528
    %2627 = vmatpush.bf16.msra.mxu0 %v2522
    %2628 = vmatpush.bf16.msra.mxu0 %v2516
    %2629 = vmatpush.bf16.msra.mxu0 %v2510
    %2630 = vmatmul.bf16.gmra.mxu0 %v2607
    %v2631 = vpop.f32.mrf.mxu0
    %v2632 = vadd.f32 %v2619, %v2631
    %v2633 = vpop.f32.mrf.mxu0
    %2634 = vdwg.mxu0
    %2635 = vmatpush.bf16.msra.mxu0 %v2505
    %2636 = vmatpush.bf16.msra.mxu0 %v2499
    %2637 = vmatpush.bf16.msra.mxu0 %v2493
    %2638 = vmatpush.bf16.msra.mxu0 %v2487
    %2639 = vmatpush.bf16.msra.mxu0 %v2481
    %2640 = vmatpush.bf16.msra.mxu0 %v2475
    %2641 = vmatpush.bf16.msra.mxu0 %v2469
    %2642 = vmatpush.bf16.msra.mxu0 %v2463
    %2643 = vmatmul.bf16.gmra.mxu0 %v2243
    %v2644 = vpop.f32.mrf.mxu0
    %v2645 = vadd.f32 0.0, %v2644
    %v2646 = vpop.f32.mrf.mxu0
    %2647 = vdwg.mxu0
    %2648 = vmatpush.bf16.msra.mxu0 0
    %2649 = vmatpush.bf16.msra.mxu0 0
    %2650 = vmatpush.bf16.msra.mxu0 0
    %2651 = vmatpush.bf16.msra.mxu0 0
    %2652 = vmatpush.bf16.msra.mxu0 %v2529
    %2653 = vmatpush.bf16.msra.mxu0 %v2523
    %2654 = vmatpush.bf16.msra.mxu0 %v2517
    %2655 = vmatpush.bf16.msra.mxu0 %v2511
    %2656 = vmatmul.bf16.gmra.mxu0 %v2607
    %v2657 = vpop.f32.mrf.mxu0
    %v2658 = vadd.f32 %v2645, %v2657
    %v2659 = vpop.f32.mrf.mxu0
    %2660 = vdwg.mxu0
    %2661 = vmatpush.bf16.msra.mxu0 %v2506
    %2662 = vmatpush.bf16.msra.mxu0 %v2500
    %2663 = vmatpush.bf16.msra.mxu0 %v2494
    %2664 = vmatpush.bf16.msra.mxu0 %v2488
    %2665 = vmatpush.bf16.msra.mxu0 %v2482
    %2666 = vmatpush.bf16.msra.mxu0 %v2476
    %2667 = vmatpush.bf16.msra.mxu0 %v2470
    %2668 = vmatpush.bf16.msra.mxu0 %v2464
    %2669 = vmatmul.bf16.gmra.mxu0 %v2243
    %v2670 = vpop.f32.mrf.mxu0
    %v2671 = vadd.f32 0.0, %v2670
    %v2672 = vpop.f32.mrf.mxu0
    %2673 = vdwg.mxu0
    %2674 = vmatpush.bf16.msra.mxu0 0
    %2675 = vmatpush.bf16.msra.mxu0 0
    %2676 = vmatpush.bf16.msra.mxu0 0
    %2677 = vmatpush.bf16.msra.mxu0 0
    %2678 = vmatpush.bf16.msra.mxu0 %v2530
    %2679 = vmatpush.bf16.msra.mxu0 %v2524
    %2680 = vmatpush.bf16.msra.mxu0 %v2518
    %2681 = vmatpush.bf16.msra.mxu0 %v2512
    %2682 = vmatmul.bf16.gmra.mxu0 %v2607
    %v2683 = vpop.f32.mrf.mxu0
    %v2684 = vadd.f32 %v2671, %v2683
    %v2685 = vpop.f32.mrf.mxu0
    %2686 = vdwg.mxu0
    %2687 = vmatpush.bf16.msra.mxu0 %v2507
    %2688 = vmatpush.bf16.msra.mxu0 %v2501
    %2689 = vmatpush.bf16.msra.mxu0 %v2495
    %2690 = vmatpush.bf16.msra.mxu0 %v2489
    %2691 = vmatpush.bf16.msra.mxu0 %v2483
    %2692 = vmatpush.bf16.msra.mxu0 %v2477
    %2693 = vmatpush.bf16.msra.mxu0 %v2471
    %2694 = vmatpush.bf16.msra.mxu0 %v2465
    %2695 = vmatmul.bf16.gmra.mxu0 %v2243
    %v2696 = vpop.f32.mrf.mxu0
    %v2697 = vadd.f32 0.0, %v2696
    %v2698 = vpop.f32.mrf.mxu0
    %2699 = vdwg.mxu0
    %2700 = vmatpush.bf16.msra.mxu0 0
    %2701 = vmatpush.bf16.msra.mxu0 0
    %2702 = vmatpush.bf16.msra.mxu0 0
    %2703 = vmatpush.bf16.msra.mxu0 0
    %2704 = vmatpush.bf16.msra.mxu0 %v2531
    %2705 = vmatpush.bf16.msra.mxu0 %v2525
    %2706 = vmatpush.bf16.msra.mxu0 %v2519
    %2707 = vmatpush.bf16.msra.mxu0 %v2513
    %2708 = vmatmul.bf16.gmra.mxu0 %v2607
    %v2709 = vpop.f32.mrf.mxu0
    %v2710 = vadd.f32 %v2697, %v2709
    %v2711 = vpop.f32.mrf.mxu0
    %2712 = vdwg.mxu0
    %2713 = vmatpush.bf16.msra.mxu0 %v2508
    %2714 = vmatpush.bf16.msra.mxu0 %v2502
    %2715 = vmatpush.bf16.msra.mxu0 %v2496
    %2716 = vmatpush.bf16.msra.mxu0 %v2490
    %2717 = vmatpush.bf16.msra.mxu0 %v2484
    %2718 = vmatpush.bf16.msra.mxu0 %v2478
    %2719 = vmatpush.bf16.msra.mxu0 %v2472
    %2720 = vmatpush.bf16.msra.mxu0 %v2466
    %2721 = vmatmul.bf16.gmra.mxu0 %v2243
    %v2722 = vpop.f32.mrf.mxu0
    %v2723 = vadd.f32 0.0, %v2722
    %v2724 = vpop.f32.mrf.mxu0
    %2725 = vdwg.mxu0
    %2726 = vmatpush.bf16.msra.mxu0 0
    %2727 = vmatpush.bf16.msra.mxu0 0
    %2728 = vmatpush.bf16.msra.mxu0 0
    %2729 = vmatpush.bf16.msra.mxu0 0
    %2730 = vmatpush.bf16.msra.mxu0 %v2532
    %2731 = vmatpush.bf16.msra.mxu0 %v2526
    %2732 = vmatpush.bf16.msra.mxu0 %v2520
    %2733 = vmatpush.bf16.msra.mxu0 %v2514
    %2734 = vmatmul.bf16.gmra.mxu0 %v2607
    %v2735 = vpop.f32.mrf.mxu0
    %v2736 = vadd.f32 %v2723, %v2735
    %v2737 = vpop.f32.mrf.mxu0
    %2738 = vdwg.mxu0
    %2739 = vmatpush.bf16.msra.mxu0 %v2509
    %2740 = vmatpush.bf16.msra.mxu0 %v2503
    %2741 = vmatpush.bf16.msra.mxu0 %v2497
    %2742 = vmatpush.bf16.msra.mxu0 %v2491
    %2743 = vmatpush.bf16.msra.mxu0 %v2485
    %2744 = vmatpush.bf16.msra.mxu0 %v2479
    %2745 = vmatpush.bf16.msra.mxu0 %v2473
    %2746 = vmatpush.bf16.msra.mxu0 %v2467
    %2747 = vmatmul.bf16.gmra.mxu0 %v2243
    %v2748 = vpop.f32.mrf.mxu0
    %v2749 = vadd.f32 0.0, %v2748
    %v2750 = vpop.f32.mrf.mxu0
    %2751 = vdwg.mxu0
    %2752 = vmatpush.bf16.msra.mxu0 0
    %2753 = vmatpush.bf16.msra.mxu0 0
    %2754 = vmatpush.bf16.msra.mxu0 0
    %2755 = vmatpush.bf16.msra.mxu0 0
    %2756 = vmatpush.bf16.msra.mxu0 %v2533
    %2757 = vmatpush.bf16.msra.mxu0 %v2527
    %2758 = vmatpush.bf16.msra.mxu0 %v2521
    %2759 = vmatpush.bf16.msra.mxu0 %v2515
    %2760 = vmatmul.bf16.gmra.mxu0 %v2607
    %v2761 = vpop.f32.mrf.mxu0
    %v2762 = vadd.f32 %v2749, %v2761
    %v2763 = vpop.f32.mrf.mxu0
    %2764 = vdwg.mxu0
    %v2768 = vunpack.c.l.b16 %v2168
    %v2769 = vunpack.c.h.b16 %v2168
    %v2770 = vunpack.c.l.b16 %v2169
    %v2771 = vunpack.c.h.b16 %v2169
    %v2772 = vunpack.c.l.b16 %v2170
    %v2773 = vunpack.c.h.b16 %v2170
    %v2774 = vpack.c.b16 %v2768, %v2768
    %v2775 = vpack.c.b16 %v2769, %v2769
    %v2776 = vpack.c.b16 %v2770, %v2770
    %v2777 = vpack.c.b16 %v2771, %v2771
    %v2778 = vpack.c.b16 %v2772, %v2772
    %v2779 = vpack.c.b16 %v2773, %v2773
    %v2781 = vsel %vm94, %v268, 0
    %v2784 = vsel %vm107, %v2774, 0
    %v2787 = vsel %vm107, %v2775, 0
    %v2790 = vsel %vm107, %v2776, 0
    %v2793 = vsel %vm107, %v2777, 0
    %v2796 = vsel %vm107, %v2778, 0
    %v2799 = vsel %vm107, %v2779, 0
    %2801 = vmatpush.bf16.msra.mxu0 0
    %2802 = vmatpush.bf16.msra.mxu0 0
    %2803 = vmatpush.bf16.msra.mxu0 0
    %2804 = vmatpush.bf16.msra.mxu0 0
    %2805 = vmatpush.bf16.msra.mxu0 0
    %2806 = vmatpush.bf16.msra.mxu0 0
    %2807 = vmatpush.bf16.msra.mxu0 0
    %2808 = vmatpush.bf16.msra.mxu0 %v2784
    %2809 = vmatmul.bf16.gmra.mxu0 %v2781
    %v2810 = vpop.f32.mrf.mxu0
    %v2811 = vadd.f32 %v2632, %v2810
    %v2812 = vpop.f32.mrf.mxu0
    %2813 = vdwg.mxu0
    %2814 = vmatpush.bf16.msra.mxu0 0
    %2815 = vmatpush.bf16.msra.mxu0 0
    %2816 = vmatpush.bf16.msra.mxu0 0
    %2817 = vmatpush.bf16.msra.mxu0 0
    %2818 = vmatpush.bf16.msra.mxu0 0
    %2819 = vmatpush.bf16.msra.mxu0 0
    %2820 = vmatpush.bf16.msra.mxu0 0
    %2821 = vmatpush.bf16.msra.mxu0 %v2787
    %2822 = vmatmul.bf16.gmra.mxu0 %v2781
    %v2823 = vpop.f32.mrf.mxu0
    %v2824 = vadd.f32 %v2658, %v2823
    %v2825 = vpop.f32.mrf.mxu0
    %2826 = vdwg.mxu0
    %2827 = vmatpush.bf16.msra.mxu0 0
    %2828 = vmatpush.bf16.msra.mxu0 0
    %2829 = vmatpush.bf16.msra.mxu0 0
    %2830 = vmatpush.bf16.msra.mxu0 0
    %2831 = vmatpush.bf16.msra.mxu0 0
    %2832 = vmatpush.bf16.msra.mxu0 0
    %2833 = vmatpush.bf16.msra.mxu0 0
    %2834 = vmatpush.bf16.msra.mxu0 %v2790
    %2835 = vmatmul.bf16.gmra.mxu0 %v2781
    %v2836 = vpop.f32.mrf.mxu0
    %v2837 = vadd.f32 %v2684, %v2836
    %v2838 = vpop.f32.mrf.mxu0
    %2839 = vdwg.mxu0
    %2840 = vmatpush.bf16.msra.mxu0 0
    %2841 = vmatpush.bf16.msra.mxu0 0
    %2842 = vmatpush.bf16.msra.mxu0 0
    %2843 = vmatpush.bf16.msra.mxu0 0
    %2844 = vmatpush.bf16.msra.mxu0 0
    %2845 = vmatpush.bf16.msra.mxu0 0
    %2846 = vmatpush.bf16.msra.mxu0 0
    %2847 = vmatpush.bf16.msra.mxu0 %v2793
    %2848 = vmatmul.bf16.gmra.mxu0 %v2781
    %v2849 = vpop.f32.mrf.mxu0
    %v2850 = vadd.f32 %v2710, %v2849
    %v2851 = vpop.f32.mrf.mxu0
    %2852 = vdwg.mxu0
    %2853 = vmatpush.bf16.msra.mxu0 0
    %2854 = vmatpush.bf16.msra.mxu0 0
    %2855 = vmatpush.bf16.msra.mxu0 0
    %2856 = vmatpush.bf16.msra.mxu0 0
    %2857 = vmatpush.bf16.msra.mxu0 0
    %2858 = vmatpush.bf16.msra.mxu0 0
    %2859 = vmatpush.bf16.msra.mxu0 0
    %2860 = vmatpush.bf16.msra.mxu0 %v2796
    %2861 = vmatmul.bf16.gmra.mxu0 %v2781
    %v2862 = vpop.f32.mrf.mxu0
    %v2863 = vadd.f32 %v2736, %v2862
    %v2864 = vpop.f32.mrf.mxu0
    %2865 = vdwg.mxu0
    %2866 = vmatpush.bf16.msra.mxu0 0
    %2867 = vmatpush.bf16.msra.mxu0 0
    %2868 = vmatpush.bf16.msra.mxu0 0
    %2869 = vmatpush.bf16.msra.mxu0 0
    %2870 = vmatpush.bf16.msra.mxu0 0
    %2871 = vmatpush.bf16.msra.mxu0 0
    %2872 = vmatpush.bf16.msra.mxu0 0
    %2873 = vmatpush.bf16.msra.mxu0 %v2799
    %2874 = vmatmul.bf16.gmra.mxu0 %v2781
    %v2875 = vpop.f32.mrf.mxu0
    %v2876 = vadd.f32 %v2762, %v2875
    %v2877 = vpop.f32.mrf.mxu0
    %2878 = vdwg.mxu0
    %v2879 = vld [vmem:[%s5 + $0xa] sm:$0xff]
    %v2881 = vperm.slane %v2879, 0
    %v2882 = vperm.slane %v2879, 1
    %v2883 = vperm.slane %v2879, 4
    %v2884 = vperm.slane %v2879, 5
    %v2885 = vperm.slane %v2879, 6
    %v2886 = vperm.slane %v2879, 7
    %v2893 = vadd.f32 %v2811, %v2881
    %v2894 = vadd.f32 %v2824, %v2882
    %v2895 = vadd.f32 %v2837, %v2883
    %v2896 = vadd.f32 %v2850, %v2884
    %v2897 = vadd.f32 %v2863, %v2885
    %v2898 = vadd.f32 %v2876, %v2886
    %v2899 = vmul.f32 %v2897, 0.5
    %v2900 = vmul.f32 %v2898, 0.5
    %v2901 = vtanh.pop %v2899
    %v2902 = vtanh.pop %v2900
    %v2903 = vmul.f32 %v2901, 0.5
    %v2904 = vmul.f32 %v2902, 0.5
    %v2905 = vadd.f32 %v2903, 0.5
    %v2906 = vadd.f32 %v2904, 0.5
    %v2907 = vmul.f32 %v2893, 0.5
    %v2908 = vmul.f32 %v2894, 0.5
    %v2909 = vtanh.pop %v2907
    %v2910 = vtanh.pop %v2908
    %v2911 = vmul.f32 %v2909, 0.5
    %v2912 = vmul.f32 %v2910, 0.5
    %v2913 = vadd.f32 %v2911, 0.5
    %v2914 = vadd.f32 %v2912, 0.5
    %v2915 = vtanh.pop %v2895
    %v2916 = vtanh.pop %v2896
    %v2917 = vmul.f32 %v2913, %v2915
    %v2918 = vmul.f32 %v2914, %v2916
    %v2919 = vtanh.pop %v2917
    %v2920 = vtanh.pop %v2918
    %v2921 = vmul.f32 %v2905, %v2919
    %v2922 = vmul.f32 %v2906, %v2920
    %v2923 = vld [vmem:[#allocation2] sm:$0xff]
    %v2924 = vld [vmem:[#allocation2 + $0x8] sm:$0xff]
    %v2925 = vld [vmem:[#allocation2 + $0x10] sm:$0xff]
    %v2926 = vld [vmem:[#allocation2 + $0x18] sm:$0xff]
    %v2927 = vld [vmem:[#allocation2 + $0x20] sm:$0xff]
    %v2928 = vld [vmem:[#allocation2 + $0x28] sm:$0xff]
    %v2929 = vld [vmem:[#allocation2 + $0x30] sm:$0xff]
    %v2930 = vld [vmem:[#allocation2 + $0x38] sm:$0xff]
    %v2931 = vld [vmem:[#allocation7] sm:$0xff]
    %v2932 = vld [vmem:[#allocation7 + $0x8] sm:$0xff]
    %v2933 = vld [vmem:[#allocation7 + $0x10] sm:$0xff]
    %v2934 = vld [vmem:[#allocation7 + $0x18] sm:$0xff]
    %v2935 = vld [vmem:[#allocation7 + $0x20] sm:$0xff]
    %v2936 = vld [vmem:[#allocation7 + $0x28] sm:$0xff]
    %v2937 = vld [vmem:[#allocation7 + $0x30] sm:$0xff]
    %v2938 = vld [vmem:[#allocation7 + $0x38] sm:$0xff]
    %v2939 = vld [vmem:[#allocation7 + $0x40] sm:$0xff]
    %v2940 = vld [vmem:[#allocation7 + $0x48] sm:$0xff]
    %v2941 = vld [vmem:[#allocation7 + $0x50] sm:$0xff]
    %v2942 = vld [vmem:[#allocation7 + $0x58] sm:$0xff]
    %v2943 = vld [vmem:[#allocation7 + $0x60] sm:$0xff]
    %v2944 = vld [vmem:[#allocation7 + $0x68] sm:$0xff]
    %v2945 = vld [vmem:[#allocation7 + $0x70] sm:$0xff]
    %v2946 = vld [vmem:[#allocation7 + $0x78] sm:$0xff]
    %v2947 = vld [vmem:[#allocation7 + $0x80] sm:$0xff]
    %v2948 = vld [vmem:[#allocation7 + $0x88] sm:$0xff]
    %v2949 = vld [vmem:[#allocation7 + $0x90] sm:$0xff]
    %v2950 = vld [vmem:[#allocation7 + $0x98] sm:$0xff]
    %v2951 = vld [vmem:[#allocation7 + $0xa0] sm:$0xff]
    %v2952 = vld [vmem:[#allocation7 + $0xa8] sm:$0xff]
    %v2953 = vld [vmem:[#allocation7 + $0xb0] sm:$0xff]
    %v2954 = vld [vmem:[#allocation7 + $0xb8] sm:$0xff]
    %v2955 = vld [vmem:[#allocation7 + $0xc0] sm:$0xff]
    %v2956 = vld [vmem:[#allocation7 + $0xc8] sm:$0xff]
    %v2957 = vld [vmem:[#allocation7 + $0xd0] sm:$0xff]
    %v2958 = vld [vmem:[#allocation7 + $0xd8] sm:$0xff]
    %v2959 = vld [vmem:[#allocation7 + $0xe0] sm:$0xff]
    %v2960 = vld [vmem:[#allocation7 + $0xe8] sm:$0xff]
    %v2961 = vld [vmem:[#allocation7 + $0xf0] sm:$0xff]
    %v2962 = vld [vmem:[#allocation7 + $0xf8] sm:$0xff]
    %v2963 = vld [vmem:[#allocation7 + $0x100] sm:$0xff]
    %v2964 = vld [vmem:[#allocation7 + $0x108] sm:$0xff]
    %v2965 = vld [vmem:[#allocation7 + $0x110] sm:$0xff]
    %v2966 = vld [vmem:[#allocation7 + $0x118] sm:$0xff]
    %v2967 = vld [vmem:[#allocation7 + $0x120] sm:$0xff]
    %v2968 = vld [vmem:[#allocation7 + $0x128] sm:$0xff]
    %v2969 = vld [vmem:[#allocation7 + $0x130] sm:$0xff]
    %v2970 = vld [vmem:[#allocation7 + $0x138] sm:$0xff]
    %v2971 = vld [vmem:[#allocation7 + $0x140] sm:$0xff]
    %v2972 = vld [vmem:[#allocation7 + $0x148] sm:$0xff]
    %v2973 = vld [vmem:[#allocation7 + $0x150] sm:$0xff]
    %v2974 = vld [vmem:[#allocation7 + $0x158] sm:$0xff]
    %v2975 = vld [vmem:[#allocation7 + $0x160] sm:$0xff]
    %v2976 = vld [vmem:[#allocation7 + $0x168] sm:$0xff]
    %v2977 = vld [vmem:[#allocation7 + $0x170] sm:$0xff]
    %v2978 = vld [vmem:[#allocation7 + $0x178] sm:$0xff]
    %v2979 = vld [vmem:[#allocation7 + $0x180] sm:$0xff]
    %v2980 = vld [vmem:[#allocation7 + $0x188] sm:$0xff]
    %v2981 = vld [vmem:[#allocation7 + $0x190] sm:$0xff]
    %v2982 = vld [vmem:[#allocation7 + $0x198] sm:$0xff]
    %v2983 = vld [vmem:[#allocation7 + $0x1a0] sm:$0xff]
    %v2984 = vld [vmem:[#allocation7 + $0x1a8] sm:$0xff]
    %v2985 = vld [vmem:[#allocation7 + $0x1b0] sm:$0xff]
    %v2986 = vld [vmem:[#allocation7 + $0x1b8] sm:$0xff]
    %v2987 = vld [vmem:[#allocation7 + $0x1c0] sm:$0xff]
    %v2988 = vld [vmem:[#allocation7 + $0x1c8] sm:$0xff]
    %v2989 = vld [vmem:[#allocation7 + $0x1d0] sm:$0xff]
    %v2990 = vld [vmem:[#allocation7 + $0x1d8] sm:$0xff]
    %v2991 = vld [vmem:[#allocation7 + $0x1e0] sm:$0xff]
    %v2992 = vld [vmem:[#allocation7 + $0x1e8] sm:$0xff]
    %v2993 = vld [vmem:[#allocation7 + $0x1f0] sm:$0xff]
    %v2994 = vld [vmem:[#allocation7 + $0x1f8] sm:$0xff]
    %v2995 = vld [vmem:[#allocation7 + $0x200] sm:$0xff]
    %v2996 = vld [vmem:[#allocation7 + $0x208] sm:$0xff]
    %v2997 = vld [vmem:[#allocation7 + $0x210] sm:$0xff]
    %v2998 = vld [vmem:[#allocation7 + $0x218] sm:$0xff]
    %v2999 = vld [vmem:[#allocation7 + $0x220] sm:$0xff]
    %v3000 = vld [vmem:[#allocation7 + $0x228] sm:$0xff]
    %v3001 = vld [vmem:[#allocation7 + $0x230] sm:$0xff]
    %v3002 = vld [vmem:[#allocation7 + $0x238] sm:$0xff]
    %v3003 = vld [vmem:[#allocation7 + $0x240] sm:$0xff]
    %v3004 = vld [vmem:[#allocation7 + $0x248] sm:$0xff]
    %v3005 = vld [vmem:[#allocation7 + $0x250] sm:$0xff]
    %v3006 = vld [vmem:[#allocation7 + $0x258] sm:$0xff]
    %v3007 = vld [vmem:[#allocation7 + $0x260] sm:$0xff]
    %v3008 = vld [vmem:[#allocation7 + $0x268] sm:$0xff]
    %v3009 = vld [vmem:[#allocation7 + $0x270] sm:$0xff]
    %v3010 = vld [vmem:[#allocation7 + $0x278] sm:$0xff]
    %v3011 = vld [vmem:[#allocation7 + $0x280] sm:$0xff]
    %v3012 = vld [vmem:[#allocation7 + $0x288] sm:$0xff]
    %v3013 = vld [vmem:[#allocation7 + $0x290] sm:$0xff]
    %v3014 = vld [vmem:[#allocation7 + $0x298] sm:$0xff]
    %v3015 = vld [vmem:[#allocation7 + $0x2a0] sm:$0xff]
    %v3016 = vld [vmem:[#allocation7 + $0x2a8] sm:$0xff]
    %v3017 = vld [vmem:[#allocation7 + $0x2b0] sm:$0xff]
    %v3018 = vld [vmem:[#allocation7 + $0x2b8] sm:$0xff]
    %v3019 = vld [vmem:[#allocation7 + $0x2c0] sm:$0xff]
    %v3020 = vld [vmem:[#allocation7 + $0x2c8] sm:$0xff]
    %v3021 = vld [vmem:[#allocation7 + $0x2d0] sm:$0xff]
    %v3022 = vld [vmem:[#allocation7 + $0x2d8] sm:$0xff]
    %v3023 = vld [vmem:[#allocation7 + $0x2e0] sm:$0xff]
    %v3024 = vld [vmem:[#allocation7 + $0x2e8] sm:$0xff]
    %v3025 = vld [vmem:[#allocation7 + $0x2f0] sm:$0xff]
    %v3026 = vld [vmem:[#allocation7 + $0x2f8] sm:$0xff]
    %v3027 = vld [vmem:[#allocation7 + $0x300] sm:$0xff]
    %v3028 = vld [vmem:[#allocation7 + $0x308] sm:$0xff]
    %v3029 = vld [vmem:[#allocation7 + $0x310] sm:$0xff]
    %v3030 = vld [vmem:[#allocation7 + $0x318] sm:$0xff]
    %v3031 = vld [vmem:[#allocation7 + $0x320] sm:$0xff]
    %v3032 = vld [vmem:[#allocation7 + $0x328] sm:$0xff]
    %v3033 = vld [vmem:[#allocation7 + $0x330] sm:$0xff]
    %v3034 = vld [vmem:[#allocation7 + $0x338] sm:$0xff]
    %v3035 = vld [vmem:[#allocation7 + $0x340] sm:$0xff]
    %v3036 = vld [vmem:[#allocation7 + $0x348] sm:$0xff]
    %v3037 = vld [vmem:[#allocation7 + $0x350] sm:$0xff]
    %v3038 = vld [vmem:[#allocation7 + $0x358] sm:$0xff]
    %v3039 = vld [vmem:[#allocation7 + $0x360] sm:$0xff]
    %v3040 = vld [vmem:[#allocation7 + $0x368] sm:$0xff]
    %v3041 = vld [vmem:[#allocation7 + $0x370] sm:$0xff]
    %v3042 = vld [vmem:[#allocation7 + $0x378] sm:$0xff]
    %v3043 = vld [vmem:[#allocation7 + $0x380] sm:$0xff]
    %v3044 = vld [vmem:[#allocation7 + $0x388] sm:$0xff]
    %v3045 = vld [vmem:[#allocation7 + $0x390] sm:$0xff]
    %v3046 = vld [vmem:[#allocation7 + $0x398] sm:$0xff]
    %v3047 = vld [vmem:[#allocation7 + $0x3a0] sm:$0xff]
    %v3048 = vld [vmem:[#allocation7 + $0x3a8] sm:$0xff]
    %v3049 = vld [vmem:[#allocation7 + $0x3b0] sm:$0xff]
    %v3050 = vld [vmem:[#allocation7 + $0x3b8] sm:$0xff]
    %v3051 = vld [vmem:[#allocation7 + $0x3c0] sm:$0xff]
    %v3052 = vld [vmem:[#allocation7 + $0x3c8] sm:$0xff]
    %v3053 = vld [vmem:[#allocation7 + $0x3d0] sm:$0xff]
    %v3054 = vld [vmem:[#allocation7 + $0x3d8] sm:$0xff]
    %v3055 = vld [vmem:[#allocation7 + $0x3e0] sm:$0xff]
    %v3056 = vld [vmem:[#allocation7 + $0x3e8] sm:$0xff]
    %v3057 = vld [vmem:[#allocation7 + $0x3f0] sm:$0xff]
    %v3058 = vld [vmem:[#allocation7 + $0x3f8] sm:$0xff]
    %v3187 = vunpack.c.l.b16 %v2931
    %v3188 = vunpack.c.h.b16 %v2931
    %v3189 = vunpack.c.l.b16 %v2932
    %v3190 = vunpack.c.h.b16 %v2932
    %v3191 = vunpack.c.l.b16 %v2933
    %v3192 = vunpack.c.h.b16 %v2933
    %v3193 = vunpack.c.l.b16 %v2934
    %v3194 = vunpack.c.h.b16 %v2934
    %v3195 = vunpack.c.l.b16 %v2935
    %v3196 = vunpack.c.h.b16 %v2935
    %v3197 = vunpack.c.l.b16 %v2936
    %v3198 = vunpack.c.h.b16 %v2936
    %v3199 = vunpack.c.l.b16 %v2937
    %v3200 = vunpack.c.h.b16 %v2937
    %v3201 = vunpack.c.l.b16 %v2938
    %v3202 = vunpack.c.h.b16 %v2938
    %v3203 = vunpack.c.l.b16 %v2939
    %v3204 = vunpack.c.h.b16 %v2939
    %v3205 = vunpack.c.l.b16 %v2940
    %v3206 = vunpack.c.h.b16 %v2940
    %v3207 = vunpack.c.l.b16 %v2941
    %v3208 = vunpack.c.h.b16 %v2941
    %v3209 = vunpack.c.l.b16 %v2942
    %v3210 = vunpack.c.h.b16 %v2942
    %v3211 = vunpack.c.l.b16 %v2943
    %v3212 = vunpack.c.h.b16 %v2943
    %v3213 = vunpack.c.l.b16 %v2944
    %v3214 = vunpack.c.h.b16 %v2944
    %v3215 = vunpack.c.l.b16 %v2945
    %v3216 = vunpack.c.h.b16 %v2945
    %v3217 = vunpack.c.l.b16 %v2946
    %v3218 = vunpack.c.h.b16 %v2946
    %v3219 = vunpack.c.l.b16 %v2947
    %v3220 = vunpack.c.h.b16 %v2947
    %v3221 = vunpack.c.l.b16 %v2948
    %v3222 = vunpack.c.h.b16 %v2948
    %v3223 = vunpack.c.l.b16 %v2949
    %v3224 = vunpack.c.h.b16 %v2949
    %v3225 = vunpack.c.l.b16 %v2950
    %v3226 = vunpack.c.h.b16 %v2950
    %v3227 = vunpack.c.l.b16 %v2951
    %v3228 = vunpack.c.h.b16 %v2951
    %v3229 = vunpack.c.l.b16 %v2952
    %v3230 = vunpack.c.h.b16 %v2952
    %v3231 = vunpack.c.l.b16 %v2953
    %v3232 = vunpack.c.h.b16 %v2953
    %v3233 = vunpack.c.l.b16 %v2954
    %v3234 = vunpack.c.h.b16 %v2954
    %v3235 = vunpack.c.l.b16 %v2955
    %v3236 = vunpack.c.h.b16 %v2955
    %v3237 = vunpack.c.l.b16 %v2956
    %v3238 = vunpack.c.h.b16 %v2956
    %v3239 = vunpack.c.l.b16 %v2957
    %v3240 = vunpack.c.h.b16 %v2957
    %v3241 = vunpack.c.l.b16 %v2958
    %v3242 = vunpack.c.h.b16 %v2958
    %v3243 = vunpack.c.l.b16 %v2959
    %v3244 = vunpack.c.h.b16 %v2959
    %v3245 = vunpack.c.l.b16 %v2960
    %v3246 = vunpack.c.h.b16 %v2960
    %v3247 = vunpack.c.l.b16 %v2961
    %v3248 = vunpack.c.h.b16 %v2961
    %v3249 = vunpack.c.l.b16 %v2962
    %v3250 = vunpack.c.h.b16 %v2962
    %v3251 = vunpack.c.l.b16 %v2963
    %v3252 = vunpack.c.h.b16 %v2963
    %v3253 = vunpack.c.l.b16 %v2964
    %v3254 = vunpack.c.h.b16 %v2964
    %v3255 = vunpack.c.l.b16 %v2965
    %v3256 = vunpack.c.h.b16 %v2965
    %v3257 = vunpack.c.l.b16 %v2966
    %v3258 = vunpack.c.h.b16 %v2966
    %v3259 = vunpack.c.l.b16 %v2967
    %v3260 = vunpack.c.h.b16 %v2967
    %v3261 = vunpack.c.l.b16 %v2968
    %v3262 = vunpack.c.h.b16 %v2968
    %v3263 = vunpack.c.l.b16 %v2969
    %v3264 = vunpack.c.h.b16 %v2969
    %v3265 = vunpack.c.l.b16 %v2970
    %v3266 = vunpack.c.h.b16 %v2970
    %v3267 = vunpack.c.l.b16 %v2971
    %v3268 = vunpack.c.h.b16 %v2971
    %v3269 = vunpack.c.l.b16 %v2972
    %v3270 = vunpack.c.h.b16 %v2972
    %v3271 = vunpack.c.l.b16 %v2973
    %v3272 = vunpack.c.h.b16 %v2973
    %v3273 = vunpack.c.l.b16 %v2974
    %v3274 = vunpack.c.h.b16 %v2974
    %v3275 = vunpack.c.l.b16 %v2975
    %v3276 = vunpack.c.h.b16 %v2975
    %v3277 = vunpack.c.l.b16 %v2976
    %v3278 = vunpack.c.h.b16 %v2976
    %v3279 = vunpack.c.l.b16 %v2977
    %v3280 = vunpack.c.h.b16 %v2977
    %v3281 = vunpack.c.l.b16 %v2978
    %v3282 = vunpack.c.h.b16 %v2978
    %v3283 = vunpack.c.l.b16 %v2979
    %v3284 = vunpack.c.h.b16 %v2979
    %v3285 = vunpack.c.l.b16 %v2980
    %v3286 = vunpack.c.h.b16 %v2980
    %v3287 = vunpack.c.l.b16 %v2981
    %v3288 = vunpack.c.h.b16 %v2981
    %v3289 = vunpack.c.l.b16 %v2982
    %v3290 = vunpack.c.h.b16 %v2982
    %v3291 = vunpack.c.l.b16 %v2983
    %v3292 = vunpack.c.h.b16 %v2983
    %v3293 = vunpack.c.l.b16 %v2984
    %v3294 = vunpack.c.h.b16 %v2984
    %v3295 = vunpack.c.l.b16 %v2985
    %v3296 = vunpack.c.h.b16 %v2985
    %v3297 = vunpack.c.l.b16 %v2986
    %v3298 = vunpack.c.h.b16 %v2986
    %v3299 = vunpack.c.l.b16 %v2987
    %v3300 = vunpack.c.h.b16 %v2987
    %v3301 = vunpack.c.l.b16 %v2988
    %v3302 = vunpack.c.h.b16 %v2988
    %v3303 = vunpack.c.l.b16 %v2989
    %v3304 = vunpack.c.h.b16 %v2989
    %v3305 = vunpack.c.l.b16 %v2990
    %v3306 = vunpack.c.h.b16 %v2990
    %v3307 = vunpack.c.l.b16 %v2991
    %v3308 = vunpack.c.h.b16 %v2991
    %v3309 = vunpack.c.l.b16 %v2992
    %v3310 = vunpack.c.h.b16 %v2992
    %v3311 = vunpack.c.l.b16 %v2993
    %v3312 = vunpack.c.h.b16 %v2993
    %v3313 = vunpack.c.l.b16 %v2994
    %v3314 = vunpack.c.h.b16 %v2994
    %v3315 = vunpack.c.l.b16 %v2995
    %v3316 = vunpack.c.h.b16 %v2995
    %v3317 = vunpack.c.l.b16 %v2996
    %v3318 = vunpack.c.h.b16 %v2996
    %v3319 = vunpack.c.l.b16 %v2997
    %v3320 = vunpack.c.h.b16 %v2997
    %v3321 = vunpack.c.l.b16 %v2998
    %v3322 = vunpack.c.h.b16 %v2998
    %v3323 = vunpack.c.l.b16 %v2999
    %v3324 = vunpack.c.h.b16 %v2999
    %v3325 = vunpack.c.l.b16 %v3000
    %v3326 = vunpack.c.h.b16 %v3000
    %v3327 = vunpack.c.l.b16 %v3001
    %v3328 = vunpack.c.h.b16 %v3001
    %v3329 = vunpack.c.l.b16 %v3002
    %v3330 = vunpack.c.h.b16 %v3002
    %v3331 = vunpack.c.l.b16 %v3003
    %v3332 = vunpack.c.h.b16 %v3003
    %v3333 = vunpack.c.l.b16 %v3004
    %v3334 = vunpack.c.h.b16 %v3004
    %v3335 = vunpack.c.l.b16 %v3005
    %v3336 = vunpack.c.h.b16 %v3005
    %v3337 = vunpack.c.l.b16 %v3006
    %v3338 = vunpack.c.h.b16 %v3006
    %v3339 = vunpack.c.l.b16 %v3007
    %v3340 = vunpack.c.h.b16 %v3007
    %v3341 = vunpack.c.l.b16 %v3008
    %v3342 = vunpack.c.h.b16 %v3008
    %v3343 = vunpack.c.l.b16 %v3009
    %v3344 = vunpack.c.h.b16 %v3009
    %v3345 = vunpack.c.l.b16 %v3010
    %v3346 = vunpack.c.h.b16 %v3010
    %v3347 = vunpack.c.l.b16 %v3011
    %v3348 = vunpack.c.h.b16 %v3011
    %v3349 = vunpack.c.l.b16 %v3012
    %v3350 = vunpack.c.h.b16 %v3012
    %v3351 = vunpack.c.l.b16 %v3013
    %v3352 = vunpack.c.h.b16 %v3013
    %v3353 = vunpack.c.l.b16 %v3014
    %v3354 = vunpack.c.h.b16 %v3014
    %v3355 = vunpack.c.l.b16 %v3015
    %v3356 = vunpack.c.h.b16 %v3015
    %v3357 = vunpack.c.l.b16 %v3016
    %v3358 = vunpack.c.h.b16 %v3016
    %v3359 = vunpack.c.l.b16 %v3017
    %v3360 = vunpack.c.h.b16 %v3017
    %v3361 = vunpack.c.l.b16 %v3018
    %v3362 = vunpack.c.h.b16 %v3018
    %v3363 = vunpack.c.l.b16 %v3019
    %v3364 = vunpack.c.h.b16 %v3019
    %v3365 = vunpack.c.l.b16 %v3020
    %v3366 = vunpack.c.h.b16 %v3020
    %v3367 = vunpack.c.l.b16 %v3021
    %v3368 = vunpack.c.h.b16 %v3021
    %v3369 = vunpack.c.l.b16 %v3022
    %v3370 = vunpack.c.h.b16 %v3022
    %v3371 = vunpack.c.l.b16 %v3023
    %v3372 = vunpack.c.h.b16 %v3023
    %v3373 = vunpack.c.l.b16 %v3024
    %v3374 = vunpack.c.h.b16 %v3024
    %v3375 = vunpack.c.l.b16 %v3025
    %v3376 = vunpack.c.h.b16 %v3025
    %v3377 = vunpack.c.l.b16 %v3026
    %v3378 = vunpack.c.h.b16 %v3026
    %v3379 = vunpack.c.l.b16 %v3027
    %v3380 = vunpack.c.h.b16 %v3027
    %v3381 = vunpack.c.l.b16 %v3028
    %v3382 = vunpack.c.h.b16 %v3028
    %v3383 = vunpack.c.l.b16 %v3029
    %v3384 = vunpack.c.h.b16 %v3029
    %v3385 = vunpack.c.l.b16 %v3030
    %v3386 = vunpack.c.h.b16 %v3030
    %v3387 = vunpack.c.l.b16 %v3031
    %v3388 = vunpack.c.h.b16 %v3031
    %v3389 = vunpack.c.l.b16 %v3032
    %v3390 = vunpack.c.h.b16 %v3032
    %v3391 = vunpack.c.l.b16 %v3033
    %v3392 = vunpack.c.h.b16 %v3033
    %v3393 = vunpack.c.l.b16 %v3034
    %v3394 = vunpack.c.h.b16 %v3034
    %v3395 = vunpack.c.l.b16 %v3035
    %v3396 = vunpack.c.h.b16 %v3035
    %v3397 = vunpack.c.l.b16 %v3036
    %v3398 = vunpack.c.h.b16 %v3036
    %v3399 = vunpack.c.l.b16 %v3037
    %v3400 = vunpack.c.h.b16 %v3037
    %v3401 = vunpack.c.l.b16 %v3038
    %v3402 = vunpack.c.h.b16 %v3038
    %v3403 = vunpack.c.l.b16 %v3039
    %v3404 = vunpack.c.h.b16 %v3039
    %v3405 = vunpack.c.l.b16 %v3040
    %v3406 = vunpack.c.h.b16 %v3040
    %v3407 = vunpack.c.l.b16 %v3041
    %v3408 = vunpack.c.h.b16 %v3041
    %v3409 = vunpack.c.l.b16 %v3042
    %v3410 = vunpack.c.h.b16 %v3042
    %v3411 = vunpack.c.l.b16 %v3043
    %v3412 = vunpack.c.h.b16 %v3043
    %v3413 = vunpack.c.l.b16 %v3044
    %v3414 = vunpack.c.h.b16 %v3044
    %v3415 = vunpack.c.l.b16 %v3045
    %v3416 = vunpack.c.h.b16 %v3045
    %v3417 = vunpack.c.l.b16 %v3046
    %v3418 = vunpack.c.h.b16 %v3046
    %v3419 = vunpack.c.l.b16 %v3047
    %v3420 = vunpack.c.h.b16 %v3047
    %v3421 = vunpack.c.l.b16 %v3048
    %v3422 = vunpack.c.h.b16 %v3048
    %v3423 = vunpack.c.l.b16 %v3049
    %v3424 = vunpack.c.h.b16 %v3049
    %v3425 = vunpack.c.l.b16 %v3050
    %v3426 = vunpack.c.h.b16 %v3050
    %v3427 = vunpack.c.l.b16 %v3051
    %v3428 = vunpack.c.h.b16 %v3051
    %v3429 = vunpack.c.l.b16 %v3052
    %v3430 = vunpack.c.h.b16 %v3052
    %v3431 = vunpack.c.l.b16 %v3053
    %v3432 = vunpack.c.h.b16 %v3053
    %v3433 = vunpack.c.l.b16 %v3054
    %v3434 = vunpack.c.h.b16 %v3054
    %v3435 = vunpack.c.l.b16 %v3055
    %v3436 = vunpack.c.h.b16 %v3055
    %v3437 = vunpack.c.l.b16 %v3056
    %v3438 = vunpack.c.h.b16 %v3056
    %v3439 = vunpack.c.l.b16 %v3057
    %v3440 = vunpack.c.h.b16 %v3057
    %v3441 = vunpack.c.l.b16 %v3058
    %v3442 = vunpack.c.h.b16 %v3058
    %v3443 = vpack.c.b16 %v3195, %v3187
    %v3444 = vpack.c.b16 %v3196, %v3188
    %v3445 = vpack.c.b16 %v3197, %v3189
    %v3446 = vpack.c.b16 %v3198, %v3190
    %v3447 = vpack.c.b16 %v3199, %v3191
    %v3448 = vpack.c.b16 %v3200, %v3192
    %v3449 = vpack.c.b16 %v3201, %v3193
    %v3450 = vpack.c.b16 %v3202, %v3194
    %v3451 = vpack.c.b16 %v3211, %v3203
    %v3452 = vpack.c.b16 %v3212, %v3204
    %v3453 = vpack.c.b16 %v3213, %v3205
    %v3454 = vpack.c.b16 %v3214, %v3206
    %v3455 = vpack.c.b16 %v3215, %v3207
    %v3456 = vpack.c.b16 %v3216, %v3208
    %v3457 = vpack.c.b16 %v3217, %v3209
    %v3458 = vpack.c.b16 %v3218, %v3210
    %v3459 = vpack.c.b16 %v3227, %v3219
    %v3460 = vpack.c.b16 %v3228, %v3220
    %v3461 = vpack.c.b16 %v3229, %v3221
    %v3462 = vpack.c.b16 %v3230, %v3222
    %v3463 = vpack.c.b16 %v3231, %v3223
    %v3464 = vpack.c.b16 %v3232, %v3224
    %v3465 = vpack.c.b16 %v3233, %v3225
    %v3466 = vpack.c.b16 %v3234, %v3226
    %v3467 = vpack.c.b16 %v3243, %v3235
    %v3468 = vpack.c.b16 %v3244, %v3236
    %v3469 = vpack.c.b16 %v3245, %v3237
    %v3470 = vpack.c.b16 %v3246, %v3238
    %v3471 = vpack.c.b16 %v3247, %v3239
    %v3472 = vpack.c.b16 %v3248, %v3240
    %v3473 = vpack.c.b16 %v3249, %v3241
    %v3474 = vpack.c.b16 %v3250, %v3242
    %v3475 = vpack.c.b16 %v3259, %v3251
    %v3476 = vpack.c.b16 %v3260, %v3252
    %v3477 = vpack.c.b16 %v3261, %v3253
    %v3478 = vpack.c.b16 %v3262, %v3254
    %v3479 = vpack.c.b16 %v3263, %v3255
    %v3480 = vpack.c.b16 %v3264, %v3256
    %v3481 = vpack.c.b16 %v3265, %v3257
    %v3482 = vpack.c.b16 %v3266, %v3258
    %v3483 = vpack.c.b16 %v3275, %v3267
    %v3484 = vpack.c.b16 %v3276, %v3268
    %v3485 = vpack.c.b16 %v3277, %v3269
    %v3486 = vpack.c.b16 %v3278, %v3270
    %v3487 = vpack.c.b16 %v3279, %v3271
    %v3488 = vpack.c.b16 %v3280, %v3272
    %v3489 = vpack.c.b16 %v3281, %v3273
    %v3490 = vpack.c.b16 %v3282, %v3274
    %v3491 = vpack.c.b16 %v3291, %v3283
    %v3492 = vpack.c.b16 %v3292, %v3284
    %v3493 = vpack.c.b16 %v3293, %v3285
    %v3494 = vpack.c.b16 %v3294, %v3286
    %v3495 = vpack.c.b16 %v3295, %v3287
    %v3496 = vpack.c.b16 %v3296, %v3288
    %v3497 = vpack.c.b16 %v3297, %v3289
    %v3498 = vpack.c.b16 %v3298, %v3290
    %v3499 = vpack.c.b16 %v3307, %v3299
    %v3500 = vpack.c.b16 %v3308, %v3300
    %v3501 = vpack.c.b16 %v3309, %v3301
    %v3502 = vpack.c.b16 %v3310, %v3302
    %v3503 = vpack.c.b16 %v3311, %v3303
    %v3504 = vpack.c.b16 %v3312, %v3304
    %v3505 = vpack.c.b16 %v3313, %v3305
    %v3506 = vpack.c.b16 %v3314, %v3306
    %v3507 = vpack.c.b16 %v3323, %v3315
    %v3508 = vpack.c.b16 %v3324, %v3316
    %v3509 = vpack.c.b16 %v3325, %v3317
    %v3510 = vpack.c.b16 %v3326, %v3318
    %v3511 = vpack.c.b16 %v3327, %v3319
    %v3512 = vpack.c.b16 %v3328, %v3320
    %v3513 = vpack.c.b16 %v3329, %v3321
    %v3514 = vpack.c.b16 %v3330, %v3322
    %v3515 = vpack.c.b16 %v3339, %v3331
    %v3516 = vpack.c.b16 %v3340, %v3332
    %v3517 = vpack.c.b16 %v3341, %v3333
    %v3518 = vpack.c.b16 %v3342, %v3334
    %v3519 = vpack.c.b16 %v3343, %v3335
    %v3520 = vpack.c.b16 %v3344, %v3336
    %v3521 = vpack.c.b16 %v3345, %v3337
    %v3522 = vpack.c.b16 %v3346, %v3338
    %v3523 = vpack.c.b16 %v3355, %v3347
    %v3524 = vpack.c.b16 %v3356, %v3348
    %v3525 = vpack.c.b16 %v3357, %v3349
    %v3526 = vpack.c.b16 %v3358, %v3350
    %v3527 = vpack.c.b16 %v3359, %v3351
    %v3528 = vpack.c.b16 %v3360, %v3352
    %v3529 = vpack.c.b16 %v3361, %v3353
    %v3530 = vpack.c.b16 %v3362, %v3354
    %v3531 = vpack.c.b16 %v3371, %v3363
    %v3532 = vpack.c.b16 %v3372, %v3364
    %v3533 = vpack.c.b16 %v3373, %v3365
    %v3534 = vpack.c.b16 %v3374, %v3366
    %v3535 = vpack.c.b16 %v3375, %v3367
    %v3536 = vpack.c.b16 %v3376, %v3368
    %v3537 = vpack.c.b16 %v3377, %v3369
    %v3538 = vpack.c.b16 %v3378, %v3370
    %v3539 = vpack.c.b16 %v3387, %v3379
    %v3540 = vpack.c.b16 %v3388, %v3380
    %v3541 = vpack.c.b16 %v3389, %v3381
    %v3542 = vpack.c.b16 %v3390, %v3382
    %v3543 = vpack.c.b16 %v3391, %v3383
    %v3544 = vpack.c.b16 %v3392, %v3384
    %v3545 = vpack.c.b16 %v3393, %v3385
    %v3546 = vpack.c.b16 %v3394, %v3386
    %v3547 = vpack.c.b16 %v3403, %v3395
    %v3548 = vpack.c.b16 %v3404, %v3396
    %v3549 = vpack.c.b16 %v3405, %v3397
    %v3550 = vpack.c.b16 %v3406, %v3398
    %v3551 = vpack.c.b16 %v3407, %v3399
    %v3552 = vpack.c.b16 %v3408, %v3400
    %v3553 = vpack.c.b16 %v3409, %v3401
    %v3554 = vpack.c.b16 %v3410, %v3402
    %v3555 = vpack.c.b16 %v3419, %v3411
    %v3556 = vpack.c.b16 %v3420, %v3412
    %v3557 = vpack.c.b16 %v3421, %v3413
    %v3558 = vpack.c.b16 %v3422, %v3414
    %v3559 = vpack.c.b16 %v3423, %v3415
    %v3560 = vpack.c.b16 %v3424, %v3416
    %v3561 = vpack.c.b16 %v3425, %v3417
    %v3562 = vpack.c.b16 %v3426, %v3418
    %v3563 = vpack.c.b16 %v3435, %v3427
    %v3564 = vpack.c.b16 %v3436, %v3428
    %v3565 = vpack.c.b16 %v3437, %v3429
    %v3566 = vpack.c.b16 %v3438, %v3430
    %v3567 = vpack.c.b16 %v3439, %v3431
    %v3568 = vpack.c.b16 %v3440, %v3432
    %v3569 = vpack.c.b16 %v3441, %v3433
    %v3570 = vpack.c.b16 %v3442, %v3434
    %3699 = vmatpush.bf16.msra.mxu0 %v3499
    %3700 = vmatpush.bf16.msra.mxu0 %v3491
    %3701 = vmatpush.bf16.msra.mxu0 %v3483
    %3702 = vmatpush.bf16.msra.mxu0 %v3475
    %3703 = vmatpush.bf16.msra.mxu0 %v3467
    %3704 = vmatpush.bf16.msra.mxu0 %v3459
    %3705 = vmatpush.bf16.msra.mxu0 %v3451
    %3706 = vmatpush.bf16.msra.mxu0 %v3443
    %3707 = vmatmul.bf16.gmra.mxu0 0
    %v3708 = vpop.f32.mrf.mxu0
    %v3709 = vadd.f32 0.0, %v3708
    %v3710 = vpop.f32.mrf.mxu0
    %3711 = vdwg.mxu0
    %3712 = vmatpush.bf16.msra.mxu0 %v3563
    %3713 = vmatpush.bf16.msra.mxu0 %v3555
    %3714 = vmatpush.bf16.msra.mxu0 %v3547
    %3715 = vmatpush.bf16.msra.mxu0 %v3539
    %3716 = vmatpush.bf16.msra.mxu0 %v3531
    %3717 = vmatpush.bf16.msra.mxu0 %v3523
    %3718 = vmatpush.bf16.msra.mxu0 %v3515
    %3719 = vmatpush.bf16.msra.mxu0 %v3507
    %3720 = vmatmul.bf16.gmra.mxu0 0
    %v3721 = vpop.f32.mrf.mxu0
    %v3722 = vadd.f32 %v3709, %v3721
    %v3723 = vpop.f32.mrf.mxu0
    %3724 = vdwg.mxu0
    %3725 = vmatpush.bf16.msra.mxu0 %v3500
    %3726 = vmatpush.bf16.msra.mxu0 %v3492
    %3727 = vmatpush.bf16.msra.mxu0 %v3484
    %3728 = vmatpush.bf16.msra.mxu0 %v3476
    %3729 = vmatpush.bf16.msra.mxu0 %v3468
    %3730 = vmatpush.bf16.msra.mxu0 %v3460
    %3731 = vmatpush.bf16.msra.mxu0 %v3452
    %3732 = vmatpush.bf16.msra.mxu0 %v3444
    %3733 = vmatmul.bf16.gmra.mxu0 0
    %v3734 = vpop.f32.mrf.mxu0
    %v3735 = vadd.f32 0.0, %v3734
    %v3736 = vpop.f32.mrf.mxu0
    %3737 = vdwg.mxu0
    %3738 = vmatpush.bf16.msra.mxu0 %v3564
    %3739 = vmatpush.bf16.msra.mxu0 %v3556
    %3740 = vmatpush.bf16.msra.mxu0 %v3548
    %3741 = vmatpush.bf16.msra.mxu0 %v3540
    %3742 = vmatpush.bf16.msra.mxu0 %v3532
    %3743 = vmatpush.bf16.msra.mxu0 %v3524
    %3744 = vmatpush.bf16.msra.mxu0 %v3516
    %3745 = vmatpush.bf16.msra.mxu0 %v3508
    %3746 = vmatmul.bf16.gmra.mxu0 0
    %v3747 = vpop.f32.mrf.mxu0
    %v3748 = vadd.f32 %v3735, %v3747
    %v3749 = vpop.f32.mrf.mxu0
    %3750 = vdwg.mxu0
    %3751 = vmatpush.bf16.msra.mxu0 %v3501
    %3752 = vmatpush.bf16.msra.mxu0 %v3493
    %3753 = vmatpush.bf16.msra.mxu0 %v3485
    %3754 = vmatpush.bf16.msra.mxu0 %v3477
    %3755 = vmatpush.bf16.msra.mxu0 %v3469
    %3756 = vmatpush.bf16.msra.mxu0 %v3461
    %3757 = vmatpush.bf16.msra.mxu0 %v3453
    %3758 = vmatpush.bf16.msra.mxu0 %v3445
    %3759 = vmatmul.bf16.gmra.mxu0 0
    %v3760 = vpop.f32.mrf.mxu0
    %v3761 = vadd.f32 0.0, %v3760
    %v3762 = vpop.f32.mrf.mxu0
    %3763 = vdwg.mxu0
    %3764 = vmatpush.bf16.msra.mxu0 %v3565
    %3765 = vmatpush.bf16.msra.mxu0 %v3557
    %3766 = vmatpush.bf16.msra.mxu0 %v3549
    %3767 = vmatpush.bf16.msra.mxu0 %v3541
    %3768 = vmatpush.bf16.msra.mxu0 %v3533
    %3769 = vmatpush.bf16.msra.mxu0 %v3525
    %3770 = vmatpush.bf16.msra.mxu0 %v3517
    %3771 = vmatpush.bf16.msra.mxu0 %v3509
    %3772 = vmatmul.bf16.gmra.mxu0 0
    %v3773 = vpop.f32.mrf.mxu0
    %v3774 = vadd.f32 %v3761, %v3773
    %v3775 = vpop.f32.mrf.mxu0
    %3776 = vdwg.mxu0
    %3777 = vmatpush.bf16.msra.mxu0 %v3502
    %3778 = vmatpush.bf16.msra.mxu0 %v3494
    %3779 = vmatpush.bf16.msra.mxu0 %v3486
    %3780 = vmatpush.bf16.msra.mxu0 %v3478
    %3781 = vmatpush.bf16.msra.mxu0 %v3470
    %3782 = vmatpush.bf16.msra.mxu0 %v3462
    %3783 = vmatpush.bf16.msra.mxu0 %v3454
    %3784 = vmatpush.bf16.msra.mxu0 %v3446
    %3785 = vmatmul.bf16.gmra.mxu0 0
    %v3786 = vpop.f32.mrf.mxu0
    %v3787 = vadd.f32 0.0, %v3786
    %v3788 = vpop.f32.mrf.mxu0
    %3789 = vdwg.mxu0
    %3790 = vmatpush.bf16.msra.mxu0 %v3566
    %3791 = vmatpush.bf16.msra.mxu0 %v3558
    %3792 = vmatpush.bf16.msra.mxu0 %v3550
    %3793 = vmatpush.bf16.msra.mxu0 %v3542
    %3794 = vmatpush.bf16.msra.mxu0 %v3534
    %3795 = vmatpush.bf16.msra.mxu0 %v3526
    %3796 = vmatpush.bf16.msra.mxu0 %v3518
    %3797 = vmatpush.bf16.msra.mxu0 %v3510
    %3798 = vmatmul.bf16.gmra.mxu0 0
    %v3799 = vpop.f32.mrf.mxu0
    %v3800 = vadd.f32 %v3787, %v3799
    %v3801 = vpop.f32.mrf.mxu0
    %3802 = vdwg.mxu0
    %3803 = vmatpush.bf16.msra.mxu0 %v3503
    %3804 = vmatpush.bf16.msra.mxu0 %v3495
    %3805 = vmatpush.bf16.msra.mxu0 %v3487
    %3806 = vmatpush.bf16.msra.mxu0 %v3479
    %3807 = vmatpush.bf16.msra.mxu0 %v3471
    %3808 = vmatpush.bf16.msra.mxu0 %v3463
    %3809 = vmatpush.bf16.msra.mxu0 %v3455
    %3810 = vmatpush.bf16.msra.mxu0 %v3447
    %3811 = vmatmul.bf16.gmra.mxu0 0
    %v3812 = vpop.f32.mrf.mxu0
    %v3813 = vadd.f32 0.0, %v3812
    %v3814 = vpop.f32.mrf.mxu0
    %3815 = vdwg.mxu0
    %3816 = vmatpush.bf16.msra.mxu0 %v3567
    %3817 = vmatpush.bf16.msra.mxu0 %v3559
    %3818 = vmatpush.bf16.msra.mxu0 %v3551
    %3819 = vmatpush.bf16.msra.mxu0 %v3543
    %3820 = vmatpush.bf16.msra.mxu0 %v3535
    %3821 = vmatpush.bf16.msra.mxu0 %v3527
    %3822 = vmatpush.bf16.msra.mxu0 %v3519
    %3823 = vmatpush.bf16.msra.mxu0 %v3511
    %3824 = vmatmul.bf16.gmra.mxu0 0
    %v3825 = vpop.f32.mrf.mxu0
    %v3826 = vadd.f32 %v3813, %v3825
    %v3827 = vpop.f32.mrf.mxu0
    %3828 = vdwg.mxu0
    %3829 = vmatpush.bf16.msra.mxu0 %v3504
    %3830 = vmatpush.bf16.msra.mxu0 %v3496
    %3831 = vmatpush.bf16.msra.mxu0 %v3488
    %3832 = vmatpush.bf16.msra.mxu0 %v3480
    %3833 = vmatpush.bf16.msra.mxu0 %v3472
    %3834 = vmatpush.bf16.msra.mxu0 %v3464
    %3835 = vmatpush.bf16.msra.mxu0 %v3456
    %3836 = vmatpush.bf16.msra.mxu0 %v3448
    %3837 = vmatmul.bf16.gmra.mxu0 0
    %v3838 = vpop.f32.mrf.mxu0
    %v3839 = vadd.f32 0.0, %v3838
    %v3840 = vpop.f32.mrf.mxu0
    %3841 = vdwg.mxu0
    %3842 = vmatpush.bf16.msra.mxu0 %v3568
    %3843 = vmatpush.bf16.msra.mxu0 %v3560
    %3844 = vmatpush.bf16.msra.mxu0 %v3552
    %3845 = vmatpush.bf16.msra.mxu0 %v3544
    %3846 = vmatpush.bf16.msra.mxu0 %v3536
    %3847 = vmatpush.bf16.msra.mxu0 %v3528
    %3848 = vmatpush.bf16.msra.mxu0 %v3520
    %3849 = vmatpush.bf16.msra.mxu0 %v3512
    %3850 = vmatmul.bf16.gmra.mxu0 0
    %v3851 = vpop.f32.mrf.mxu0
    %v3852 = vadd.f32 %v3839, %v3851
    %v3853 = vpop.f32.mrf.mxu0
    %3854 = vdwg.mxu0
    %3855 = vmatpush.bf16.msra.mxu0 %v3505
    %3856 = vmatpush.bf16.msra.mxu0 %v3497
    %3857 = vmatpush.bf16.msra.mxu0 %v3489
    %3858 = vmatpush.bf16.msra.mxu0 %v3481
    %3859 = vmatpush.bf16.msra.mxu0 %v3473
    %3860 = vmatpush.bf16.msra.mxu0 %v3465
    %3861 = vmatpush.bf16.msra.mxu0 %v3457
    %3862 = vmatpush.bf16.msra.mxu0 %v3449
    %3863 = vmatmul.bf16.gmra.mxu0 0
    %v3864 = vpop.f32.mrf.mxu0
    %v3865 = vadd.f32 0.0, %v3864
    %v3866 = vpop.f32.mrf.mxu0
    %3867 = vdwg.mxu0
    %3868 = vmatpush.bf16.msra.mxu0 %v3569
    %3869 = vmatpush.bf16.msra.mxu0 %v3561
    %3870 = vmatpush.bf16.msra.mxu0 %v3553
    %3871 = vmatpush.bf16.msra.mxu0 %v3545
    %3872 = vmatpush.bf16.msra.mxu0 %v3537
    %3873 = vmatpush.bf16.msra.mxu0 %v3529
    %3874 = vmatpush.bf16.msra.mxu0 %v3521
    %3875 = vmatpush.bf16.msra.mxu0 %v3513
    %3876 = vmatmul.bf16.gmra.mxu0 0
    %v3877 = vpop.f32.mrf.mxu0
    %v3878 = vadd.f32 %v3865, %v3877
    %v3879 = vpop.f32.mrf.mxu0
    %3880 = vdwg.mxu0
    %3881 = vmatpush.bf16.msra.mxu0 %v3506
    %3882 = vmatpush.bf16.msra.mxu0 %v3498
    %3883 = vmatpush.bf16.msra.mxu0 %v3490
    %3884 = vmatpush.bf16.msra.mxu0 %v3482
    %3885 = vmatpush.bf16.msra.mxu0 %v3474
    %3886 = vmatpush.bf16.msra.mxu0 %v3466
    %3887 = vmatpush.bf16.msra.mxu0 %v3458
    %3888 = vmatpush.bf16.msra.mxu0 %v3450
    %3889 = vmatmul.bf16.gmra.mxu0 0
    %v3890 = vpop.f32.mrf.mxu0
    %v3891 = vadd.f32 0.0, %v3890
    %v3892 = vpop.f32.mrf.mxu0
    %3893 = vdwg.mxu0
    %3894 = vmatpush.bf16.msra.mxu0 %v3570
    %3895 = vmatpush.bf16.msra.mxu0 %v3562
    %3896 = vmatpush.bf16.msra.mxu0 %v3554
    %3897 = vmatpush.bf16.msra.mxu0 %v3546
    %3898 = vmatpush.bf16.msra.mxu0 %v3538
    %3899 = vmatpush.bf16.msra.mxu0 %v3530
    %3900 = vmatpush.bf16.msra.mxu0 %v3522
    %3901 = vmatpush.bf16.msra.mxu0 %v3514
    %3902 = vmatmul.bf16.gmra.mxu0 0
    %v3903 = vpop.f32.mrf.mxu0
    %v3904 = vadd.f32 %v3891, %v3903
    %v3905 = vpop.f32.mrf.mxu0
    %3906 = vdwg.mxu0
    %v3907 = vadd.f32 %v2923, %v3722
    %v3908 = vadd.f32 %v2924, %v3748
    %v3909 = vadd.f32 %v2925, %v3774
    %v3910 = vadd.f32 %v2926, %v3800
    %v3911 = vadd.f32 %v2927, %v3826
    %v3912 = vadd.f32 %v2928, %v3852
    %v3913 = vadd.f32 %v2929, %v3878
    %v3914 = vadd.f32 %v2930, %v3904
    %v3915 = vmul.f32 %v3907, 0.5
    %v3916 = vmul.f32 %v3908, 0.5
    %v3917 = vtanh.pop %v3915
    %v3918 = vtanh.pop %v3916
    %v3919 = vmul.f32 %v3917, 0.5
    %v3920 = vmul.f32 %v3918, 0.5
    %v3921 = vadd.f32 %v3919, 0.5
    %v3922 = vadd.f32 %v3920, 0.5
    %v3923 = vmul.f32 %v3909, 0.5
    %v3924 = vmul.f32 %v3910, 0.5
    %v3925 = vtanh.pop %v3923
    %v3926 = vtanh.pop %v3924
    %v3927 = vmul.f32 %v3925, 0.5
    %v3928 = vmul.f32 %v3926, 0.5
    %v3929 = vadd.f32 %v3927, 0.5
    %v3930 = vadd.f32 %v3928, 0.5
    %v3931 = vtanh.pop %v3911
    %v3932 = vtanh.pop %v3912
    %v3933 = vmul.f32 %v3913, 0.5
    %v3934 = vmul.f32 %v3914, 0.5
    %v3935 = vtanh.pop %v3933
    %v3936 = vtanh.pop %v3934
    %v3937 = vmul.f32 %v3935, 0.5
    %v3938 = vmul.f32 %v3936, 0.5
    %v3939 = vadd.f32 %v3937, 0.5
    %v3940 = vadd.f32 %v3938, 0.5
    %v3941 = vmul.f32 %v3929, 0.0
    %v3942 = vmul.f32 %v3930, 0.0
    %v3943 = vmul.f32 %v3921, %v3931
    %v3944 = vmul.f32 %v3922, %v3932
    %v3945 = vadd.f32 %v3941, %v3943
    %v3946 = vadd.f32 %v3942, %v3944
    %v3947 = vtanh.pop %v3945
    %v3948 = vtanh.pop %v3946
    %v3949 = vmul.f32 %v3939, %v3947
    %v3950 = vmul.f32 %v3940, %v3948
    %v3951 = vld [vmem:[#allocation2 + $0x40] sm:$0xff]
    %v3952 = vld [vmem:[#allocation2 + $0x48] sm:$0xff]
    %v3953 = vld [vmem:[#allocation2 + $0x50] sm:$0xff]
    %v3954 = vld [vmem:[#allocation2 + $0x58] sm:$0xff]
    %v3955 = vld [vmem:[#allocation2 + $0x60] sm:$0xff]
    %v3956 = vld [vmem:[#allocation2 + $0x68] sm:$0xff]
    %v3957 = vld [vmem:[#allocation2 + $0x70] sm:$0xff]
    %v3958 = vld [vmem:[#allocation2 + $0x78] sm:$0xff]
    %v3959 = vpack.c.bf16 %v3949, %v3949
    %v3960 = vpack.c.bf16 %v3950, %v3950
    %3961 = vmatpush.bf16.msra.mxu0 %v3499
    %3962 = vmatpush.bf16.msra.mxu0 %v3491
    %3963 = vmatpush.bf16.msra.mxu0 %v3483
    %3964 = vmatpush.bf16.msra.mxu0 %v3475
    %3965 = vmatpush.bf16.msra.mxu0 %v3467
    %3966 = vmatpush.bf16.msra.mxu0 %v3459
    %3967 = vmatpush.bf16.msra.mxu0 %v3451
    %3968 = vmatpush.bf16.msra.mxu0 %v3443
    %3969 = vmatmul.bf16.gmra.mxu0 %v3959
    %v3970 = vpop.f32.mrf.mxu0
    %v3971 = vadd.f32 0.0, %v3970
    %v3972 = vpop.f32.mrf.mxu0
    %3973 = vdwg.mxu0
    %3974 = vmatpush.bf16.msra.mxu0 %v3563
    %3975 = vmatpush.bf16.msra.mxu0 %v3555
    %3976 = vmatpush.bf16.msra.mxu0 %v3547
    %3977 = vmatpush.bf16.msra.mxu0 %v3539
    %3978 = vmatpush.bf16.msra.mxu0 %v3531
    %3979 = vmatpush.bf16.msra.mxu0 %v3523
    %3980 = vmatpush.bf16.msra.mxu0 %v3515
    %3981 = vmatpush.bf16.msra.mxu0 %v3507
    %3982 = vmatmul.bf16.gmra.mxu0 %v3960
    %v3983 = vpop.f32.mrf.mxu0
    %v3984 = vadd.f32 %v3971, %v3983
    %v3985 = vpop.f32.mrf.mxu0
    %3986 = vdwg.mxu0
    %3987 = vmatpush.bf16.msra.mxu0 %v3500
    %3988 = vmatpush.bf16.msra.mxu0 %v3492
    %3989 = vmatpush.bf16.msra.mxu0 %v3484
    %3990 = vmatpush.bf16.msra.mxu0 %v3476
    %3991 = vmatpush.bf16.msra.mxu0 %v3468
    %3992 = vmatpush.bf16.msra.mxu0 %v3460
    %3993 = vmatpush.bf16.msra.mxu0 %v3452
    %3994 = vmatpush.bf16.msra.mxu0 %v3444
    %3995 = vmatmul.bf16.gmra.mxu0 %v3959
    %v3996 = vpop.f32.mrf.mxu0
    %v3997 = vadd.f32 0.0, %v3996
    %v3998 = vpop.f32.mrf.mxu0
    %3999 = vdwg.mxu0
    %4000 = vmatpush.bf16.msra.mxu0 %v3564
    %4001 = vmatpush.bf16.msra.mxu0 %v3556
    %4002 = vmatpush.bf16.msra.mxu0 %v3548
    %4003 = vmatpush.bf16.msra.mxu0 %v3540
    %4004 = vmatpush.bf16.msra.mxu0 %v3532
    %4005 = vmatpush.bf16.msra.mxu0 %v3524
    %4006 = vmatpush.bf16.msra.mxu0 %v3516
    %4007 = vmatpush.bf16.msra.mxu0 %v3508
    %4008 = vmatmul.bf16.gmra.mxu0 %v3960
    %v4009 = vpop.f32.mrf.mxu0
    %v4010 = vadd.f32 %v3997, %v4009
    %v4011 = vpop.f32.mrf.mxu0
    %4012 = vdwg.mxu0
    %4013 = vmatpush.bf16.msra.mxu0 %v3501
    %4014 = vmatpush.bf16.msra.mxu0 %v3493
    %4015 = vmatpush.bf16.msra.mxu0 %v3485
    %4016 = vmatpush.bf16.msra.mxu0 %v3477
    %4017 = vmatpush.bf16.msra.mxu0 %v3469
    %4018 = vmatpush.bf16.msra.mxu0 %v3461
    %4019 = vmatpush.bf16.msra.mxu0 %v3453
    %4020 = vmatpush.bf16.msra.mxu0 %v3445
    %4021 = vmatmul.bf16.gmra.mxu0 %v3959
    %v4022 = vpop.f32.mrf.mxu0
    %v4023 = vadd.f32 0.0, %v4022
    %v4024 = vpop.f32.mrf.mxu0
    %4025 = vdwg.mxu0
    %4026 = vmatpush.bf16.msra.mxu0 %v3565
    %4027 = vmatpush.bf16.msra.mxu0 %v3557
    %4028 = vmatpush.bf16.msra.mxu0 %v3549
    %4029 = vmatpush.bf16.msra.mxu0 %v3541
    %4030 = vmatpush.bf16.msra.mxu0 %v3533
    %4031 = vmatpush.bf16.msra.mxu0 %v3525
    %4032 = vmatpush.bf16.msra.mxu0 %v3517
    %4033 = vmatpush.bf16.msra.mxu0 %v3509
    %4034 = vmatmul.bf16.gmra.mxu0 %v3960
    %v4035 = vpop.f32.mrf.mxu0
    %v4036 = vadd.f32 %v4023, %v4035
    %v4037 = vpop.f32.mrf.mxu0
    %4038 = vdwg.mxu0
    %4039 = vmatpush.bf16.msra.mxu0 %v3502
    %4040 = vmatpush.bf16.msra.mxu0 %v3494
    %4041 = vmatpush.bf16.msra.mxu0 %v3486
    %4042 = vmatpush.bf16.msra.mxu0 %v3478
    %4043 = vmatpush.bf16.msra.mxu0 %v3470
    %4044 = vmatpush.bf16.msra.mxu0 %v3462
    %4045 = vmatpush.bf16.msra.mxu0 %v3454
    %4046 = vmatpush.bf16.msra.mxu0 %v3446
    %4047 = vmatmul.bf16.gmra.mxu0 %v3959
    %v4048 = vpop.f32.mrf.mxu0
    %v4049 = vadd.f32 0.0, %v4048
    %v4050 = vpop.f32.mrf.mxu0
    %4051 = vdwg.mxu0
    %4052 = vmatpush.bf16.msra.mxu0 %v3566
    %4053 = vmatpush.bf16.msra.mxu0 %v3558
    %4054 = vmatpush.bf16.msra.mxu0 %v3550
    %4055 = vmatpush.bf16.msra.mxu0 %v3542
    %4056 = vmatpush.bf16.msra.mxu0 %v3534
    %4057 = vmatpush.bf16.msra.mxu0 %v3526
    %4058 = vmatpush.bf16.msra.mxu0 %v3518
    %4059 = vmatpush.bf16.msra.mxu0 %v3510
    %4060 = vmatmul.bf16.gmra.mxu0 %v3960
    %v4061 = vpop.f32.mrf.mxu0
    %v4062 = vadd.f32 %v4049, %v4061
    %v4063 = vpop.f32.mrf.mxu0
    %4064 = vdwg.mxu0
    %4065 = vmatpush.bf16.msra.mxu0 %v3503
    %4066 = vmatpush.bf16.msra.mxu0 %v3495
    %4067 = vmatpush.bf16.msra.mxu0 %v3487
    %4068 = vmatpush.bf16.msra.mxu0 %v3479
    %4069 = vmatpush.bf16.msra.mxu0 %v3471
    %4070 = vmatpush.bf16.msra.mxu0 %v3463
    %4071 = vmatpush.bf16.msra.mxu0 %v3455
    %4072 = vmatpush.bf16.msra.mxu0 %v3447
    %4073 = vmatmul.bf16.gmra.mxu0 %v3959
    %v4074 = vpop.f32.mrf.mxu0
    %v4075 = vadd.f32 0.0, %v4074
    %v4076 = vpop.f32.mrf.mxu0
    %4077 = vdwg.mxu0
    %4078 = vmatpush.bf16.msra.mxu0 %v3567
    %4079 = vmatpush.bf16.msra.mxu0 %v3559
    %4080 = vmatpush.bf16.msra.mxu0 %v3551
    %4081 = vmatpush.bf16.msra.mxu0 %v3543
    %4082 = vmatpush.bf16.msra.mxu0 %v3535
    %4083 = vmatpush.bf16.msra.mxu0 %v3527
    %4084 = vmatpush.bf16.msra.mxu0 %v3519
    %4085 = vmatpush.bf16.msra.mxu0 %v3511
    %4086 = vmatmul.bf16.gmra.mxu0 %v3960
    %v4087 = vpop.f32.mrf.mxu0
    %v4088 = vadd.f32 %v4075, %v4087
    %v4089 = vpop.f32.mrf.mxu0
    %4090 = vdwg.mxu0
    %4091 = vmatpush.bf16.msra.mxu0 %v3504
    %4092 = vmatpush.bf16.msra.mxu0 %v3496
    %4093 = vmatpush.bf16.msra.mxu0 %v3488
    %4094 = vmatpush.bf16.msra.mxu0 %v3480
    %4095 = vmatpush.bf16.msra.mxu0 %v3472
    %4096 = vmatpush.bf16.msra.mxu0 %v3464
    %4097 = vmatpush.bf16.msra.mxu0 %v3456
    %4098 = vmatpush.bf16.msra.mxu0 %v3448
    %4099 = vmatmul.bf16.gmra.mxu0 %v3959
    %v4100 = vpop.f32.mrf.mxu0
    %v4101 = vadd.f32 0.0, %v4100
    %v4102 = vpop.f32.mrf.mxu0
    %4103 = vdwg.mxu0
    %4104 = vmatpush.bf16.msra.mxu0 %v3568
    %4105 = vmatpush.bf16.msra.mxu0 %v3560
    %4106 = vmatpush.bf16.msra.mxu0 %v3552
    %4107 = vmatpush.bf16.msra.mxu0 %v3544
    %4108 = vmatpush.bf16.msra.mxu0 %v3536
    %4109 = vmatpush.bf16.msra.mxu0 %v3528
    %4110 = vmatpush.bf16.msra.mxu0 %v3520
    %4111 = vmatpush.bf16.msra.mxu0 %v3512
    %4112 = vmatmul.bf16.gmra.mxu0 %v3960
    %v4113 = vpop.f32.mrf.mxu0
    %v4114 = vadd.f32 %v4101, %v4113
    %v4115 = vpop.f32.mrf.mxu0
    %4116 = vdwg.mxu0
    %4117 = vmatpush.bf16.msra.mxu0 %v3505
    %4118 = vmatpush.bf16.msra.mxu0 %v3497
    %4119 = vmatpush.bf16.msra.mxu0 %v3489
    %4120 = vmatpush.bf16.msra.mxu0 %v3481
    %4121 = vmatpush.bf16.msra.mxu0 %v3473
    %4122 = vmatpush.bf16.msra.mxu0 %v3465
    %4123 = vmatpush.bf16.msra.mxu0 %v3457
    %4124 = vmatpush.bf16.msra.mxu0 %v3449
    %4125 = vmatmul.bf16.gmra.mxu0 %v3959
    %v4126 = vpop.f32.mrf.mxu0
    %v4127 = vadd.f32 0.0, %v4126
    %v4128 = vpop.f32.mrf.mxu0
    %4129 = vdwg.mxu0
    %4130 = vmatpush.bf16.msra.mxu0 %v3569
    %4131 = vmatpush.bf16.msra.mxu0 %v3561
    %4132 = vmatpush.bf16.msra.mxu0 %v3553
    %4133 = vmatpush.bf16.msra.mxu0 %v3545
    %4134 = vmatpush.bf16.msra.mxu0 %v3537
    %4135 = vmatpush.bf16.msra.mxu0 %v3529
    %4136 = vmatpush.bf16.msra.mxu0 %v3521
    %4137 = vmatpush.bf16.msra.mxu0 %v3513
    %4138 = vmatmul.bf16.gmra.mxu0 %v3960
    %v4139 = vpop.f32.mrf.mxu0
    %v4140 = vadd.f32 %v4127, %v4139
    %v4141 = vpop.f32.mrf.mxu0
    %4142 = vdwg.mxu0
    %4143 = vmatpush.bf16.msra.mxu0 %v3506
    %4144 = vmatpush.bf16.msra.mxu0 %v3498
    %4145 = vmatpush.bf16.msra.mxu0 %v3490
    %4146 = vmatpush.bf16.msra.mxu0 %v3482
    %4147 = vmatpush.bf16.msra.mxu0 %v3474
    %4148 = vmatpush.bf16.msra.mxu0 %v3466
    %4149 = vmatpush.bf16.msra.mxu0 %v3458
    %4150 = vmatpush.bf16.msra.mxu0 %v3450
    %4151 = vmatmul.bf16.gmra.mxu0 %v3959
    %v4152 = vpop.f32.mrf.mxu0
    %v4153 = vadd.f32 0.0, %v4152
    %v4154 = vpop.f32.mrf.mxu0
    %4155 = vdwg.mxu0
    %4156 = vmatpush.bf16.msra.mxu0 %v3570
    %4157 = vmatpush.bf16.msra.mxu0 %v3562
    %4158 = vmatpush.bf16.msra.mxu0 %v3554
    %4159 = vmatpush.bf16.msra.mxu0 %v3546
    %4160 = vmatpush.bf16.msra.mxu0 %v3538
    %4161 = vmatpush.bf16.msra.mxu0 %v3530
    %4162 = vmatpush.bf16.msra.mxu0 %v3522
    %4163 = vmatpush.bf16.msra.mxu0 %v3514
    %4164 = vmatmul.bf16.gmra.mxu0 %v3960
    %v4165 = vpop.f32.mrf.mxu0
    %v4166 = vadd.f32 %v4153, %v4165
    %v4167 = vpop.f32.mrf.mxu0
    %4168 = vdwg.mxu0
    %v4169 = vadd.f32 %v3951, %v3984
    %v4170 = vadd.f32 %v3952, %v4010
    %v4171 = vadd.f32 %v3953, %v4036
    %v4172 = vadd.f32 %v3954, %v4062
    %v4173 = vadd.f32 %v3955, %v4088
    %v4174 = vadd.f32 %v3956, %v4114
    %v4175 = vadd.f32 %v3957, %v4140
    %v4176 = vadd.f32 %v3958, %v4166
    %v4177 = vmul.f32 %v4169, 0.5
    %v4178 = vmul.f32 %v4170, 0.5
    %v4179 = vtanh.pop %v4177
    %v4180 = vtanh.pop %v4178
    %v4181 = vmul.f32 %v4179, 0.5
    %v4182 = vmul.f32 %v4180, 0.5
    %v4183 = vadd.f32 %v4181, 0.5
    %v4184 = vadd.f32 %v4182, 0.5
    %v4185 = vmul.f32 %v4171, 0.5
    %v4186 = vmul.f32 %v4172, 0.5
    %v4187 = vtanh.pop %v4185
    %v4188 = vtanh.pop %v4186
    %v4189 = vmul.f32 %v4187, 0.5
    %v4190 = vmul.f32 %v4188, 0.5
    %v4191 = vadd.f32 %v4189, 0.5
    %v4192 = vadd.f32 %v4190, 0.5
    %v4193 = vtanh.pop %v4173
    %v4194 = vtanh.pop %v4174
    %v4195 = vmul.f32 %v4175, 0.5
    %v4196 = vmul.f32 %v4176, 0.5
    %v4197 = vtanh.pop %v4195
    %v4198 = vtanh.pop %v4196
    %v4199 = vmul.f32 %v4197, 0.5
    %v4200 = vmul.f32 %v4198, 0.5
    %v4201 = vadd.f32 %v4199, 0.5
    %v4202 = vadd.f32 %v4200, 0.5
    %v4203 = vmul.f32 %v4191, %v3945
    %v4204 = vmul.f32 %v4192, %v3946
    %v4205 = vmul.f32 %v4183, %v4193
    %v4206 = vmul.f32 %v4184, %v4194
    %v4207 = vadd.f32 %v4203, %v4205
    %v4208 = vadd.f32 %v4204, %v4206
    %v4209 = vtanh.pop %v4207
    %v4210 = vtanh.pop %v4208
    %v4211 = vmul.f32 %v4201, %v4209
    %v4212 = vmul.f32 %v4202, %v4210
    %v4213 = vld [vmem:[#allocation2 + $0x80] sm:$0xff]
    %v4214 = vld [vmem:[#allocation2 + $0x88] sm:$0xff]
    %v4215 = vld [vmem:[#allocation2 + $0x90] sm:$0xff]
    %v4216 = vld [vmem:[#allocation2 + $0x98] sm:$0xff]
    %v4217 = vld [vmem:[#allocation2 + $0xa0] sm:$0xff]
    %v4218 = vld [vmem:[#allocation2 + $0xa8] sm:$0xff]
    %v4219 = vld [vmem:[#allocation2 + $0xb0] sm:$0xff]
    %v4220 = vld [vmem:[#allocation2 + $0xb8] sm:$0xff]
    %v4221 = vpack.c.bf16 %v4211, %v4211
    %v4222 = vpack.c.bf16 %v4212, %v4212
    %4223 = vmatpush.bf16.msra.mxu0 %v3499
    %4224 = vmatpush.bf16.msra.mxu0 %v3491
    %4225 = vmatpush.bf16.msra.mxu0 %v3483
    %4226 = vmatpush.bf16.msra.mxu0 %v3475
    %4227 = vmatpush.bf16.msra.mxu0 %v3467
    %4228 = vmatpush.bf16.msra.mxu0 %v3459
    %4229 = vmatpush.bf16.msra.mxu0 %v3451
    %4230 = vmatpush.bf16.msra.mxu0 %v3443
    %4231 = vmatmul.bf16.gmra.mxu0 %v4221
    %v4232 = vpop.f32.mrf.mxu0
    %v4233 = vadd.f32 0.0, %v4232
    %v4234 = vpop.f32.mrf.mxu0
    %4235 = vdwg.mxu0
    %4236 = vmatpush.bf16.msra.mxu0 %v3563
    %4237 = vmatpush.bf16.msra.mxu0 %v3555
    %4238 = vmatpush.bf16.msra.mxu0 %v3547
    %4239 = vmatpush.bf16.msra.mxu0 %v3539
    %4240 = vmatpush.bf16.msra.mxu0 %v3531
    %4241 = vmatpush.bf16.msra.mxu0 %v3523
    %4242 = vmatpush.bf16.msra.mxu0 %v3515
    %4243 = vmatpush.bf16.msra.mxu0 %v3507
    %4244 = vmatmul.bf16.gmra.mxu0 %v4222
    %v4245 = vpop.f32.mrf.mxu0
    %v4246 = vadd.f32 %v4233, %v4245
    %v4247 = vpop.f32.mrf.mxu0
    %4248 = vdwg.mxu0
    %4249 = vmatpush.bf16.msra.mxu0 %v3500
    %4250 = vmatpush.bf16.msra.mxu0 %v3492
    %4251 = vmatpush.bf16.msra.mxu0 %v3484
    %4252 = vmatpush.bf16.msra.mxu0 %v3476
    %4253 = vmatpush.bf16.msra.mxu0 %v3468
    %4254 = vmatpush.bf16.msra.mxu0 %v3460
    %4255 = vmatpush.bf16.msra.mxu0 %v3452
    %4256 = vmatpush.bf16.msra.mxu0 %v3444
    %4257 = vmatmul.bf16.gmra.mxu0 %v4221
    %v4258 = vpop.f32.mrf.mxu0
    %v4259 = vadd.f32 0.0, %v4258
    %v4260 = vpop.f32.mrf.mxu0
    %4261 = vdwg.mxu0
    %4262 = vmatpush.bf16.msra.mxu0 %v3564
    %4263 = vmatpush.bf16.msra.mxu0 %v3556
    %4264 = vmatpush.bf16.msra.mxu0 %v3548
    %4265 = vmatpush.bf16.msra.mxu0 %v3540
    %4266 = vmatpush.bf16.msra.mxu0 %v3532
    %4267 = vmatpush.bf16.msra.mxu0 %v3524
    %4268 = vmatpush.bf16.msra.mxu0 %v3516
    %4269 = vmatpush.bf16.msra.mxu0 %v3508
    %4270 = vmatmul.bf16.gmra.mxu0 %v4222
    %v4271 = vpop.f32.mrf.mxu0
    %v4272 = vadd.f32 %v4259, %v4271
    %v4273 = vpop.f32.mrf.mxu0
    %4274 = vdwg.mxu0
    %4275 = vmatpush.bf16.msra.mxu0 %v3501
    %4276 = vmatpush.bf16.msra.mxu0 %v3493
    %4277 = vmatpush.bf16.msra.mxu0 %v3485
    %4278 = vmatpush.bf16.msra.mxu0 %v3477
    %4279 = vmatpush.bf16.msra.mxu0 %v3469
    %4280 = vmatpush.bf16.msra.mxu0 %v3461
    %4281 = vmatpush.bf16.msra.mxu0 %v3453
    %4282 = vmatpush.bf16.msra.mxu0 %v3445
    %4283 = vmatmul.bf16.gmra.mxu0 %v4221
    %v4284 = vpop.f32.mrf.mxu0
    %v4285 = vadd.f32 0.0, %v4284
    %v4286 = vpop.f32.mrf.mxu0
    %4287 = vdwg.mxu0
    %4288 = vmatpush.bf16.msra.mxu0 %v3565
    %4289 = vmatpush.bf16.msra.mxu0 %v3557
    %4290 = vmatpush.bf16.msra.mxu0 %v3549
    %4291 = vmatpush.bf16.msra.mxu0 %v3541
    %4292 = vmatpush.bf16.msra.mxu0 %v3533
    %4293 = vmatpush.bf16.msra.mxu0 %v3525
    %4294 = vmatpush.bf16.msra.mxu0 %v3517
    %4295 = vmatpush.bf16.msra.mxu0 %v3509
    %4296 = vmatmul.bf16.gmra.mxu0 %v4222
    %v4297 = vpop.f32.mrf.mxu0
    %v4298 = vadd.f32 %v4285, %v4297
    %v4299 = vpop.f32.mrf.mxu0
    %4300 = vdwg.mxu0
    %4301 = vmatpush.bf16.msra.mxu0 %v3502
    %4302 = vmatpush.bf16.msra.mxu0 %v3494
    %4303 = vmatpush.bf16.msra.mxu0 %v3486
    %4304 = vmatpush.bf16.msra.mxu0 %v3478
    %4305 = vmatpush.bf16.msra.mxu0 %v3470
    %4306 = vmatpush.bf16.msra.mxu0 %v3462
    %4307 = vmatpush.bf16.msra.mxu0 %v3454
    %4308 = vmatpush.bf16.msra.mxu0 %v3446
    %4309 = vmatmul.bf16.gmra.mxu0 %v4221
    %v4310 = vpop.f32.mrf.mxu0
    %v4311 = vadd.f32 0.0, %v4310
    %v4312 = vpop.f32.mrf.mxu0
    %4313 = vdwg.mxu0
    %4314 = vmatpush.bf16.msra.mxu0 %v3566
    %4315 = vmatpush.bf16.msra.mxu0 %v3558
    %4316 = vmatpush.bf16.msra.mxu0 %v3550
    %4317 = vmatpush.bf16.msra.mxu0 %v3542
    %4318 = vmatpush.bf16.msra.mxu0 %v3534
    %4319 = vmatpush.bf16.msra.mxu0 %v3526
    %4320 = vmatpush.bf16.msra.mxu0 %v3518
    %4321 = vmatpush.bf16.msra.mxu0 %v3510
    %4322 = vmatmul.bf16.gmra.mxu0 %v4222
    %v4323 = vpop.f32.mrf.mxu0
    %v4324 = vadd.f32 %v4311, %v4323
    %v4325 = vpop.f32.mrf.mxu0
    %4326 = vdwg.mxu0
    %4327 = vmatpush.bf16.msra.mxu0 %v3503
    %4328 = vmatpush.bf16.msra.mxu0 %v3495
    %4329 = vmatpush.bf16.msra.mxu0 %v3487
    %4330 = vmatpush.bf16.msra.mxu0 %v3479
    %4331 = vmatpush.bf16.msra.mxu0 %v3471
    %4332 = vmatpush.bf16.msra.mxu0 %v3463
    %4333 = vmatpush.bf16.msra.mxu0 %v3455
    %4334 = vmatpush.bf16.msra.mxu0 %v3447
    %4335 = vmatmul.bf16.gmra.mxu0 %v4221
    %v4336 = vpop.f32.mrf.mxu0
    %v4337 = vadd.f32 0.0, %v4336
    %v4338 = vpop.f32.mrf.mxu0
    %4339 = vdwg.mxu0
    %4340 = vmatpush.bf16.msra.mxu0 %v3567
    %4341 = vmatpush.bf16.msra.mxu0 %v3559
    %4342 = vmatpush.bf16.msra.mxu0 %v3551
    %4343 = vmatpush.bf16.msra.mxu0 %v3543
    %4344 = vmatpush.bf16.msra.mxu0 %v3535
    %4345 = vmatpush.bf16.msra.mxu0 %v3527
    %4346 = vmatpush.bf16.msra.mxu0 %v3519
    %4347 = vmatpush.bf16.msra.mxu0 %v3511
    %4348 = vmatmul.bf16.gmra.mxu0 %v4222
    %v4349 = vpop.f32.mrf.mxu0
    %v4350 = vadd.f32 %v4337, %v4349
    %v4351 = vpop.f32.mrf.mxu0
    %4352 = vdwg.mxu0
    %4353 = vmatpush.bf16.msra.mxu0 %v3504
    %4354 = vmatpush.bf16.msra.mxu0 %v3496
    %4355 = vmatpush.bf16.msra.mxu0 %v3488
    %4356 = vmatpush.bf16.msra.mxu0 %v3480
    %4357 = vmatpush.bf16.msra.mxu0 %v3472
    %4358 = vmatpush.bf16.msra.mxu0 %v3464
    %4359 = vmatpush.bf16.msra.mxu0 %v3456
    %4360 = vmatpush.bf16.msra.mxu0 %v3448
    %4361 = vmatmul.bf16.gmra.mxu0 %v4221
    %v4362 = vpop.f32.mrf.mxu0
    %v4363 = vadd.f32 0.0, %v4362
    %v4364 = vpop.f32.mrf.mxu0
    %4365 = vdwg.mxu0
    %4366 = vmatpush.bf16.msra.mxu0 %v3568
    %4367 = vmatpush.bf16.msra.mxu0 %v3560
    %4368 = vmatpush.bf16.msra.mxu0 %v3552
    %4369 = vmatpush.bf16.msra.mxu0 %v3544
    %4370 = vmatpush.bf16.msra.mxu0 %v3536
    %4371 = vmatpush.bf16.msra.mxu0 %v3528
    %4372 = vmatpush.bf16.msra.mxu0 %v3520
    %4373 = vmatpush.bf16.msra.mxu0 %v3512
    %4374 = vmatmul.bf16.gmra.mxu0 %v4222
    %v4375 = vpop.f32.mrf.mxu0
    %v4376 = vadd.f32 %v4363, %v4375
    %v4377 = vpop.f32.mrf.mxu0
    %4378 = vdwg.mxu0
    %4379 = vmatpush.bf16.msra.mxu0 %v3505
    %4380 = vmatpush.bf16.msra.mxu0 %v3497
    %4381 = vmatpush.bf16.msra.mxu0 %v3489
    %4382 = vmatpush.bf16.msra.mxu0 %v3481
    %4383 = vmatpush.bf16.msra.mxu0 %v3473
    %4384 = vmatpush.bf16.msra.mxu0 %v3465
    %4385 = vmatpush.bf16.msra.mxu0 %v3457
    %4386 = vmatpush.bf16.msra.mxu0 %v3449
    %4387 = vmatmul.bf16.gmra.mxu0 %v4221
    %v4388 = vpop.f32.mrf.mxu0
    %v4389 = vadd.f32 0.0, %v4388
    %v4390 = vpop.f32.mrf.mxu0
    %4391 = vdwg.mxu0
    %4392 = vmatpush.bf16.msra.mxu0 %v3569
    %4393 = vmatpush.bf16.msra.mxu0 %v3561
    %4394 = vmatpush.bf16.msra.mxu0 %v3553
    %4395 = vmatpush.bf16.msra.mxu0 %v3545
    %4396 = vmatpush.bf16.msra.mxu0 %v3537
    %4397 = vmatpush.bf16.msra.mxu0 %v3529
    %4398 = vmatpush.bf16.msra.mxu0 %v3521
    %4399 = vmatpush.bf16.msra.mxu0 %v3513
    %4400 = vmatmul.bf16.gmra.mxu0 %v4222
    %v4401 = vpop.f32.mrf.mxu0
    %v4402 = vadd.f32 %v4389, %v4401
    %v4403 = vpop.f32.mrf.mxu0
    %4404 = vdwg.mxu0
    %4405 = vmatpush.bf16.msra.mxu0 %v3506
    %4406 = vmatpush.bf16.msra.mxu0 %v3498
    %4407 = vmatpush.bf16.msra.mxu0 %v3490
    %4408 = vmatpush.bf16.msra.mxu0 %v3482
    %4409 = vmatpush.bf16.msra.mxu0 %v3474
    %4410 = vmatpush.bf16.msra.mxu0 %v3466
    %4411 = vmatpush.bf16.msra.mxu0 %v3458
    %4412 = vmatpush.bf16.msra.mxu0 %v3450
    %4413 = vmatmul.bf16.gmra.mxu0 %v4221
    %v4414 = vpop.f32.mrf.mxu0
    %v4415 = vadd.f32 0.0, %v4414
    %v4416 = vpop.f32.mrf.mxu0
    %4417 = vdwg.mxu0
    %4418 = vmatpush.bf16.msra.mxu0 %v3570
    %4419 = vmatpush.bf16.msra.mxu0 %v3562
    %4420 = vmatpush.bf16.msra.mxu0 %v3554
    %4421 = vmatpush.bf16.msra.mxu0 %v3546
    %4422 = vmatpush.bf16.msra.mxu0 %v3538
    %4423 = vmatpush.bf16.msra.mxu0 %v3530
    %4424 = vmatpush.bf16.msra.mxu0 %v3522
    %4425 = vmatpush.bf16.msra.mxu0 %v3514
    %4426 = vmatmul.bf16.gmra.mxu0 %v4222
    %v4427 = vpop.f32.mrf.mxu0
    %v4428 = vadd.f32 %v4415, %v4427
    %v4429 = vpop.f32.mrf.mxu0
    %4430 = vdwg.mxu0
    %v4431 = vadd.f32 %v4213, %v4246
    %v4432 = vadd.f32 %v4214, %v4272
    %v4433 = vadd.f32 %v4215, %v4298
    %v4434 = vadd.f32 %v4216, %v4324
    %v4435 = vadd.f32 %v4217, %v4350
    %v4436 = vadd.f32 %v4218, %v4376
    %v4437 = vadd.f32 %v4219, %v4402
    %v4438 = vadd.f32 %v4220, %v4428
    %v4439 = vmul.f32 %v4431, 0.5
    %v4440 = vmul.f32 %v4432, 0.5
    %v4441 = vtanh.pop %v4439
    %v4442 = vtanh.pop %v4440
    %v4443 = vmul.f32 %v4441, 0.5
    %v4444 = vmul.f32 %v4442, 0.5
    %v4445 = vadd.f32 %v4443, 0.5
    %v4446 = vadd.f32 %v4444, 0.5
    %v4447 = vmul.f32 %v4433, 0.5
    %v4448 = vmul.f32 %v4434, 0.5
    %v4449 = vtanh.pop %v4447
    %v4450 = vtanh.pop %v4448
    %v4451 = vmul.f32 %v4449, 0.5
    %v4452 = vmul.f32 %v4450, 0.5
    %v4453 = vadd.f32 %v4451, 0.5
    %v4454 = vadd.f32 %v4452, 0.5
    %v4455 = vtanh.pop %v4435
    %v4456 = vtanh.pop %v4436
    %v4457 = vmul.f32 %v4437, 0.5
    %v4458 = vmul.f32 %v4438, 0.5
    %v4459 = vtanh.pop %v4457
    %v4460 = vtanh.pop %v4458
    %v4461 = vmul.f32 %v4459, 0.5
    %v4462 = vmul.f32 %v4460, 0.5
    %v4463 = vadd.f32 %v4461, 0.5
    %v4464 = vadd.f32 %v4462, 0.5
    %v4465 = vmul.f32 %v4453, %v4207
    %v4466 = vmul.f32 %v4454, %v4208
    %v4467 = vmul.f32 %v4445, %v4455
    %v4468 = vmul.f32 %v4446, %v4456
    %v4469 = vadd.f32 %v4465, %v4467
    %v4470 = vadd.f32 %v4466, %v4468
    %v4471 = vtanh.pop %v4469
    %v4472 = vtanh.pop %v4470
    %v4473 = vmul.f32 %v4463, %v4471
    %v4474 = vmul.f32 %v4464, %v4472
    %v4475 = vld [vmem:[#allocation2 + $0xc0] sm:$0xff]
    %v4476 = vld [vmem:[#allocation2 + $0xc8] sm:$0xff]
    %v4477 = vld [vmem:[#allocation2 + $0xd0] sm:$0xff]
    %v4478 = vld [vmem:[#allocation2 + $0xd8] sm:$0xff]
    %v4479 = vld [vmem:[#allocation2 + $0xe0] sm:$0xff]
    %v4480 = vld [vmem:[#allocation2 + $0xe8] sm:$0xff]
    %v4481 = vld [vmem:[#allocation2 + $0xf0] sm:$0xff]
    %v4482 = vld [vmem:[#allocation2 + $0xf8] sm:$0xff]
    %v4483 = vpack.c.bf16 %v4473, %v4473
    %v4484 = vpack.c.bf16 %v4474, %v4474
    %4485 = vmatpush.bf16.msra.mxu0 %v3499
    %4486 = vmatpush.bf16.msra.mxu0 %v3491
    %4487 = vmatpush.bf16.msra.mxu0 %v3483
    %4488 = vmatpush.bf16.msra.mxu0 %v3475
    %4489 = vmatpush.bf16.msra.mxu0 %v3467
    %4490 = vmatpush.bf16.msra.mxu0 %v3459
    %4491 = vmatpush.bf16.msra.mxu0 %v3451
    %4492 = vmatpush.bf16.msra.mxu0 %v3443
    %4493 = vmatmul.bf16.gmra.mxu0 %v4483
    %v4494 = vpop.f32.mrf.mxu0
    %v4495 = vadd.f32 0.0, %v4494
    %v4496 = vpop.f32.mrf.mxu0
    %4497 = vdwg.mxu0
    %4498 = vmatpush.bf16.msra.mxu0 %v3563
    %4499 = vmatpush.bf16.msra.mxu0 %v3555
    %4500 = vmatpush.bf16.msra.mxu0 %v3547
    %4501 = vmatpush.bf16.msra.mxu0 %v3539
    %4502 = vmatpush.bf16.msra.mxu0 %v3531
    %4503 = vmatpush.bf16.msra.mxu0 %v3523
    %4504 = vmatpush.bf16.msra.mxu0 %v3515
    %4505 = vmatpush.bf16.msra.mxu0 %v3507
    %4506 = vmatmul.bf16.gmra.mxu0 %v4484
    %v4507 = vpop.f32.mrf.mxu0
    %v4508 = vadd.f32 %v4495, %v4507
    %v4509 = vpop.f32.mrf.mxu0
    %4510 = vdwg.mxu0
    %4511 = vmatpush.bf16.msra.mxu0 %v3500
    %4512 = vmatpush.bf16.msra.mxu0 %v3492
    %4513 = vmatpush.bf16.msra.mxu0 %v3484
    %4514 = vmatpush.bf16.msra.mxu0 %v3476
    %4515 = vmatpush.bf16.msra.mxu0 %v3468
    %4516 = vmatpush.bf16.msra.mxu0 %v3460
    %4517 = vmatpush.bf16.msra.mxu0 %v3452
    %4518 = vmatpush.bf16.msra.mxu0 %v3444
    %4519 = vmatmul.bf16.gmra.mxu0 %v4483
    %v4520 = vpop.f32.mrf.mxu0
    %v4521 = vadd.f32 0.0, %v4520
    %v4522 = vpop.f32.mrf.mxu0
    %4523 = vdwg.mxu0
    %4524 = vmatpush.bf16.msra.mxu0 %v3564
    %4525 = vmatpush.bf16.msra.mxu0 %v3556
    %4526 = vmatpush.bf16.msra.mxu0 %v3548
    %4527 = vmatpush.bf16.msra.mxu0 %v3540
    %4528 = vmatpush.bf16.msra.mxu0 %v3532
    %4529 = vmatpush.bf16.msra.mxu0 %v3524
    %4530 = vmatpush.bf16.msra.mxu0 %v3516
    %4531 = vmatpush.bf16.msra.mxu0 %v3508
    %4532 = vmatmul.bf16.gmra.mxu0 %v4484
    %v4533 = vpop.f32.mrf.mxu0
    %v4534 = vadd.f32 %v4521, %v4533
    %v4535 = vpop.f32.mrf.mxu0
    %4536 = vdwg.mxu0
    %4537 = vmatpush.bf16.msra.mxu0 %v3501
    %4538 = vmatpush.bf16.msra.mxu0 %v3493
    %4539 = vmatpush.bf16.msra.mxu0 %v3485
    %4540 = vmatpush.bf16.msra.mxu0 %v3477
    %4541 = vmatpush.bf16.msra.mxu0 %v3469
    %4542 = vmatpush.bf16.msra.mxu0 %v3461
    %4543 = vmatpush.bf16.msra.mxu0 %v3453
    %4544 = vmatpush.bf16.msra.mxu0 %v3445
    %4545 = vmatmul.bf16.gmra.mxu0 %v4483
    %v4546 = vpop.f32.mrf.mxu0
    %v4547 = vadd.f32 0.0, %v4546
    %v4548 = vpop.f32.mrf.mxu0
    %4549 = vdwg.mxu0
    %4550 = vmatpush.bf16.msra.mxu0 %v3565
    %4551 = vmatpush.bf16.msra.mxu0 %v3557
    %4552 = vmatpush.bf16.msra.mxu0 %v3549
    %4553 = vmatpush.bf16.msra.mxu0 %v3541
    %4554 = vmatpush.bf16.msra.mxu0 %v3533
    %4555 = vmatpush.bf16.msra.mxu0 %v3525
    %4556 = vmatpush.bf16.msra.mxu0 %v3517
    %4557 = vmatpush.bf16.msra.mxu0 %v3509
    %4558 = vmatmul.bf16.gmra.mxu0 %v4484
    %v4559 = vpop.f32.mrf.mxu0
    %v4560 = vadd.f32 %v4547, %v4559
    %v4561 = vpop.f32.mrf.mxu0
    %4562 = vdwg.mxu0
    %4563 = vmatpush.bf16.msra.mxu0 %v3502
    %4564 = vmatpush.bf16.msra.mxu0 %v3494
    %4565 = vmatpush.bf16.msra.mxu0 %v3486
    %4566 = vmatpush.bf16.msra.mxu0 %v3478
    %4567 = vmatpush.bf16.msra.mxu0 %v3470
    %4568 = vmatpush.bf16.msra.mxu0 %v3462
    %4569 = vmatpush.bf16.msra.mxu0 %v3454
    %4570 = vmatpush.bf16.msra.mxu0 %v3446
    %4571 = vmatmul.bf16.gmra.mxu0 %v4483
    %v4572 = vpop.f32.mrf.mxu0
    %v4573 = vadd.f32 0.0, %v4572
    %v4574 = vpop.f32.mrf.mxu0
    %4575 = vdwg.mxu0
    %4576 = vmatpush.bf16.msra.mxu0 %v3566
    %4577 = vmatpush.bf16.msra.mxu0 %v3558
    %4578 = vmatpush.bf16.msra.mxu0 %v3550
    %4579 = vmatpush.bf16.msra.mxu0 %v3542
    %4580 = vmatpush.bf16.msra.mxu0 %v3534
    %4581 = vmatpush.bf16.msra.mxu0 %v3526
    %4582 = vmatpush.bf16.msra.mxu0 %v3518
    %4583 = vmatpush.bf16.msra.mxu0 %v3510
    %4584 = vmatmul.bf16.gmra.mxu0 %v4484
    %v4585 = vpop.f32.mrf.mxu0
    %v4586 = vadd.f32 %v4573, %v4585
    %v4587 = vpop.f32.mrf.mxu0
    %4588 = vdwg.mxu0
    %4589 = vmatpush.bf16.msra.mxu0 %v3503
    %4590 = vmatpush.bf16.msra.mxu0 %v3495
    %4591 = vmatpush.bf16.msra.mxu0 %v3487
    %4592 = vmatpush.bf16.msra.mxu0 %v3479
    %4593 = vmatpush.bf16.msra.mxu0 %v3471
    %4594 = vmatpush.bf16.msra.mxu0 %v3463
    %4595 = vmatpush.bf16.msra.mxu0 %v3455
    %4596 = vmatpush.bf16.msra.mxu0 %v3447
    %4597 = vmatmul.bf16.gmra.mxu0 %v4483
    %v4598 = vpop.f32.mrf.mxu0
    %v4599 = vadd.f32 0.0, %v4598
    %v4600 = vpop.f32.mrf.mxu0
    %4601 = vdwg.mxu0
    %4602 = vmatpush.bf16.msra.mxu0 %v3567
    %4603 = vmatpush.bf16.msra.mxu0 %v3559
    %4604 = vmatpush.bf16.msra.mxu0 %v3551
    %4605 = vmatpush.bf16.msra.mxu0 %v3543
    %4606 = vmatpush.bf16.msra.mxu0 %v3535
    %4607 = vmatpush.bf16.msra.mxu0 %v3527
    %4608 = vmatpush.bf16.msra.mxu0 %v3519
    %4609 = vmatpush.bf16.msra.mxu0 %v3511
    %4610 = vmatmul.bf16.gmra.mxu0 %v4484
    %v4611 = vpop.f32.mrf.mxu0
    %v4612 = vadd.f32 %v4599, %v4611
    %v4613 = vpop.f32.mrf.mxu0
    %4614 = vdwg.mxu0
    %4615 = vmatpush.bf16.msra.mxu0 %v3504
    %4616 = vmatpush.bf16.msra.mxu0 %v3496
    %4617 = vmatpush.bf16.msra.mxu0 %v3488
    %4618 = vmatpush.bf16.msra.mxu0 %v3480
    %4619 = vmatpush.bf16.msra.mxu0 %v3472
    %4620 = vmatpush.bf16.msra.mxu0 %v3464
    %4621 = vmatpush.bf16.msra.mxu0 %v3456
    %4622 = vmatpush.bf16.msra.mxu0 %v3448
    %4623 = vmatmul.bf16.gmra.mxu0 %v4483
    %v4624 = vpop.f32.mrf.mxu0
    %v4625 = vadd.f32 0.0, %v4624
    %v4626 = vpop.f32.mrf.mxu0
    %4627 = vdwg.mxu0
    %4628 = vmatpush.bf16.msra.mxu0 %v3568
    %4629 = vmatpush.bf16.msra.mxu0 %v3560
    %4630 = vmatpush.bf16.msra.mxu0 %v3552
    %4631 = vmatpush.bf16.msra.mxu0 %v3544
    %4632 = vmatpush.bf16.msra.mxu0 %v3536
    %4633 = vmatpush.bf16.msra.mxu0 %v3528
    %4634 = vmatpush.bf16.msra.mxu0 %v3520
    %4635 = vmatpush.bf16.msra.mxu0 %v3512
    %4636 = vmatmul.bf16.gmra.mxu0 %v4484
    %v4637 = vpop.f32.mrf.mxu0
    %v4638 = vadd.f32 %v4625, %v4637
    %v4639 = vpop.f32.mrf.mxu0
    %4640 = vdwg.mxu0
    %4641 = vmatpush.bf16.msra.mxu0 %v3505
    %4642 = vmatpush.bf16.msra.mxu0 %v3497
    %4643 = vmatpush.bf16.msra.mxu0 %v3489
    %4644 = vmatpush.bf16.msra.mxu0 %v3481
    %4645 = vmatpush.bf16.msra.mxu0 %v3473
    %4646 = vmatpush.bf16.msra.mxu0 %v3465
    %4647 = vmatpush.bf16.msra.mxu0 %v3457
    %4648 = vmatpush.bf16.msra.mxu0 %v3449
    %4649 = vmatmul.bf16.gmra.mxu0 %v4483
    %v4650 = vpop.f32.mrf.mxu0
    %v4651 = vadd.f32 0.0, %v4650
    %v4652 = vpop.f32.mrf.mxu0
    %4653 = vdwg.mxu0
    %4654 = vmatpush.bf16.msra.mxu0 %v3569
    %4655 = vmatpush.bf16.msra.mxu0 %v3561
    %4656 = vmatpush.bf16.msra.mxu0 %v3553
    %4657 = vmatpush.bf16.msra.mxu0 %v3545
    %4658 = vmatpush.bf16.msra.mxu0 %v3537
    %4659 = vmatpush.bf16.msra.mxu0 %v3529
    %4660 = vmatpush.bf16.msra.mxu0 %v3521
    %4661 = vmatpush.bf16.msra.mxu0 %v3513
    %4662 = vmatmul.bf16.gmra.mxu0 %v4484
    %v4663 = vpop.f32.mrf.mxu0
    %v4664 = vadd.f32 %v4651, %v4663
    %v4665 = vpop.f32.mrf.mxu0
    %4666 = vdwg.mxu0
    %4667 = vmatpush.bf16.msra.mxu0 %v3506
    %4668 = vmatpush.bf16.msra.mxu0 %v3498
    %4669 = vmatpush.bf16.msra.mxu0 %v3490
    %4670 = vmatpush.bf16.msra.mxu0 %v3482
    %4671 = vmatpush.bf16.msra.mxu0 %v3474
    %4672 = vmatpush.bf16.msra.mxu0 %v3466
    %4673 = vmatpush.bf16.msra.mxu0 %v3458
    %4674 = vmatpush.bf16.msra.mxu0 %v3450
    %4675 = vmatmul.bf16.gmra.mxu0 %v4483
    %v4676 = vpop.f32.mrf.mxu0
    %v4677 = vadd.f32 0.0, %v4676
    %v4678 = vpop.f32.mrf.mxu0
    %4679 = vdwg.mxu0
    %4680 = vmatpush.bf16.msra.mxu0 %v3570
    %4681 = vmatpush.bf16.msra.mxu0 %v3562
    %4682 = vmatpush.bf16.msra.mxu0 %v3554
    %4683 = vmatpush.bf16.msra.mxu0 %v3546
    %4684 = vmatpush.bf16.msra.mxu0 %v3538
    %4685 = vmatpush.bf16.msra.mxu0 %v3530
    %4686 = vmatpush.bf16.msra.mxu0 %v3522
    %4687 = vmatpush.bf16.msra.mxu0 %v3514
    %4688 = vmatmul.bf16.gmra.mxu0 %v4484
    %v4689 = vpop.f32.mrf.mxu0
    %v4690 = vadd.f32 %v4677, %v4689
    %v4691 = vpop.f32.mrf.mxu0
    %4692 = vdwg.mxu0
    %v4693 = vadd.f32 %v4475, %v4508
    %v4694 = vadd.f32 %v4476, %v4534
    %v4695 = vadd.f32 %v4477, %v4560
    %v4696 = vadd.f32 %v4478, %v4586
    %v4697 = vadd.f32 %v4479, %v4612
    %v4698 = vadd.f32 %v4480, %v4638
    %v4699 = vadd.f32 %v4481, %v4664
    %v4700 = vadd.f32 %v4482, %v4690
    %v4701 = vmul.f32 %v4693, 0.5
    %v4702 = vmul.f32 %v4694, 0.5
    %v4703 = vtanh.pop %v4701
    %v4704 = vtanh.pop %v4702
    %v4705 = vmul.f32 %v4703, 0.5
    %v4706 = vmul.f32 %v4704, 0.5
    %v4707 = vadd.f32 %v4705, 0.5
    %v4708 = vadd.f32 %v4706, 0.5
    %v4709 = vmul.f32 %v4695, 0.5
    %v4710 = vmul.f32 %v4696, 0.5
    %v4711 = vtanh.pop %v4709
    %v4712 = vtanh.pop %v4710
    %v4713 = vmul.f32 %v4711, 0.5
    %v4714 = vmul.f32 %v4712, 0.5
    %v4715 = vadd.f32 %v4713, 0.5
    %v4716 = vadd.f32 %v4714, 0.5
    %v4717 = vtanh.pop %v4697
    %v4718 = vtanh.pop %v4698
    %v4719 = vmul.f32 %v4699, 0.5
    %v4720 = vmul.f32 %v4700, 0.5
    %v4721 = vtanh.pop %v4719
    %v4722 = vtanh.pop %v4720
    %v4723 = vmul.f32 %v4721, 0.5
    %v4724 = vmul.f32 %v4722, 0.5
    %v4725 = vadd.f32 %v4723, 0.5
    %v4726 = vadd.f32 %v4724, 0.5
    %v4727 = vmul.f32 %v4715, %v4469
    %v4728 = vmul.f32 %v4716, %v4470
    %v4729 = vmul.f32 %v4707, %v4717
    %v4730 = vmul.f32 %v4708, %v4718
    %v4731 = vadd.f32 %v4727, %v4729
    %v4732 = vadd.f32 %v4728, %v4730
    %v4733 = vtanh.pop %v4731
    %v4734 = vtanh.pop %v4732
    %v4735 = vmul.f32 %v4725, %v4733
    %v4736 = vmul.f32 %v4726, %v4734
    %v4737 = vld [vmem:[#allocation2 + $0x100] sm:$0xff]
    %v4738 = vld [vmem:[#allocation2 + $0x108] sm:$0xff]
    %v4739 = vld [vmem:[#allocation2 + $0x110] sm:$0xff]
    %v4740 = vld [vmem:[#allocation2 + $0x118] sm:$0xff]
    %v4741 = vld [vmem:[#allocation2 + $0x120] sm:$0xff]
    %v4742 = vld [vmem:[#allocation2 + $0x128] sm:$0xff]
    %v4743 = vld [vmem:[#allocation2 + $0x130] sm:$0xff]
    %v4744 = vld [vmem:[#allocation2 + $0x138] sm:$0xff]
    %v4745 = vpack.c.bf16 %v4735, %v4735
    %v4746 = vpack.c.bf16 %v4736, %v4736
    %4747 = vmatpush.bf16.msra.mxu0 %v3499
    %4748 = vmatpush.bf16.msra.mxu0 %v3491
    %4749 = vmatpush.bf16.msra.mxu0 %v3483
    %4750 = vmatpush.bf16.msra.mxu0 %v3475
    %4751 = vmatpush.bf16.msra.mxu0 %v3467
    %4752 = vmatpush.bf16.msra.mxu0 %v3459
    %4753 = vmatpush.bf16.msra.mxu0 %v3451
    %4754 = vmatpush.bf16.msra.mxu0 %v3443
    %4755 = vmatmul.bf16.gmra.mxu0 %v4745
    %v4756 = vpop.f32.mrf.mxu0
    %v4757 = vadd.f32 0.0, %v4756
    %v4758 = vpop.f32.mrf.mxu0
    %4759 = vdwg.mxu0
    %4760 = vmatpush.bf16.msra.mxu0 %v3563
    %4761 = vmatpush.bf16.msra.mxu0 %v3555
    %4762 = vmatpush.bf16.msra.mxu0 %v3547
    %4763 = vmatpush.bf16.msra.mxu0 %v3539
    %4764 = vmatpush.bf16.msra.mxu0 %v3531
    %4765 = vmatpush.bf16.msra.mxu0 %v3523
    %4766 = vmatpush.bf16.msra.mxu0 %v3515
    %4767 = vmatpush.bf16.msra.mxu0 %v3507
    %4768 = vmatmul.bf16.gmra.mxu0 %v4746
    %v4769 = vpop.f32.mrf.mxu0
    %v4770 = vadd.f32 %v4757, %v4769
    %v4771 = vpop.f32.mrf.mxu0
    %4772 = vdwg.mxu0
    %4773 = vmatpush.bf16.msra.mxu0 %v3500
    %4774 = vmatpush.bf16.msra.mxu0 %v3492
    %4775 = vmatpush.bf16.msra.mxu0 %v3484
    %4776 = vmatpush.bf16.msra.mxu0 %v3476
    %4777 = vmatpush.bf16.msra.mxu0 %v3468
    %4778 = vmatpush.bf16.msra.mxu0 %v3460
    %4779 = vmatpush.bf16.msra.mxu0 %v3452
    %4780 = vmatpush.bf16.msra.mxu0 %v3444
    %4781 = vmatmul.bf16.gmra.mxu0 %v4745
    %v4782 = vpop.f32.mrf.mxu0
    %v4783 = vadd.f32 0.0, %v4782
    %v4784 = vpop.f32.mrf.mxu0
    %4785 = vdwg.mxu0
    %4786 = vmatpush.bf16.msra.mxu0 %v3564
    %4787 = vmatpush.bf16.msra.mxu0 %v3556
    %4788 = vmatpush.bf16.msra.mxu0 %v3548
    %4789 = vmatpush.bf16.msra.mxu0 %v3540
    %4790 = vmatpush.bf16.msra.mxu0 %v3532
    %4791 = vmatpush.bf16.msra.mxu0 %v3524
    %4792 = vmatpush.bf16.msra.mxu0 %v3516
    %4793 = vmatpush.bf16.msra.mxu0 %v3508
    %4794 = vmatmul.bf16.gmra.mxu0 %v4746
    %v4795 = vpop.f32.mrf.mxu0
    %v4796 = vadd.f32 %v4783, %v4795
    %v4797 = vpop.f32.mrf.mxu0
    %4798 = vdwg.mxu0
    %4799 = vmatpush.bf16.msra.mxu0 %v3501
    %4800 = vmatpush.bf16.msra.mxu0 %v3493
    %4801 = vmatpush.bf16.msra.mxu0 %v3485
    %4802 = vmatpush.bf16.msra.mxu0 %v3477
    %4803 = vmatpush.bf16.msra.mxu0 %v3469
    %4804 = vmatpush.bf16.msra.mxu0 %v3461
    %4805 = vmatpush.bf16.msra.mxu0 %v3453
    %4806 = vmatpush.bf16.msra.mxu0 %v3445
    %4807 = vmatmul.bf16.gmra.mxu0 %v4745
    %v4808 = vpop.f32.mrf.mxu0
    %v4809 = vadd.f32 0.0, %v4808
    %v4810 = vpop.f32.mrf.mxu0
    %4811 = vdwg.mxu0
    %4812 = vmatpush.bf16.msra.mxu0 %v3565
    %4813 = vmatpush.bf16.msra.mxu0 %v3557
    %4814 = vmatpush.bf16.msra.mxu0 %v3549
    %4815 = vmatpush.bf16.msra.mxu0 %v3541
    %4816 = vmatpush.bf16.msra.mxu0 %v3533
    %4817 = vmatpush.bf16.msra.mxu0 %v3525
    %4818 = vmatpush.bf16.msra.mxu0 %v3517
    %4819 = vmatpush.bf16.msra.mxu0 %v3509
    %4820 = vmatmul.bf16.gmra.mxu0 %v4746
    %v4821 = vpop.f32.mrf.mxu0
    %v4822 = vadd.f32 %v4809, %v4821
    %v4823 = vpop.f32.mrf.mxu0
    %4824 = vdwg.mxu0
    %4825 = vmatpush.bf16.msra.mxu0 %v3502
    %4826 = vmatpush.bf16.msra.mxu0 %v3494
    %4827 = vmatpush.bf16.msra.mxu0 %v3486
    %4828 = vmatpush.bf16.msra.mxu0 %v3478
    %4829 = vmatpush.bf16.msra.mxu0 %v3470
    %4830 = vmatpush.bf16.msra.mxu0 %v3462
    %4831 = vmatpush.bf16.msra.mxu0 %v3454
    %4832 = vmatpush.bf16.msra.mxu0 %v3446
    %4833 = vmatmul.bf16.gmra.mxu0 %v4745
    %v4834 = vpop.f32.mrf.mxu0
    %v4835 = vadd.f32 0.0, %v4834
    %v4836 = vpop.f32.mrf.mxu0
    %4837 = vdwg.mxu0
    %4838 = vmatpush.bf16.msra.mxu0 %v3566
    %4839 = vmatpush.bf16.msra.mxu0 %v3558
    %4840 = vmatpush.bf16.msra.mxu0 %v3550
    %4841 = vmatpush.bf16.msra.mxu0 %v3542
    %4842 = vmatpush.bf16.msra.mxu0 %v3534
    %4843 = vmatpush.bf16.msra.mxu0 %v3526
    %4844 = vmatpush.bf16.msra.mxu0 %v3518
    %4845 = vmatpush.bf16.msra.mxu0 %v3510
    %4846 = vmatmul.bf16.gmra.mxu0 %v4746
    %v4847 = vpop.f32.mrf.mxu0
    %v4848 = vadd.f32 %v4835, %v4847
    %v4849 = vpop.f32.mrf.mxu0
    %4850 = vdwg.mxu0
    %4851 = vmatpush.bf16.msra.mxu0 %v3503
    %4852 = vmatpush.bf16.msra.mxu0 %v3495
    %4853 = vmatpush.bf16.msra.mxu0 %v3487
    %4854 = vmatpush.bf16.msra.mxu0 %v3479
    %4855 = vmatpush.bf16.msra.mxu0 %v3471
    %4856 = vmatpush.bf16.msra.mxu0 %v3463
    %4857 = vmatpush.bf16.msra.mxu0 %v3455
    %4858 = vmatpush.bf16.msra.mxu0 %v3447
    %4859 = vmatmul.bf16.gmra.mxu0 %v4745
    %v4860 = vpop.f32.mrf.mxu0
    %v4861 = vadd.f32 0.0, %v4860
    %v4862 = vpop.f32.mrf.mxu0
    %4863 = vdwg.mxu0
    %4864 = vmatpush.bf16.msra.mxu0 %v3567
    %4865 = vmatpush.bf16.msra.mxu0 %v3559
    %4866 = vmatpush.bf16.msra.mxu0 %v3551
    %4867 = vmatpush.bf16.msra.mxu0 %v3543
    %4868 = vmatpush.bf16.msra.mxu0 %v3535
    %4869 = vmatpush.bf16.msra.mxu0 %v3527
    %4870 = vmatpush.bf16.msra.mxu0 %v3519
    %4871 = vmatpush.bf16.msra.mxu0 %v3511
    %4872 = vmatmul.bf16.gmra.mxu0 %v4746
    %v4873 = vpop.f32.mrf.mxu0
    %v4874 = vadd.f32 %v4861, %v4873
    %v4875 = vpop.f32.mrf.mxu0
    %4876 = vdwg.mxu0
    %4877 = vmatpush.bf16.msra.mxu0 %v3504
    %4878 = vmatpush.bf16.msra.mxu0 %v3496
    %4879 = vmatpush.bf16.msra.mxu0 %v3488
    %4880 = vmatpush.bf16.msra.mxu0 %v3480
    %4881 = vmatpush.bf16.msra.mxu0 %v3472
    %4882 = vmatpush.bf16.msra.mxu0 %v3464
    %4883 = vmatpush.bf16.msra.mxu0 %v3456
    %4884 = vmatpush.bf16.msra.mxu0 %v3448
    %4885 = vmatmul.bf16.gmra.mxu0 %v4745
    %v4886 = vpop.f32.mrf.mxu0
    %v4887 = vadd.f32 0.0, %v4886
    %v4888 = vpop.f32.mrf.mxu0
    %4889 = vdwg.mxu0
    %4890 = vmatpush.bf16.msra.mxu0 %v3568
    %4891 = vmatpush.bf16.msra.mxu0 %v3560
    %4892 = vmatpush.bf16.msra.mxu0 %v3552
    %4893 = vmatpush.bf16.msra.mxu0 %v3544
    %4894 = vmatpush.bf16.msra.mxu0 %v3536
    %4895 = vmatpush.bf16.msra.mxu0 %v3528
    %4896 = vmatpush.bf16.msra.mxu0 %v3520
    %4897 = vmatpush.bf16.msra.mxu0 %v3512
    %4898 = vmatmul.bf16.gmra.mxu0 %v4746
    %v4899 = vpop.f32.mrf.mxu0
    %v4900 = vadd.f32 %v4887, %v4899
    %v4901 = vpop.f32.mrf.mxu0
    %4902 = vdwg.mxu0
    %4903 = vmatpush.bf16.msra.mxu0 %v3505
    %4904 = vmatpush.bf16.msra.mxu0 %v3497
    %4905 = vmatpush.bf16.msra.mxu0 %v3489
    %4906 = vmatpush.bf16.msra.mxu0 %v3481
    %4907 = vmatpush.bf16.msra.mxu0 %v3473
    %4908 = vmatpush.bf16.msra.mxu0 %v3465
    %4909 = vmatpush.bf16.msra.mxu0 %v3457
    %4910 = vmatpush.bf16.msra.mxu0 %v3449
    %4911 = vmatmul.bf16.gmra.mxu0 %v4745
    %v4912 = vpop.f32.mrf.mxu0
    %v4913 = vadd.f32 0.0, %v4912
    %v4914 = vpop.f32.mrf.mxu0
    %4915 = vdwg.mxu0
    %4916 = vmatpush.bf16.msra.mxu0 %v3569
    %4917 = vmatpush.bf16.msra.mxu0 %v3561
    %4918 = vmatpush.bf16.msra.mxu0 %v3553
    %4919 = vmatpush.bf16.msra.mxu0 %v3545
    %4920 = vmatpush.bf16.msra.mxu0 %v3537
    %4921 = vmatpush.bf16.msra.mxu0 %v3529
    %4922 = vmatpush.bf16.msra.mxu0 %v3521
    %4923 = vmatpush.bf16.msra.mxu0 %v3513
    %4924 = vmatmul.bf16.gmra.mxu0 %v4746
    %v4925 = vpop.f32.mrf.mxu0
    %v4926 = vadd.f32 %v4913, %v4925
    %v4927 = vpop.f32.mrf.mxu0
    %4928 = vdwg.mxu0
    %4929 = vmatpush.bf16.msra.mxu0 %v3506
    %4930 = vmatpush.bf16.msra.mxu0 %v3498
    %4931 = vmatpush.bf16.msra.mxu0 %v3490
    %4932 = vmatpush.bf16.msra.mxu0 %v3482
    %4933 = vmatpush.bf16.msra.mxu0 %v3474
    %4934 = vmatpush.bf16.msra.mxu0 %v3466
    %4935 = vmatpush.bf16.msra.mxu0 %v3458
    %4936 = vmatpush.bf16.msra.mxu0 %v3450
    %4937 = vmatmul.bf16.gmra.mxu0 %v4745
    %v4938 = vpop.f32.mrf.mxu0
    %v4939 = vadd.f32 0.0, %v4938
    %v4940 = vpop.f32.mrf.mxu0
    %4941 = vdwg.mxu0
    %4942 = vmatpush.bf16.msra.mxu0 %v3570
    %4943 = vmatpush.bf16.msra.mxu0 %v3562
    %4944 = vmatpush.bf16.msra.mxu0 %v3554
    %4945 = vmatpush.bf16.msra.mxu0 %v3546
    %4946 = vmatpush.bf16.msra.mxu0 %v3538
    %4947 = vmatpush.bf16.msra.mxu0 %v3530
    %4948 = vmatpush.bf16.msra.mxu0 %v3522
    %4949 = vmatpush.bf16.msra.mxu0 %v3514
    %4950 = vmatmul.bf16.gmra.mxu0 %v4746
    %v4951 = vpop.f32.mrf.mxu0
    %v4952 = vadd.f32 %v4939, %v4951
    %v4953 = vpop.f32.mrf.mxu0
    %4954 = vdwg.mxu0
    %v4955 = vadd.f32 %v4737, %v4770
    %v4956 = vadd.f32 %v4738, %v4796
    %v4957 = vadd.f32 %v4739, %v4822
    %v4958 = vadd.f32 %v4740, %v4848
    %v4959 = vadd.f32 %v4741, %v4874
    %v4960 = vadd.f32 %v4742, %v4900
    %v4961 = vadd.f32 %v4743, %v4926
    %v4962 = vadd.f32 %v4744, %v4952
    %v4963 = vmul.f32 %v4955, 0.5
    %v4964 = vmul.f32 %v4956, 0.5
    %v4965 = vtanh.pop %v4963
    %v4966 = vtanh.pop %v4964
    %v4967 = vmul.f32 %v4965, 0.5
    %v4968 = vmul.f32 %v4966, 0.5
    %v4969 = vadd.f32 %v4967, 0.5
    %v4970 = vadd.f32 %v4968, 0.5
    %v4971 = vmul.f32 %v4957, 0.5
    %v4972 = vmul.f32 %v4958, 0.5
    %v4973 = vtanh.pop %v4971
    %v4974 = vtanh.pop %v4972
    %v4975 = vmul.f32 %v4973, 0.5
    %v4976 = vmul.f32 %v4974, 0.5
    %v4977 = vadd.f32 %v4975, 0.5
    %v4978 = vadd.f32 %v4976, 0.5
    %v4979 = vtanh.pop %v4959
    %v4980 = vtanh.pop %v4960
    %v4981 = vmul.f32 %v4961, 0.5
    %v4982 = vmul.f32 %v4962, 0.5
    %v4983 = vtanh.pop %v4981
    %v4984 = vtanh.pop %v4982
    %v4985 = vmul.f32 %v4983, 0.5
    %v4986 = vmul.f32 %v4984, 0.5
    %v4987 = vadd.f32 %v4985, 0.5
    %v4988 = vadd.f32 %v4986, 0.5
    %v4989 = vmul.f32 %v4977, %v4731
    %v4990 = vmul.f32 %v4978, %v4732
    %v4991 = vmul.f32 %v4969, %v4979
    %v4992 = vmul.f32 %v4970, %v4980
    %v4993 = vadd.f32 %v4989, %v4991
    %v4994 = vadd.f32 %v4990, %v4992
    %v4995 = vtanh.pop %v4993
    %v4996 = vtanh.pop %v4994
    %v4997 = vmul.f32 %v4987, %v4995
    %v4998 = vmul.f32 %v4988, %v4996
    %v4999 = vld [vmem:[#allocation2 + $0x140] sm:$0xff]
    %v5000 = vld [vmem:[#allocation2 + $0x148] sm:$0xff]
    %v5001 = vld [vmem:[#allocation2 + $0x150] sm:$0xff]
    %v5002 = vld [vmem:[#allocation2 + $0x158] sm:$0xff]
    %v5003 = vld [vmem:[#allocation2 + $0x160] sm:$0xff]
    %v5004 = vld [vmem:[#allocation2 + $0x168] sm:$0xff]
    %v5005 = vld [vmem:[#allocation2 + $0x170] sm:$0xff]
    %v5006 = vld [vmem:[#allocation2 + $0x178] sm:$0xff]
    %v5007 = vpack.c.bf16 %v4997, %v4997
    %v5008 = vpack.c.bf16 %v4998, %v4998
    %5009 = vmatpush.bf16.msra.mxu0 %v3499
    %5010 = vmatpush.bf16.msra.mxu0 %v3491
    %5011 = vmatpush.bf16.msra.mxu0 %v3483
    %5012 = vmatpush.bf16.msra.mxu0 %v3475
    %5013 = vmatpush.bf16.msra.mxu0 %v3467
    %5014 = vmatpush.bf16.msra.mxu0 %v3459
    %5015 = vmatpush.bf16.msra.mxu0 %v3451
    %5016 = vmatpush.bf16.msra.mxu0 %v3443
    %5017 = vmatmul.bf16.gmra.mxu0 %v5007
    %v5018 = vpop.f32.mrf.mxu0
    %v5019 = vadd.f32 0.0, %v5018
    %v5020 = vpop.f32.mrf.mxu0
    %5021 = vdwg.mxu0
    %5022 = vmatpush.bf16.msra.mxu0 %v3563
    %5023 = vmatpush.bf16.msra.mxu0 %v3555
    %5024 = vmatpush.bf16.msra.mxu0 %v3547
    %5025 = vmatpush.bf16.msra.mxu0 %v3539
    %5026 = vmatpush.bf16.msra.mxu0 %v3531
    %5027 = vmatpush.bf16.msra.mxu0 %v3523
    %5028 = vmatpush.bf16.msra.mxu0 %v3515
    %5029 = vmatpush.bf16.msra.mxu0 %v3507
    %5030 = vmatmul.bf16.gmra.mxu0 %v5008
    %v5031 = vpop.f32.mrf.mxu0
    %v5032 = vadd.f32 %v5019, %v5031
    %v5033 = vpop.f32.mrf.mxu0
    %5034 = vdwg.mxu0
    %5035 = vmatpush.bf16.msra.mxu0 %v3500
    %5036 = vmatpush.bf16.msra.mxu0 %v3492
    %5037 = vmatpush.bf16.msra.mxu0 %v3484
    %5038 = vmatpush.bf16.msra.mxu0 %v3476
    %5039 = vmatpush.bf16.msra.mxu0 %v3468
    %5040 = vmatpush.bf16.msra.mxu0 %v3460
    %5041 = vmatpush.bf16.msra.mxu0 %v3452
    %5042 = vmatpush.bf16.msra.mxu0 %v3444
    %5043 = vmatmul.bf16.gmra.mxu0 %v5007
    %v5044 = vpop.f32.mrf.mxu0
    %v5045 = vadd.f32 0.0, %v5044
    %v5046 = vpop.f32.mrf.mxu0
    %5047 = vdwg.mxu0
    %5048 = vmatpush.bf16.msra.mxu0 %v3564
    %5049 = vmatpush.bf16.msra.mxu0 %v3556
    %5050 = vmatpush.bf16.msra.mxu0 %v3548
    %5051 = vmatpush.bf16.msra.mxu0 %v3540
    %5052 = vmatpush.bf16.msra.mxu0 %v3532
    %5053 = vmatpush.bf16.msra.mxu0 %v3524
    %5054 = vmatpush.bf16.msra.mxu0 %v3516
    %5055 = vmatpush.bf16.msra.mxu0 %v3508
    %5056 = vmatmul.bf16.gmra.mxu0 %v5008
    %v5057 = vpop.f32.mrf.mxu0
    %v5058 = vadd.f32 %v5045, %v5057
    %v5059 = vpop.f32.mrf.mxu0
    %5060 = vdwg.mxu0
    %5061 = vmatpush.bf16.msra.mxu0 %v3501
    %5062 = vmatpush.bf16.msra.mxu0 %v3493
    %5063 = vmatpush.bf16.msra.mxu0 %v3485
    %5064 = vmatpush.bf16.msra.mxu0 %v3477
    %5065 = vmatpush.bf16.msra.mxu0 %v3469
    %5066 = vmatpush.bf16.msra.mxu0 %v3461
    %5067 = vmatpush.bf16.msra.mxu0 %v3453
    %5068 = vmatpush.bf16.msra.mxu0 %v3445
    %5069 = vmatmul.bf16.gmra.mxu0 %v5007
    %v5070 = vpop.f32.mrf.mxu0
    %v5071 = vadd.f32 0.0, %v5070
    %v5072 = vpop.f32.mrf.mxu0
    %5073 = vdwg.mxu0
    %5074 = vmatpush.bf16.msra.mxu0 %v3565
    %5075 = vmatpush.bf16.msra.mxu0 %v3557
    %5076 = vmatpush.bf16.msra.mxu0 %v3549
    %5077 = vmatpush.bf16.msra.mxu0 %v3541
    %5078 = vmatpush.bf16.msra.mxu0 %v3533
    %5079 = vmatpush.bf16.msra.mxu0 %v3525
    %5080 = vmatpush.bf16.msra.mxu0 %v3517
    %5081 = vmatpush.bf16.msra.mxu0 %v3509
    %5082 = vmatmul.bf16.gmra.mxu0 %v5008
    %v5083 = vpop.f32.mrf.mxu0
    %v5084 = vadd.f32 %v5071, %v5083
    %v5085 = vpop.f32.mrf.mxu0
    %5086 = vdwg.mxu0
    %5087 = vmatpush.bf16.msra.mxu0 %v3502
    %5088 = vmatpush.bf16.msra.mxu0 %v3494
    %5089 = vmatpush.bf16.msra.mxu0 %v3486
    %5090 = vmatpush.bf16.msra.mxu0 %v3478
    %5091 = vmatpush.bf16.msra.mxu0 %v3470
    %5092 = vmatpush.bf16.msra.mxu0 %v3462
    %5093 = vmatpush.bf16.msra.mxu0 %v3454
    %5094 = vmatpush.bf16.msra.mxu0 %v3446
    %5095 = vmatmul.bf16.gmra.mxu0 %v5007
    %v5096 = vpop.f32.mrf.mxu0
    %v5097 = vadd.f32 0.0, %v5096
    %v5098 = vpop.f32.mrf.mxu0
    %5099 = vdwg.mxu0
    %5100 = vmatpush.bf16.msra.mxu0 %v3566
    %5101 = vmatpush.bf16.msra.mxu0 %v3558
    %5102 = vmatpush.bf16.msra.mxu0 %v3550
    %5103 = vmatpush.bf16.msra.mxu0 %v3542
    %5104 = vmatpush.bf16.msra.mxu0 %v3534
    %5105 = vmatpush.bf16.msra.mxu0 %v3526
    %5106 = vmatpush.bf16.msra.mxu0 %v3518
    %5107 = vmatpush.bf16.msra.mxu0 %v3510
    %5108 = vmatmul.bf16.gmra.mxu0 %v5008
    %v5109 = vpop.f32.mrf.mxu0
    %v5110 = vadd.f32 %v5097, %v5109
    %v5111 = vpop.f32.mrf.mxu0
    %5112 = vdwg.mxu0
    %5113 = vmatpush.bf16.msra.mxu0 %v3503
    %5114 = vmatpush.bf16.msra.mxu0 %v3495
    %5115 = vmatpush.bf16.msra.mxu0 %v3487
    %5116 = vmatpush.bf16.msra.mxu0 %v3479
    %5117 = vmatpush.bf16.msra.mxu0 %v3471
    %5118 = vmatpush.bf16.msra.mxu0 %v3463
    %5119 = vmatpush.bf16.msra.mxu0 %v3455
    %5120 = vmatpush.bf16.msra.mxu0 %v3447
    %5121 = vmatmul.bf16.gmra.mxu0 %v5007
    %v5122 = vpop.f32.mrf.mxu0
    %v5123 = vadd.f32 0.0, %v5122
    %v5124 = vpop.f32.mrf.mxu0
    %5125 = vdwg.mxu0
    %5126 = vmatpush.bf16.msra.mxu0 %v3567
    %5127 = vmatpush.bf16.msra.mxu0 %v3559
    %5128 = vmatpush.bf16.msra.mxu0 %v3551
    %5129 = vmatpush.bf16.msra.mxu0 %v3543
    %5130 = vmatpush.bf16.msra.mxu0 %v3535
    %5131 = vmatpush.bf16.msra.mxu0 %v3527
    %5132 = vmatpush.bf16.msra.mxu0 %v3519
    %5133 = vmatpush.bf16.msra.mxu0 %v3511
    %5134 = vmatmul.bf16.gmra.mxu0 %v5008
    %v5135 = vpop.f32.mrf.mxu0
    %v5136 = vadd.f32 %v5123, %v5135
    %v5137 = vpop.f32.mrf.mxu0
    %5138 = vdwg.mxu0
    %5139 = vmatpush.bf16.msra.mxu0 %v3504
    %5140 = vmatpush.bf16.msra.mxu0 %v3496
    %5141 = vmatpush.bf16.msra.mxu0 %v3488
    %5142 = vmatpush.bf16.msra.mxu0 %v3480
    %5143 = vmatpush.bf16.msra.mxu0 %v3472
    %5144 = vmatpush.bf16.msra.mxu0 %v3464
    %5145 = vmatpush.bf16.msra.mxu0 %v3456
    %5146 = vmatpush.bf16.msra.mxu0 %v3448
    %5147 = vmatmul.bf16.gmra.mxu0 %v5007
    %v5148 = vpop.f32.mrf.mxu0
    %v5149 = vadd.f32 0.0, %v5148
    %v5150 = vpop.f32.mrf.mxu0
    %5151 = vdwg.mxu0
    %5152 = vmatpush.bf16.msra.mxu0 %v3568
    %5153 = vmatpush.bf16.msra.mxu0 %v3560
    %5154 = vmatpush.bf16.msra.mxu0 %v3552
    %5155 = vmatpush.bf16.msra.mxu0 %v3544
    %5156 = vmatpush.bf16.msra.mxu0 %v3536
    %5157 = vmatpush.bf16.msra.mxu0 %v3528
    %5158 = vmatpush.bf16.msra.mxu0 %v3520
    %5159 = vmatpush.bf16.msra.mxu0 %v3512
    %5160 = vmatmul.bf16.gmra.mxu0 %v5008
    %v5161 = vpop.f32.mrf.mxu0
    %v5162 = vadd.f32 %v5149, %v5161
    %v5163 = vpop.f32.mrf.mxu0
    %5164 = vdwg.mxu0
    %5165 = vmatpush.bf16.msra.mxu0 %v3505
    %5166 = vmatpush.bf16.msra.mxu0 %v3497
    %5167 = vmatpush.bf16.msra.mxu0 %v3489
    %5168 = vmatpush.bf16.msra.mxu0 %v3481
    %5169 = vmatpush.bf16.msra.mxu0 %v3473
    %5170 = vmatpush.bf16.msra.mxu0 %v3465
    %5171 = vmatpush.bf16.msra.mxu0 %v3457
    %5172 = vmatpush.bf16.msra.mxu0 %v3449
    %5173 = vmatmul.bf16.gmra.mxu0 %v5007
    %v5174 = vpop.f32.mrf.mxu0
    %v5175 = vadd.f32 0.0, %v5174
    %v5176 = vpop.f32.mrf.mxu0
    %5177 = vdwg.mxu0
    %5178 = vmatpush.bf16.msra.mxu0 %v3569
    %5179 = vmatpush.bf16.msra.mxu0 %v3561
    %5180 = vmatpush.bf16.msra.mxu0 %v3553
    %5181 = vmatpush.bf16.msra.mxu0 %v3545
    %5182 = vmatpush.bf16.msra.mxu0 %v3537
    %5183 = vmatpush.bf16.msra.mxu0 %v3529
    %5184 = vmatpush.bf16.msra.mxu0 %v3521
    %5185 = vmatpush.bf16.msra.mxu0 %v3513
    %5186 = vmatmul.bf16.gmra.mxu0 %v5008
    %v5187 = vpop.f32.mrf.mxu0
    %v5188 = vadd.f32 %v5175, %v5187
    %v5189 = vpop.f32.mrf.mxu0
    %5190 = vdwg.mxu0
    %5191 = vmatpush.bf16.msra.mxu0 %v3506
    %5192 = vmatpush.bf16.msra.mxu0 %v3498
    %5193 = vmatpush.bf16.msra.mxu0 %v3490
    %5194 = vmatpush.bf16.msra.mxu0 %v3482
    %5195 = vmatpush.bf16.msra.mxu0 %v3474
    %5196 = vmatpush.bf16.msra.mxu0 %v3466
    %5197 = vmatpush.bf16.msra.mxu0 %v3458
    %5198 = vmatpush.bf16.msra.mxu0 %v3450
    %5199 = vmatmul.bf16.gmra.mxu0 %v5007
    %v5200 = vpop.f32.mrf.mxu0
    %v5201 = vadd.f32 0.0, %v5200
    %v5202 = vpop.f32.mrf.mxu0
    %5203 = vdwg.mxu0
    %5204 = vmatpush.bf16.msra.mxu0 %v3570
    %5205 = vmatpush.bf16.msra.mxu0 %v3562
    %5206 = vmatpush.bf16.msra.mxu0 %v3554
    %5207 = vmatpush.bf16.msra.mxu0 %v3546
    %5208 = vmatpush.bf16.msra.mxu0 %v3538
    %5209 = vmatpush.bf16.msra.mxu0 %v3530
    %5210 = vmatpush.bf16.msra.mxu0 %v3522
    %5211 = vmatpush.bf16.msra.mxu0 %v3514
    %5212 = vmatmul.bf16.gmra.mxu0 %v5008
    %v5213 = vpop.f32.mrf.mxu0
    %v5214 = vadd.f32 %v5201, %v5213
    %v5215 = vpop.f32.mrf.mxu0
    %5216 = vdwg.mxu0
    %v5217 = vadd.f32 %v4999, %v5032
    %v5218 = vadd.f32 %v5000, %v5058
    %v5219 = vadd.f32 %v5001, %v5084
    %v5220 = vadd.f32 %v5002, %v5110
    %v5221 = vadd.f32 %v5003, %v5136
    %v5222 = vadd.f32 %v5004, %v5162
    %v5223 = vadd.f32 %v5005, %v5188
    %v5224 = vadd.f32 %v5006, %v5214
    %v5225 = vmul.f32 %v5217, 0.5
    %v5226 = vmul.f32 %v5218, 0.5
    %v5227 = vtanh.pop %v5225
    %v5228 = vtanh.pop %v5226
    %v5229 = vmul.f32 %v5227, 0.5
    %v5230 = vmul.f32 %v5228, 0.5
    %v5231 = vadd.f32 %v5229, 0.5
    %v5232 = vadd.f32 %v5230, 0.5
    %v5233 = vmul.f32 %v5219, 0.5
    %v5234 = vmul.f32 %v5220, 0.5
    %v5235 = vtanh.pop %v5233
    %v5236 = vtanh.pop %v5234
    %v5237 = vmul.f32 %v5235, 0.5
    %v5238 = vmul.f32 %v5236, 0.5
    %v5239 = vadd.f32 %v5237, 0.5
    %v5240 = vadd.f32 %v5238, 0.5
    %v5241 = vtanh.pop %v5221
    %v5242 = vtanh.pop %v5222
    %v5243 = vmul.f32 %v5223, 0.5
    %v5244 = vmul.f32 %v5224, 0.5
    %v5245 = vtanh.pop %v5243
    %v5246 = vtanh.pop %v5244
    %v5247 = vmul.f32 %v5245, 0.5
    %v5248 = vmul.f32 %v5246, 0.5
    %v5249 = vadd.f32 %v5247, 0.5
    %v5250 = vadd.f32 %v5248, 0.5
    %v5251 = vmul.f32 %v5239, %v4993
    %v5252 = vmul.f32 %v5240, %v4994
    %v5253 = vmul.f32 %v5231, %v5241
    %v5254 = vmul.f32 %v5232, %v5242
    %v5255 = vadd.f32 %v5251, %v5253
    %v5256 = vadd.f32 %v5252, %v5254
    %v5257 = vtanh.pop %v5255
    %v5258 = vtanh.pop %v5256
    %v5259 = vmul.f32 %v5249, %v5257
    %v5260 = vmul.f32 %v5250, %v5258
    %v5261 = vld [vmem:[#allocation2 + $0x180] sm:$0xff]
    %v5262 = vld [vmem:[#allocation2 + $0x188] sm:$0xff]
    %v5263 = vld [vmem:[#allocation2 + $0x190] sm:$0xff]
    %v5264 = vld [vmem:[#allocation2 + $0x198] sm:$0xff]
    %v5265 = vld [vmem:[#allocation2 + $0x1a0] sm:$0xff]
    %v5266 = vld [vmem:[#allocation2 + $0x1a8] sm:$0xff]
    %v5267 = vld [vmem:[#allocation2 + $0x1b0] sm:$0xff]
    %v5268 = vld [vmem:[#allocation2 + $0x1b8] sm:$0xff]
    %v5269 = vpack.c.bf16 %v5259, %v5259
    %v5270 = vpack.c.bf16 %v5260, %v5260
    %5271 = vmatpush.bf16.msra.mxu0 %v3499
    %5272 = vmatpush.bf16.msra.mxu0 %v3491
    %5273 = vmatpush.bf16.msra.mxu0 %v3483
    %5274 = vmatpush.bf16.msra.mxu0 %v3475
    %5275 = vmatpush.bf16.msra.mxu0 %v3467
    %5276 = vmatpush.bf16.msra.mxu0 %v3459
    %5277 = vmatpush.bf16.msra.mxu0 %v3451
    %5278 = vmatpush.bf16.msra.mxu0 %v3443
    %5279 = vmatmul.bf16.gmra.mxu0 %v5269
    %v5280 = vpop.f32.mrf.mxu0
    %v5281 = vadd.f32 0.0, %v5280
    %v5282 = vpop.f32.mrf.mxu0
    %5283 = vdwg.mxu0
    %5284 = vmatpush.bf16.msra.mxu0 %v3563
    %5285 = vmatpush.bf16.msra.mxu0 %v3555
    %5286 = vmatpush.bf16.msra.mxu0 %v3547
    %5287 = vmatpush.bf16.msra.mxu0 %v3539
    %5288 = vmatpush.bf16.msra.mxu0 %v3531
    %5289 = vmatpush.bf16.msra.mxu0 %v3523
    %5290 = vmatpush.bf16.msra.mxu0 %v3515
    %5291 = vmatpush.bf16.msra.mxu0 %v3507
    %5292 = vmatmul.bf16.gmra.mxu0 %v5270
    %v5293 = vpop.f32.mrf.mxu0
    %v5294 = vadd.f32 %v5281, %v5293
    %v5295 = vpop.f32.mrf.mxu0
    %5296 = vdwg.mxu0
    %5297 = vmatpush.bf16.msra.mxu0 %v3500
    %5298 = vmatpush.bf16.msra.mxu0 %v3492
    %5299 = vmatpush.bf16.msra.mxu0 %v3484
    %5300 = vmatpush.bf16.msra.mxu0 %v3476
    %5301 = vmatpush.bf16.msra.mxu0 %v3468
    %5302 = vmatpush.bf16.msra.mxu0 %v3460
    %5303 = vmatpush.bf16.msra.mxu0 %v3452
    %5304 = vmatpush.bf16.msra.mxu0 %v3444
    %5305 = vmatmul.bf16.gmra.mxu0 %v5269
    %v5306 = vpop.f32.mrf.mxu0
    %v5307 = vadd.f32 0.0, %v5306
    %v5308 = vpop.f32.mrf.mxu0
    %5309 = vdwg.mxu0
    %5310 = vmatpush.bf16.msra.mxu0 %v3564
    %5311 = vmatpush.bf16.msra.mxu0 %v3556
    %5312 = vmatpush.bf16.msra.mxu0 %v3548
    %5313 = vmatpush.bf16.msra.mxu0 %v3540
    %5314 = vmatpush.bf16.msra.mxu0 %v3532
    %5315 = vmatpush.bf16.msra.mxu0 %v3524
    %5316 = vmatpush.bf16.msra.mxu0 %v3516
    %5317 = vmatpush.bf16.msra.mxu0 %v3508
    %5318 = vmatmul.bf16.gmra.mxu0 %v5270
    %v5319 = vpop.f32.mrf.mxu0
    %v5320 = vadd.f32 %v5307, %v5319
    %v5321 = vpop.f32.mrf.mxu0
    %5322 = vdwg.mxu0
    %5323 = vmatpush.bf16.msra.mxu0 %v3501
    %5324 = vmatpush.bf16.msra.mxu0 %v3493
    %5325 = vmatpush.bf16.msra.mxu0 %v3485
    %5326 = vmatpush.bf16.msra.mxu0 %v3477
    %5327 = vmatpush.bf16.msra.mxu0 %v3469
    %5328 = vmatpush.bf16.msra.mxu0 %v3461
    %5329 = vmatpush.bf16.msra.mxu0 %v3453
    %5330 = vmatpush.bf16.msra.mxu0 %v3445
    %5331 = vmatmul.bf16.gmra.mxu0 %v5269
    %v5332 = vpop.f32.mrf.mxu0
    %v5333 = vadd.f32 0.0, %v5332
    %v5334 = vpop.f32.mrf.mxu0
    %5335 = vdwg.mxu0
    %5336 = vmatpush.bf16.msra.mxu0 %v3565
    %5337 = vmatpush.bf16.msra.mxu0 %v3557
    %5338 = vmatpush.bf16.msra.mxu0 %v3549
    %5339 = vmatpush.bf16.msra.mxu0 %v3541
    %5340 = vmatpush.bf16.msra.mxu0 %v3533
    %5341 = vmatpush.bf16.msra.mxu0 %v3525
    %5342 = vmatpush.bf16.msra.mxu0 %v3517
    %5343 = vmatpush.bf16.msra.mxu0 %v3509
    %5344 = vmatmul.bf16.gmra.mxu0 %v5270
    %v5345 = vpop.f32.mrf.mxu0
    %v5346 = vadd.f32 %v5333, %v5345
    %v5347 = vpop.f32.mrf.mxu0
    %5348 = vdwg.mxu0
    %5349 = vmatpush.bf16.msra.mxu0 %v3502
    %5350 = vmatpush.bf16.msra.mxu0 %v3494
    %5351 = vmatpush.bf16.msra.mxu0 %v3486
    %5352 = vmatpush.bf16.msra.mxu0 %v3478
    %5353 = vmatpush.bf16.msra.mxu0 %v3470
    %5354 = vmatpush.bf16.msra.mxu0 %v3462
    %5355 = vmatpush.bf16.msra.mxu0 %v3454
    %5356 = vmatpush.bf16.msra.mxu0 %v3446
    %5357 = vmatmul.bf16.gmra.mxu0 %v5269
    %v5358 = vpop.f32.mrf.mxu0
    %v5359 = vadd.f32 0.0, %v5358
    %v5360 = vpop.f32.mrf.mxu0
    %5361 = vdwg.mxu0
    %5362 = vmatpush.bf16.msra.mxu0 %v3566
    %5363 = vmatpush.bf16.msra.mxu0 %v3558
    %5364 = vmatpush.bf16.msra.mxu0 %v3550
    %5365 = vmatpush.bf16.msra.mxu0 %v3542
    %5366 = vmatpush.bf16.msra.mxu0 %v3534
    %5367 = vmatpush.bf16.msra.mxu0 %v3526
    %5368 = vmatpush.bf16.msra.mxu0 %v3518
    %5369 = vmatpush.bf16.msra.mxu0 %v3510
    %5370 = vmatmul.bf16.gmra.mxu0 %v5270
    %v5371 = vpop.f32.mrf.mxu0
    %v5372 = vadd.f32 %v5359, %v5371
    %v5373 = vpop.f32.mrf.mxu0
    %5374 = vdwg.mxu0
    %5375 = vmatpush.bf16.msra.mxu0 %v3503
    %5376 = vmatpush.bf16.msra.mxu0 %v3495
    %5377 = vmatpush.bf16.msra.mxu0 %v3487
    %5378 = vmatpush.bf16.msra.mxu0 %v3479
    %5379 = vmatpush.bf16.msra.mxu0 %v3471
    %5380 = vmatpush.bf16.msra.mxu0 %v3463
    %5381 = vmatpush.bf16.msra.mxu0 %v3455
    %5382 = vmatpush.bf16.msra.mxu0 %v3447
    %5383 = vmatmul.bf16.gmra.mxu0 %v5269
    %v5384 = vpop.f32.mrf.mxu0
    %v5385 = vadd.f32 0.0, %v5384
    %v5386 = vpop.f32.mrf.mxu0
    %5387 = vdwg.mxu0
    %5388 = vmatpush.bf16.msra.mxu0 %v3567
    %5389 = vmatpush.bf16.msra.mxu0 %v3559
    %5390 = vmatpush.bf16.msra.mxu0 %v3551
    %5391 = vmatpush.bf16.msra.mxu0 %v3543
    %5392 = vmatpush.bf16.msra.mxu0 %v3535
    %5393 = vmatpush.bf16.msra.mxu0 %v3527
    %5394 = vmatpush.bf16.msra.mxu0 %v3519
    %5395 = vmatpush.bf16.msra.mxu0 %v3511
    %5396 = vmatmul.bf16.gmra.mxu0 %v5270
    %v5397 = vpop.f32.mrf.mxu0
    %v5398 = vadd.f32 %v5385, %v5397
    %v5399 = vpop.f32.mrf.mxu0
    %5400 = vdwg.mxu0
    %5401 = vmatpush.bf16.msra.mxu0 %v3504
    %5402 = vmatpush.bf16.msra.mxu0 %v3496
    %5403 = vmatpush.bf16.msra.mxu0 %v3488
    %5404 = vmatpush.bf16.msra.mxu0 %v3480
    %5405 = vmatpush.bf16.msra.mxu0 %v3472
    %5406 = vmatpush.bf16.msra.mxu0 %v3464
    %5407 = vmatpush.bf16.msra.mxu0 %v3456
    %5408 = vmatpush.bf16.msra.mxu0 %v3448
    %5409 = vmatmul.bf16.gmra.mxu0 %v5269
    %v5410 = vpop.f32.mrf.mxu0
    %v5411 = vadd.f32 0.0, %v5410
    %v5412 = vpop.f32.mrf.mxu0
    %5413 = vdwg.mxu0
    %5414 = vmatpush.bf16.msra.mxu0 %v3568
    %5415 = vmatpush.bf16.msra.mxu0 %v3560
    %5416 = vmatpush.bf16.msra.mxu0 %v3552
    %5417 = vmatpush.bf16.msra.mxu0 %v3544
    %5418 = vmatpush.bf16.msra.mxu0 %v3536
    %5419 = vmatpush.bf16.msra.mxu0 %v3528
    %5420 = vmatpush.bf16.msra.mxu0 %v3520
    %5421 = vmatpush.bf16.msra.mxu0 %v3512
    %5422 = vmatmul.bf16.gmra.mxu0 %v5270
    %v5423 = vpop.f32.mrf.mxu0
    %v5424 = vadd.f32 %v5411, %v5423
    %v5425 = vpop.f32.mrf.mxu0
    %5426 = vdwg.mxu0
    %5427 = vmatpush.bf16.msra.mxu0 %v3505
    %5428 = vmatpush.bf16.msra.mxu0 %v3497
    %5429 = vmatpush.bf16.msra.mxu0 %v3489
    %5430 = vmatpush.bf16.msra.mxu0 %v3481
    %5431 = vmatpush.bf16.msra.mxu0 %v3473
    %5432 = vmatpush.bf16.msra.mxu0 %v3465
    %5433 = vmatpush.bf16.msra.mxu0 %v3457
    %5434 = vmatpush.bf16.msra.mxu0 %v3449
    %5435 = vmatmul.bf16.gmra.mxu0 %v5269
    %v5436 = vpop.f32.mrf.mxu0
    %v5437 = vadd.f32 0.0, %v5436
    %v5438 = vpop.f32.mrf.mxu0
    %5439 = vdwg.mxu0
    %5440 = vmatpush.bf16.msra.mxu0 %v3569
    %5441 = vmatpush.bf16.msra.mxu0 %v3561
    %5442 = vmatpush.bf16.msra.mxu0 %v3553
    %5443 = vmatpush.bf16.msra.mxu0 %v3545
    %5444 = vmatpush.bf16.msra.mxu0 %v3537
    %5445 = vmatpush.bf16.msra.mxu0 %v3529
    %5446 = vmatpush.bf16.msra.mxu0 %v3521
    %5447 = vmatpush.bf16.msra.mxu0 %v3513
    %5448 = vmatmul.bf16.gmra.mxu0 %v5270
    %v5449 = vpop.f32.mrf.mxu0
    %v5450 = vadd.f32 %v5437, %v5449
    %v5451 = vpop.f32.mrf.mxu0
    %5452 = vdwg.mxu0
    %5453 = vmatpush.bf16.msra.mxu0 %v3506
    %5454 = vmatpush.bf16.msra.mxu0 %v3498
    %5455 = vmatpush.bf16.msra.mxu0 %v3490
    %5456 = vmatpush.bf16.msra.mxu0 %v3482
    %5457 = vmatpush.bf16.msra.mxu0 %v3474
    %5458 = vmatpush.bf16.msra.mxu0 %v3466
    %5459 = vmatpush.bf16.msra.mxu0 %v3458
    %5460 = vmatpush.bf16.msra.mxu0 %v3450
    %5461 = vmatmul.bf16.gmra.mxu0 %v5269
    %v5462 = vpop.f32.mrf.mxu0
    %v5463 = vadd.f32 0.0, %v5462
    %v5464 = vpop.f32.mrf.mxu0
    %5465 = vdwg.mxu0
    %5466 = vmatpush.bf16.msra.mxu0 %v3570
    %5467 = vmatpush.bf16.msra.mxu0 %v3562
    %5468 = vmatpush.bf16.msra.mxu0 %v3554
    %5469 = vmatpush.bf16.msra.mxu0 %v3546
    %5470 = vmatpush.bf16.msra.mxu0 %v3538
    %5471 = vmatpush.bf16.msra.mxu0 %v3530
    %5472 = vmatpush.bf16.msra.mxu0 %v3522
    %5473 = vmatpush.bf16.msra.mxu0 %v3514
    %5474 = vmatmul.bf16.gmra.mxu0 %v5270
    %v5475 = vpop.f32.mrf.mxu0
    %v5476 = vadd.f32 %v5463, %v5475
    %v5477 = vpop.f32.mrf.mxu0
    %5478 = vdwg.mxu0
    %v5479 = vadd.f32 %v5261, %v5294
    %v5480 = vadd.f32 %v5262, %v5320
    %v5481 = vadd.f32 %v5263, %v5346
    %v5482 = vadd.f32 %v5264, %v5372
    %v5483 = vadd.f32 %v5265, %v5398
    %v5484 = vadd.f32 %v5266, %v5424
    %v5485 = vadd.f32 %v5267, %v5450
    %v5486 = vadd.f32 %v5268, %v5476
    %v5487 = vmul.f32 %v5479, 0.5
    %v5488 = vmul.f32 %v5480, 0.5
    %v5489 = vtanh.pop %v5487
    %v5490 = vtanh.pop %v5488
    %v5491 = vmul.f32 %v5489, 0.5
    %v5492 = vmul.f32 %v5490, 0.5
    %v5493 = vadd.f32 %v5491, 0.5
    %v5494 = vadd.f32 %v5492, 0.5
    %v5495 = vmul.f32 %v5481, 0.5
    %v5496 = vmul.f32 %v5482, 0.5
    %v5497 = vtanh.pop %v5495
    %v5498 = vtanh.pop %v5496
    %v5499 = vmul.f32 %v5497, 0.5
    %v5500 = vmul.f32 %v5498, 0.5
    %v5501 = vadd.f32 %v5499, 0.5
    %v5502 = vadd.f32 %v5500, 0.5
    %v5503 = vtanh.pop %v5483
    %v5504 = vtanh.pop %v5484
    %v5505 = vmul.f32 %v5485, 0.5
    %v5506 = vmul.f32 %v5486, 0.5
    %v5507 = vtanh.pop %v5505
    %v5508 = vtanh.pop %v5506
    %v5509 = vmul.f32 %v5507, 0.5
    %v5510 = vmul.f32 %v5508, 0.5
    %v5511 = vadd.f32 %v5509, 0.5
    %v5512 = vadd.f32 %v5510, 0.5
    %v5513 = vmul.f32 %v5501, %v5255
    %v5514 = vmul.f32 %v5502, %v5256
    %v5515 = vmul.f32 %v5493, %v5503
    %v5516 = vmul.f32 %v5494, %v5504
    %v5517 = vadd.f32 %v5513, %v5515
    %v5518 = vadd.f32 %v5514, %v5516
    %v5519 = vtanh.pop %v5517
    %v5520 = vtanh.pop %v5518
    %v5521 = vmul.f32 %v5511, %v5519
    %v5522 = vmul.f32 %v5512, %v5520
    %v5523 = vld [vmem:[#allocation2 + $0x1c0] sm:$0xff]
    %v5524 = vld [vmem:[#allocation2 + $0x1c8] sm:$0xff]
    %v5525 = vld [vmem:[#allocation2 + $0x1d0] sm:$0xff]
    %v5526 = vld [vmem:[#allocation2 + $0x1d8] sm:$0xff]
    %v5527 = vld [vmem:[#allocation2 + $0x1e0] sm:$0xff]
    %v5528 = vld [vmem:[#allocation2 + $0x1e8] sm:$0xff]
    %v5529 = vld [vmem:[#allocation2 + $0x1f0] sm:$0xff]
    %v5530 = vld [vmem:[#allocation2 + $0x1f8] sm:$0xff]
    %v5531 = vpack.c.bf16 %v5521, %v5521
    %v5532 = vpack.c.bf16 %v5522, %v5522
    %5533 = vmatpush.bf16.msra.mxu0 %v3499
    %5534 = vmatpush.bf16.msra.mxu0 %v3491
    %5535 = vmatpush.bf16.msra.mxu0 %v3483
    %5536 = vmatpush.bf16.msra.mxu0 %v3475
    %5537 = vmatpush.bf16.msra.mxu0 %v3467
    %5538 = vmatpush.bf16.msra.mxu0 %v3459
    %5539 = vmatpush.bf16.msra.mxu0 %v3451
    %5540 = vmatpush.bf16.msra.mxu0 %v3443
    %5541 = vmatmul.bf16.gmra.mxu0 %v5531
    %v5542 = vpop.f32.mrf.mxu0
    %v5543 = vadd.f32 0.0, %v5542
    %v5544 = vpop.f32.mrf.mxu0
    %5545 = vdwg.mxu0
    %5546 = vmatpush.bf16.msra.mxu0 %v3563
    %5547 = vmatpush.bf16.msra.mxu0 %v3555
    %5548 = vmatpush.bf16.msra.mxu0 %v3547
    %5549 = vmatpush.bf16.msra.mxu0 %v3539
    %5550 = vmatpush.bf16.msra.mxu0 %v3531
    %5551 = vmatpush.bf16.msra.mxu0 %v3523
    %5552 = vmatpush.bf16.msra.mxu0 %v3515
    %5553 = vmatpush.bf16.msra.mxu0 %v3507
    %5554 = vmatmul.bf16.gmra.mxu0 %v5532
    %v5555 = vpop.f32.mrf.mxu0
    %v5556 = vadd.f32 %v5543, %v5555
    %v5557 = vpop.f32.mrf.mxu0
    %5558 = vdwg.mxu0
    %5559 = vmatpush.bf16.msra.mxu0 %v3500
    %5560 = vmatpush.bf16.msra.mxu0 %v3492
    %5561 = vmatpush.bf16.msra.mxu0 %v3484
    %5562 = vmatpush.bf16.msra.mxu0 %v3476
    %5563 = vmatpush.bf16.msra.mxu0 %v3468
    %5564 = vmatpush.bf16.msra.mxu0 %v3460
    %5565 = vmatpush.bf16.msra.mxu0 %v3452
    %5566 = vmatpush.bf16.msra.mxu0 %v3444
    %5567 = vmatmul.bf16.gmra.mxu0 %v5531
    %v5568 = vpop.f32.mrf.mxu0
    %v5569 = vadd.f32 0.0, %v5568
    %v5570 = vpop.f32.mrf.mxu0
    %5571 = vdwg.mxu0
    %5572 = vmatpush.bf16.msra.mxu0 %v3564
    %5573 = vmatpush.bf16.msra.mxu0 %v3556
    %5574 = vmatpush.bf16.msra.mxu0 %v3548
    %5575 = vmatpush.bf16.msra.mxu0 %v3540
    %5576 = vmatpush.bf16.msra.mxu0 %v3532
    %5577 = vmatpush.bf16.msra.mxu0 %v3524
    %5578 = vmatpush.bf16.msra.mxu0 %v3516
    %5579 = vmatpush.bf16.msra.mxu0 %v3508
    %5580 = vmatmul.bf16.gmra.mxu0 %v5532
    %v5581 = vpop.f32.mrf.mxu0
    %v5582 = vadd.f32 %v5569, %v5581
    %v5583 = vpop.f32.mrf.mxu0
    %5584 = vdwg.mxu0
    %5585 = vmatpush.bf16.msra.mxu0 %v3501
    %5586 = vmatpush.bf16.msra.mxu0 %v3493
    %5587 = vmatpush.bf16.msra.mxu0 %v3485
    %5588 = vmatpush.bf16.msra.mxu0 %v3477
    %5589 = vmatpush.bf16.msra.mxu0 %v3469
    %5590 = vmatpush.bf16.msra.mxu0 %v3461
    %5591 = vmatpush.bf16.msra.mxu0 %v3453
    %5592 = vmatpush.bf16.msra.mxu0 %v3445
    %5593 = vmatmul.bf16.gmra.mxu0 %v5531
    %v5594 = vpop.f32.mrf.mxu0
    %v5595 = vadd.f32 0.0, %v5594
    %v5596 = vpop.f32.mrf.mxu0
    %5597 = vdwg.mxu0
    %5598 = vmatpush.bf16.msra.mxu0 %v3565
    %5599 = vmatpush.bf16.msra.mxu0 %v3557
    %5600 = vmatpush.bf16.msra.mxu0 %v3549
    %5601 = vmatpush.bf16.msra.mxu0 %v3541
    %5602 = vmatpush.bf16.msra.mxu0 %v3533
    %5603 = vmatpush.bf16.msra.mxu0 %v3525
    %5604 = vmatpush.bf16.msra.mxu0 %v3517
    %5605 = vmatpush.bf16.msra.mxu0 %v3509
    %5606 = vmatmul.bf16.gmra.mxu0 %v5532
    %v5607 = vpop.f32.mrf.mxu0
    %v5608 = vadd.f32 %v5595, %v5607
    %v5609 = vpop.f32.mrf.mxu0
    %5610 = vdwg.mxu0
    %5611 = vmatpush.bf16.msra.mxu0 %v3502
    %5612 = vmatpush.bf16.msra.mxu0 %v3494
    %5613 = vmatpush.bf16.msra.mxu0 %v3486
    %5614 = vmatpush.bf16.msra.mxu0 %v3478
    %5615 = vmatpush.bf16.msra.mxu0 %v3470
    %5616 = vmatpush.bf16.msra.mxu0 %v3462
    %5617 = vmatpush.bf16.msra.mxu0 %v3454
    %5618 = vmatpush.bf16.msra.mxu0 %v3446
    %5619 = vmatmul.bf16.gmra.mxu0 %v5531
    %v5620 = vpop.f32.mrf.mxu0
    %v5621 = vadd.f32 0.0, %v5620
    %v5622 = vpop.f32.mrf.mxu0
    %5623 = vdwg.mxu0
    %5624 = vmatpush.bf16.msra.mxu0 %v3566
    %5625 = vmatpush.bf16.msra.mxu0 %v3558
    %5626 = vmatpush.bf16.msra.mxu0 %v3550
    %5627 = vmatpush.bf16.msra.mxu0 %v3542
    %5628 = vmatpush.bf16.msra.mxu0 %v3534
    %5629 = vmatpush.bf16.msra.mxu0 %v3526
    %5630 = vmatpush.bf16.msra.mxu0 %v3518
    %5631 = vmatpush.bf16.msra.mxu0 %v3510
    %5632 = vmatmul.bf16.gmra.mxu0 %v5532
    %v5633 = vpop.f32.mrf.mxu0
    %v5634 = vadd.f32 %v5621, %v5633
    %v5635 = vpop.f32.mrf.mxu0
    %5636 = vdwg.mxu0
    %5637 = vmatpush.bf16.msra.mxu0 %v3503
    %5638 = vmatpush.bf16.msra.mxu0 %v3495
    %5639 = vmatpush.bf16.msra.mxu0 %v3487
    %5640 = vmatpush.bf16.msra.mxu0 %v3479
    %5641 = vmatpush.bf16.msra.mxu0 %v3471
    %5642 = vmatpush.bf16.msra.mxu0 %v3463
    %5643 = vmatpush.bf16.msra.mxu0 %v3455
    %5644 = vmatpush.bf16.msra.mxu0 %v3447
    %5645 = vmatmul.bf16.gmra.mxu0 %v5531
    %v5646 = vpop.f32.mrf.mxu0
    %v5647 = vadd.f32 0.0, %v5646
    %v5648 = vpop.f32.mrf.mxu0
    %5649 = vdwg.mxu0
    %5650 = vmatpush.bf16.msra.mxu0 %v3567
    %5651 = vmatpush.bf16.msra.mxu0 %v3559
    %5652 = vmatpush.bf16.msra.mxu0 %v3551
    %5653 = vmatpush.bf16.msra.mxu0 %v3543
    %5654 = vmatpush.bf16.msra.mxu0 %v3535
    %5655 = vmatpush.bf16.msra.mxu0 %v3527
    %5656 = vmatpush.bf16.msra.mxu0 %v3519
    %5657 = vmatpush.bf16.msra.mxu0 %v3511
    %5658 = vmatmul.bf16.gmra.mxu0 %v5532
    %v5659 = vpop.f32.mrf.mxu0
    %v5660 = vadd.f32 %v5647, %v5659
    %v5661 = vpop.f32.mrf.mxu0
    %5662 = vdwg.mxu0
    %5663 = vmatpush.bf16.msra.mxu0 %v3504
    %5664 = vmatpush.bf16.msra.mxu0 %v3496
    %5665 = vmatpush.bf16.msra.mxu0 %v3488
    %5666 = vmatpush.bf16.msra.mxu0 %v3480
    %5667 = vmatpush.bf16.msra.mxu0 %v3472
    %5668 = vmatpush.bf16.msra.mxu0 %v3464
    %5669 = vmatpush.bf16.msra.mxu0 %v3456
    %5670 = vmatpush.bf16.msra.mxu0 %v3448
    %5671 = vmatmul.bf16.gmra.mxu0 %v5531
    %v5672 = vpop.f32.mrf.mxu0
    %v5673 = vadd.f32 0.0, %v5672
    %v5674 = vpop.f32.mrf.mxu0
    %5675 = vdwg.mxu0
    %5676 = vmatpush.bf16.msra.mxu0 %v3568
    %5677 = vmatpush.bf16.msra.mxu0 %v3560
    %5678 = vmatpush.bf16.msra.mxu0 %v3552
    %5679 = vmatpush.bf16.msra.mxu0 %v3544
    %5680 = vmatpush.bf16.msra.mxu0 %v3536
    %5681 = vmatpush.bf16.msra.mxu0 %v3528
    %5682 = vmatpush.bf16.msra.mxu0 %v3520
    %5683 = vmatpush.bf16.msra.mxu0 %v3512
    %5684 = vmatmul.bf16.gmra.mxu0 %v5532
    %v5685 = vpop.f32.mrf.mxu0
    %v5686 = vadd.f32 %v5673, %v5685
    %v5687 = vpop.f32.mrf.mxu0
    %5688 = vdwg.mxu0
    %5689 = vmatpush.bf16.msra.mxu0 %v3505
    %5690 = vmatpush.bf16.msra.mxu0 %v3497
    %5691 = vmatpush.bf16.msra.mxu0 %v3489
    %5692 = vmatpush.bf16.msra.mxu0 %v3481
    %5693 = vmatpush.bf16.msra.mxu0 %v3473
    %5694 = vmatpush.bf16.msra.mxu0 %v3465
    %5695 = vmatpush.bf16.msra.mxu0 %v3457
    %5696 = vmatpush.bf16.msra.mxu0 %v3449
    %5697 = vmatmul.bf16.gmra.mxu0 %v5531
    %v5698 = vpop.f32.mrf.mxu0
    %v5699 = vadd.f32 0.0, %v5698
    %v5700 = vpop.f32.mrf.mxu0
    %5701 = vdwg.mxu0
    %5702 = vmatpush.bf16.msra.mxu0 %v3569
    %5703 = vmatpush.bf16.msra.mxu0 %v3561
    %5704 = vmatpush.bf16.msra.mxu0 %v3553
    %5705 = vmatpush.bf16.msra.mxu0 %v3545
    %5706 = vmatpush.bf16.msra.mxu0 %v3537
    %5707 = vmatpush.bf16.msra.mxu0 %v3529
    %5708 = vmatpush.bf16.msra.mxu0 %v3521
    %5709 = vmatpush.bf16.msra.mxu0 %v3513
    %5710 = vmatmul.bf16.gmra.mxu0 %v5532
    %v5711 = vpop.f32.mrf.mxu0
    %v5712 = vadd.f32 %v5699, %v5711
    %v5713 = vpop.f32.mrf.mxu0
    %5714 = vdwg.mxu0
    %5715 = vmatpush.bf16.msra.mxu0 %v3506
    %5716 = vmatpush.bf16.msra.mxu0 %v3498
    %5717 = vmatpush.bf16.msra.mxu0 %v3490
    %5718 = vmatpush.bf16.msra.mxu0 %v3482
    %5719 = vmatpush.bf16.msra.mxu0 %v3474
    %5720 = vmatpush.bf16.msra.mxu0 %v3466
    %5721 = vmatpush.bf16.msra.mxu0 %v3458
    %5722 = vmatpush.bf16.msra.mxu0 %v3450
    %5723 = vmatmul.bf16.gmra.mxu0 %v5531
    %v5724 = vpop.f32.mrf.mxu0
    %v5725 = vadd.f32 0.0, %v5724
    %v5726 = vpop.f32.mrf.mxu0
    %5727 = vdwg.mxu0
    %5728 = vmatpush.bf16.msra.mxu0 %v3570
    %5729 = vmatpush.bf16.msra.mxu0 %v3562
    %5730 = vmatpush.bf16.msra.mxu0 %v3554
    %5731 = vmatpush.bf16.msra.mxu0 %v3546
    %5732 = vmatpush.bf16.msra.mxu0 %v3538
    %5733 = vmatpush.bf16.msra.mxu0 %v3530
    %5734 = vmatpush.bf16.msra.mxu0 %v3522
    %5735 = vmatpush.bf16.msra.mxu0 %v3514
    %5736 = vmatmul.bf16.gmra.mxu0 %v5532
    %v5737 = vpop.f32.mrf.mxu0
    %v5738 = vadd.f32 %v5725, %v5737
    %v5739 = vpop.f32.mrf.mxu0
    %5740 = vdwg.mxu0
    %v5741 = vadd.f32 %v5523, %v5556
    %v5742 = vadd.f32 %v5524, %v5582
    %v5743 = vadd.f32 %v5525, %v5608
    %v5744 = vadd.f32 %v5526, %v5634
    %v5745 = vadd.f32 %v5527, %v5660
    %v5746 = vadd.f32 %v5528, %v5686
    %v5747 = vadd.f32 %v5529, %v5712
    %v5748 = vadd.f32 %v5530, %v5738
    %v5749 = vmul.f32 %v5741, 0.5
    %v5750 = vmul.f32 %v5742, 0.5
    %v5751 = vtanh.pop %v5749
    %v5752 = vtanh.pop %v5750
    %v5753 = vmul.f32 %v5751, 0.5
    %v5754 = vmul.f32 %v5752, 0.5
    %v5755 = vadd.f32 %v5753, 0.5
    %v5756 = vadd.f32 %v5754, 0.5
    %v5757 = vmul.f32 %v5743, 0.5
    %v5758 = vmul.f32 %v5744, 0.5
    %v5759 = vtanh.pop %v5757
    %v5760 = vtanh.pop %v5758
    %v5761 = vmul.f32 %v5759, 0.5
    %v5762 = vmul.f32 %v5760, 0.5
    %v5763 = vadd.f32 %v5761, 0.5
    %v5764 = vadd.f32 %v5762, 0.5
    %v5765 = vtanh.pop %v5745
    %v5766 = vtanh.pop %v5746
    %v5767 = vmul.f32 %v5747, 0.5
    %v5768 = vmul.f32 %v5748, 0.5
    %v5769 = vtanh.pop %v5767
    %v5770 = vtanh.pop %v5768
    %v5771 = vmul.f32 %v5769, 0.5
    %v5772 = vmul.f32 %v5770, 0.5
    %v5773 = vadd.f32 %v5771, 0.5
    %v5774 = vadd.f32 %v5772, 0.5
    %v5775 = vmul.f32 %v5763, %v5517
    %v5776 = vmul.f32 %v5764, %v5518
    %v5777 = vmul.f32 %v5755, %v5765
    %v5778 = vmul.f32 %v5756, %v5766
    %v5779 = vadd.f32 %v5775, %v5777
    %v5780 = vadd.f32 %v5776, %v5778
    %v5781 = vtanh.pop %v5779
    %v5782 = vtanh.pop %v5780
    %v5783 = vmul.f32 %v5773, %v5781
    %v5784 = vmul.f32 %v5774, %v5782
    %s5785 = smul.u32 4, 64
    %s5786 = smul.u32 %s5785, 4
    %s5787 = sshll.u32 %s5786, 4
    %5788 = dma.done [#allocation4], %s5787
    %v5793 = vrot.slane %v5783, 2
    %v5794 = vrot.slane %v5784, 2
    %v5795 = vrot.slane %v2921, 2
    %v5796 = vrot.slane %v2922, 2
    %v5801 = vsub.f32 %v5783, %v5793
    %v5802 = vsub.f32 %v5784, %v5794
    %v5803 = vsub.f32 %v2921, %v5795
    %v5804 = vsub.f32 %v2922, %v5796
    %v5805 = vand.u32 2147483647, %v5801
    %v5806 = vand.u32 2147483647, %v5802
    %v5807 = vand.u32 2147483647, %v5803
    %v5808 = vand.u32 2147483647, %v5804
    %v5809 = vpack.c.bf16 %v5805, %v5805
    %v5810 = vpack.c.bf16 %v5806, %v5806
    %v5811 = vpack.c.bf16 %v5807, %v5807
    %v5812 = vpack.c.bf16 %v5808, %v5808
    %v5813 = vld [vmem:[#allocation3] sm:$0xff]
    %v5814 = vld [vmem:[#allocation3 + $0x8] sm:$0xff]
    %v5815 = vld [vmem:[#allocation3 + $0x10] sm:$0xff]
    %v5816 = vld [vmem:[#allocation3 + $0x18] sm:$0xff]
    %v5817 = vld [vmem:[#allocation3 + $0x20] sm:$0xff]
    %v5818 = vld [vmem:[#allocation3 + $0x28] sm:$0xff]
    %v5819 = vld [vmem:[#allocation3 + $0x30] sm:$0xff]
    %v5820 = vld [vmem:[#allocation3 + $0x38] sm:$0xff]
    %v5821 = vld [vmem:[#allocation3 + $0x40] sm:$0xff]
    %v5822 = vld [vmem:[#allocation3 + $0x48] sm:$0xff]
    %v5823 = vld [vmem:[#allocation3 + $0x50] sm:$0xff]
    %v5824 = vld [vmem:[#allocation3 + $0x58] sm:$0xff]
    %v5825 = vld [vmem:[#allocation3 + $0x60] sm:$0xff]
    %v5826 = vld [vmem:[#allocation3 + $0x68] sm:$0xff]
    %v5827 = vld [vmem:[#allocation3 + $0x70] sm:$0xff]
    %v5828 = vld [vmem:[#allocation3 + $0x78] sm:$0xff]
    %v5829 = vld [vmem:[#allocation3 + $0x80] sm:$0xff]
    %v5830 = vld [vmem:[#allocation3 + $0x88] sm:$0xff]
    %v5831 = vld [vmem:[#allocation3 + $0x90] sm:$0xff]
    %v5832 = vld [vmem:[#allocation3 + $0x98] sm:$0xff]
    %v5833 = vld [vmem:[#allocation3 + $0xa0] sm:$0xff]
    %v5834 = vld [vmem:[#allocation3 + $0xa8] sm:$0xff]
    %v5835 = vld [vmem:[#allocation3 + $0xb0] sm:$0xff]
    %v5836 = vld [vmem:[#allocation3 + $0xb8] sm:$0xff]
    %v5837 = vld [vmem:[#allocation3 + $0xc0] sm:$0xff]
    %v5838 = vld [vmem:[#allocation3 + $0xc8] sm:$0xff]
    %v5839 = vld [vmem:[#allocation3 + $0xd0] sm:$0xff]
    %v5840 = vld [vmem:[#allocation3 + $0xd8] sm:$0xff]
    %v5841 = vld [vmem:[#allocation3 + $0xe0] sm:$0xff]
    %v5842 = vld [vmem:[#allocation3 + $0xe8] sm:$0xff]
    %v5843 = vld [vmem:[#allocation3 + $0xf0] sm:$0xff]
    %v5844 = vld [vmem:[#allocation3 + $0xf8] sm:$0xff]
    %v5845 = vld [vmem:[#allocation3 + $0x100] sm:$0xff]
    %v5846 = vld [vmem:[#allocation3 + $0x108] sm:$0xff]
    %v5847 = vld [vmem:[#allocation3 + $0x110] sm:$0xff]
    %v5848 = vld [vmem:[#allocation3 + $0x118] sm:$0xff]
    %v5849 = vld [vmem:[#allocation3 + $0x120] sm:$0xff]
    %v5850 = vld [vmem:[#allocation3 + $0x128] sm:$0xff]
    %v5851 = vld [vmem:[#allocation3 + $0x130] sm:$0xff]
    %v5852 = vld [vmem:[#allocation3 + $0x138] sm:$0xff]
    %v5853 = vld [vmem:[#allocation3 + $0x140] sm:$0xff]
    %v5854 = vld [vmem:[#allocation3 + $0x148] sm:$0xff]
    %v5855 = vld [vmem:[#allocation3 + $0x150] sm:$0xff]
    %v5856 = vld [vmem:[#allocation3 + $0x158] sm:$0xff]
    %v5857 = vld [vmem:[#allocation3 + $0x160] sm:$0xff]
    %v5858 = vld [vmem:[#allocation3 + $0x168] sm:$0xff]
    %v5859 = vld [vmem:[#allocation3 + $0x170] sm:$0xff]
    %v5860 = vld [vmem:[#allocation3 + $0x178] sm:$0xff]
    %v5861 = vld [vmem:[#allocation3 + $0x180] sm:$0xff]
    %v5862 = vld [vmem:[#allocation3 + $0x188] sm:$0xff]
    %v5863 = vld [vmem:[#allocation3 + $0x190] sm:$0xff]
    %v5864 = vld [vmem:[#allocation3 + $0x198] sm:$0xff]
    %v5865 = vld [vmem:[#allocation3 + $0x1a0] sm:$0xff]
    %v5866 = vld [vmem:[#allocation3 + $0x1a8] sm:$0xff]
    %v5867 = vld [vmem:[#allocation3 + $0x1b0] sm:$0xff]
    %v5868 = vld [vmem:[#allocation3 + $0x1b8] sm:$0xff]
    %v5869 = vld [vmem:[#allocation3 + $0x1c0] sm:$0xff]
    %v5870 = vld [vmem:[#allocation3 + $0x1c8] sm:$0xff]
    %v5871 = vld [vmem:[#allocation3 + $0x1d0] sm:$0xff]
    %v5872 = vld [vmem:[#allocation3 + $0x1d8] sm:$0xff]
    %v5873 = vld [vmem:[#allocation3 + $0x1e0] sm:$0xff]
    %v5874 = vld [vmem:[#allocation3 + $0x1e8] sm:$0xff]
    %v5875 = vld [vmem:[#allocation3 + $0x1f0] sm:$0xff]
    %v5876 = vld [vmem:[#allocation3 + $0x1f8] sm:$0xff]
    %v5877 = vld [vmem:[#allocation3 + $0x200] sm:$0xff]
    %v5878 = vld [vmem:[#allocation3 + $0x208] sm:$0xff]
    %v5879 = vld [vmem:[#allocation3 + $0x210] sm:$0xff]
    %v5880 = vld [vmem:[#allocation3 + $0x218] sm:$0xff]
    %v5881 = vld [vmem:[#allocation3 + $0x220] sm:$0xff]
    %v5882 = vld [vmem:[#allocation3 + $0x228] sm:$0xff]
    %v5883 = vld [vmem:[#allocation3 + $0x230] sm:$0xff]
    %v5884 = vld [vmem:[#allocation3 + $0x238] sm:$0xff]
    %v5885 = vld [vmem:[#allocation3 + $0x240] sm:$0xff]
    %v5886 = vld [vmem:[#allocation3 + $0x248] sm:$0xff]
    %v5887 = vld [vmem:[#allocation3 + $0x250] sm:$0xff]
    %v5888 = vld [vmem:[#allocation3 + $0x258] sm:$0xff]
    %v5889 = vld [vmem:[#allocation3 + $0x260] sm:$0xff]
    %v5890 = vld [vmem:[#allocation3 + $0x268] sm:$0xff]
    %v5891 = vld [vmem:[#allocation3 + $0x270] sm:$0xff]
    %v5892 = vld [vmem:[#allocation3 + $0x278] sm:$0xff]
    %v5893 = vld [vmem:[#allocation3 + $0x280] sm:$0xff]
    %v5894 = vld [vmem:[#allocation3 + $0x288] sm:$0xff]
    %v5895 = vld [vmem:[#allocation3 + $0x290] sm:$0xff]
    %v5896 = vld [vmem:[#allocation3 + $0x298] sm:$0xff]
    %v5897 = vld [vmem:[#allocation3 + $0x2a0] sm:$0xff]
    %v5898 = vld [vmem:[#allocation3 + $0x2a8] sm:$0xff]
    %v5899 = vld [vmem:[#allocation3 + $0x2b0] sm:$0xff]
    %v5900 = vld [vmem:[#allocation3 + $0x2b8] sm:$0xff]
    %v5901 = vld [vmem:[#allocation3 + $0x2c0] sm:$0xff]
    %v5902 = vld [vmem:[#allocation3 + $0x2c8] sm:$0xff]
    %v5903 = vld [vmem:[#allocation3 + $0x2d0] sm:$0xff]
    %v5904 = vld [vmem:[#allocation3 + $0x2d8] sm:$0xff]
    %v5905 = vld [vmem:[#allocation3 + $0x2e0] sm:$0xff]
    %v5906 = vld [vmem:[#allocation3 + $0x2e8] sm:$0xff]
    %v5907 = vld [vmem:[#allocation3 + $0x2f0] sm:$0xff]
    %v5908 = vld [vmem:[#allocation3 + $0x2f8] sm:$0xff]
    %v5909 = vld [vmem:[#allocation3 + $0x300] sm:$0xff]
    %v5910 = vld [vmem:[#allocation3 + $0x308] sm:$0xff]
    %v5911 = vld [vmem:[#allocation3 + $0x310] sm:$0xff]
    %v5912 = vld [vmem:[#allocation3 + $0x318] sm:$0xff]
    %v5913 = vld [vmem:[#allocation3 + $0x320] sm:$0xff]
    %v5914 = vld [vmem:[#allocation3 + $0x328] sm:$0xff]
    %v5915 = vld [vmem:[#allocation3 + $0x330] sm:$0xff]
    %v5916 = vld [vmem:[#allocation3 + $0x338] sm:$0xff]
    %v5917 = vld [vmem:[#allocation3 + $0x340] sm:$0xff]
    %v5918 = vld [vmem:[#allocation3 + $0x348] sm:$0xff]
    %v5919 = vld [vmem:[#allocation3 + $0x350] sm:$0xff]
    %v5920 = vld [vmem:[#allocation3 + $0x358] sm:$0xff]
    %v5921 = vld [vmem:[#allocation3 + $0x360] sm:$0xff]
    %v5922 = vld [vmem:[#allocation3 + $0x368] sm:$0xff]
    %v5923 = vld [vmem:[#allocation3 + $0x370] sm:$0xff]
    %v5924 = vld [vmem:[#allocation3 + $0x378] sm:$0xff]
    %v5925 = vld [vmem:[#allocation3 + $0x380] sm:$0xff]
    %v5926 = vld [vmem:[#allocation3 + $0x388] sm:$0xff]
    %v5927 = vld [vmem:[#allocation3 + $0x390] sm:$0xff]
    %v5928 = vld [vmem:[#allocation3 + $0x398] sm:$0xff]
    %v5929 = vld [vmem:[#allocation3 + $0x3a0] sm:$0xff]
    %v5930 = vld [vmem:[#allocation3 + $0x3a8] sm:$0xff]
    %v5931 = vld [vmem:[#allocation3 + $0x3b0] sm:$0xff]
    %v5932 = vld [vmem:[#allocation3 + $0x3b8] sm:$0xff]
    %v5933 = vld [vmem:[#allocation3 + $0x3c0] sm:$0xff]
    %v5934 = vld [vmem:[#allocation3 + $0x3c8] sm:$0xff]
    %v5935 = vld [vmem:[#allocation3 + $0x3d0] sm:$0xff]
    %v5936 = vld [vmem:[#allocation3 + $0x3d8] sm:$0xff]
    %v5937 = vld [vmem:[#allocation3 + $0x3e0] sm:$0xff]
    %v5938 = vld [vmem:[#allocation3 + $0x3e8] sm:$0xff]
    %v5939 = vld [vmem:[#allocation3 + $0x3f0] sm:$0xff]
    %v5940 = vld [vmem:[#allocation3 + $0x3f8] sm:$0xff]
    %v5941 = vld [vmem:[%s5 + $0x12] sm:$0xf]
    %v5943 = vperm.slane %v5941, 0
    %v5944 = vperm.slane %v5941, 1
    %v5945 = vperm.slane %v5941, 2
    %v5946 = vperm.slane %v5941, 3
    %v6079 = vunpack.c.l.b16 %v5813
    %v6080 = vunpack.c.h.b16 %v5813
    %v6081 = vunpack.c.l.b16 %v5814
    %v6082 = vunpack.c.h.b16 %v5814
    %v6083 = vunpack.c.l.b16 %v5815
    %v6084 = vunpack.c.h.b16 %v5815
    %v6085 = vunpack.c.l.b16 %v5816
    %v6086 = vunpack.c.h.b16 %v5816
    %v6087 = vunpack.c.l.b16 %v5817
    %v6088 = vunpack.c.h.b16 %v5817
    %v6089 = vunpack.c.l.b16 %v5818
    %v6090 = vunpack.c.h.b16 %v5818
    %v6091 = vunpack.c.l.b16 %v5819
    %v6092 = vunpack.c.h.b16 %v5819
    %v6093 = vunpack.c.l.b16 %v5820
    %v6094 = vunpack.c.h.b16 %v5820
    %v6095 = vunpack.c.l.b16 %v5821
    %v6096 = vunpack.c.h.b16 %v5821
    %v6097 = vunpack.c.l.b16 %v5822
    %v6098 = vunpack.c.h.b16 %v5822
    %v6099 = vunpack.c.l.b16 %v5823
    %v6100 = vunpack.c.h.b16 %v5823
    %v6101 = vunpack.c.l.b16 %v5824
    %v6102 = vunpack.c.h.b16 %v5824
    %v6103 = vunpack.c.l.b16 %v5825
    %v6104 = vunpack.c.h.b16 %v5825
    %v6105 = vunpack.c.l.b16 %v5826
    %v6106 = vunpack.c.h.b16 %v5826
    %v6107 = vunpack.c.l.b16 %v5827
    %v6108 = vunpack.c.h.b16 %v5827
    %v6109 = vunpack.c.l.b16 %v5828
    %v6110 = vunpack.c.h.b16 %v5828
    %v6111 = vunpack.c.l.b16 %v5829
    %v6112 = vunpack.c.h.b16 %v5829
    %v6113 = vunpack.c.l.b16 %v5830
    %v6114 = vunpack.c.h.b16 %v5830
    %v6115 = vunpack.c.l.b16 %v5831
    %v6116 = vunpack.c.h.b16 %v5831
    %v6117 = vunpack.c.l.b16 %v5832
    %v6118 = vunpack.c.h.b16 %v5832
    %v6119 = vunpack.c.l.b16 %v5833
    %v6120 = vunpack.c.h.b16 %v5833
    %v6121 = vunpack.c.l.b16 %v5834
    %v6122 = vunpack.c.h.b16 %v5834
    %v6123 = vunpack.c.l.b16 %v5835
    %v6124 = vunpack.c.h.b16 %v5835
    %v6125 = vunpack.c.l.b16 %v5836
    %v6126 = vunpack.c.h.b16 %v5836
    %v6127 = vunpack.c.l.b16 %v5837
    %v6128 = vunpack.c.h.b16 %v5837
    %v6129 = vunpack.c.l.b16 %v5838
    %v6130 = vunpack.c.h.b16 %v5838
    %v6131 = vunpack.c.l.b16 %v5839
    %v6132 = vunpack.c.h.b16 %v5839
    %v6133 = vunpack.c.l.b16 %v5840
    %v6134 = vunpack.c.h.b16 %v5840
    %v6135 = vunpack.c.l.b16 %v5841
    %v6136 = vunpack.c.h.b16 %v5841
    %v6137 = vunpack.c.l.b16 %v5842
    %v6138 = vunpack.c.h.b16 %v5842
    %v6139 = vunpack.c.l.b16 %v5843
    %v6140 = vunpack.c.h.b16 %v5843
    %v6141 = vunpack.c.l.b16 %v5844
    %v6142 = vunpack.c.h.b16 %v5844
    %v6143 = vunpack.c.l.b16 %v5845
    %v6144 = vunpack.c.h.b16 %v5845
    %v6145 = vunpack.c.l.b16 %v5846
    %v6146 = vunpack.c.h.b16 %v5846
    %v6147 = vunpack.c.l.b16 %v5847
    %v6148 = vunpack.c.h.b16 %v5847
    %v6149 = vunpack.c.l.b16 %v5848
    %v6150 = vunpack.c.h.b16 %v5848
    %v6151 = vunpack.c.l.b16 %v5849
    %v6152 = vunpack.c.h.b16 %v5849
    %v6153 = vunpack.c.l.b16 %v5850
    %v6154 = vunpack.c.h.b16 %v5850
    %v6155 = vunpack.c.l.b16 %v5851
    %v6156 = vunpack.c.h.b16 %v5851
    %v6157 = vunpack.c.l.b16 %v5852
    %v6158 = vunpack.c.h.b16 %v5852
    %v6159 = vunpack.c.l.b16 %v5853
    %v6160 = vunpack.c.h.b16 %v5853
    %v6161 = vunpack.c.l.b16 %v5854
    %v6162 = vunpack.c.h.b16 %v5854
    %v6163 = vunpack.c.l.b16 %v5855
    %v6164 = vunpack.c.h.b16 %v5855
    %v6165 = vunpack.c.l.b16 %v5856
    %v6166 = vunpack.c.h.b16 %v5856
    %v6167 = vunpack.c.l.b16 %v5857
    %v6168 = vunpack.c.h.b16 %v5857
    %v6169 = vunpack.c.l.b16 %v5858
    %v6170 = vunpack.c.h.b16 %v5858
    %v6171 = vunpack.c.l.b16 %v5859
    %v6172 = vunpack.c.h.b16 %v5859
    %v6173 = vunpack.c.l.b16 %v5860
    %v6174 = vunpack.c.h.b16 %v5860
    %v6175 = vunpack.c.l.b16 %v5861
    %v6176 = vunpack.c.h.b16 %v5861
    %v6177 = vunpack.c.l.b16 %v5862
    %v6178 = vunpack.c.h.b16 %v5862
    %v6179 = vunpack.c.l.b16 %v5863
    %v6180 = vunpack.c.h.b16 %v5863
    %v6181 = vunpack.c.l.b16 %v5864
    %v6182 = vunpack.c.h.b16 %v5864
    %v6183 = vunpack.c.l.b16 %v5865
    %v6184 = vunpack.c.h.b16 %v5865
    %v6185 = vunpack.c.l.b16 %v5866
    %v6186 = vunpack.c.h.b16 %v5866
    %v6187 = vunpack.c.l.b16 %v5867
    %v6188 = vunpack.c.h.b16 %v5867
    %v6189 = vunpack.c.l.b16 %v5868
    %v6190 = vunpack.c.h.b16 %v5868
    %v6191 = vunpack.c.l.b16 %v5869
    %v6192 = vunpack.c.h.b16 %v5869
    %v6193 = vunpack.c.l.b16 %v5870
    %v6194 = vunpack.c.h.b16 %v5870
    %v6195 = vunpack.c.l.b16 %v5871
    %v6196 = vunpack.c.h.b16 %v5871
    %v6197 = vunpack.c.l.b16 %v5872
    %v6198 = vunpack.c.h.b16 %v5872
    %v6199 = vunpack.c.l.b16 %v5873
    %v6200 = vunpack.c.h.b16 %v5873
    %v6201 = vunpack.c.l.b16 %v5874
    %v6202 = vunpack.c.h.b16 %v5874
    %v6203 = vunpack.c.l.b16 %v5875
    %v6204 = vunpack.c.h.b16 %v5875
    %v6205 = vunpack.c.l.b16 %v5876
    %v6206 = vunpack.c.h.b16 %v5876
    %v6207 = vunpack.c.l.b16 %v5877
    %v6208 = vunpack.c.h.b16 %v5877
    %v6209 = vunpack.c.l.b16 %v5878
    %v6210 = vunpack.c.h.b16 %v5878
    %v6211 = vunpack.c.l.b16 %v5879
    %v6212 = vunpack.c.h.b16 %v5879
    %v6213 = vunpack.c.l.b16 %v5880
    %v6214 = vunpack.c.h.b16 %v5880
    %v6215 = vunpack.c.l.b16 %v5881
    %v6216 = vunpack.c.h.b16 %v5881
    %v6217 = vunpack.c.l.b16 %v5882
    %v6218 = vunpack.c.h.b16 %v5882
    %v6219 = vunpack.c.l.b16 %v5883
    %v6220 = vunpack.c.h.b16 %v5883
    %v6221 = vunpack.c.l.b16 %v5884
    %v6222 = vunpack.c.h.b16 %v5884
    %v6223 = vunpack.c.l.b16 %v5885
    %v6224 = vunpack.c.h.b16 %v5885
    %v6225 = vunpack.c.l.b16 %v5886
    %v6226 = vunpack.c.h.b16 %v5886
    %v6227 = vunpack.c.l.b16 %v5887
    %v6228 = vunpack.c.h.b16 %v5887
    %v6229 = vunpack.c.l.b16 %v5888
    %v6230 = vunpack.c.h.b16 %v5888
    %v6231 = vunpack.c.l.b16 %v5889
    %v6232 = vunpack.c.h.b16 %v5889
    %v6233 = vunpack.c.l.b16 %v5890
    %v6234 = vunpack.c.h.b16 %v5890
    %v6235 = vunpack.c.l.b16 %v5891
    %v6236 = vunpack.c.h.b16 %v5891
    %v6237 = vunpack.c.l.b16 %v5892
    %v6238 = vunpack.c.h.b16 %v5892
    %v6239 = vunpack.c.l.b16 %v5893
    %v6240 = vunpack.c.h.b16 %v5893
    %v6241 = vunpack.c.l.b16 %v5894
    %v6242 = vunpack.c.h.b16 %v5894
    %v6243 = vunpack.c.l.b16 %v5895
    %v6244 = vunpack.c.h.b16 %v5895
    %v6245 = vunpack.c.l.b16 %v5896
    %v6246 = vunpack.c.h.b16 %v5896
    %v6247 = vunpack.c.l.b16 %v5897
    %v6248 = vunpack.c.h.b16 %v5897
    %v6249 = vunpack.c.l.b16 %v5898
    %v6250 = vunpack.c.h.b16 %v5898
    %v6251 = vunpack.c.l.b16 %v5899
    %v6252 = vunpack.c.h.b16 %v5899
    %v6253 = vunpack.c.l.b16 %v5900
    %v6254 = vunpack.c.h.b16 %v5900
    %v6255 = vunpack.c.l.b16 %v5901
    %v6256 = vunpack.c.h.b16 %v5901
    %v6257 = vunpack.c.l.b16 %v5902
    %v6258 = vunpack.c.h.b16 %v5902
    %v6259 = vunpack.c.l.b16 %v5903
    %v6260 = vunpack.c.h.b16 %v5903
    %v6261 = vunpack.c.l.b16 %v5904
    %v6262 = vunpack.c.h.b16 %v5904
    %v6263 = vunpack.c.l.b16 %v5905
    %v6264 = vunpack.c.h.b16 %v5905
    %v6265 = vunpack.c.l.b16 %v5906
    %v6266 = vunpack.c.h.b16 %v5906
    %v6267 = vunpack.c.l.b16 %v5907
    %v6268 = vunpack.c.h.b16 %v5907
    %v6269 = vunpack.c.l.b16 %v5908
    %v6270 = vunpack.c.h.b16 %v5908
    %v6271 = vunpack.c.l.b16 %v5909
    %v6272 = vunpack.c.h.b16 %v5909
    %v6273 = vunpack.c.l.b16 %v5910
    %v6274 = vunpack.c.h.b16 %v5910
    %v6275 = vunpack.c.l.b16 %v5911
    %v6276 = vunpack.c.h.b16 %v5911
    %v6277 = vunpack.c.l.b16 %v5912
    %v6278 = vunpack.c.h.b16 %v5912
    %v6279 = vunpack.c.l.b16 %v5913
    %v6280 = vunpack.c.h.b16 %v5913
    %v6281 = vunpack.c.l.b16 %v5914
    %v6282 = vunpack.c.h.b16 %v5914
    %v6283 = vunpack.c.l.b16 %v5915
    %v6284 = vunpack.c.h.b16 %v5915
    %v6285 = vunpack.c.l.b16 %v5916
    %v6286 = vunpack.c.h.b16 %v5916
    %v6287 = vunpack.c.l.b16 %v5917
    %v6288 = vunpack.c.h.b16 %v5917
    %v6289 = vunpack.c.l.b16 %v5918
    %v6290 = vunpack.c.h.b16 %v5918
    %v6291 = vunpack.c.l.b16 %v5919
    %v6292 = vunpack.c.h.b16 %v5919
    %v6293 = vunpack.c.l.b16 %v5920
    %v6294 = vunpack.c.h.b16 %v5920
    %v6295 = vunpack.c.l.b16 %v5921
    %v6296 = vunpack.c.h.b16 %v5921
    %v6297 = vunpack.c.l.b16 %v5922
    %v6298 = vunpack.c.h.b16 %v5922
    %v6299 = vunpack.c.l.b16 %v5923
    %v6300 = vunpack.c.h.b16 %v5923
    %v6301 = vunpack.c.l.b16 %v5924
    %v6302 = vunpack.c.h.b16 %v5924
    %v6303 = vunpack.c.l.b16 %v5925
    %v6304 = vunpack.c.h.b16 %v5925
    %v6305 = vunpack.c.l.b16 %v5926
    %v6306 = vunpack.c.h.b16 %v5926
    %v6307 = vunpack.c.l.b16 %v5927
    %v6308 = vunpack.c.h.b16 %v5927
    %v6309 = vunpack.c.l.b16 %v5928
    %v6310 = vunpack.c.h.b16 %v5928
    %v6311 = vunpack.c.l.b16 %v5929
    %v6312 = vunpack.c.h.b16 %v5929
    %v6313 = vunpack.c.l.b16 %v5930
    %v6314 = vunpack.c.h.b16 %v5930
    %v6315 = vunpack.c.l.b16 %v5931
    %v6316 = vunpack.c.h.b16 %v5931
    %v6317 = vunpack.c.l.b16 %v5932
    %v6318 = vunpack.c.h.b16 %v5932
    %v6319 = vunpack.c.l.b16 %v5933
    %v6320 = vunpack.c.h.b16 %v5933
    %v6321 = vunpack.c.l.b16 %v5934
    %v6322 = vunpack.c.h.b16 %v5934
    %v6323 = vunpack.c.l.b16 %v5935
    %v6324 = vunpack.c.h.b16 %v5935
    %v6325 = vunpack.c.l.b16 %v5936
    %v6326 = vunpack.c.h.b16 %v5936
    %v6327 = vunpack.c.l.b16 %v5937
    %v6328 = vunpack.c.h.b16 %v5937
    %v6329 = vunpack.c.l.b16 %v5938
    %v6330 = vunpack.c.h.b16 %v5938
    %v6331 = vunpack.c.l.b16 %v5939
    %v6332 = vunpack.c.h.b16 %v5939
    %v6333 = vunpack.c.l.b16 %v5940
    %v6334 = vunpack.c.h.b16 %v5940
    %v6335 = vpack.c.b16 %v6083, %v6079
    %v6336 = vpack.c.b16 %v6084, %v6080
    %v6337 = vpack.c.b16 %v6085, %v6081
    %v6338 = vpack.c.b16 %v6086, %v6082
    %v6339 = vpack.c.b16 %v6091, %v6087
    %v6340 = vpack.c.b16 %v6092, %v6088
    %v6341 = vpack.c.b16 %v6093, %v6089
    %v6342 = vpack.c.b16 %v6094, %v6090
    %v6343 = vpack.c.b16 %v6099, %v6095
    %v6344 = vpack.c.b16 %v6100, %v6096
    %v6345 = vpack.c.b16 %v6101, %v6097
    %v6346 = vpack.c.b16 %v6102, %v6098
    %v6347 = vpack.c.b16 %v6107, %v6103
    %v6348 = vpack.c.b16 %v6108, %v6104
    %v6349 = vpack.c.b16 %v6109, %v6105
    %v6350 = vpack.c.b16 %v6110, %v6106
    %v6351 = vpack.c.b16 %v6115, %v6111
    %v6352 = vpack.c.b16 %v6116, %v6112
    %v6353 = vpack.c.b16 %v6117, %v6113
    %v6354 = vpack.c.b16 %v6118, %v6114
    %v6355 = vpack.c.b16 %v6123, %v6119
    %v6356 = vpack.c.b16 %v6124, %v6120
    %v6357 = vpack.c.b16 %v6125, %v6121
    %v6358 = vpack.c.b16 %v6126, %v6122
    %v6359 = vpack.c.b16 %v6131, %v6127
    %v6360 = vpack.c.b16 %v6132, %v6128
    %v6361 = vpack.c.b16 %v6133, %v6129
    %v6362 = vpack.c.b16 %v6134, %v6130
    %v6363 = vpack.c.b16 %v6139, %v6135
    %v6364 = vpack.c.b16 %v6140, %v6136
    %v6365 = vpack.c.b16 %v6141, %v6137
    %v6366 = vpack.c.b16 %v6142, %v6138
    %v6367 = vpack.c.b16 %v6147, %v6143
    %v6368 = vpack.c.b16 %v6148, %v6144
    %v6369 = vpack.c.b16 %v6149, %v6145
    %v6370 = vpack.c.b16 %v6150, %v6146
    %v6371 = vpack.c.b16 %v6155, %v6151
    %v6372 = vpack.c.b16 %v6156, %v6152
    %v6373 = vpack.c.b16 %v6157, %v6153
    %v6374 = vpack.c.b16 %v6158, %v6154
    %v6375 = vpack.c.b16 %v6163, %v6159
    %v6376 = vpack.c.b16 %v6164, %v6160
    %v6377 = vpack.c.b16 %v6165, %v6161
    %v6378 = vpack.c.b16 %v6166, %v6162
    %v6379 = vpack.c.b16 %v6171, %v6167
    %v6380 = vpack.c.b16 %v6172, %v6168
    %v6381 = vpack.c.b16 %v6173, %v6169
    %v6382 = vpack.c.b16 %v6174, %v6170
    %v6383 = vpack.c.b16 %v6179, %v6175
    %v6384 = vpack.c.b16 %v6180, %v6176
    %v6385 = vpack.c.b16 %v6181, %v6177
    %v6386 = vpack.c.b16 %v6182, %v6178
    %v6387 = vpack.c.b16 %v6187, %v6183
    %v6388 = vpack.c.b16 %v6188, %v6184
    %v6389 = vpack.c.b16 %v6189, %v6185
    %v6390 = vpack.c.b16 %v6190, %v6186
    %v6391 = vpack.c.b16 %v6195, %v6191
    %v6392 = vpack.c.b16 %v6196, %v6192
    %v6393 = vpack.c.b16 %v6197, %v6193
    %v6394 = vpack.c.b16 %v6198, %v6194
    %v6395 = vpack.c.b16 %v6203, %v6199
    %v6396 = vpack.c.b16 %v6204, %v6200
    %v6397 = vpack.c.b16 %v6205, %v6201
    %v6398 = vpack.c.b16 %v6206, %v6202
    %v6399 = vpack.c.b16 %v6211, %v6207
    %v6400 = vpack.c.b16 %v6212, %v6208
    %v6401 = vpack.c.b16 %v6213, %v6209
    %v6402 = vpack.c.b16 %v6214, %v6210
    %v6403 = vpack.c.b16 %v6219, %v6215
    %v6404 = vpack.c.b16 %v6220, %v6216
    %v6405 = vpack.c.b16 %v6221, %v6217
    %v6406 = vpack.c.b16 %v6222, %v6218
    %v6407 = vpack.c.b16 %v6227, %v6223
    %v6408 = vpack.c.b16 %v6228, %v6224
    %v6409 = vpack.c.b16 %v6229, %v6225
    %v6410 = vpack.c.b16 %v6230, %v6226
    %v6411 = vpack.c.b16 %v6235, %v6231
    %v6412 = vpack.c.b16 %v6236, %v6232
    %v6413 = vpack.c.b16 %v6237, %v6233
    %v6414 = vpack.c.b16 %v6238, %v6234
    %v6415 = vpack.c.b16 %v6243, %v6239
    %v6416 = vpack.c.b16 %v6244, %v6240
    %v6417 = vpack.c.b16 %v6245, %v6241
    %v6418 = vpack.c.b16 %v6246, %v6242
    %v6419 = vpack.c.b16 %v6251, %v6247
    %v6420 = vpack.c.b16 %v6252, %v6248
    %v6421 = vpack.c.b16 %v6253, %v6249
    %v6422 = vpack.c.b16 %v6254, %v6250
    %v6423 = vpack.c.b16 %v6259, %v6255
    %v6424 = vpack.c.b16 %v6260, %v6256
    %v6425 = vpack.c.b16 %v6261, %v6257
    %v6426 = vpack.c.b16 %v6262, %v6258
    %v6427 = vpack.c.b16 %v6267, %v6263
    %v6428 = vpack.c.b16 %v6268, %v6264
    %v6429 = vpack.c.b16 %v6269, %v6265
    %v6430 = vpack.c.b16 %v6270, %v6266
    %v6431 = vpack.c.b16 %v6275, %v6271
    %v6432 = vpack.c.b16 %v6276, %v6272
    %v6433 = vpack.c.b16 %v6277, %v6273
    %v6434 = vpack.c.b16 %v6278, %v6274
    %v6435 = vpack.c.b16 %v6283, %v6279
    %v6436 = vpack.c.b16 %v6284, %v6280
    %v6437 = vpack.c.b16 %v6285, %v6281
    %v6438 = vpack.c.b16 %v6286, %v6282
    %v6439 = vpack.c.b16 %v6291, %v6287
    %v6440 = vpack.c.b16 %v6292, %v6288
    %v6441 = vpack.c.b16 %v6293, %v6289
    %v6442 = vpack.c.b16 %v6294, %v6290
    %v6443 = vpack.c.b16 %v6299, %v6295
    %v6444 = vpack.c.b16 %v6300, %v6296
    %v6445 = vpack.c.b16 %v6301, %v6297
    %v6446 = vpack.c.b16 %v6302, %v6298
    %v6447 = vpack.c.b16 %v6307, %v6303
    %v6448 = vpack.c.b16 %v6308, %v6304
    %v6449 = vpack.c.b16 %v6309, %v6305
    %v6450 = vpack.c.b16 %v6310, %v6306
    %v6451 = vpack.c.b16 %v6315, %v6311
    %v6452 = vpack.c.b16 %v6316, %v6312
    %v6453 = vpack.c.b16 %v6317, %v6313
    %v6454 = vpack.c.b16 %v6318, %v6314
    %v6455 = vpack.c.b16 %v6323, %v6319
    %v6456 = vpack.c.b16 %v6324, %v6320
    %v6457 = vpack.c.b16 %v6325, %v6321
    %v6458 = vpack.c.b16 %v6326, %v6322
    %v6459 = vpack.c.b16 %v6331, %v6327
    %v6460 = vpack.c.b16 %v6332, %v6328
    %v6461 = vpack.c.b16 %v6333, %v6329
    %v6462 = vpack.c.b16 %v6334, %v6330
    %6591 = vmatpush.bf16.msra.mxu0 %v6363
    %6592 = vmatpush.bf16.msra.mxu0 %v6359
    %6593 = vmatpush.bf16.msra.mxu0 %v6355
    %6594 = vmatpush.bf16.msra.mxu0 %v6351
    %6595 = vmatpush.bf16.msra.mxu0 %v6347
    %6596 = vmatpush.bf16.msra.mxu0 %v6343
    %6597 = vmatpush.bf16.msra.mxu0 %v6339
    %6598 = vmatpush.bf16.msra.mxu0 %v6335
    %6599 = vmatmul.bf16.gmra.mxu0 %v5809
    %v6600 = vpop.f32.mrf.mxu0
    %v6601 = vadd.f32 %v5943, %v6600
    %v6602 = vpop.f32.mrf.mxu0
    %6603 = vdwg.mxu0
    %6604 = vmatpush.bf16.msra.mxu0 %v6395
    %6605 = vmatpush.bf16.msra.mxu0 %v6391
    %6606 = vmatpush.bf16.msra.mxu0 %v6387
    %6607 = vmatpush.bf16.msra.mxu0 %v6383
    %6608 = vmatpush.bf16.msra.mxu0 %v6379
    %6609 = vmatpush.bf16.msra.mxu0 %v6375
    %6610 = vmatpush.bf16.msra.mxu0 %v6371
    %6611 = vmatpush.bf16.msra.mxu0 %v6367
    %6612 = vmatmul.bf16.gmra.mxu0 %v5810
    %v6613 = vpop.f32.mrf.mxu0
    %v6614 = vadd.f32 %v6601, %v6613
    %v6615 = vpop.f32.mrf.mxu0
    %6616 = vdwg.mxu0
    %6617 = vmatpush.bf16.msra.mxu0 %v6427
    %6618 = vmatpush.bf16.msra.mxu0 %v6423
    %6619 = vmatpush.bf16.msra.mxu0 %v6419
    %6620 = vmatpush.bf16.msra.mxu0 %v6415
    %6621 = vmatpush.bf16.msra.mxu0 %v6411
    %6622 = vmatpush.bf16.msra.mxu0 %v6407
    %6623 = vmatpush.bf16.msra.mxu0 %v6403
    %6624 = vmatpush.bf16.msra.mxu0 %v6399
    %6625 = vmatmul.bf16.gmra.mxu0 %v5811
    %v6626 = vpop.f32.mrf.mxu0
    %v6627 = vadd.f32 %v6614, %v6626
    %v6628 = vpop.f32.mrf.mxu0
    %6629 = vdwg.mxu0
    %6630 = vmatpush.bf16.msra.mxu0 %v6459
    %6631 = vmatpush.bf16.msra.mxu0 %v6455
    %6632 = vmatpush.bf16.msra.mxu0 %v6451
    %6633 = vmatpush.bf16.msra.mxu0 %v6447
    %6634 = vmatpush.bf16.msra.mxu0 %v6443
    %6635 = vmatpush.bf16.msra.mxu0 %v6439
    %6636 = vmatpush.bf16.msra.mxu0 %v6435
    %6637 = vmatpush.bf16.msra.mxu0 %v6431
    %6638 = vmatmul.bf16.gmra.mxu0 %v5812
    %v6639 = vpop.f32.mrf.mxu0
    %v6640 = vadd.f32 %v6627, %v6639
    %v6641 = vpop.f32.mrf.mxu0
    %6642 = vdwg.mxu0
    %6643 = vmatpush.bf16.msra.mxu0 %v6364
    %6644 = vmatpush.bf16.msra.mxu0 %v6360
    %6645 = vmatpush.bf16.msra.mxu0 %v6356
    %6646 = vmatpush.bf16.msra.mxu0 %v6352
    %6647 = vmatpush.bf16.msra.mxu0 %v6348
    %6648 = vmatpush.bf16.msra.mxu0 %v6344
    %6649 = vmatpush.bf16.msra.mxu0 %v6340
    %6650 = vmatpush.bf16.msra.mxu0 %v6336
    %6651 = vmatmul.bf16.gmra.mxu0 %v5809
    %v6652 = vpop.f32.mrf.mxu0
    %v6653 = vadd.f32 %v5944, %v6652
    %v6654 = vpop.f32.mrf.mxu0
    %6655 = vdwg.mxu0
    %6656 = vmatpush.bf16.msra.mxu0 %v6396
    %6657 = vmatpush.bf16.msra.mxu0 %v6392
    %6658 = vmatpush.bf16.msra.mxu0 %v6388
    %6659 = vmatpush.bf16.msra.mxu0 %v6384
    %6660 = vmatpush.bf16.msra.mxu0 %v6380
    %6661 = vmatpush.bf16.msra.mxu0 %v6376
    %6662 = vmatpush.bf16.msra.mxu0 %v6372
    %6663 = vmatpush.bf16.msra.mxu0 %v6368
    %6664 = vmatmul.bf16.gmra.mxu0 %v5810
    %v6665 = vpop.f32.mrf.mxu0
    %v6666 = vadd.f32 %v6653, %v6665
    %v6667 = vpop.f32.mrf.mxu0
    %6668 = vdwg.mxu0
    %6669 = vmatpush.bf16.msra.mxu0 %v6428
    %6670 = vmatpush.bf16.msra.mxu0 %v6424
    %6671 = vmatpush.bf16.msra.mxu0 %v6420
    %6672 = vmatpush.bf16.msra.mxu0 %v6416
    %6673 = vmatpush.bf16.msra.mxu0 %v6412
    %6674 = vmatpush.bf16.msra.mxu0 %v6408
    %6675 = vmatpush.bf16.msra.mxu0 %v6404
    %6676 = vmatpush.bf16.msra.mxu0 %v6400
    %6677 = vmatmul.bf16.gmra.mxu0 %v5811
    %v6678 = vpop.f32.mrf.mxu0
    %v6679 = vadd.f32 %v6666, %v6678
    %v6680 = vpop.f32.mrf.mxu0
    %6681 = vdwg.mxu0
    %6682 = vmatpush.bf16.msra.mxu0 %v6460
    %6683 = vmatpush.bf16.msra.mxu0 %v6456
    %6684 = vmatpush.bf16.msra.mxu0 %v6452
    %6685 = vmatpush.bf16.msra.mxu0 %v6448
    %6686 = vmatpush.bf16.msra.mxu0 %v6444
    %6687 = vmatpush.bf16.msra.mxu0 %v6440
    %6688 = vmatpush.bf16.msra.mxu0 %v6436
    %6689 = vmatpush.bf16.msra.mxu0 %v6432
    %6690 = vmatmul.bf16.gmra.mxu0 %v5812
    %v6691 = vpop.f32.mrf.mxu0
    %v6692 = vadd.f32 %v6679, %v6691
    %v6693 = vpop.f32.mrf.mxu0
    %6694 = vdwg.mxu0
    %6695 = vmatpush.bf16.msra.mxu0 %v6365
    %6696 = vmatpush.bf16.msra.mxu0 %v6361
    %6697 = vmatpush.bf16.msra.mxu0 %v6357
    %6698 = vmatpush.bf16.msra.mxu0 %v6353
    %6699 = vmatpush.bf16.msra.mxu0 %v6349
    %6700 = vmatpush.bf16.msra.mxu0 %v6345
    %6701 = vmatpush.bf16.msra.mxu0 %v6341
    %6702 = vmatpush.bf16.msra.mxu0 %v6337
    %6703 = vmatmul.bf16.gmra.mxu0 %v5809
    %v6704 = vpop.f32.mrf.mxu0
    %v6705 = vadd.f32 %v5945, %v6704
    %v6706 = vpop.f32.mrf.mxu0
    %6707 = vdwg.mxu0
    %6708 = vmatpush.bf16.msra.mxu0 %v6397
    %6709 = vmatpush.bf16.msra.mxu0 %v6393
    %6710 = vmatpush.bf16.msra.mxu0 %v6389
    %6711 = vmatpush.bf16.msra.mxu0 %v6385
    %6712 = vmatpush.bf16.msra.mxu0 %v6381
    %6713 = vmatpush.bf16.msra.mxu0 %v6377
    %6714 = vmatpush.bf16.msra.mxu0 %v6373
    %6715 = vmatpush.bf16.msra.mxu0 %v6369
    %6716 = vmatmul.bf16.gmra.mxu0 %v5810
    %v6717 = vpop.f32.mrf.mxu0
    %v6718 = vadd.f32 %v6705, %v6717
    %v6719 = vpop.f32.mrf.mxu0
    %6720 = vdwg.mxu0
    %6721 = vmatpush.bf16.msra.mxu0 %v6429
    %6722 = vmatpush.bf16.msra.mxu0 %v6425
    %6723 = vmatpush.bf16.msra.mxu0 %v6421
    %6724 = vmatpush.bf16.msra.mxu0 %v6417
    %6725 = vmatpush.bf16.msra.mxu0 %v6413
    %6726 = vmatpush.bf16.msra.mxu0 %v6409
    %6727 = vmatpush.bf16.msra.mxu0 %v6405
    %6728 = vmatpush.bf16.msra.mxu0 %v6401
    %6729 = vmatmul.bf16.gmra.mxu0 %v5811
    %v6730 = vpop.f32.mrf.mxu0
    %v6731 = vadd.f32 %v6718, %v6730
    %v6732 = vpop.f32.mrf.mxu0
    %6733 = vdwg.mxu0
    %6734 = vmatpush.bf16.msra.mxu0 %v6461
    %6735 = vmatpush.bf16.msra.mxu0 %v6457
    %6736 = vmatpush.bf16.msra.mxu0 %v6453
    %6737 = vmatpush.bf16.msra.mxu0 %v6449
    %6738 = vmatpush.bf16.msra.mxu0 %v6445
    %6739 = vmatpush.bf16.msra.mxu0 %v6441
    %6740 = vmatpush.bf16.msra.mxu0 %v6437
    %6741 = vmatpush.bf16.msra.mxu0 %v6433
    %6742 = vmatmul.bf16.gmra.mxu0 %v5812
    %v6743 = vpop.f32.mrf.mxu0
    %v6744 = vadd.f32 %v6731, %v6743
    %v6745 = vpop.f32.mrf.mxu0
    %6746 = vdwg.mxu0
    %6747 = vmatpush.bf16.msra.mxu0 %v6366
    %6748 = vmatpush.bf16.msra.mxu0 %v6362
    %6749 = vmatpush.bf16.msra.mxu0 %v6358
    %6750 = vmatpush.bf16.msra.mxu0 %v6354
    %6751 = vmatpush.bf16.msra.mxu0 %v6350
    %6752 = vmatpush.bf16.msra.mxu0 %v6346
    %6753 = vmatpush.bf16.msra.mxu0 %v6342
    %6754 = vmatpush.bf16.msra.mxu0 %v6338
    %6755 = vmatmul.bf16.gmra.mxu0 %v5809
    %v6756 = vpop.f32.mrf.mxu0
    %v6757 = vadd.f32 %v5946, %v6756
    %v6758 = vpop.f32.mrf.mxu0
    %6759 = vdwg.mxu0
    %6760 = vmatpush.bf16.msra.mxu0 %v6398
    %6761 = vmatpush.bf16.msra.mxu0 %v6394
    %6762 = vmatpush.bf16.msra.mxu0 %v6390
    %6763 = vmatpush.bf16.msra.mxu0 %v6386
    %6764 = vmatpush.bf16.msra.mxu0 %v6382
    %6765 = vmatpush.bf16.msra.mxu0 %v6378
    %6766 = vmatpush.bf16.msra.mxu0 %v6374
    %6767 = vmatpush.bf16.msra.mxu0 %v6370
    %6768 = vmatmul.bf16.gmra.mxu0 %v5810
    %v6769 = vpop.f32.mrf.mxu0
    %v6770 = vadd.f32 %v6757, %v6769
    %v6771 = vpop.f32.mrf.mxu0
    %6772 = vdwg.mxu0
    %6773 = vmatpush.bf16.msra.mxu0 %v6430
    %6774 = vmatpush.bf16.msra.mxu0 %v6426
    %6775 = vmatpush.bf16.msra.mxu0 %v6422
    %6776 = vmatpush.bf16.msra.mxu0 %v6418
    %6777 = vmatpush.bf16.msra.mxu0 %v6414
    %6778 = vmatpush.bf16.msra.mxu0 %v6410
    %6779 = vmatpush.bf16.msra.mxu0 %v6406
    %6780 = vmatpush.bf16.msra.mxu0 %v6402
    %6781 = vmatmul.bf16.gmra.mxu0 %v5811
    %v6782 = vpop.f32.mrf.mxu0
    %v6783 = vadd.f32 %v6770, %v6782
    %v6784 = vpop.f32.mrf.mxu0
    %6785 = vdwg.mxu0
    %6786 = vmatpush.bf16.msra.mxu0 %v6462
    %6787 = vmatpush.bf16.msra.mxu0 %v6458
    %6788 = vmatpush.bf16.msra.mxu0 %v6454
    %6789 = vmatpush.bf16.msra.mxu0 %v6450
    %6790 = vmatpush.bf16.msra.mxu0 %v6446
    %6791 = vmatpush.bf16.msra.mxu0 %v6442
    %6792 = vmatpush.bf16.msra.mxu0 %v6438
    %6793 = vmatpush.bf16.msra.mxu0 %v6434
    %6794 = vmatmul.bf16.gmra.mxu0 %v5812
    %v6795 = vpop.f32.mrf.mxu0
    %v6796 = vadd.f32 %v6783, %v6795
    %v6797 = vpop.f32.mrf.mxu0
    %6798 = vdwg.mxu0
    %v6799 = vmax.f32 %v6640, 0.0
    %v6800 = vmax.f32 %v6692, 0.0
    %v6801 = vmax.f32 %v6744, 0.0
    %v6802 = vmax.f32 %v6796, 0.0
    %v6803 = vld [vmem:[%s5 + $0x16] sm:$0xf]
    %v6805 = vperm.slane %v6803, 0
    %v6806 = vperm.slane %v6803, 1
    %v6807 = vperm.slane %v6803, 2
    %v6808 = vperm.slane %v6803, 3
    %v6813 = vmul.f32 %v6799, %v6805
    %v6814 = vmul.f32 %v6800, %v6806
    %v6815 = vmul.f32 %v6801, %v6807
    %v6816 = vmul.f32 %v6802, %v6808
    %vm6817 = vcmask 1041408
    %v6818 = vsel %vm6817, %v6813, 0.0
    %v6819 = vsel %vm6817, %v6814, 0.0
    %v6820 = vadd.f32 %v6818, %v6819
    %v6821 = vsel %vm6817, %v6815, 0.0
    %v6822 = vadd.f32 %v6820, %v6821
    %v6823 = vsel %vm6817, %v6816, 0.0
    %v6824 = vadd.f32 %v6822, %v6823
    %6825 = vadd.xlane.f32.xlu0 %v6824
    %v6826 = vpop.xlane.xlu0 %6825
    %v6827 = vld [vmem:[%s5 + $0x1a] sm:$0x1]
    %v6829 = vperm.slane %v6827, 0
    %v6831 = vadd.f32 %v6826, %v6829
    %v6832 = vmul.f32 %v6831, 0.5
    %v6833 = vtanh.pop %v6832
    %v6834 = vmul.f32 %v6833, 0.5
    %v6835 = vadd.f32 %v6834, 0.5
    %vm6836 = vcmask 1024
    %6837 = vst.msk [vmem:[%s7] sm:$0x3] %vm6836, %v6835
    // Predicated region
    $region38: #{mclita_forward.1} parent=1 // pred_check
      _
    $region39: #{mclita_forward.1} parent=1 // pred_check_branch
      %6839 = sbr.rel (0) target = $region41
    $region40: #{mclita_forward.1} parent=1 // pred_region
      _
    $region41: #{mclita_forward.1} parent=1 // pred_fallthru
      _
    // Predicated region
    $region42: #{mclita_forward.1} parent=1 // pred_check
      _
    $region43: #{mclita_forward.1} parent=1 // pred_check_branch
      %6841 = sbr.rel (0) target = $region45
    $region44: #{mclita_forward.1} parent=1 // pred_region
      _
    $region45: #{mclita_forward.1} parent=1 // pred_fallthru
      _
    %6842 = vsyncpa [#allocation6], 1
    %6843 = vsyncpa [#allocation8], 1
  %6844 = vsyncmov [#allocation4]
  %s6845 = vpop.sfrf %6844
  %p6846 = scmp.eq.s32.totalorder %s6845, 0
  %p6847 = pneg %p6846
  %6849 = shalt.err (%p6847)

</llo_original>
